<compile_context>
chip_gen: v5e
topology: v5e:2x2
jax: 0.10.0
libtpu: 0.0.40
codegen_flags: <defaults>
</compile_context>

<pallas_src>
import math
import jax
import jax.numpy as jnp
from jax.experimental import pallas as pl
from jax.experimental.pallas import tpu as pltpu

T_EMB_DIM = 128
CH = 100            # logical hidden width (PyTorch module)
CH_PAD = 128        # lane-aligned padded hidden width used on-chip
OUT_DIM = 2         # gan_linear output width
OUT_PAD = 128       # lane-aligned padded output width used on-chip
JOINT = 1.0         # args.ac_w <= 0  ->  joint = 1.0
LRELU_SLOPE = 0.2


# ---------------------------------------------------------------------------
# glue: sinusoidal timestep embedding (same as ddgan's get_timestep_embedding)
# ---------------------------------------------------------------------------
def get_timestep_embedding(timesteps, embedding_dim):
    half_dim = embedding_dim // 2
    emb = math.log(10000.0) / (half_dim - 1)
    emb = jnp.exp(jnp.arange(half_dim, dtype=jnp.float32) * -emb)
    emb = timesteps.astype(jnp.float32)[:, None] * emb[None, :]
    emb = jnp.concatenate([jnp.sin(emb), jnp.cos(emb)], axis=1)
    # embedding_dim is even (128) so no padding branch needed
    return emb


# ---------------------------------------------------------------------------
# in-kernel elementwise helpers
# ---------------------------------------------------------------------------
def _leaky_relu(v):
    return jnp.where(v >= 0, v, LRELU_SLOPE * v)


def _sigmoid_stable(v):
    # one exp (EUP) + one approx reciprocal (EUP); no overflow.
    e = jnp.exp(-jnp.abs(v))
    r = pl.reciprocal(1.0 + e, approx=True)
    return jnp.where(v >= 0, r, e * r)


def _silu(v):
    return v * _sigmoid_stable(v)


# ---------------------------------------------------------------------------
# Pallas kernel: full MLP stack (t-embed MLP + 4-layer encode + gan_linear)
# ---------------------------------------------------------------------------
def d_gaussian_kernel(
    temb_ref, inp4_ref,
    tw1_ref, tb1_ref, tw2_ref, tb2_ref,
    ew1ac_ref, ew1b_ref, eb1_ref,
    ew2_ref, eb2_ref, ew3_ref, eb3_ref, ew4_ref, eb4_ref,
    gw_ref, gb_ref,
    out_ref,
):
    f32 = jnp.float32
    bf16 = jnp.bfloat16

    def dot(a, w_ref):
        # bf16 operands on the MXU, f32 accumulate.
        return jnp.dot(a.astype(bf16), w_ref[...], preferred_element_type=f32)

    # ---- TimestepEmbedding.main: Linear -> LeakyReLU -> Linear --------------
    temb0 = temb_ref[...]                                      # (TB, 128) bf16
    h = _leaky_relu(dot(temb0, tw1_ref) + tb1_ref[...])
    temb = dot(h, tw2_ref) + tb2_ref[...]
    # outer self.act(...) in D_guassian.forward
    temb = _leaky_relu(temb)

    # ---- encode layer 1: cat([input, temb, input_tp1*joint]) @ W1 + b1 ------
    # temb part on the MXU; the K=4 [input, input_tp1*joint] part as VPU
    # broadcast multiply-adds (a K=4 matmul would waste a full MXU pass).
    x = dot(temb, ew1b_ref) + eb1_ref[...]                     # (TB, 128) f32
    inp4 = inp4_ref[...]                                       # (TB, 4)   f32
    w14 = ew1ac_ref[...]                                       # (4, 128)  f32
    for k in range(4):
        x = x + inp4[:, k:k + 1] * w14[k:k + 1, :]
    x = _silu(x)

    # ---- encode layers 2..4 --------------------------------------------------
    x = _silu(dot(x, ew2_ref) + eb2_ref[...])
    x = _silu(dot(x, ew3_ref) + eb3_ref[...])
    x = _silu(dot(x, ew4_ref) + eb4_ref[...])

    # ---- gan_linear + sigmoid (lane-dense 128-wide output block) -------------
    s = dot(x, gw_ref) + gb_ref[...]
    out_ref[...] = _sigmoid_stable(s)


# ---------------------------------------------------------------------------
# parameter construction (deterministic, synthetic) with zero padding to 128
# ---------------------------------------------------------------------------
def init_params(key):
    """Weights stored (in, out) so kernel does x @ W + b (== torch x@W.T+b)."""
    def lin(k, fan_in, fan_out):
        kw, kb = jax.random.split(k)
        s = 1.0 / math.sqrt(fan_in)
        w = jax.random.uniform(kw, (fan_in, fan_out), jnp.float32, -s, s)
        b = jax.random.uniform(kb, (1, fan_out), jnp.float32, -s, s)
        return w, b

    keys = jax.random.split(key, 7)
    tw1, tb1 = lin(keys[0], T_EMB_DIM, T_EMB_DIM)
    tw2, tb2 = lin(keys[1], T_EMB_DIM, T_EMB_DIM)
    ew1, eb1 = lin(keys[2], 2 * 2 + T_EMB_DIM, CH)       # (132, 100)
    ew2, eb2 = lin(keys[3], CH, CH)
    ew3, eb3 = lin(keys[4], CH, CH)
    ew4, eb4 = lin(keys[5], CH, CH)
    gw, gb = lin(keys[6], CH, OUT_DIM)

    # split encode-layer-1 weight per cat([input(2), temb(128), input_tp1(2)])
    ew1a = ew1[0:2, :]
    ew1b = ew1[2:2 + T_EMB_DIM, :]
    ew1c = ew1[2 + T_EMB_DIM:, :]
    ew1ac = jnp.concatenate([ew1a, ew1c], axis=0)        # (4, 100)

    # zero-pad hidden width 100 -> 128 and output width 2 -> 128.  Exactly
    # preserves the math: padded channels get bias 0 -> SiLU(0)=0, padded gw
    # rows are 0, padded gw columns / gb lanes are 0 (sliced off in wrapper).
    dpad = CH_PAD - CH
    opad = OUT_PAD - OUT_DIM
    pad_out = lambda w: jnp.pad(w, ((0, 0), (0, dpad)))
    pad_in = lambda w: jnp.pad(w, ((0, dpad), (0, 0)))

    bf16 = jnp.bfloat16
    return dict(
        tw1=tw1.astype(bf16), tb1=tb1,
        tw2=tw2.astype(bf16), tb2=tb2,
        ew1ac=pad_out(ew1ac),                            # (4, 128) f32 (VPU path)
        ew1b=pad_out(ew1b).astype(bf16),
        eb1=pad_out(eb1),
        ew2=pad_in(pad_out(ew2)).astype(bf16), eb2=pad_out(eb2),
        ew3=pad_in(pad_out(ew3)).astype(bf16), eb3=pad_out(eb3),
        ew4=pad_in(pad_out(ew4)).astype(bf16), eb4=pad_out(eb4),
        gw=jnp.pad(gw, ((0, dpad), (0, opad))).astype(bf16),
        gb=jnp.pad(gb, ((0, 0), (0, opad))),
    )


# ---------------------------------------------------------------------------
# wrapper
# ---------------------------------------------------------------------------
def _pick_tile_b(B, tile_b):
    """Round/clamp the batch tile: multiple of 128, never larger than the
    padded batch, keep >=2 grid steps (v7x dual TC) when the batch allows
    256+ row tiles (v6e/v7x MXU streaming)."""
    tile_b = max(128, (tile_b // 128) * 128)
    full = pl.cdiv(B, 128) * 128
    tile_b = min(tile_b, full)
    if B >= 512:
        half = pl.cdiv(pl.cdiv(B, 2), 128) * 128
        tile_b = min(tile_b, max(256, half))
    return tile_b


def d_gaussian_forward(params, x, t, x_tp1, tile_b=512):
    B = x.shape[0]
    # bf16 halves the dominant HBM stream; kernel used bf16 for this dot anyway.
    temb_sin = get_timestep_embedding(t * 1000.0, T_EMB_DIM).astype(jnp.bfloat16)
    inp4 = jnp.concatenate([x, x_tp1 * JOINT], axis=1)         # (B, 4) f32

    tile_b = _pick_tile_b(B, tile_b)
    Bp = pl.cdiv(B, tile_b) * tile_b
    if Bp != B:
        pad = ((0, Bp - B), (0, 0))
        temb_sin = jnp.pad(temb_sin, pad)
        inp4 = jnp.pad(inp4, pad)

    grid = (Bp // tile_b,)

    def act_spec(feat):
        return pl.BlockSpec((tile_b, feat), lambda i: (i, 0))

    def w_spec(arr):
        # full-array block, constant index -> stays resident in VMEM.
        return pl.BlockSpec(arr.shape, lambda i: (0, 0))

    weights = [
        params["tw1"], params["tb1"], params["tw2"], params["tb2"],
        params["ew1ac"], params["ew1b"], params["eb1"],
        params["ew2"], params["eb2"], params["ew3"], params["eb3"],
        params["ew4"], params["eb4"], params["gw"], params["gb"],
    ]

    out = pl.pallas_call(
        d_gaussian_kernel,
        out_shape=jax.ShapeDtypeStruct((Bp, OUT_PAD), jnp.float32),
        grid=grid,
        in_specs=[act_spec(T_EMB_DIM), act_spec(4)] + [w_spec(w) for w in weights],
        out_specs=pl.BlockSpec((tile_b, OUT_PAD), lambda i: (i, 0)),
        compiler_params=pltpu.CompilerParams(
            dimension_semantics=("parallel",)),
    )(temb_sin, inp4, *weights)

    # matches torch `.squeeze()` (also drops the batch dim when B == 1)
    return jnp.squeeze(out[:B, :OUT_DIM])


# ---------------------------------------------------------------------------
# pure-JAX reference (same bf16-weight / f32-accumulate numerics)
# ---------------------------------------------------------------------------
def d_gaussian_reference(params, x, t, x_tp1):
    bf16 = jnp.bfloat16
    dot = lambda a, w: jnp.dot(a.astype(bf16), w, preferred_element_type=jnp.float32)
    lrelu = lambda v: jnp.where(v >= 0, v, LRELU_SLOPE * v)
    silu = lambda v: v * jax.nn.sigmoid(v)

    temb0 = get_timestep_embedding(t * 1000.0, T_EMB_DIM).astype(bf16)
    h = lrelu(dot(temb0, params["tw1"]) + params["tb1"])
    temb = lrelu(dot(h, params["tw2"]) + params["tb2"])

    inp4 = jnp.concatenate([x, x_tp1 * JOINT], axis=1)
    h = silu(jnp.dot(inp4, params["ew1ac"], preferred_element_type=jnp.float32)
             + dot(temb, params["ew1b"]) + params["eb1"])
    h = silu(dot(h, params["ew2"]) + params["eb2"])
    h = silu(dot(h, params["ew3"]) + params["eb3"])
    h = silu(dot(h, params["ew4"]) + params["eb4"])
    s = dot(h, params["gw"]) + params["gb"]
    return jnp.squeeze(jax.nn.sigmoid(s)[:, :OUT_DIM])


if __name__ == "__main__":
    key = jax.random.PRNGKey(0)
    kp, kx, kt, kx1 = jax.random.split(key, 4)

    B = 1000  # pads to 1024 -> 2-step batch grid with 512-row tiles
    params = init_params(kp)
    x = jax.random.normal(kx, (B, 2), jnp.float32)        # current sample (2-D MoG)
    x_tp1 = jax.random.normal(kx1, (B, 2), jnp.float32)   # next-step sample
    t = jax.random.uniform(kt, (B,), jnp.float32)         # continuous time in [0,1)

    out = d_gaussian_forward(params, x, t, x_tp1)
    out = jax.block_until_ready(out)

    ref = d_gaussian_reference(params, x, t, x_tp1)
    assert out.shape == (B, OUT_DIM), out.shape
    # tolerance covers bf16 matmuls + approx-reciprocal sigmoid (outputs in [0,1])
    assert bool(jnp.allclose(out, ref, atol=3e-3, rtol=3e-3)), "mismatch vs JAX reference"

    print("KERNEL_OK")
</pallas_src>

<mosaic_0001>
module attributes {stable_mosaic.version = 11 : i64} {
  func.func @d_gaussian_kernel(%arg0: i32, %arg1: memref<512x128xbf16, #tpu.memory_space<vmem>>, %arg2: memref<512x4xf32, #tpu.memory_space<vmem>>, %arg3: memref<128x128xbf16, #tpu.memory_space<vmem>>, %arg4: memref<1x128xf32, #tpu.memory_space<vmem>>, %arg5: memref<128x128xbf16, #tpu.memory_space<vmem>>, %arg6: memref<1x128xf32, #tpu.memory_space<vmem>>, %arg7: memref<4x128xf32, #tpu.memory_space<vmem>>, %arg8: memref<128x128xbf16, #tpu.memory_space<vmem>>, %arg9: memref<1x128xf32, #tpu.memory_space<vmem>>, %arg10: memref<128x128xbf16, #tpu.memory_space<vmem>>, %arg11: memref<1x128xf32, #tpu.memory_space<vmem>>, %arg12: memref<128x128xbf16, #tpu.memory_space<vmem>>, %arg13: memref<1x128xf32, #tpu.memory_space<vmem>>, %arg14: memref<128x128xbf16, #tpu.memory_space<vmem>>, %arg15: memref<1x128xf32, #tpu.memory_space<vmem>>, %arg16: memref<128x128xbf16, #tpu.memory_space<vmem>>, %arg17: memref<1x128xf32, #tpu.memory_space<vmem>>, %arg18: memref<512x128xf32, #tpu.memory_space<vmem>>) attributes {dimension_semantics = [#tpu.dimension_semantics<parallel>], iteration_bounds = array<i64: 2>, scalar_prefetch = 0 : i64, scratch_operands = 0 : i64, tpu.core_type = #tpu.core_type<tc>, window_params = [{transform_indices = @transform_0, window_bounds = array<i64: 512, 128>}, {transform_indices = @transform_1, window_bounds = array<i64: 512, 4>}, {pipeline_mode = #tpu.pipeline_mode<synchronous>, transform_indices = @transform_2, window_bounds = array<i64: 128, 128>}, {pipeline_mode = #tpu.pipeline_mode<synchronous>, transform_indices = @transform_3, window_bounds = array<i64: 1, 128>}, {pipeline_mode = #tpu.pipeline_mode<synchronous>, transform_indices = @transform_4, window_bounds = array<i64: 128, 128>}, {pipeline_mode = #tpu.pipeline_mode<synchronous>, transform_indices = @transform_5, window_bounds = array<i64: 1, 128>}, {pipeline_mode = #tpu.pipeline_mode<synchronous>, transform_indices = @transform_6, window_bounds = array<i64: 4, 128>}, {pipeline_mode = #tpu.pipeline_mode<synchronous>, transform_indices = @transform_7, window_bounds = array<i64: 128, 128>}, {pipeline_mode = #tpu.pipeline_mode<synchronous>, transform_indices = @transform_8, window_bounds = array<i64: 1, 128>}, {pipeline_mode = #tpu.pipeline_mode<synchronous>, transform_indices = @transform_9, window_bounds = array<i64: 128, 128>}, {pipeline_mode = #tpu.pipeline_mode<synchronous>, transform_indices = @transform_10, window_bounds = array<i64: 1, 128>}, {pipeline_mode = #tpu.pipeline_mode<synchronous>, transform_indices = @transform_11, window_bounds = array<i64: 128, 128>}, {pipeline_mode = #tpu.pipeline_mode<synchronous>, transform_indices = @transform_12, window_bounds = array<i64: 1, 128>}, {pipeline_mode = #tpu.pipeline_mode<synchronous>, transform_indices = @transform_13, window_bounds = array<i64: 128, 128>}, {pipeline_mode = #tpu.pipeline_mode<synchronous>, transform_indices = @transform_14, window_bounds = array<i64: 1, 128>}, {pipeline_mode = #tpu.pipeline_mode<synchronous>, transform_indices = @transform_15, window_bounds = array<i64: 128, 128>}, {pipeline_mode = #tpu.pipeline_mode<synchronous>, transform_indices = @transform_16, window_bounds = array<i64: 1, 128>}, {transform_indices = @transform_17, window_bounds = array<i64: 512, 128>}]} {
    %c0 = arith.constant 0 : index
    %c0_0 = arith.constant 0 : index
    %0 = vector.load %arg1[%c0, %c0_0] : memref<512x128xbf16, #tpu.memory_space<vmem>>, vector<512x128xbf16>
    %c0_1 = arith.constant 0 : index
    %c0_2 = arith.constant 0 : index
    %1 = vector.load %arg3[%c0_1, %c0_2] : memref<128x128xbf16, #tpu.memory_space<vmem>>, vector<128x128xbf16>
    %cst = arith.constant dense<0.000000e+00> : vector<512x128xf32>
    %2 = tpu.matmul %0, %1, %cst {dimension_numbers = #tpu.dot_dimension_numbers<[1], [0], [0], [1], [0, 0, 1, 1], [], []>} : vector<512x128xbf16>, vector<128x128xbf16>, vector<512x128xf32> -> vector<512x128xf32>
    %c0_3 = arith.constant 0 : index
    %c0_4 = arith.constant 0 : index
    %3 = vector.load %arg4[%c0_3, %c0_4] : memref<1x128xf32, #tpu.memory_space<vmem>>, vector<1x128xf32>
    %4 = vector.broadcast %3 : vector<1x128xf32> to vector<512x128xf32>
    %5 = arith.addf %2, %4 : vector<512x128xf32>
    %cst_5 = arith.constant 0.000000e+00 : f32
    %6 = vector.broadcast %cst_5 : f32 to vector<512x128xf32>
    %7 = arith.cmpf oge, %5, %6 : vector<512x128xf32>
    %cst_6 = arith.constant 2.000000e-01 : f32
    %8 = vector.broadcast %cst_6 : f32 to vector<512x128xf32>
    %9 = arith.mulf %8, %5 : vector<512x128xf32>
    %10 = arith.select %7, %5, %9 : vector<512x128xi1>, vector<512x128xf32>
    %11 = arith.truncf %10 : vector<512x128xf32> to vector<512x128xbf16>
    %c0_7 = arith.constant 0 : index
    %c0_8 = arith.constant 0 : index
    %12 = vector.load %arg5[%c0_7, %c0_8] : memref<128x128xbf16, #tpu.memory_space<vmem>>, vector<128x128xbf16>
    %cst_9 = arith.constant dense<0.000000e+00> : vector<512x128xf32>
    %13 = tpu.matmul %11, %12, %cst_9 {dimension_numbers = #tpu.dot_dimension_numbers<[1], [0], [0], [1], [0, 0, 1, 1], [], []>} : vector<512x128xbf16>, vector<128x128xbf16>, vector<512x128xf32> -> vector<512x128xf32>
    %c0_10 = arith.constant 0 : index
    %c0_11 = arith.constant 0 : index
    %14 = vector.load %arg6[%c0_10, %c0_11] : memref<1x128xf32, #tpu.memory_space<vmem>>, vector<1x128xf32>
    %15 = vector.broadcast %14 : vector<1x128xf32> to vector<512x128xf32>
    %16 = arith.addf %13, %15 : vector<512x128xf32>
    %cst_12 = arith.constant 0.000000e+00 : f32
    %17 = vector.broadcast %cst_12 : f32 to vector<512x128xf32>
    %18 = arith.cmpf oge, %16, %17 : vector<512x128xf32>
    %cst_13 = arith.constant 2.000000e-01 : f32
    %19 = vector.broadcast %cst_13 : f32 to vector<512x128xf32>
    %20 = arith.mulf %19, %16 : vector<512x128xf32>
    %21 = arith.select %18, %16, %20 : vector<512x128xi1>, vector<512x128xf32>
    %22 = arith.truncf %21 : vector<512x128xf32> to vector<512x128xbf16>
    %c0_14 = arith.constant 0 : index
    %c0_15 = arith.constant 0 : index
    %23 = vector.load %arg8[%c0_14, %c0_15] : memref<128x128xbf16, #tpu.memory_space<vmem>>, vector<128x128xbf16>
    %cst_16 = arith.constant dense<0.000000e+00> : vector<512x128xf32>
    %24 = tpu.matmul %22, %23, %cst_16 {dimension_numbers = #tpu.dot_dimension_numbers<[1], [0], [0], [1], [0, 0, 1, 1], [], []>} : vector<512x128xbf16>, vector<128x128xbf16>, vector<512x128xf32> -> vector<512x128xf32>
    %c0_17 = arith.constant 0 : index
    %c0_18 = arith.constant 0 : index
    %25 = vector.load %arg9[%c0_17, %c0_18] : memref<1x128xf32, #tpu.memory_space<vmem>>, vector<1x128xf32>
    %26 = vector.broadcast %25 : vector<1x128xf32> to vector<512x128xf32>
    %27 = arith.addf %24, %26 : vector<512x128xf32>
    %c0_19 = arith.constant 0 : index
    %c0_20 = arith.constant 0 : index
    %28 = vector.load %arg2[%c0_19, %c0_20] : memref<512x4xf32, #tpu.memory_space<vmem>>, vector<512x4xf32>
    %c0_21 = arith.constant 0 : index
    %c0_22 = arith.constant 0 : index
    %29 = vector.load %arg7[%c0_21, %c0_22] : memref<4x128xf32, #tpu.memory_space<vmem>>, vector<4x128xf32>
    %30 = vector.extract_strided_slice %28 {offsets = [0, 0], sizes = [512, 1], strides = [1, 1]} : vector<512x4xf32> to vector<512x1xf32>
    %31 = vector.extract_strided_slice %29 {offsets = [0, 0], sizes = [1, 128], strides = [1, 1]} : vector<4x128xf32> to vector<1x128xf32>
    %32 = vector.broadcast %30 : vector<512x1xf32> to vector<512x128xf32>
    %33 = vector.broadcast %31 : vector<1x128xf32> to vector<512x128xf32>
    %34 = arith.mulf %32, %33 : vector<512x128xf32>
    %35 = arith.addf %27, %34 : vector<512x128xf32>
    %36 = vector.extract_strided_slice %28 {offsets = [0, 1], sizes = [512, 1], strides = [1, 1]} : vector<512x4xf32> to vector<512x1xf32>
    %37 = vector.extract_strided_slice %29 {offsets = [1, 0], sizes = [1, 128], strides = [1, 1]} : vector<4x128xf32> to vector<1x128xf32>
    %38 = vector.broadcast %36 : vector<512x1xf32> to vector<512x128xf32>
    %39 = vector.broadcast %37 : vector<1x128xf32> to vector<512x128xf32>
    %40 = arith.mulf %38, %39 : vector<512x128xf32>
    %41 = arith.addf %35, %40 : vector<512x128xf32>
    %42 = vector.extract_strided_slice %28 {offsets = [0, 2], sizes = [512, 1], strides = [1, 1]} : vector<512x4xf32> to vector<512x1xf32>
    %43 = vector.extract_strided_slice %29 {offsets = [2, 0], sizes = [1, 128], strides = [1, 1]} : vector<4x128xf32> to vector<1x128xf32>
    %44 = vector.broadcast %42 : vector<512x1xf32> to vector<512x128xf32>
    %45 = vector.broadcast %43 : vector<1x128xf32> to vector<512x128xf32>
    %46 = arith.mulf %44, %45 : vector<512x128xf32>
    %47 = arith.addf %41, %46 : vector<512x128xf32>
    %48 = vector.extract_strided_slice %28 {offsets = [0, 3], sizes = [512, 1], strides = [1, 1]} : vector<512x4xf32> to vector<512x1xf32>
    %49 = vector.extract_strided_slice %29 {offsets = [3, 0], sizes = [1, 128], strides = [1, 1]} : vector<4x128xf32> to vector<1x128xf32>
    %50 = vector.broadcast %48 : vector<512x1xf32> to vector<512x128xf32>
    %51 = vector.broadcast %49 : vector<1x128xf32> to vector<512x128xf32>
    %52 = arith.mulf %50, %51 : vector<512x128xf32>
    %53 = arith.addf %47, %52 : vector<512x128xf32>
    %54 = math.absf %53 : vector<512x128xf32>
    %cst_23 = arith.constant 0.000000e+00 : f32
    %55 = vector.broadcast %cst_23 : f32 to vector<512x128xf32>
    %56 = arith.subf %55, %54 : vector<512x128xf32>
    %57 = math.exp %56 : vector<512x128xf32>
    %cst_24 = arith.constant 1.000000e+00 : f32
    %58 = vector.broadcast %cst_24 : f32 to vector<512x128xf32>
    %59 = arith.addf %58, %57 : vector<512x128xf32>
    %60 = tpu.reciprocal %59 {approx = true} : vector<512x128xf32> -> vector<512x128xf32>
    %cst_25 = arith.constant 0.000000e+00 : f32
    %61 = vector.broadcast %cst_25 : f32 to vector<512x128xf32>
    %62 = arith.cmpf oge, %53, %61 : vector<512x128xf32>
    %63 = arith.mulf %57, %60 : vector<512x128xf32>
    %64 = arith.select %62, %60, %63 : vector<512x128xi1>, vector<512x128xf32>
    %65 = arith.mulf %53, %64 : vector<512x128xf32>
    %66 = arith.truncf %65 : vector<512x128xf32> to vector<512x128xbf16>
    %c0_26 = arith.constant 0 : index
    %c0_27 = arith.constant 0 : index
    %67 = vector.load %arg10[%c0_26, %c0_27] : memref<128x128xbf16, #tpu.memory_space<vmem>>, vector<128x128xbf16>
    %cst_28 = arith.constant dense<0.000000e+00> : vector<512x128xf32>
    %68 = tpu.matmul %66, %67, %cst_28 {dimension_numbers = #tpu.dot_dimension_numbers<[1], [0], [0], [1], [0, 0, 1, 1], [], []>} : vector<512x128xbf16>, vector<128x128xbf16>, vector<512x128xf32> -> vector<512x128xf32>
    %c0_29 = arith.constant 0 : index
    %c0_30 = arith.constant 0 : index
    %69 = vector.load %arg11[%c0_29, %c0_30] : memref<1x128xf32, #tpu.memory_space<vmem>>, vector<1x128xf32>
    %70 = vector.broadcast %69 : vector<1x128xf32> to vector<512x128xf32>
    %71 = arith.addf %68, %70 : vector<512x128xf32>
    %72 = math.absf %71 : vector<512x128xf32>
    %cst_31 = arith.constant 0.000000e+00 : f32
    %73 = vector.broadcast %cst_31 : f32 to vector<512x128xf32>
    %74 = arith.subf %73, %72 : vector<512x128xf32>
    %75 = math.exp %74 : vector<512x128xf32>
    %cst_32 = arith.constant 1.000000e+00 : f32
    %76 = vector.broadcast %cst_32 : f32 to vector<512x128xf32>
    %77 = arith.addf %76, %75 : vector<512x128xf32>
    %78 = tpu.reciprocal %77 {approx = true} : vector<512x128xf32> -> vector<512x128xf32>
    %cst_33 = arith.constant 0.000000e+00 : f32
    %79 = vector.broadcast %cst_33 : f32 to vector<512x128xf32>
    %80 = arith.cmpf oge, %71, %79 : vector<512x128xf32>
    %81 = arith.mulf %75, %78 : vector<512x128xf32>
    %82 = arith.select %80, %78, %81 : vector<512x128xi1>, vector<512x128xf32>
    %83 = arith.mulf %71, %82 : vector<512x128xf32>
    %84 = arith.truncf %83 : vector<512x128xf32> to vector<512x128xbf16>
    %c0_34 = arith.constant 0 : index
    %c0_35 = arith.constant 0 : index
    %85 = vector.load %arg12[%c0_34, %c0_35] : memref<128x128xbf16, #tpu.memory_space<vmem>>, vector<128x128xbf16>
    %cst_36 = arith.constant dense<0.000000e+00> : vector<512x128xf32>
    %86 = tpu.matmul %84, %85, %cst_36 {dimension_numbers = #tpu.dot_dimension_numbers<[1], [0], [0], [1], [0, 0, 1, 1], [], []>} : vector<512x128xbf16>, vector<128x128xbf16>, vector<512x128xf32> -> vector<512x128xf32>
    %c0_37 = arith.constant 0 : index
    %c0_38 = arith.constant 0 : index
    %87 = vector.load %arg13[%c0_37, %c0_38] : memref<1x128xf32, #tpu.memory_space<vmem>>, vector<1x128xf32>
    %88 = vector.broadcast %87 : vector<1x128xf32> to vector<512x128xf32>
    %89 = arith.addf %86, %88 : vector<512x128xf32>
    %90 = math.absf %89 : vector<512x128xf32>
    %cst_39 = arith.constant 0.000000e+00 : f32
    %91 = vector.broadcast %cst_39 : f32 to vector<512x128xf32>
    %92 = arith.subf %91, %90 : vector<512x128xf32>
    %93 = math.exp %92 : vector<512x128xf32>
    %cst_40 = arith.constant 1.000000e+00 : f32
    %94 = vector.broadcast %cst_40 : f32 to vector<512x128xf32>
    %95 = arith.addf %94, %93 : vector<512x128xf32>
    %96 = tpu.reciprocal %95 {approx = true} : vector<512x128xf32> -> vector<512x128xf32>
    %cst_41 = arith.constant 0.000000e+00 : f32
    %97 = vector.broadcast %cst_41 : f32 to vector<512x128xf32>
    %98 = arith.cmpf oge, %89, %97 : vector<512x128xf32>
    %99 = arith.mulf %93, %96 : vector<512x128xf32>
    %100 = arith.select %98, %96, %99 : vector<512x128xi1>, vector<512x128xf32>
    %101 = arith.mulf %89, %100 : vector<512x128xf32>
    %102 = arith.truncf %101 : vector<512x128xf32> to vector<512x128xbf16>
    %c0_42 = arith.constant 0 : index
    %c0_43 = arith.constant 0 : index
    %103 = vector.load %arg14[%c0_42, %c0_43] : memref<128x128xbf16, #tpu.memory_space<vmem>>, vector<128x128xbf16>
    %cst_44 = arith.constant dense<0.000000e+00> : vector<512x128xf32>
    %104 = tpu.matmul %102, %103, %cst_44 {dimension_numbers = #tpu.dot_dimension_numbers<[1], [0], [0], [1], [0, 0, 1, 1], [], []>} : vector<512x128xbf16>, vector<128x128xbf16>, vector<512x128xf32> -> vector<512x128xf32>
    %c0_45 = arith.constant 0 : index
    %c0_46 = arith.constant 0 : index
    %105 = vector.load %arg15[%c0_45, %c0_46] : memref<1x128xf32, #tpu.memory_space<vmem>>, vector<1x128xf32>
    %106 = vector.broadcast %105 : vector<1x128xf32> to vector<512x128xf32>
    %107 = arith.addf %104, %106 : vector<512x128xf32>
    %108 = math.absf %107 : vector<512x128xf32>
    %cst_47 = arith.constant 0.000000e+00 : f32
    %109 = vector.broadcast %cst_47 : f32 to vector<512x128xf32>
    %110 = arith.subf %109, %108 : vector<512x128xf32>
    %111 = math.exp %110 : vector<512x128xf32>
    %cst_48 = arith.constant 1.000000e+00 : f32
    %112 = vector.broadcast %cst_48 : f32 to vector<512x128xf32>
    %113 = arith.addf %112, %111 : vector<512x128xf32>
    %114 = tpu.reciprocal %113 {approx = true} : vector<512x128xf32> -> vector<512x128xf32>
    %cst_49 = arith.constant 0.000000e+00 : f32
    %115 = vector.broadcast %cst_49 : f32 to vector<512x128xf32>
    %116 = arith.cmpf oge, %107, %115 : vector<512x128xf32>
    %117 = arith.mulf %111, %114 : vector<512x128xf32>
    %118 = arith.select %116, %114, %117 : vector<512x128xi1>, vector<512x128xf32>
    %119 = arith.mulf %107, %118 : vector<512x128xf32>
    %120 = arith.truncf %119 : vector<512x128xf32> to vector<512x128xbf16>
    %c0_50 = arith.constant 0 : index
    %c0_51 = arith.constant 0 : index
    %121 = vector.load %arg16[%c0_50, %c0_51] : memref<128x128xbf16, #tpu.memory_space<vmem>>, vector<128x128xbf16>
    %cst_52 = arith.constant dense<0.000000e+00> : vector<512x128xf32>
    %122 = tpu.matmul %120, %121, %cst_52 {dimension_numbers = #tpu.dot_dimension_numbers<[1], [0], [0], [1], [0, 0, 1, 1], [], []>} : vector<512x128xbf16>, vector<128x128xbf16>, vector<512x128xf32> -> vector<512x128xf32>
    %c0_53 = arith.constant 0 : index
    %c0_54 = arith.constant 0 : index
    %123 = vector.load %arg17[%c0_53, %c0_54] : memref<1x128xf32, #tpu.memory_space<vmem>>, vector<1x128xf32>
    %124 = vector.broadcast %123 : vector<1x128xf32> to vector<512x128xf32>
    %125 = arith.addf %122, %124 : vector<512x128xf32>
    %126 = math.absf %125 : vector<512x128xf32>
    %cst_55 = arith.constant 0.000000e+00 : f32
    %127 = vector.broadcast %cst_55 : f32 to vector<512x128xf32>
    %128 = arith.subf %127, %126 : vector<512x128xf32>
    %129 = math.exp %128 : vector<512x128xf32>
    %cst_56 = arith.constant 1.000000e+00 : f32
    %130 = vector.broadcast %cst_56 : f32 to vector<512x128xf32>
    %131 = arith.addf %130, %129 : vector<512x128xf32>
    %132 = tpu.reciprocal %131 {approx = true} : vector<512x128xf32> -> vector<512x128xf32>
    %cst_57 = arith.constant 0.000000e+00 : f32
    %133 = vector.broadcast %cst_57 : f32 to vector<512x128xf32>
    %134 = arith.cmpf oge, %125, %133 : vector<512x128xf32>
    %135 = arith.mulf %129, %132 : vector<512x128xf32>
    %136 = arith.select %134, %132, %135 : vector<512x128xi1>, vector<512x128xf32>
    %c0_58 = arith.constant 0 : index
    %c0_59 = arith.constant 0 : index
    %137 = vector.load %arg18[%c0_58, %c0_59] : memref<512x128xf32, #tpu.memory_space<vmem>>, vector<512x128xf32>
    tpu.vector_store %arg18[%c0_58, %c0_59], %136 {strides = array<i32>} : memref<512x128xf32, #tpu.memory_space<vmem>>, vector<512x128xf32>,
    return
  }
  func.func @transform_0(%arg0: i32) -> (i32, i32) {
    %c0_i32 = arith.constant 0 : i32
    %c0_i32_0 = arith.constant 0 : i32
    return %arg0, %c0_i32 : i32, i32
  }
  func.func @transform_1(%arg0: i32) -> (i32, i32) {
    %c0_i32 = arith.constant 0 : i32
    %c0_i32_0 = arith.constant 0 : i32
    return %arg0, %c0_i32 : i32, i32
  }
  func.func @transform_2(%arg0: i32) -> (i32, i32) {
    %c0_i32 = arith.constant 0 : i32
    %c0_i32_0 = arith.constant 0 : i32
    %c0_i32_1 = arith.constant 0 : i32
    return %c0_i32, %c0_i32_0 : i32, i32
  }
  func.func @transform_3(%arg0: i32) -> (i32, i32) {
    %c0_i32 = arith.constant 0 : i32
    %c0_i32_0 = arith.constant 0 : i32
    %c0_i32_1 = arith.constant 0 : i32
    return %c0_i32, %c0_i32_0 : i32, i32
  }
  func.func @transform_4(%arg0: i32) -> (i32, i32) {
    %c0_i32 = arith.constant 0 : i32
    %c0_i32_0 = arith.constant 0 : i32
    %c0_i32_1 = arith.constant 0 : i32
    return %c0_i32, %c0_i32_0 : i32, i32
  }
  func.func @transform_5(%arg0: i32) -> (i32, i32) {
    %c0_i32 = arith.constant 0 : i32
    %c0_i32_0 = arith.constant 0 : i32
    %c0_i32_1 = arith.constant 0 : i32
    return %c0_i32, %c0_i32_0 : i32, i32
  }
  func.func @transform_6(%arg0: i32) -> (i32, i32) {
    %c0_i32 = arith.constant 0 : i32
    %c0_i32_0 = arith.constant 0 : i32
    %c0_i32_1 = arith.constant 0 : i32
    return %c0_i32, %c0_i32_0 : i32, i32
  }
  func.func @transform_7(%arg0: i32) -> (i32, i32) {
    %c0_i32 = arith.constant 0 : i32
    %c0_i32_0 = arith.constant 0 : i32
    %c0_i32_1 = arith.constant 0 : i32
    return %c0_i32, %c0_i32_0 : i32, i32
  }
  func.func @transform_8(%arg0: i32) -> (i32, i32) {
    %c0_i32 = arith.constant 0 : i32
    %c0_i32_0 = arith.constant 0 : i32
    %c0_i32_1 = arith.constant 0 : i32
    return %c0_i32, %c0_i32_0 : i32, i32
  }
  func.func @transform_9(%arg0: i32) -> (i32, i32) {
    %c0_i32 = arith.constant 0 : i32
    %c0_i32_0 = arith.constant 0 : i32
    %c0_i32_1 = arith.constant 0 : i32
    return %c0_i32, %c0_i32_0 : i32, i32
  }
  func.func @transform_10(%arg0: i32) -> (i32, i32) {
    %c0_i32 = arith.constant 0 : i32
    %c0_i32_0 = arith.constant 0 : i32
    %c0_i32_1 = arith.constant 0 : i32
    return %c0_i32, %c0_i32_0 : i32, i32
  }
  func.func @transform_11(%arg0: i32) -> (i32, i32) {
    %c0_i32 = arith.constant 0 : i32
    %c0_i32_0 = arith.constant 0 : i32
    %c0_i32_1 = arith.constant 0 : i32
    return %c0_i32, %c0_i32_0 : i32, i32
  }
  func.func @transform_12(%arg0: i32) -> (i32, i32) {
    %c0_i32 = arith.constant 0 : i32
    %c0_i32_0 = arith.constant 0 : i32
    %c0_i32_1 = arith.constant 0 : i32
    return %c0_i32, %c0_i32_0 : i32, i32
  }
  func.func @transform_13(%arg0: i32) -> (i32, i32) {
    %c0_i32 = arith.constant 0 : i32
    %c0_i32_0 = arith.constant 0 : i32
    %c0_i32_1 = arith.constant 0 : i32
    return %c0_i32, %c0_i32_0 : i32, i32
  }
  func.func @transform_14(%arg0: i32) -> (i32, i32) {
    %c0_i32 = arith.constant 0 : i32
    %c0_i32_0 = arith.constant 0 : i32
    %c0_i32_1 = arith.constant 0 : i32
    return %c0_i32, %c0_i32_0 : i32, i32
  }
  func.func @transform_15(%arg0: i32) -> (i32, i32) {
    %c0_i32 = arith.constant 0 : i32
    %c0_i32_0 = arith.constant 0 : i32
    %c0_i32_1 = arith.constant 0 : i32
    return %c0_i32, %c0_i32_0 : i32, i32
  }
  func.func @transform_16(%arg0: i32) -> (i32, i32) {
    %c0_i32 = arith.constant 0 : i32
    %c0_i32_0 = arith.constant 0 : i32
    %c0_i32_1 = arith.constant 0 : i32
    return %c0_i32, %c0_i32_0 : i32, i32
  }
  func.func @transform_17(%arg0: i32) -> (i32, i32) {
    %c0_i32 = arith.constant 0 : i32
    %c0_i32_0 = arith.constant 0 : i32
    return %arg0, %c0_i32 : i32, i32
  }
}

</mosaic_0001>

<llo_original>
// kernel: tpu_custom_call.1
$region0: #{tpu_custom_call.1}
  #allocation0 [shape = 'u32[]', space=smem, size = 0x4, offset = 0x4, fixed_abs, tag = 'smem constant byte address 0x4 - core index']
  #allocation1 [shape = 'u32[72,128]{1,0:T(1,128)}', space=vmem, size = 0x9000, scoped, tag = 'internal scratch']
  %s0 = inlined_call_operand.vmem [shape: bf16[1024,128], index: 0, kind: input, shape index: {}]
  %s1 = inlined_call_operand.vmem [shape: f32[1024,4], index: 1, kind: input, shape index: {}]
  %s2 = inlined_call_operand.vmem [shape: bf16[128,128], index: 2, kind: input, shape index: {}]
  %s3 = inlined_call_operand.vmem [shape: f32[1,128], index: 3, kind: input, shape index: {}]
  %s4 = inlined_call_operand.vmem [shape: bf16[128,128], index: 4, kind: input, shape index: {}]
  %s5 = inlined_call_operand.vmem [shape: f32[1,128], index: 5, kind: input, shape index: {}]
  %s6 = inlined_call_operand.vmem [shape: f32[4,128], index: 6, kind: input, shape index: {}]
  %s7 = inlined_call_operand.vmem [shape: bf16[128,128], index: 7, kind: input, shape index: {}]
  %s8 = inlined_call_operand.vmem [shape: f32[1,128], index: 8, kind: input, shape index: {}]
  %s9 = inlined_call_operand.vmem [shape: bf16[128,128], index: 9, kind: input, shape index: {}]
  %s10 = inlined_call_operand.vmem [shape: f32[1,128], index: 10, kind: input, shape index: {}]
  %s11 = inlined_call_operand.vmem [shape: bf16[128,128], index: 11, kind: input, shape index: {}]
  %s12 = inlined_call_operand.vmem [shape: f32[1,128], index: 12, kind: input, shape index: {}]
  %s13 = inlined_call_operand.vmem [shape: bf16[128,128], index: 13, kind: input, shape index: {}]
  %s14 = inlined_call_operand.vmem [shape: f32[1,128], index: 14, kind: input, shape index: {}]
  %s15 = inlined_call_operand.vmem [shape: bf16[128,128], index: 15, kind: input, shape index: {}]
  %s16 = inlined_call_operand.vmem [shape: f32[1,128], index: 16, kind: input, shape index: {}]
  %s17 = inlined_call_operand.hbm [shape: f32[1024,128], index: 17, kind: output, shape index: {}]
  %s18 = sld [smem:[#allocation0]]
  $region101: #{tpu_custom_call.1} parent=0
    _
  %s20 = ssub.s32 1, %s18
  %s21 = scalar_select 0, %s20, %s18
  $region1: #{tpu_custom_call.1} parent=0
    #allocation2 [shape = 'u8[524288]{0}', space=vmem, size = 0x80000, scoped, tag = 'output window, operand 0']
    #allocation3 [shape = 's32[2]{0}', space=sflag, size = 0x8, scoped, tag = 'scoped memory for tpu_custom_call.1']
    %22 = vsyncpa [#allocation3], 0
    %s23 = scalar_lea.sflag [#allocation3], 1
    %24 = vsyncpa %s23, 0
    loop: start=0, step=1, limit=4
    $region2: #{tpu_custom_call.1} parent=1 // loop_pre_header
      _
    $region3: #{tpu_custom_call.1} parent=1 // loop_header
      %s26 = sphi 0, %s30
      %p27 = scmp.ge.s32.totalorder %s26, 4
      %s36 = sphi 0, %s38
      %s39 = sphi 0, %s36
      %s40 = sphi 0, %s39
      %s56 = sphi 0, %s40
      %s62 = sphi 0, %s64
      %s65 = sphi 0, %s62
      %s66 = sphi 0, %s65
      %s82 = sphi 0, %s66
      %s86 = sphi 0, %s86
      %s88 = sphi 0, %s86
      %s89 = sphi 0, %s88
      %s103 = sphi 0, %s89
      %s107 = sphi 0, %s107
      %s109 = sphi 0, %s107
      %s110 = sphi 0, %s109
      %s124 = sphi 0, %s110
      %s128 = sphi 0, %s128
      %s130 = sphi 0, %s128
      %s131 = sphi 0, %s130
      %s145 = sphi 0, %s131
      %s149 = sphi 0, %s149
      %s151 = sphi 0, %s149
      %s152 = sphi 0, %s151
      %s166 = sphi 0, %s152
      %s170 = sphi 0, %s170
      %s172 = sphi 0, %s170
      %s173 = sphi 0, %s172
      %s187 = sphi 0, %s173
      %s191 = sphi 0, %s191
      %s193 = sphi 0, %s191
      %s194 = sphi 0, %s193
      %s208 = sphi 0, %s194
      %s212 = sphi 0, %s212
      %s214 = sphi 0, %s212
      %s215 = sphi 0, %s214
      %s229 = sphi 0, %s215
      %s233 = sphi 0, %s233
      %s235 = sphi 0, %s233
      %s236 = sphi 0, %s235
      %s250 = sphi 0, %s236
      %s254 = sphi 0, %s254
      %s256 = sphi 0, %s254
      %s257 = sphi 0, %s256
      %s271 = sphi 0, %s257
      %s275 = sphi 0, %s275
      %s277 = sphi 0, %s275
      %s278 = sphi 0, %s277
      %s292 = sphi 0, %s278
      %s296 = sphi 0, %s296
      %s298 = sphi 0, %s296
      %s299 = sphi 0, %s298
      %s313 = sphi 0, %s299
      %s317 = sphi 0, %s317
      %s319 = sphi 0, %s317
      %s320 = sphi 0, %s319
      %s334 = sphi 0, %s320
      %s338 = sphi 0, %s338
      %s340 = sphi 0, %s338
      %s341 = sphi 0, %s340
      %s355 = sphi 0, %s341
      %s359 = sphi 0, %s359
      %s361 = sphi 0, %s359
      %s362 = sphi 0, %s361
      %s376 = sphi 0, %s362
      %s380 = sphi 0, %s380
      %s382 = sphi 0, %s380
      %s383 = sphi 0, %s382
      %s397 = sphi 0, %s383
      %s403 = sphi 0, %s405
      %s406 = sphi 0, %s403
      %s407 = sphi 0, %s406
      %s423 = sphi 0, %s407
    $region4: #{tpu_custom_call.1} parent=1 // loop_header_branch
      %29 = sbr.rel (%p27) target = $region8
    $region5: #{tpu_custom_call.1} parent=1 // loop_body
      %s31 = ssub.s32 %s26, 1
      %s32 = ssub.s32 %s26, 2
      %s33 = sadd.s32 %s26, 1
      %s34 = ssub.s32 %s26, %s33
      %p35 = scmp.eq.s32.totalorder %s34, 0
      %s37 = sadd.s32 %s36, 1
      %s38 = scalar_select %p35, %s36, %s37
      %p41 = pneg %p35
      %p42 = scmp.eq.s32.totalorder %s26, 1
      %p43 = por %p41, %p42
      %p44 = scmp.ne.s32.totalorder %s36, %s39
      %p45 = scmp.eq.s32.totalorder %s26, 0
      %p46 = por %p44, %p45
      %p47 = scmp.ne.s32.totalorder %s36, %s39
      %p48 = scmp.eq.s32.totalorder %s31, 1
      %p49 = por %p47, %p48
      %p50 = scmp.ne.s32.totalorder %s39, %s40
      %p51 = scmp.eq.s32.totalorder %s31, 0
      %p52 = por %p50, %p51
      %p53 = scmp.ne.s32.totalorder %s39, %s40
      %p54 = scmp.eq.s32.totalorder %s32, 1
      %p55 = por %p53, %p54
      %p57 = scmp.ne.s32.totalorder %s40, %s56
      %p58 = scmp.eq.s32.totalorder %s32, 0
      %p59 = por %p57, %p58
      %s60 = ssub.s32 %s26, %s33
      %p61 = scmp.eq.s32.totalorder %s60, 0
      %s63 = sadd.s32 %s62, 1
      %s64 = scalar_select %p61, %s62, %s63
      %p67 = pneg %p61
      %p68 = scmp.eq.s32.totalorder %s26, 1
      %p69 = por %p67, %p68
      %p70 = scmp.ne.s32.totalorder %s62, %s65
      %p71 = scmp.eq.s32.totalorder %s26, 0
      %p72 = por %p70, %p71
      %p73 = scmp.ne.s32.totalorder %s62, %s65
      %p74 = scmp.eq.s32.totalorder %s31, 1
      %p75 = por %p73, %p74
      %p76 = scmp.ne.s32.totalorder %s65, %s66
      %p77 = scmp.eq.s32.totalorder %s31, 0
      %p78 = por %p76, %p77
      %p79 = scmp.ne.s32.totalorder %s65, %s66
      %p80 = scmp.eq.s32.totalorder %s32, 1
      %p81 = por %p79, %p80
      %p83 = scmp.ne.s32.totalorder %s66, %s82
      %p84 = scmp.eq.s32.totalorder %s32, 0
      %p85 = por %p83, %p84
      %s87 = sadd.s32 %s86, 1
      %p90 = scmp.eq.s32.totalorder %s26, 1
      %p91 = scmp.ne.s32.totalorder %s86, %s88
      %p92 = scmp.eq.s32.totalorder %s26, 0
      %p93 = por %p91, %p92
      %p94 = scmp.ne.s32.totalorder %s86, %s88
      %p95 = scmp.eq.s32.totalorder %s31, 1
      %p96 = por %p94, %p95
      %p97 = scmp.ne.s32.totalorder %s88, %s89
      %p98 = scmp.eq.s32.totalorder %s31, 0
      %p99 = por %p97, %p98
      %p100 = scmp.ne.s32.totalorder %s88, %s89
      %p101 = scmp.eq.s32.totalorder %s32, 1
      %p102 = por %p100, %p101
      %p104 = scmp.ne.s32.totalorder %s89, %s103
      %p105 = scmp.eq.s32.totalorder %s32, 0
      %p106 = por %p104, %p105
      %s108 = sadd.s32 %s107, 1
      %p111 = scmp.eq.s32.totalorder %s26, 1
      %p112 = scmp.ne.s32.totalorder %s107, %s109
      %p113 = scmp.eq.s32.totalorder %s26, 0
      %p114 = por %p112, %p113
      %p115 = scmp.ne.s32.totalorder %s107, %s109
      %p116 = scmp.eq.s32.totalorder %s31, 1
      %p117 = por %p115, %p116
      %p118 = scmp.ne.s32.totalorder %s109, %s110
      %p119 = scmp.eq.s32.totalorder %s31, 0
      %p120 = por %p118, %p119
      %p121 = scmp.ne.s32.totalorder %s109, %s110
      %p122 = scmp.eq.s32.totalorder %s32, 1
      %p123 = por %p121, %p122
      %p125 = scmp.ne.s32.totalorder %s110, %s124
      %p126 = scmp.eq.s32.totalorder %s32, 0
      %p127 = por %p125, %p126
      %s129 = sadd.s32 %s128, 1
      %p132 = scmp.eq.s32.totalorder %s26, 1
      %p133 = scmp.ne.s32.totalorder %s128, %s130
      %p134 = scmp.eq.s32.totalorder %s26, 0
      %p135 = por %p133, %p134
      %p136 = scmp.ne.s32.totalorder %s128, %s130
      %p137 = scmp.eq.s32.totalorder %s31, 1
      %p138 = por %p136, %p137
      %p139 = scmp.ne.s32.totalorder %s130, %s131
      %p140 = scmp.eq.s32.totalorder %s31, 0
      %p141 = por %p139, %p140
      %p142 = scmp.ne.s32.totalorder %s130, %s131
      %p143 = scmp.eq.s32.totalorder %s32, 1
      %p144 = por %p142, %p143
      %p146 = scmp.ne.s32.totalorder %s131, %s145
      %p147 = scmp.eq.s32.totalorder %s32, 0
      %p148 = por %p146, %p147
      %s150 = sadd.s32 %s149, 1
      %p153 = scmp.eq.s32.totalorder %s26, 1
      %p154 = scmp.ne.s32.totalorder %s149, %s151
      %p155 = scmp.eq.s32.totalorder %s26, 0
      %p156 = por %p154, %p155
      %p157 = scmp.ne.s32.totalorder %s149, %s151
      %p158 = scmp.eq.s32.totalorder %s31, 1
      %p159 = por %p157, %p158
      %p160 = scmp.ne.s32.totalorder %s151, %s152
      %p161 = scmp.eq.s32.totalorder %s31, 0
      %p162 = por %p160, %p161
      %p163 = scmp.ne.s32.totalorder %s151, %s152
      %p164 = scmp.eq.s32.totalorder %s32, 1
      %p165 = por %p163, %p164
      %p167 = scmp.ne.s32.totalorder %s152, %s166
      %p168 = scmp.eq.s32.totalorder %s32, 0
      %p169 = por %p167, %p168
      %s171 = sadd.s32 %s170, 1
      %p174 = scmp.eq.s32.totalorder %s26, 1
      %p175 = scmp.ne.s32.totalorder %s170, %s172
      %p176 = scmp.eq.s32.totalorder %s26, 0
      %p177 = por %p175, %p176
      %p178 = scmp.ne.s32.totalorder %s170, %s172
      %p179 = scmp.eq.s32.totalorder %s31, 1
      %p180 = por %p178, %p179
      %p181 = scmp.ne.s32.totalorder %s172, %s173
      %p182 = scmp.eq.s32.totalorder %s31, 0
      %p183 = por %p181, %p182
      %p184 = scmp.ne.s32.totalorder %s172, %s173
      %p185 = scmp.eq.s32.totalorder %s32, 1
      %p186 = por %p184, %p185
      %p188 = scmp.ne.s32.totalorder %s173, %s187
      %p189 = scmp.eq.s32.totalorder %s32, 0
      %p190 = por %p188, %p189
      %s192 = sadd.s32 %s191, 1
      %p195 = scmp.eq.s32.totalorder %s26, 1
      %p196 = scmp.ne.s32.totalorder %s191, %s193
      %p197 = scmp.eq.s32.totalorder %s26, 0
      %p198 = por %p196, %p197
      %p199 = scmp.ne.s32.totalorder %s191, %s193
      %p200 = scmp.eq.s32.totalorder %s31, 1
      %p201 = por %p199, %p200
      %p202 = scmp.ne.s32.totalorder %s193, %s194
      %p203 = scmp.eq.s32.totalorder %s31, 0
      %p204 = por %p202, %p203
      %p205 = scmp.ne.s32.totalorder %s193, %s194
      %p206 = scmp.eq.s32.totalorder %s32, 1
      %p207 = por %p205, %p206
      %p209 = scmp.ne.s32.totalorder %s194, %s208
      %p210 = scmp.eq.s32.totalorder %s32, 0
      %p211 = por %p209, %p210
      %s213 = sadd.s32 %s212, 1
      %p216 = scmp.eq.s32.totalorder %s26, 1
      %p217 = scmp.ne.s32.totalorder %s212, %s214
      %p218 = scmp.eq.s32.totalorder %s26, 0
      %p219 = por %p217, %p218
      %p220 = scmp.ne.s32.totalorder %s212, %s214
      %p221 = scmp.eq.s32.totalorder %s31, 1
      %p222 = por %p220, %p221
      %p223 = scmp.ne.s32.totalorder %s214, %s215
      %p224 = scmp.eq.s32.totalorder %s31, 0
      %p225 = por %p223, %p224
      %p226 = scmp.ne.s32.totalorder %s214, %s215
      %p227 = scmp.eq.s32.totalorder %s32, 1
      %p228 = por %p226, %p227
      %p230 = scmp.ne.s32.totalorder %s215, %s229
      %p231 = scmp.eq.s32.totalorder %s32, 0
      %p232 = por %p230, %p231
      %s234 = sadd.s32 %s233, 1
      %p237 = scmp.eq.s32.totalorder %s26, 1
      %p238 = scmp.ne.s32.totalorder %s233, %s235
      %p239 = scmp.eq.s32.totalorder %s26, 0
      %p240 = por %p238, %p239
      %p241 = scmp.ne.s32.totalorder %s233, %s235
      %p242 = scmp.eq.s32.totalorder %s31, 1
      %p243 = por %p241, %p242
      %p244 = scmp.ne.s32.totalorder %s235, %s236
      %p245 = scmp.eq.s32.totalorder %s31, 0
      %p246 = por %p244, %p245
      %p247 = scmp.ne.s32.totalorder %s235, %s236
      %p248 = scmp.eq.s32.totalorder %s32, 1
      %p249 = por %p247, %p248
      %p251 = scmp.ne.s32.totalorder %s236, %s250
      %p252 = scmp.eq.s32.totalorder %s32, 0
      %p253 = por %p251, %p252
      %s255 = sadd.s32 %s254, 1
      %p258 = scmp.eq.s32.totalorder %s26, 1
      %p259 = scmp.ne.s32.totalorder %s254, %s256
      %p260 = scmp.eq.s32.totalorder %s26, 0
      %p261 = por %p259, %p260
      %p262 = scmp.ne.s32.totalorder %s254, %s256
      %p263 = scmp.eq.s32.totalorder %s31, 1
      %p264 = por %p262, %p263
      %p265 = scmp.ne.s32.totalorder %s256, %s257
      %p266 = scmp.eq.s32.totalorder %s31, 0
      %p267 = por %p265, %p266
      %p268 = scmp.ne.s32.totalorder %s256, %s257
      %p269 = scmp.eq.s32.totalorder %s32, 1
      %p270 = por %p268, %p269
      %p272 = scmp.ne.s32.totalorder %s257, %s271
      %p273 = scmp.eq.s32.totalorder %s32, 0
      %p274 = por %p272, %p273
      %s276 = sadd.s32 %s275, 1
      %p279 = scmp.eq.s32.totalorder %s26, 1
      %p280 = scmp.ne.s32.totalorder %s275, %s277
      %p281 = scmp.eq.s32.totalorder %s26, 0
      %p282 = por %p280, %p281
      %p283 = scmp.ne.s32.totalorder %s275, %s277
      %p284 = scmp.eq.s32.totalorder %s31, 1
      %p285 = por %p283, %p284
      %p286 = scmp.ne.s32.totalorder %s277, %s278
      %p287 = scmp.eq.s32.totalorder %s31, 0
      %p288 = por %p286, %p287
      %p289 = scmp.ne.s32.totalorder %s277, %s278
      %p290 = scmp.eq.s32.totalorder %s32, 1
      %p291 = por %p289, %p290
      %p293 = scmp.ne.s32.totalorder %s278, %s292
      %p294 = scmp.eq.s32.totalorder %s32, 0
      %p295 = por %p293, %p294
      %s297 = sadd.s32 %s296, 1
      %p300 = scmp.eq.s32.totalorder %s26, 1
      %p301 = scmp.ne.s32.totalorder %s296, %s298
      %p302 = scmp.eq.s32.totalorder %s26, 0
      %p303 = por %p301, %p302
      %p304 = scmp.ne.s32.totalorder %s296, %s298
      %p305 = scmp.eq.s32.totalorder %s31, 1
      %p306 = por %p304, %p305
      %p307 = scmp.ne.s32.totalorder %s298, %s299
      %p308 = scmp.eq.s32.totalorder %s31, 0
      %p309 = por %p307, %p308
      %p310 = scmp.ne.s32.totalorder %s298, %s299
      %p311 = scmp.eq.s32.totalorder %s32, 1
      %p312 = por %p310, %p311
      %p314 = scmp.ne.s32.totalorder %s299, %s313
      %p315 = scmp.eq.s32.totalorder %s32, 0
      %p316 = por %p314, %p315
      %s318 = sadd.s32 %s317, 1
      %p321 = scmp.eq.s32.totalorder %s26, 1
      %p322 = scmp.ne.s32.totalorder %s317, %s319
      %p323 = scmp.eq.s32.totalorder %s26, 0
      %p324 = por %p322, %p323
      %p325 = scmp.ne.s32.totalorder %s317, %s319
      %p326 = scmp.eq.s32.totalorder %s31, 1
      %p327 = por %p325, %p326
      %p328 = scmp.ne.s32.totalorder %s319, %s320
      %p329 = scmp.eq.s32.totalorder %s31, 0
      %p330 = por %p328, %p329
      %p331 = scmp.ne.s32.totalorder %s319, %s320
      %p332 = scmp.eq.s32.totalorder %s32, 1
      %p333 = por %p331, %p332
      %p335 = scmp.ne.s32.totalorder %s320, %s334
      %p336 = scmp.eq.s32.totalorder %s32, 0
      %p337 = por %p335, %p336
      %s339 = sadd.s32 %s338, 1
      %p342 = scmp.eq.s32.totalorder %s26, 1
      %p343 = scmp.ne.s32.totalorder %s338, %s340
      %p344 = scmp.eq.s32.totalorder %s26, 0
      %p345 = por %p343, %p344
      %p346 = scmp.ne.s32.totalorder %s338, %s340
      %p347 = scmp.eq.s32.totalorder %s31, 1
      %p348 = por %p346, %p347
      %p349 = scmp.ne.s32.totalorder %s340, %s341
      %p350 = scmp.eq.s32.totalorder %s31, 0
      %p351 = por %p349, %p350
      %p352 = scmp.ne.s32.totalorder %s340, %s341
      %p353 = scmp.eq.s32.totalorder %s32, 1
      %p354 = por %p352, %p353
      %p356 = scmp.ne.s32.totalorder %s341, %s355
      %p357 = scmp.eq.s32.totalorder %s32, 0
      %p358 = por %p356, %p357
      %s360 = sadd.s32 %s359, 1
      %p363 = scmp.eq.s32.totalorder %s26, 1
      %p364 = scmp.ne.s32.totalorder %s359, %s361
      %p365 = scmp.eq.s32.totalorder %s26, 0
      %p366 = por %p364, %p365
      %p367 = scmp.ne.s32.totalorder %s359, %s361
      %p368 = scmp.eq.s32.totalorder %s31, 1
      %p369 = por %p367, %p368
      %p370 = scmp.ne.s32.totalorder %s361, %s362
      %p371 = scmp.eq.s32.totalorder %s31, 0
      %p372 = por %p370, %p371
      %p373 = scmp.ne.s32.totalorder %s361, %s362
      %p374 = scmp.eq.s32.totalorder %s32, 1
      %p375 = por %p373, %p374
      %p377 = scmp.ne.s32.totalorder %s362, %s376
      %p378 = scmp.eq.s32.totalorder %s32, 0
      %p379 = por %p377, %p378
      %s381 = sadd.s32 %s380, 1
      %p384 = scmp.eq.s32.totalorder %s26, 1
      %p385 = scmp.ne.s32.totalorder %s380, %s382
      %p386 = scmp.eq.s32.totalorder %s26, 0
      %p387 = por %p385, %p386
      %p388 = scmp.ne.s32.totalorder %s380, %s382
      %p389 = scmp.eq.s32.totalorder %s31, 1
      %p390 = por %p388, %p389
      %p391 = scmp.ne.s32.totalorder %s382, %s383
      %p392 = scmp.eq.s32.totalorder %s31, 0
      %p393 = por %p391, %p392
      %p394 = scmp.ne.s32.totalorder %s382, %s383
      %p395 = scmp.eq.s32.totalorder %s32, 1
      %p396 = por %p394, %p395
      %p398 = scmp.ne.s32.totalorder %s383, %s397
      %p399 = scmp.eq.s32.totalorder %s32, 0
      %p400 = por %p398, %p399
      %s401 = ssub.s32 %s26, %s33
      %p402 = scmp.eq.s32.totalorder %s401, 0
      %s404 = sadd.s32 %s403, 1
      %s405 = scalar_select %p402, %s403, %s404
      %p408 = pneg %p402
      %p409 = scmp.eq.s32.totalorder %s26, 1
      %p410 = por %p408, %p409
      %p411 = scmp.ne.s32.totalorder %s403, %s406
      %p412 = scmp.eq.s32.totalorder %s26, 0
      %p413 = por %p411, %p412
      %p414 = scmp.ne.s32.totalorder %s403, %s406
      %p415 = scmp.eq.s32.totalorder %s31, 1
      %p416 = por %p414, %p415
      %p417 = scmp.ne.s32.totalorder %s406, %s407
      %p418 = scmp.eq.s32.totalorder %s31, 0
      %p419 = por %p417, %p418
      %p420 = scmp.ne.s32.totalorder %s406, %s407
      %p421 = scmp.eq.s32.totalorder %s32, 1
      %p422 = por %p420, %p421
      %p424 = scmp.ne.s32.totalorder %s407, %s423
      %p425 = scmp.eq.s32.totalorder %s32, 0
      %p426 = por %p424, %p425
      %p427 = scmp.le.s32.totalorder 1, %s26
      %p428 = scmp.lt.s32.totalorder %s26, 3
      %p429 = pnand %p427, %p428
      %p430 = pneg %p429
      // Predicated region
      $region9: #{tpu_custom_call.1} parent=5 // pred_check
        _
      $region10: #{tpu_custom_call.1} parent=5 // pred_check_branch
        %432 = sbr.rel (%p429) target = $region12
      $region11: #{tpu_custom_call.1} parent=5 // pred_region
        %s433 = ssub.s32 %s26, 1
        // Predicated region
        $region13: #{tpu_custom_call.1} parent=11 // pred_check
          %p434 = pneg %p99
        $region14: #{tpu_custom_call.1} parent=11 // pred_check_branch
          %436 = sbr.rel (%p434) target = $region16
        $region15: #{tpu_custom_call.1} parent=11 // pred_region
          _
        $region16: #{tpu_custom_call.1} parent=11 // pred_fallthru
          _
        // Predicated region
        $region17: #{tpu_custom_call.1} parent=11 // pred_check
          %p437 = pneg %p120
        $region18: #{tpu_custom_call.1} parent=11 // pred_check_branch
          %439 = sbr.rel (%p437) target = $region20
        $region19: #{tpu_custom_call.1} parent=11 // pred_region
          _
        $region20: #{tpu_custom_call.1} parent=11 // pred_fallthru
          _
        // Predicated region
        $region21: #{tpu_custom_call.1} parent=11 // pred_check
          %p440 = pneg %p141
        $region22: #{tpu_custom_call.1} parent=11 // pred_check_branch
          %442 = sbr.rel (%p440) target = $region24
        $region23: #{tpu_custom_call.1} parent=11 // pred_region
          _
        $region24: #{tpu_custom_call.1} parent=11 // pred_fallthru
          _
        // Predicated region
        $region25: #{tpu_custom_call.1} parent=11 // pred_check
          %p443 = pneg %p162
        $region26: #{tpu_custom_call.1} parent=11 // pred_check_branch
          %445 = sbr.rel (%p443) target = $region28
        $region27: #{tpu_custom_call.1} parent=11 // pred_region
          _
        $region28: #{tpu_custom_call.1} parent=11 // pred_fallthru
          _
        // Predicated region
        $region29: #{tpu_custom_call.1} parent=11 // pred_check
          %p446 = pneg %p183
        $region30: #{tpu_custom_call.1} parent=11 // pred_check_branch
          %448 = sbr.rel (%p446) target = $region32
        $region31: #{tpu_custom_call.1} parent=11 // pred_region
          _
        $region32: #{tpu_custom_call.1} parent=11 // pred_fallthru
          _
        // Predicated region
        $region33: #{tpu_custom_call.1} parent=11 // pred_check
          %p449 = pneg %p204
        $region34: #{tpu_custom_call.1} parent=11 // pred_check_branch
          %451 = sbr.rel (%p449) target = $region36
        $region35: #{tpu_custom_call.1} parent=11 // pred_region
          _
        $region36: #{tpu_custom_call.1} parent=11 // pred_fallthru
          _
        // Predicated region
        $region37: #{tpu_custom_call.1} parent=11 // pred_check
          %p452 = pneg %p225
        $region38: #{tpu_custom_call.1} parent=11 // pred_check_branch
          %454 = sbr.rel (%p452) target = $region40
        $region39: #{tpu_custom_call.1} parent=11 // pred_region
          _
        $region40: #{tpu_custom_call.1} parent=11 // pred_fallthru
          _
        // Predicated region
        $region41: #{tpu_custom_call.1} parent=11 // pred_check
          %p455 = pneg %p246
        $region42: #{tpu_custom_call.1} parent=11 // pred_check_branch
          %457 = sbr.rel (%p455) target = $region44
        $region43: #{tpu_custom_call.1} parent=11 // pred_region
          _
        $region44: #{tpu_custom_call.1} parent=11 // pred_fallthru
          _
        // Predicated region
        $region45: #{tpu_custom_call.1} parent=11 // pred_check
          %p458 = pneg %p267
        $region46: #{tpu_custom_call.1} parent=11 // pred_check_branch
          %460 = sbr.rel (%p458) target = $region48
        $region47: #{tpu_custom_call.1} parent=11 // pred_region
          _
        $region48: #{tpu_custom_call.1} parent=11 // pred_fallthru
          _
        // Predicated region
        $region49: #{tpu_custom_call.1} parent=11 // pred_check
          %p461 = pneg %p288
        $region50: #{tpu_custom_call.1} parent=11 // pred_check_branch
          %463 = sbr.rel (%p461) target = $region52
        $region51: #{tpu_custom_call.1} parent=11 // pred_region
          _
        $region52: #{tpu_custom_call.1} parent=11 // pred_fallthru
          _
        // Predicated region
        $region53: #{tpu_custom_call.1} parent=11 // pred_check
          %p464 = pneg %p309
        $region54: #{tpu_custom_call.1} parent=11 // pred_check_branch
          %466 = sbr.rel (%p464) target = $region56
        $region55: #{tpu_custom_call.1} parent=11 // pred_region
          _
        $region56: #{tpu_custom_call.1} parent=11 // pred_fallthru
          _
        // Predicated region
        $region57: #{tpu_custom_call.1} parent=11 // pred_check
          %p467 = pneg %p330
        $region58: #{tpu_custom_call.1} parent=11 // pred_check_branch
          %469 = sbr.rel (%p467) target = $region60
        $region59: #{tpu_custom_call.1} parent=11 // pred_region
          _
        $region60: #{tpu_custom_call.1} parent=11 // pred_fallthru
          _
        // Predicated region
        $region61: #{tpu_custom_call.1} parent=11 // pred_check
          %p470 = pneg %p351
        $region62: #{tpu_custom_call.1} parent=11 // pred_check_branch
          %472 = sbr.rel (%p470) target = $region64
        $region63: #{tpu_custom_call.1} parent=11 // pred_region
          _
        $region64: #{tpu_custom_call.1} parent=11 // pred_fallthru
          _
        // Predicated region
        $region65: #{tpu_custom_call.1} parent=11 // pred_check
          %p473 = pneg %p372
        $region66: #{tpu_custom_call.1} parent=11 // pred_check_branch
          %475 = sbr.rel (%p473) target = $region68
        $region67: #{tpu_custom_call.1} parent=11 // pred_region
          _
        $region68: #{tpu_custom_call.1} parent=11 // pred_fallthru
          _
        // Predicated region
        $region69: #{tpu_custom_call.1} parent=11 // pred_check
          %p476 = pneg %p393
        $region70: #{tpu_custom_call.1} parent=11 // pred_check_branch
          %478 = sbr.rel (%p476) target = $region72
        $region71: #{tpu_custom_call.1} parent=11 // pred_region
          _
        $region72: #{tpu_custom_call.1} parent=11 // pred_fallthru
          _
      $region12: #{tpu_custom_call.1} parent=5 // pred_fallthru
        _
      %p479 = scmp.lt.s32.totalorder %s26, 2
      // Predicated region
      $region73: #{tpu_custom_call.1} parent=5 // pred_check
        %p480 = pneg %p479
      $region74: #{tpu_custom_call.1} parent=5 // pred_check_branch
        %482 = sbr.rel (%p480) target = $region76
      $region75: #{tpu_custom_call.1} parent=5 // pred_region
        // Predicated region
        $region77: #{tpu_custom_call.1} parent=75 // pred_check
          %p483 = pneg %p46
        $region78: #{tpu_custom_call.1} parent=75 // pred_check_branch
          %485 = sbr.rel (%p483) target = $region80
        $region79: #{tpu_custom_call.1} parent=75 // pred_region
          %s486 = smul.u32 64, %s26
          %p487 = scmp.lt.s32.totalorder %s486, 127
          %s488 = scalar_select %p487, %s486, 127
          %s489 = smul.addr %s488, 4
          %s490 = scalar_lea.vmem %s0, %s489
          %s491 = smul.u32 64, %s26
        $region80: #{tpu_custom_call.1} parent=75 // pred_fallthru
          _
        // Predicated region
        $region81: #{tpu_custom_call.1} parent=75 // pred_check
          %p492 = pneg %p72
        $region82: #{tpu_custom_call.1} parent=75 // pred_check_branch
          %494 = sbr.rel (%p492) target = $region84
        $region83: #{tpu_custom_call.1} parent=75 // pred_region
          %s495 = smul.u32 64, %s26
          %p496 = scmp.lt.s32.totalorder %s495, 127
          %s497 = scalar_select %p496, %s495, 127
          %s498 = smul.addr %s497, 8
          %s499 = scalar_lea.vmem %s1, %s498
          %s500 = smul.u32 64, %s26
        $region84: #{tpu_custom_call.1} parent=75 // pred_fallthru
          _
      $region76: #{tpu_custom_call.1} parent=5 // pred_fallthru
        _
      %p501 = scmp.le.s32.totalorder 1, %s26
      %p502 = scmp.lt.s32.totalorder %s26, 3
      %p503 = pnand %p501, %p502
      %p504 = pneg %p503
      // Predicated region
      $region85: #{tpu_custom_call.1} parent=5 // pred_check
        _
      $region86: #{tpu_custom_call.1} parent=5 // pred_check_branch
        %506 = sbr.rel (%p503) target = $region88
      $region87: #{tpu_custom_call.1} parent=5 // pred_region
        %s507 = ssub.s32 %s26, 1
        %s508 = smul.u32 64, %s31
        %p509 = scmp.lt.s32.totalorder %s508, 127
        %s510 = scalar_select %p509, %s508, 127
        %s511 = smul.addr %s510, 4
        %s512 = scalar_lea.vmem %s0, %s511
        %p513 = pneg %p52
        %p514 = pneg %p49
        %s515 = smul.u32 64, %s31
        %p516 = scmp.lt.s32.totalorder %s515, 127
        %s517 = scalar_select %p516, %s515, 127
        %s518 = smul.addr %s517, 8
        %s519 = scalar_lea.vmem %s1, %s518
        %p520 = pneg %p78
        %p521 = pneg %p75
        %p522 = pneg %p99
        %p523 = pneg %p96
        %p524 = pneg %p120
        %p525 = pneg %p117
        %p526 = pneg %p141
        %p527 = pneg %p138
        %p528 = pneg %p162
        %p529 = pneg %p159
        %p530 = pneg %p183
        %p531 = pneg %p180
        %p532 = pneg %p204
        %p533 = pneg %p201
        %p534 = pneg %p225
        %p535 = pneg %p222
        %p536 = pneg %p246
        %p537 = pneg %p243
        %p538 = pneg %p267
        %p539 = pneg %p264
        %p540 = pneg %p288
        %p541 = pneg %p285
        %p542 = pneg %p309
        %p543 = pneg %p306
        %p544 = pneg %p330
        %p545 = pneg %p327
        %p546 = pneg %p351
        %p547 = pneg %p348
        %p548 = pneg %p372
        %p549 = pneg %p369
        %p550 = pneg %p393
        %p551 = pneg %p390
        %p552 = pneg %p419
        %p553 = pneg %p416
        %s554 = sand.u32 %s406, 1
        %s555 = scalar_lea.sflag [#allocation3], %s554
        %s556 = sand.u32 %s406, 1
        %s557 = smul.addr %s556, 512
        %s558 = scalar_lea.vmem [#allocation2], %s557
        %s559 = smul.u32 64, %s31
        %p560 = scmp.lt.s32.totalorder %s559, 127
        %s561 = scalar_select %p560, %s559, 127
        %s562 = smul.addr %s561, 4
        %s563 = scalar_lea.vmem %s0, %s562
        %s564 = smul.u32 64, %s31
        %s565 = smul.u32 64, %s31
        %p566 = scmp.lt.s32.totalorder %s565, 127
        %s567 = scalar_select %p566, %s565, 127
        %s568 = smul.addr %s567, 8
        %s569 = scalar_lea.vmem %s1, %s568
        %s570 = smul.u32 64, %s31
        %s571 = smul.u32 64, %s31
        %v572 = vld [vmem:[%s563] sm:$0xf]
        %v573 = vld [vmem:[%s563 + $0x4] sm:$0xf]
        %v574 = vld [vmem:[%s563 + $0x8] sm:$0xf]
        %v575 = vld [vmem:[%s563 + $0xc] sm:$0xf]
        %v576 = vld [vmem:[%s563 + $0x10] sm:$0xf]
        %v577 = vld [vmem:[%s563 + $0x14] sm:$0xf]
        %v578 = vld [vmem:[%s563 + $0x18] sm:$0xf]
        %v579 = vld [vmem:[%s563 + $0x1c] sm:$0xf]
        %v580 = vld [vmem:[%s563 + $0x20] sm:$0xf]
        %v581 = vld [vmem:[%s563 + $0x24] sm:$0xf]
        %v582 = vld [vmem:[%s563 + $0x28] sm:$0xf]
        %v583 = vld [vmem:[%s563 + $0x2c] sm:$0xf]
        %v584 = vld [vmem:[%s563 + $0x30] sm:$0xf]
        %v585 = vld [vmem:[%s563 + $0x34] sm:$0xf]
        %v586 = vld [vmem:[%s563 + $0x38] sm:$0xf]
        %v587 = vld [vmem:[%s563 + $0x3c] sm:$0xf]
        %v588 = vld [vmem:[%s563 + $0x40] sm:$0xf]
        %v589 = vld [vmem:[%s563 + $0x44] sm:$0xf]
        %v590 = vld [vmem:[%s563 + $0x48] sm:$0xf]
        %v591 = vld [vmem:[%s563 + $0x4c] sm:$0xf]
        %v592 = vld [vmem:[%s563 + $0x50] sm:$0xf]
        %v593 = vld [vmem:[%s563 + $0x54] sm:$0xf]
        %v594 = vld [vmem:[%s563 + $0x58] sm:$0xf]
        %v595 = vld [vmem:[%s563 + $0x5c] sm:$0xf]
        %v596 = vld [vmem:[%s563 + $0x60] sm:$0xf]
        %v597 = vld [vmem:[%s563 + $0x64] sm:$0xf]
        %v598 = vld [vmem:[%s563 + $0x68] sm:$0xf]
        %v599 = vld [vmem:[%s563 + $0x6c] sm:$0xf]
        %v600 = vld [vmem:[%s563 + $0x70] sm:$0xf]
        %v601 = vld [vmem:[%s563 + $0x74] sm:$0xf]
        %v602 = vld [vmem:[%s563 + $0x78] sm:$0xf]
        %v603 = vld [vmem:[%s563 + $0x7c] sm:$0xf]
        %v604 = vld [vmem:[%s563 + $0x80] sm:$0xf]
        %v605 = vld [vmem:[%s563 + $0x84] sm:$0xf]
        %v606 = vld [vmem:[%s563 + $0x88] sm:$0xf]
        %v607 = vld [vmem:[%s563 + $0x8c] sm:$0xf]
        %v608 = vld [vmem:[%s563 + $0x90] sm:$0xf]
        %v609 = vld [vmem:[%s563 + $0x94] sm:$0xf]
        %v610 = vld [vmem:[%s563 + $0x98] sm:$0xf]
        %v611 = vld [vmem:[%s563 + $0x9c] sm:$0xf]
        %v612 = vld [vmem:[%s563 + $0xa0] sm:$0xf]
        %v613 = vld [vmem:[%s563 + $0xa4] sm:$0xf]
        %v614 = vld [vmem:[%s563 + $0xa8] sm:$0xf]
        %v615 = vld [vmem:[%s563 + $0xac] sm:$0xf]
        %v616 = vld [vmem:[%s563 + $0xb0] sm:$0xf]
        %v617 = vld [vmem:[%s563 + $0xb4] sm:$0xf]
        %v618 = vld [vmem:[%s563 + $0xb8] sm:$0xf]
        %v619 = vld [vmem:[%s563 + $0xbc] sm:$0xf]
        %v620 = vld [vmem:[%s563 + $0xc0] sm:$0xf]
        %v621 = vld [vmem:[%s563 + $0xc4] sm:$0xf]
        %v622 = vld [vmem:[%s563 + $0xc8] sm:$0xf]
        %v623 = vld [vmem:[%s563 + $0xcc] sm:$0xf]
        %v624 = vld [vmem:[%s563 + $0xd0] sm:$0xf]
        %v625 = vld [vmem:[%s563 + $0xd4] sm:$0xf]
        %v626 = vld [vmem:[%s563 + $0xd8] sm:$0xf]
        %v627 = vld [vmem:[%s563 + $0xdc] sm:$0xf]
        %v628 = vld [vmem:[%s563 + $0xe0] sm:$0xf]
        %v629 = vld [vmem:[%s563 + $0xe4] sm:$0xf]
        %v630 = vld [vmem:[%s563 + $0xe8] sm:$0xf]
        %v631 = vld [vmem:[%s563 + $0xec] sm:$0xf]
        %v632 = vld [vmem:[%s563 + $0xf0] sm:$0xf]
        %v633 = vld [vmem:[%s563 + $0xf4] sm:$0xf]
        %v634 = vld [vmem:[%s563 + $0xf8] sm:$0xf]
        %v635 = vld [vmem:[%s563 + $0xfc] sm:$0xf]
        %v636 = vld [vmem:[%s2] sm:$0xf]
        %v637 = vld [vmem:[%s2 + $0x4] sm:$0xf]
        %v638 = vld [vmem:[%s2 + $0x8] sm:$0xf]
        %v639 = vld [vmem:[%s2 + $0xc] sm:$0xf]
        %v640 = vld [vmem:[%s2 + $0x10] sm:$0xf]
        %v641 = vld [vmem:[%s2 + $0x14] sm:$0xf]
        %v642 = vld [vmem:[%s2 + $0x18] sm:$0xf]
        %v643 = vld [vmem:[%s2 + $0x1c] sm:$0xf]
        %v644 = vld [vmem:[%s2 + $0x20] sm:$0xf]
        %v645 = vld [vmem:[%s2 + $0x24] sm:$0xf]
        %v646 = vld [vmem:[%s2 + $0x28] sm:$0xf]
        %v647 = vld [vmem:[%s2 + $0x2c] sm:$0xf]
        %v648 = vld [vmem:[%s2 + $0x30] sm:$0xf]
        %v649 = vld [vmem:[%s2 + $0x34] sm:$0xf]
        %v650 = vld [vmem:[%s2 + $0x38] sm:$0xf]
        %v651 = vld [vmem:[%s2 + $0x3c] sm:$0xf]
        %v652 = vld [vmem:[%s3] sm:$0x1]
        %v654 = vperm.slane %v652, 0
        %v720 = vunpack.c.l.b16 %v572
        %v721 = vunpack.c.l.b16 %v573
        %v722 = vunpack.c.l.b16 %v574
        %v723 = vunpack.c.l.b16 %v575
        %v724 = vunpack.c.l.b16 %v576
        %v725 = vunpack.c.l.b16 %v577
        %v726 = vunpack.c.l.b16 %v578
        %v727 = vunpack.c.l.b16 %v579
        %v728 = vunpack.c.l.b16 %v580
        %v729 = vunpack.c.l.b16 %v581
        %v730 = vunpack.c.l.b16 %v582
        %v731 = vunpack.c.l.b16 %v583
        %v732 = vunpack.c.l.b16 %v584
        %v733 = vunpack.c.l.b16 %v585
        %v734 = vunpack.c.l.b16 %v586
        %v735 = vunpack.c.l.b16 %v587
        %v736 = vunpack.c.l.b16 %v588
        %v737 = vunpack.c.l.b16 %v589
        %v738 = vunpack.c.l.b16 %v590
        %v739 = vunpack.c.l.b16 %v591
        %v740 = vunpack.c.l.b16 %v592
        %v741 = vunpack.c.l.b16 %v593
        %v742 = vunpack.c.l.b16 %v594
        %v743 = vunpack.c.l.b16 %v595
        %v744 = vunpack.c.l.b16 %v596
        %v745 = vunpack.c.l.b16 %v597
        %v746 = vunpack.c.l.b16 %v598
        %v747 = vunpack.c.l.b16 %v599
        %v748 = vunpack.c.l.b16 %v600
        %v749 = vunpack.c.l.b16 %v601
        %v750 = vunpack.c.l.b16 %v602
        %v751 = vunpack.c.l.b16 %v603
        %v752 = vunpack.c.l.b16 %v604
        %v753 = vunpack.c.l.b16 %v605
        %v754 = vunpack.c.l.b16 %v606
        %v755 = vunpack.c.l.b16 %v607
        %v756 = vunpack.c.l.b16 %v608
        %v757 = vunpack.c.l.b16 %v609
        %v758 = vunpack.c.l.b16 %v610
        %v759 = vunpack.c.l.b16 %v611
        %v760 = vunpack.c.l.b16 %v612
        %v761 = vunpack.c.l.b16 %v613
        %v762 = vunpack.c.l.b16 %v614
        %v763 = vunpack.c.l.b16 %v615
        %v764 = vunpack.c.l.b16 %v616
        %v765 = vunpack.c.l.b16 %v617
        %v766 = vunpack.c.l.b16 %v618
        %v767 = vunpack.c.l.b16 %v619
        %v768 = vunpack.c.l.b16 %v620
        %v769 = vunpack.c.l.b16 %v621
        %v770 = vunpack.c.l.b16 %v622
        %v771 = vunpack.c.l.b16 %v623
        %v772 = vunpack.c.l.b16 %v624
        %v773 = vunpack.c.l.b16 %v625
        %v774 = vunpack.c.l.b16 %v626
        %v775 = vunpack.c.l.b16 %v627
        %v776 = vunpack.c.l.b16 %v628
        %v777 = vunpack.c.l.b16 %v629
        %v778 = vunpack.c.l.b16 %v630
        %v779 = vunpack.c.l.b16 %v631
        %v780 = vunpack.c.l.b16 %v632
        %v781 = vunpack.c.l.b16 %v633
        %v782 = vunpack.c.l.b16 %v634
        %v783 = vunpack.c.l.b16 %v635
        %v784 = vpack.c.b16 %v721, %v720
        %v785 = vpack.c.b16 %v723, %v722
        %v786 = vpack.c.b16 %v725, %v724
        %v787 = vpack.c.b16 %v727, %v726
        %v788 = vpack.c.b16 %v729, %v728
        %v789 = vpack.c.b16 %v731, %v730
        %v790 = vpack.c.b16 %v733, %v732
        %v791 = vpack.c.b16 %v735, %v734
        %v792 = vpack.c.b16 %v737, %v736
        %v793 = vpack.c.b16 %v739, %v738
        %v794 = vpack.c.b16 %v741, %v740
        %v795 = vpack.c.b16 %v743, %v742
        %v796 = vpack.c.b16 %v745, %v744
        %v797 = vpack.c.b16 %v747, %v746
        %v798 = vpack.c.b16 %v749, %v748
        %v799 = vpack.c.b16 %v751, %v750
        %v800 = vpack.c.b16 %v753, %v752
        %v801 = vpack.c.b16 %v755, %v754
        %v802 = vpack.c.b16 %v757, %v756
        %v803 = vpack.c.b16 %v759, %v758
        %v804 = vpack.c.b16 %v761, %v760
        %v805 = vpack.c.b16 %v763, %v762
        %v806 = vpack.c.b16 %v765, %v764
        %v807 = vpack.c.b16 %v767, %v766
        %v808 = vpack.c.b16 %v769, %v768
        %v809 = vpack.c.b16 %v771, %v770
        %v810 = vpack.c.b16 %v773, %v772
        %v811 = vpack.c.b16 %v775, %v774
        %v812 = vpack.c.b16 %v777, %v776
        %v813 = vpack.c.b16 %v779, %v778
        %v814 = vpack.c.b16 %v781, %v780
        %v815 = vpack.c.b16 %v783, %v782
        %v864 = vunpack.c.l.b16 %v636
        %v865 = vunpack.c.l.b16 %v637
        %v866 = vunpack.c.l.b16 %v638
        %v867 = vunpack.c.l.b16 %v639
        %v868 = vunpack.c.l.b16 %v640
        %v869 = vunpack.c.l.b16 %v641
        %v870 = vunpack.c.l.b16 %v642
        %v871 = vunpack.c.l.b16 %v643
        %v872 = vunpack.c.l.b16 %v644
        %v873 = vunpack.c.l.b16 %v645
        %v874 = vunpack.c.l.b16 %v646
        %v875 = vunpack.c.l.b16 %v647
        %v876 = vunpack.c.l.b16 %v648
        %v877 = vunpack.c.l.b16 %v649
        %v878 = vunpack.c.l.b16 %v650
        %v879 = vunpack.c.l.b16 %v651
        %v880 = vpack.c.b16 %v865, %v864
        %v881 = vpack.c.b16 %v867, %v866
        %v882 = vpack.c.b16 %v869, %v868
        %v883 = vpack.c.b16 %v871, %v870
        %v884 = vpack.c.b16 %v873, %v872
        %v885 = vpack.c.b16 %v875, %v874
        %v886 = vpack.c.b16 %v877, %v876
        %v887 = vpack.c.b16 %v879, %v878
        %896 = vmatpush.bf16.msra.mxu0 %v887
        %897 = vmatpush.bf16.msra.mxu0 %v886
        %898 = vmatpush.bf16.msra.mxu0 %v885
        %899 = vmatpush.bf16.msra.mxu0 %v884
        %900 = vmatpush.bf16.msra.mxu0 %v883
        %901 = vmatpush.bf16.msra.mxu0 %v882
        %902 = vmatpush.bf16.msra.mxu0 %v881
        %903 = vmatpush.bf16.msra.mxu0 %v880
        %904 = vmatmul.bf16.gmra.mxu0 %v784
        %v905 = vpop.f32.mrf.mxu0
        %v906 = vadd.f32 %v654, %v905
        %v907 = vpop.f32.mrf.mxu0
        %v908 = vadd.f32 %v654, %v907
        %909 = vmatmul.bf16.gmra.mxu0 %v785
        %v910 = vpop.f32.mrf.mxu0
        %v911 = vadd.f32 %v654, %v910
        %v912 = vpop.f32.mrf.mxu0
        %v913 = vadd.f32 %v654, %v912
        %914 = vmatmul.bf16.gmra.mxu0 %v786
        %v915 = vpop.f32.mrf.mxu0
        %v916 = vadd.f32 %v654, %v915
        %v917 = vpop.f32.mrf.mxu0
        %v918 = vadd.f32 %v654, %v917
        %919 = vmatmul.bf16.gmra.mxu0 %v787
        %v920 = vpop.f32.mrf.mxu0
        %v921 = vadd.f32 %v654, %v920
        %v922 = vpop.f32.mrf.mxu0
        %v923 = vadd.f32 %v654, %v922
        %924 = vmatmul.bf16.gmra.mxu0 %v788
        %v925 = vpop.f32.mrf.mxu0
        %v926 = vadd.f32 %v654, %v925
        %v927 = vpop.f32.mrf.mxu0
        %v928 = vadd.f32 %v654, %v927
        %929 = vmatmul.bf16.gmra.mxu0 %v789
        %v930 = vpop.f32.mrf.mxu0
        %v931 = vadd.f32 %v654, %v930
        %v932 = vpop.f32.mrf.mxu0
        %v933 = vadd.f32 %v654, %v932
        %934 = vmatmul.bf16.gmra.mxu0 %v790
        %v935 = vpop.f32.mrf.mxu0
        %v936 = vadd.f32 %v654, %v935
        %v937 = vpop.f32.mrf.mxu0
        %v938 = vadd.f32 %v654, %v937
        %939 = vmatmul.bf16.gmra.mxu0 %v791
        %v940 = vpop.f32.mrf.mxu0
        %v941 = vadd.f32 %v654, %v940
        %v942 = vpop.f32.mrf.mxu0
        %v943 = vadd.f32 %v654, %v942
        %944 = vmatmul.bf16.gmra.mxu0 %v792
        %v945 = vpop.f32.mrf.mxu0
        %v946 = vadd.f32 %v654, %v945
        %v947 = vpop.f32.mrf.mxu0
        %v948 = vadd.f32 %v654, %v947
        %949 = vmatmul.bf16.gmra.mxu0 %v793
        %v950 = vpop.f32.mrf.mxu0
        %v951 = vadd.f32 %v654, %v950
        %v952 = vpop.f32.mrf.mxu0
        %v953 = vadd.f32 %v654, %v952
        %954 = vmatmul.bf16.gmra.mxu0 %v794
        %v955 = vpop.f32.mrf.mxu0
        %v956 = vadd.f32 %v654, %v955
        %v957 = vpop.f32.mrf.mxu0
        %v958 = vadd.f32 %v654, %v957
        %959 = vmatmul.bf16.gmra.mxu0 %v795
        %v960 = vpop.f32.mrf.mxu0
        %v961 = vadd.f32 %v654, %v960
        %v962 = vpop.f32.mrf.mxu0
        %v963 = vadd.f32 %v654, %v962
        %964 = vmatmul.bf16.gmra.mxu0 %v796
        %v965 = vpop.f32.mrf.mxu0
        %v966 = vadd.f32 %v654, %v965
        %v967 = vpop.f32.mrf.mxu0
        %v968 = vadd.f32 %v654, %v967
        %969 = vmatmul.bf16.gmra.mxu0 %v797
        %v970 = vpop.f32.mrf.mxu0
        %v971 = vadd.f32 %v654, %v970
        %v972 = vpop.f32.mrf.mxu0
        %v973 = vadd.f32 %v654, %v972
        %974 = vmatmul.bf16.gmra.mxu0 %v798
        %v975 = vpop.f32.mrf.mxu0
        %v976 = vadd.f32 %v654, %v975
        %v977 = vpop.f32.mrf.mxu0
        %v978 = vadd.f32 %v654, %v977
        %979 = vmatmul.bf16.gmra.mxu0 %v799
        %v980 = vpop.f32.mrf.mxu0
        %v981 = vadd.f32 %v654, %v980
        %v982 = vpop.f32.mrf.mxu0
        %v983 = vadd.f32 %v654, %v982
        %984 = vmatmul.bf16.gmra.mxu0 %v800
        %v985 = vpop.f32.mrf.mxu0
        %v986 = vadd.f32 %v654, %v985
        %v987 = vpop.f32.mrf.mxu0
        %v988 = vadd.f32 %v654, %v987
        %989 = vmatmul.bf16.gmra.mxu0 %v801
        %v990 = vpop.f32.mrf.mxu0
        %v991 = vadd.f32 %v654, %v990
        %v992 = vpop.f32.mrf.mxu0
        %v993 = vadd.f32 %v654, %v992
        %994 = vmatmul.bf16.gmra.mxu0 %v802
        %v995 = vpop.f32.mrf.mxu0
        %v996 = vadd.f32 %v654, %v995
        %v997 = vpop.f32.mrf.mxu0
        %v998 = vadd.f32 %v654, %v997
        %999 = vmatmul.bf16.gmra.mxu0 %v803
        %v1000 = vpop.f32.mrf.mxu0
        %v1001 = vadd.f32 %v654, %v1000
        %v1002 = vpop.f32.mrf.mxu0
        %v1003 = vadd.f32 %v654, %v1002
        %1004 = vmatmul.bf16.gmra.mxu0 %v804
        %v1005 = vpop.f32.mrf.mxu0
        %v1006 = vadd.f32 %v654, %v1005
        %v1007 = vpop.f32.mrf.mxu0
        %v1008 = vadd.f32 %v654, %v1007
        %1009 = vmatmul.bf16.gmra.mxu0 %v805
        %v1010 = vpop.f32.mrf.mxu0
        %v1011 = vadd.f32 %v654, %v1010
        %v1012 = vpop.f32.mrf.mxu0
        %v1013 = vadd.f32 %v654, %v1012
        %1014 = vmatmul.bf16.gmra.mxu0 %v806
        %v1015 = vpop.f32.mrf.mxu0
        %v1016 = vadd.f32 %v654, %v1015
        %v1017 = vpop.f32.mrf.mxu0
        %v1018 = vadd.f32 %v654, %v1017
        %1019 = vmatmul.bf16.gmra.mxu0 %v807
        %v1020 = vpop.f32.mrf.mxu0
        %v1021 = vadd.f32 %v654, %v1020
        %v1022 = vpop.f32.mrf.mxu0
        %v1023 = vadd.f32 %v654, %v1022
        %1024 = vmatmul.bf16.gmra.mxu0 %v808
        %v1025 = vpop.f32.mrf.mxu0
        %v1026 = vadd.f32 %v654, %v1025
        %v1027 = vpop.f32.mrf.mxu0
        %v1028 = vadd.f32 %v654, %v1027
        %1029 = vmatmul.bf16.gmra.mxu0 %v809
        %v1030 = vpop.f32.mrf.mxu0
        %v1031 = vadd.f32 %v654, %v1030
        %v1032 = vpop.f32.mrf.mxu0
        %v1033 = vadd.f32 %v654, %v1032
        %1034 = vmatmul.bf16.gmra.mxu0 %v810
        %v1035 = vpop.f32.mrf.mxu0
        %v1036 = vadd.f32 %v654, %v1035
        %v1037 = vpop.f32.mrf.mxu0
        %v1038 = vadd.f32 %v654, %v1037
        %1039 = vmatmul.bf16.gmra.mxu0 %v811
        %v1040 = vpop.f32.mrf.mxu0
        %v1041 = vadd.f32 %v654, %v1040
        %v1042 = vpop.f32.mrf.mxu0
        %v1043 = vadd.f32 %v654, %v1042
        %1044 = vmatmul.bf16.gmra.mxu0 %v812
        %v1045 = vpop.f32.mrf.mxu0
        %v1046 = vadd.f32 %v654, %v1045
        %v1047 = vpop.f32.mrf.mxu0
        %v1048 = vadd.f32 %v654, %v1047
        %1049 = vmatmul.bf16.gmra.mxu0 %v813
        %v1050 = vpop.f32.mrf.mxu0
        %v1051 = vadd.f32 %v654, %v1050
        %v1052 = vpop.f32.mrf.mxu0
        %v1053 = vadd.f32 %v654, %v1052
        %1054 = vmatmul.bf16.gmra.mxu0 %v814
        %v1055 = vpop.f32.mrf.mxu0
        %v1056 = vadd.f32 %v654, %v1055
        %v1057 = vpop.f32.mrf.mxu0
        %v1058 = vadd.f32 %v654, %v1057
        %1059 = vmatmul.bf16.gmra.mxu0 %v815
        %v1060 = vpop.f32.mrf.mxu0
        %v1061 = vadd.f32 %v654, %v1060
        %v1062 = vpop.f32.mrf.mxu0
        %v1063 = vadd.f32 %v654, %v1062
        %1064 = vdwg.mxu0
        %vm1065 = vcmp.ge.f32.partialorder %v906, 0.0
        %vm1066 = vcmp.ge.f32.partialorder %v908, 0.0
        %vm1067 = vcmp.ge.f32.partialorder %v911, 0.0
        %vm1068 = vcmp.ge.f32.partialorder %v913, 0.0
        %vm1069 = vcmp.ge.f32.partialorder %v916, 0.0
        %vm1070 = vcmp.ge.f32.partialorder %v918, 0.0
        %vm1071 = vcmp.ge.f32.partialorder %v921, 0.0
        %vm1072 = vcmp.ge.f32.partialorder %v923, 0.0
        %vm1073 = vcmp.ge.f32.partialorder %v926, 0.0
        %vm1074 = vcmp.ge.f32.partialorder %v928, 0.0
        %vm1075 = vcmp.ge.f32.partialorder %v931, 0.0
        %vm1076 = vcmp.ge.f32.partialorder %v933, 0.0
        %vm1077 = vcmp.ge.f32.partialorder %v936, 0.0
        %vm1078 = vcmp.ge.f32.partialorder %v938, 0.0
        %vm1079 = vcmp.ge.f32.partialorder %v941, 0.0
        %vm1080 = vcmp.ge.f32.partialorder %v943, 0.0
        %vm1081 = vcmp.ge.f32.partialorder %v946, 0.0
        %vm1082 = vcmp.ge.f32.partialorder %v948, 0.0
        %vm1083 = vcmp.ge.f32.partialorder %v951, 0.0
        %vm1084 = vcmp.ge.f32.partialorder %v953, 0.0
        %vm1085 = vcmp.ge.f32.partialorder %v956, 0.0
        %vm1086 = vcmp.ge.f32.partialorder %v958, 0.0
        %vm1087 = vcmp.ge.f32.partialorder %v961, 0.0
        %vm1088 = vcmp.ge.f32.partialorder %v963, 0.0
        %vm1089 = vcmp.ge.f32.partialorder %v966, 0.0
        %vm1090 = vcmp.ge.f32.partialorder %v968, 0.0
        %vm1091 = vcmp.ge.f32.partialorder %v971, 0.0
        %vm1092 = vcmp.ge.f32.partialorder %v973, 0.0
        %vm1093 = vcmp.ge.f32.partialorder %v976, 0.0
        %vm1094 = vcmp.ge.f32.partialorder %v978, 0.0
        %vm1095 = vcmp.ge.f32.partialorder %v981, 0.0
        %vm1096 = vcmp.ge.f32.partialorder %v983, 0.0
        %vm1097 = vcmp.ge.f32.partialorder %v986, 0.0
        %vm1098 = vcmp.ge.f32.partialorder %v988, 0.0
        %vm1099 = vcmp.ge.f32.partialorder %v991, 0.0
        %vm1100 = vcmp.ge.f32.partialorder %v993, 0.0
        %vm1101 = vcmp.ge.f32.partialorder %v996, 0.0
        %vm1102 = vcmp.ge.f32.partialorder %v998, 0.0
        %vm1103 = vcmp.ge.f32.partialorder %v1001, 0.0
        %vm1104 = vcmp.ge.f32.partialorder %v1003, 0.0
        %vm1105 = vcmp.ge.f32.partialorder %v1006, 0.0
        %vm1106 = vcmp.ge.f32.partialorder %v1008, 0.0
        %vm1107 = vcmp.ge.f32.partialorder %v1011, 0.0
        %vm1108 = vcmp.ge.f32.partialorder %v1013, 0.0
        %vm1109 = vcmp.ge.f32.partialorder %v1016, 0.0
        %vm1110 = vcmp.ge.f32.partialorder %v1018, 0.0
        %vm1111 = vcmp.ge.f32.partialorder %v1021, 0.0
        %vm1112 = vcmp.ge.f32.partialorder %v1023, 0.0
        %vm1113 = vcmp.ge.f32.partialorder %v1026, 0.0
        %vm1114 = vcmp.ge.f32.partialorder %v1028, 0.0
        %vm1115 = vcmp.ge.f32.partialorder %v1031, 0.0
        %vm1116 = vcmp.ge.f32.partialorder %v1033, 0.0
        %vm1117 = vcmp.ge.f32.partialorder %v1036, 0.0
        %vm1118 = vcmp.ge.f32.partialorder %v1038, 0.0
        %vm1119 = vcmp.ge.f32.partialorder %v1041, 0.0
        %vm1120 = vcmp.ge.f32.partialorder %v1043, 0.0
        %vm1121 = vcmp.ge.f32.partialorder %v1046, 0.0
        %vm1122 = vcmp.ge.f32.partialorder %v1048, 0.0
        %vm1123 = vcmp.ge.f32.partialorder %v1051, 0.0
        %vm1124 = vcmp.ge.f32.partialorder %v1053, 0.0
        %vm1125 = vcmp.ge.f32.partialorder %v1056, 0.0
        %vm1126 = vcmp.ge.f32.partialorder %v1058, 0.0
        %vm1127 = vcmp.ge.f32.partialorder %v1061, 0.0
        %vm1128 = vcmp.ge.f32.partialorder %v1063, 0.0
        %v1129 = vmul.f32 %v906, 0.2
        %v1130 = vmul.f32 %v908, 0.2
        %v1131 = vmul.f32 %v911, 0.2
        %v1132 = vmul.f32 %v913, 0.2
        %v1133 = vmul.f32 %v916, 0.2
        %v1134 = vmul.f32 %v918, 0.2
        %v1135 = vmul.f32 %v921, 0.2
        %v1136 = vmul.f32 %v923, 0.2
        %v1137 = vmul.f32 %v926, 0.2
        %v1138 = vmul.f32 %v928, 0.2
        %v1139 = vmul.f32 %v931, 0.2
        %v1140 = vmul.f32 %v933, 0.2
        %v1141 = vmul.f32 %v936, 0.2
        %v1142 = vmul.f32 %v938, 0.2
        %v1143 = vmul.f32 %v941, 0.2
        %v1144 = vmul.f32 %v943, 0.2
        %v1145 = vmul.f32 %v946, 0.2
        %v1146 = vmul.f32 %v948, 0.2
        %v1147 = vmul.f32 %v951, 0.2
        %v1148 = vmul.f32 %v953, 0.2
        %v1149 = vmul.f32 %v956, 0.2
        %v1150 = vmul.f32 %v958, 0.2
        %v1151 = vmul.f32 %v961, 0.2
        %v1152 = vmul.f32 %v963, 0.2
        %v1153 = vmul.f32 %v966, 0.2
        %v1154 = vmul.f32 %v968, 0.2
        %v1155 = vmul.f32 %v971, 0.2
        %v1156 = vmul.f32 %v973, 0.2
        %v1157 = vmul.f32 %v976, 0.2
        %v1158 = vmul.f32 %v978, 0.2
        %v1159 = vmul.f32 %v981, 0.2
        %v1160 = vmul.f32 %v983, 0.2
        %v1161 = vmul.f32 %v986, 0.2
        %v1162 = vmul.f32 %v988, 0.2
        %v1163 = vmul.f32 %v991, 0.2
        %v1164 = vmul.f32 %v993, 0.2
        %v1165 = vmul.f32 %v996, 0.2
        %v1166 = vmul.f32 %v998, 0.2
        %v1167 = vmul.f32 %v1001, 0.2
        %v1168 = vmul.f32 %v1003, 0.2
        %v1169 = vmul.f32 %v1006, 0.2
        %v1170 = vmul.f32 %v1008, 0.2
        %v1171 = vmul.f32 %v1011, 0.2
        %v1172 = vmul.f32 %v1013, 0.2
        %v1173 = vmul.f32 %v1016, 0.2
        %v1174 = vmul.f32 %v1018, 0.2
        %v1175 = vmul.f32 %v1021, 0.2
        %v1176 = vmul.f32 %v1023, 0.2
        %v1177 = vmul.f32 %v1026, 0.2
        %v1178 = vmul.f32 %v1028, 0.2
        %v1179 = vmul.f32 %v1031, 0.2
        %v1180 = vmul.f32 %v1033, 0.2
        %v1181 = vmul.f32 %v1036, 0.2
        %v1182 = vmul.f32 %v1038, 0.2
        %v1183 = vmul.f32 %v1041, 0.2
        %v1184 = vmul.f32 %v1043, 0.2
        %v1185 = vmul.f32 %v1046, 0.2
        %v1186 = vmul.f32 %v1048, 0.2
        %v1187 = vmul.f32 %v1051, 0.2
        %v1188 = vmul.f32 %v1053, 0.2
        %v1189 = vmul.f32 %v1056, 0.2
        %v1190 = vmul.f32 %v1058, 0.2
        %v1191 = vmul.f32 %v1061, 0.2
        %v1192 = vmul.f32 %v1063, 0.2
        %v1193 = vsel %vm1065, %v906, %v1129
        %v1194 = vsel %vm1066, %v908, %v1130
        %v1195 = vsel %vm1067, %v911, %v1131
        %v1196 = vsel %vm1068, %v913, %v1132
        %v1197 = vsel %vm1069, %v916, %v1133
        %v1198 = vsel %vm1070, %v918, %v1134
        %v1199 = vsel %vm1071, %v921, %v1135
        %v1200 = vsel %vm1072, %v923, %v1136
        %v1201 = vsel %vm1073, %v926, %v1137
        %v1202 = vsel %vm1074, %v928, %v1138
        %v1203 = vsel %vm1075, %v931, %v1139
        %v1204 = vsel %vm1076, %v933, %v1140
        %v1205 = vsel %vm1077, %v936, %v1141
        %v1206 = vsel %vm1078, %v938, %v1142
        %v1207 = vsel %vm1079, %v941, %v1143
        %v1208 = vsel %vm1080, %v943, %v1144
        %v1209 = vsel %vm1081, %v946, %v1145
        %v1210 = vsel %vm1082, %v948, %v1146
        %v1211 = vsel %vm1083, %v951, %v1147
        %v1212 = vsel %vm1084, %v953, %v1148
        %v1213 = vsel %vm1085, %v956, %v1149
        %v1214 = vsel %vm1086, %v958, %v1150
        %v1215 = vsel %vm1087, %v961, %v1151
        %v1216 = vsel %vm1088, %v963, %v1152
        %v1217 = vsel %vm1089, %v966, %v1153
        %v1218 = vsel %vm1090, %v968, %v1154
        %v1219 = vsel %vm1091, %v971, %v1155
        %v1220 = vsel %vm1092, %v973, %v1156
        %v1221 = vsel %vm1093, %v976, %v1157
        %v1222 = vsel %vm1094, %v978, %v1158
        %v1223 = vsel %vm1095, %v981, %v1159
        %v1224 = vsel %vm1096, %v983, %v1160
        %v1225 = vsel %vm1097, %v986, %v1161
        %v1226 = vsel %vm1098, %v988, %v1162
        %v1227 = vsel %vm1099, %v991, %v1163
        %v1228 = vsel %vm1100, %v993, %v1164
        %v1229 = vsel %vm1101, %v996, %v1165
        %v1230 = vsel %vm1102, %v998, %v1166
        %v1231 = vsel %vm1103, %v1001, %v1167
        %v1232 = vsel %vm1104, %v1003, %v1168
        %v1233 = vsel %vm1105, %v1006, %v1169
        %v1234 = vsel %vm1106, %v1008, %v1170
        %v1235 = vsel %vm1107, %v1011, %v1171
        %v1236 = vsel %vm1108, %v1013, %v1172
        %v1237 = vsel %vm1109, %v1016, %v1173
        %v1238 = vsel %vm1110, %v1018, %v1174
        %v1239 = vsel %vm1111, %v1021, %v1175
        %v1240 = vsel %vm1112, %v1023, %v1176
        %v1241 = vsel %vm1113, %v1026, %v1177
        %v1242 = vsel %vm1114, %v1028, %v1178
        %v1243 = vsel %vm1115, %v1031, %v1179
        %v1244 = vsel %vm1116, %v1033, %v1180
        %v1245 = vsel %vm1117, %v1036, %v1181
        %v1246 = vsel %vm1118, %v1038, %v1182
        %v1247 = vsel %vm1119, %v1041, %v1183
        %v1248 = vsel %vm1120, %v1043, %v1184
        %v1249 = vsel %vm1121, %v1046, %v1185
        %v1250 = vsel %vm1122, %v1048, %v1186
        %v1251 = vsel %vm1123, %v1051, %v1187
        %v1252 = vsel %vm1124, %v1053, %v1188
        %v1253 = vsel %vm1125, %v1056, %v1189
        %v1254 = vsel %vm1126, %v1058, %v1190
        %v1255 = vsel %vm1127, %v1061, %v1191
        %v1256 = vsel %vm1128, %v1063, %v1192
        %v1257 = vpack.c.bf16 %v1194, %v1193
        %v1258 = vpack.c.bf16 %v1196, %v1195
        %v1259 = vpack.c.bf16 %v1198, %v1197
        %v1260 = vpack.c.bf16 %v1200, %v1199
        %v1261 = vpack.c.bf16 %v1202, %v1201
        %v1262 = vpack.c.bf16 %v1204, %v1203
        %v1263 = vpack.c.bf16 %v1206, %v1205
        %v1264 = vpack.c.bf16 %v1208, %v1207
        %v1265 = vpack.c.bf16 %v1210, %v1209
        %v1266 = vpack.c.bf16 %v1212, %v1211
        %v1267 = vpack.c.bf16 %v1214, %v1213
        %v1268 = vpack.c.bf16 %v1216, %v1215
        %v1269 = vpack.c.bf16 %v1218, %v1217
        %v1270 = vpack.c.bf16 %v1220, %v1219
        %v1271 = vpack.c.bf16 %v1222, %v1221
        %v1272 = vpack.c.bf16 %v1224, %v1223
        %v1273 = vpack.c.bf16 %v1226, %v1225
        %v1274 = vpack.c.bf16 %v1228, %v1227
        %v1275 = vpack.c.bf16 %v1230, %v1229
        %v1276 = vpack.c.bf16 %v1232, %v1231
        %v1277 = vpack.c.bf16 %v1234, %v1233
        %v1278 = vpack.c.bf16 %v1236, %v1235
        %v1279 = vpack.c.bf16 %v1238, %v1237
        %v1280 = vpack.c.bf16 %v1240, %v1239
        %v1281 = vpack.c.bf16 %v1242, %v1241
        %v1282 = vpack.c.bf16 %v1244, %v1243
        %v1283 = vpack.c.bf16 %v1246, %v1245
        %v1284 = vpack.c.bf16 %v1248, %v1247
        %v1285 = vpack.c.bf16 %v1250, %v1249
        %v1286 = vpack.c.bf16 %v1252, %v1251
        %v1287 = vpack.c.bf16 %v1254, %v1253
        %v1288 = vpack.c.bf16 %v1256, %v1255
        %v1289 = vld [vmem:[%s4] sm:$0xf]
        %v1290 = vld [vmem:[%s4 + $0x4] sm:$0xf]
        %v1291 = vld [vmem:[%s4 + $0x8] sm:$0xf]
        %v1292 = vld [vmem:[%s4 + $0xc] sm:$0xf]
        %v1293 = vld [vmem:[%s4 + $0x10] sm:$0xf]
        %v1294 = vld [vmem:[%s4 + $0x14] sm:$0xf]
        %v1295 = vld [vmem:[%s4 + $0x18] sm:$0xf]
        %v1296 = vld [vmem:[%s4 + $0x1c] sm:$0xf]
        %v1297 = vld [vmem:[%s4 + $0x20] sm:$0xf]
        %v1298 = vld [vmem:[%s4 + $0x24] sm:$0xf]
        %v1299 = vld [vmem:[%s4 + $0x28] sm:$0xf]
        %v1300 = vld [vmem:[%s4 + $0x2c] sm:$0xf]
        %v1301 = vld [vmem:[%s4 + $0x30] sm:$0xf]
        %v1302 = vld [vmem:[%s4 + $0x34] sm:$0xf]
        %v1303 = vld [vmem:[%s4 + $0x38] sm:$0xf]
        %v1304 = vld [vmem:[%s4 + $0x3c] sm:$0xf]
        %v1305 = vld [vmem:[%s5] sm:$0x1]
        %v1307 = vperm.slane %v1305, 0
        %v1325 = vunpack.c.l.b16 %v1289
        %v1326 = vunpack.c.l.b16 %v1290
        %v1327 = vunpack.c.l.b16 %v1291
        %v1328 = vunpack.c.l.b16 %v1292
        %v1329 = vunpack.c.l.b16 %v1293
        %v1330 = vunpack.c.l.b16 %v1294
        %v1331 = vunpack.c.l.b16 %v1295
        %v1332 = vunpack.c.l.b16 %v1296
        %v1333 = vunpack.c.l.b16 %v1297
        %v1334 = vunpack.c.l.b16 %v1298
        %v1335 = vunpack.c.l.b16 %v1299
        %v1336 = vunpack.c.l.b16 %v1300
        %v1337 = vunpack.c.l.b16 %v1301
        %v1338 = vunpack.c.l.b16 %v1302
        %v1339 = vunpack.c.l.b16 %v1303
        %v1340 = vunpack.c.l.b16 %v1304
        %v1341 = vpack.c.b16 %v1326, %v1325
        %v1342 = vpack.c.b16 %v1328, %v1327
        %v1343 = vpack.c.b16 %v1330, %v1329
        %v1344 = vpack.c.b16 %v1332, %v1331
        %v1345 = vpack.c.b16 %v1334, %v1333
        %v1346 = vpack.c.b16 %v1336, %v1335
        %v1347 = vpack.c.b16 %v1338, %v1337
        %v1348 = vpack.c.b16 %v1340, %v1339
        %1357 = vmatpush.bf16.msra.mxu0 %v1348
        %1358 = vmatpush.bf16.msra.mxu0 %v1347
        %1359 = vmatpush.bf16.msra.mxu0 %v1346
        %1360 = vmatpush.bf16.msra.mxu0 %v1345
        %1361 = vmatpush.bf16.msra.mxu0 %v1344
        %1362 = vmatpush.bf16.msra.mxu0 %v1343
        %1363 = vmatpush.bf16.msra.mxu0 %v1342
        %1364 = vmatpush.bf16.msra.mxu0 %v1341
        %1365 = vmatmul.bf16.gmra.mxu0 %v1257
        %v1366 = vpop.f32.mrf.mxu0
        %v1367 = vadd.f32 %v1307, %v1366
        %v1368 = vpop.f32.mrf.mxu0
        %v1369 = vadd.f32 %v1307, %v1368
        %1370 = vmatmul.bf16.gmra.mxu0 %v1258
        %v1371 = vpop.f32.mrf.mxu0
        %v1372 = vadd.f32 %v1307, %v1371
        %v1373 = vpop.f32.mrf.mxu0
        %v1374 = vadd.f32 %v1307, %v1373
        %1375 = vmatmul.bf16.gmra.mxu0 %v1259
        %v1376 = vpop.f32.mrf.mxu0
        %v1377 = vadd.f32 %v1307, %v1376
        %v1378 = vpop.f32.mrf.mxu0
        %v1379 = vadd.f32 %v1307, %v1378
        %1380 = vmatmul.bf16.gmra.mxu0 %v1260
        %v1381 = vpop.f32.mrf.mxu0
        %v1382 = vadd.f32 %v1307, %v1381
        %v1383 = vpop.f32.mrf.mxu0
        %v1384 = vadd.f32 %v1307, %v1383
        %1385 = vmatmul.bf16.gmra.mxu0 %v1261
        %v1386 = vpop.f32.mrf.mxu0
        %v1387 = vadd.f32 %v1307, %v1386
        %v1388 = vpop.f32.mrf.mxu0
        %v1389 = vadd.f32 %v1307, %v1388
        %1390 = vmatmul.bf16.gmra.mxu0 %v1262
        %v1391 = vpop.f32.mrf.mxu0
        %v1392 = vadd.f32 %v1307, %v1391
        %v1393 = vpop.f32.mrf.mxu0
        %v1394 = vadd.f32 %v1307, %v1393
        %1395 = vmatmul.bf16.gmra.mxu0 %v1263
        %v1396 = vpop.f32.mrf.mxu0
        %v1397 = vadd.f32 %v1307, %v1396
        %v1398 = vpop.f32.mrf.mxu0
        %v1399 = vadd.f32 %v1307, %v1398
        %1400 = vmatmul.bf16.gmra.mxu0 %v1264
        %v1401 = vpop.f32.mrf.mxu0
        %v1402 = vadd.f32 %v1307, %v1401
        %v1403 = vpop.f32.mrf.mxu0
        %v1404 = vadd.f32 %v1307, %v1403
        %1405 = vmatmul.bf16.gmra.mxu0 %v1265
        %v1406 = vpop.f32.mrf.mxu0
        %v1407 = vadd.f32 %v1307, %v1406
        %v1408 = vpop.f32.mrf.mxu0
        %v1409 = vadd.f32 %v1307, %v1408
        %1410 = vmatmul.bf16.gmra.mxu0 %v1266
        %v1411 = vpop.f32.mrf.mxu0
        %v1412 = vadd.f32 %v1307, %v1411
        %v1413 = vpop.f32.mrf.mxu0
        %v1414 = vadd.f32 %v1307, %v1413
        %1415 = vmatmul.bf16.gmra.mxu0 %v1267
        %v1416 = vpop.f32.mrf.mxu0
        %v1417 = vadd.f32 %v1307, %v1416
        %v1418 = vpop.f32.mrf.mxu0
        %v1419 = vadd.f32 %v1307, %v1418
        %1420 = vmatmul.bf16.gmra.mxu0 %v1268
        %v1421 = vpop.f32.mrf.mxu0
        %v1422 = vadd.f32 %v1307, %v1421
        %v1423 = vpop.f32.mrf.mxu0
        %v1424 = vadd.f32 %v1307, %v1423
        %1425 = vmatmul.bf16.gmra.mxu0 %v1269
        %v1426 = vpop.f32.mrf.mxu0
        %v1427 = vadd.f32 %v1307, %v1426
        %v1428 = vpop.f32.mrf.mxu0
        %v1429 = vadd.f32 %v1307, %v1428
        %1430 = vmatmul.bf16.gmra.mxu0 %v1270
        %v1431 = vpop.f32.mrf.mxu0
        %v1432 = vadd.f32 %v1307, %v1431
        %v1433 = vpop.f32.mrf.mxu0
        %v1434 = vadd.f32 %v1307, %v1433
        %1435 = vmatmul.bf16.gmra.mxu0 %v1271
        %v1436 = vpop.f32.mrf.mxu0
        %v1437 = vadd.f32 %v1307, %v1436
        %v1438 = vpop.f32.mrf.mxu0
        %v1439 = vadd.f32 %v1307, %v1438
        %1440 = vmatmul.bf16.gmra.mxu0 %v1272
        %v1441 = vpop.f32.mrf.mxu0
        %v1442 = vadd.f32 %v1307, %v1441
        %v1443 = vpop.f32.mrf.mxu0
        %v1444 = vadd.f32 %v1307, %v1443
        %1445 = vmatmul.bf16.gmra.mxu0 %v1273
        %v1446 = vpop.f32.mrf.mxu0
        %v1447 = vadd.f32 %v1307, %v1446
        %v1448 = vpop.f32.mrf.mxu0
        %v1449 = vadd.f32 %v1307, %v1448
        %1450 = vmatmul.bf16.gmra.mxu0 %v1274
        %v1451 = vpop.f32.mrf.mxu0
        %v1452 = vadd.f32 %v1307, %v1451
        %v1453 = vpop.f32.mrf.mxu0
        %v1454 = vadd.f32 %v1307, %v1453
        %1455 = vmatmul.bf16.gmra.mxu0 %v1275
        %v1456 = vpop.f32.mrf.mxu0
        %v1457 = vadd.f32 %v1307, %v1456
        %v1458 = vpop.f32.mrf.mxu0
        %v1459 = vadd.f32 %v1307, %v1458
        %1460 = vmatmul.bf16.gmra.mxu0 %v1276
        %v1461 = vpop.f32.mrf.mxu0
        %v1462 = vadd.f32 %v1307, %v1461
        %v1463 = vpop.f32.mrf.mxu0
        %v1464 = vadd.f32 %v1307, %v1463
        %1465 = vmatmul.bf16.gmra.mxu0 %v1277
        %v1466 = vpop.f32.mrf.mxu0
        %v1467 = vadd.f32 %v1307, %v1466
        %v1468 = vpop.f32.mrf.mxu0
        %v1469 = vadd.f32 %v1307, %v1468
        %1470 = vmatmul.bf16.gmra.mxu0 %v1278
        %v1471 = vpop.f32.mrf.mxu0
        %v1472 = vadd.f32 %v1307, %v1471
        %v1473 = vpop.f32.mrf.mxu0
        %v1474 = vadd.f32 %v1307, %v1473
        %1475 = vmatmul.bf16.gmra.mxu0 %v1279
        %v1476 = vpop.f32.mrf.mxu0
        %v1477 = vadd.f32 %v1307, %v1476
        %v1478 = vpop.f32.mrf.mxu0
        %v1479 = vadd.f32 %v1307, %v1478
        %1480 = vmatmul.bf16.gmra.mxu0 %v1280
        %v1481 = vpop.f32.mrf.mxu0
        %v1482 = vadd.f32 %v1307, %v1481
        %v1483 = vpop.f32.mrf.mxu0
        %v1484 = vadd.f32 %v1307, %v1483
        %1485 = vmatmul.bf16.gmra.mxu0 %v1281
        %v1486 = vpop.f32.mrf.mxu0
        %v1487 = vadd.f32 %v1307, %v1486
        %v1488 = vpop.f32.mrf.mxu0
        %v1489 = vadd.f32 %v1307, %v1488
        %1490 = vmatmul.bf16.gmra.mxu0 %v1282
        %v1491 = vpop.f32.mrf.mxu0
        %v1492 = vadd.f32 %v1307, %v1491
        %v1493 = vpop.f32.mrf.mxu0
        %v1494 = vadd.f32 %v1307, %v1493
        %1495 = vmatmul.bf16.gmra.mxu0 %v1283
        %v1496 = vpop.f32.mrf.mxu0
        %v1497 = vadd.f32 %v1307, %v1496
        %v1498 = vpop.f32.mrf.mxu0
        %v1499 = vadd.f32 %v1307, %v1498
        %1500 = vmatmul.bf16.gmra.mxu0 %v1284
        %v1501 = vpop.f32.mrf.mxu0
        %v1502 = vadd.f32 %v1307, %v1501
        %v1503 = vpop.f32.mrf.mxu0
        %v1504 = vadd.f32 %v1307, %v1503
        %1505 = vmatmul.bf16.gmra.mxu0 %v1285
        %v1506 = vpop.f32.mrf.mxu0
        %v1507 = vadd.f32 %v1307, %v1506
        %v1508 = vpop.f32.mrf.mxu0
        %v1509 = vadd.f32 %v1307, %v1508
        %1510 = vmatmul.bf16.gmra.mxu0 %v1286
        %v1511 = vpop.f32.mrf.mxu0
        %v1512 = vadd.f32 %v1307, %v1511
        %v1513 = vpop.f32.mrf.mxu0
        %v1514 = vadd.f32 %v1307, %v1513
        %1515 = vmatmul.bf16.gmra.mxu0 %v1287
        %v1516 = vpop.f32.mrf.mxu0
        %v1517 = vadd.f32 %v1307, %v1516
        %v1518 = vpop.f32.mrf.mxu0
        %v1519 = vadd.f32 %v1307, %v1518
        %1520 = vmatmul.bf16.gmra.mxu0 %v1288
        %v1521 = vpop.f32.mrf.mxu0
        %v1522 = vadd.f32 %v1307, %v1521
        %v1523 = vpop.f32.mrf.mxu0
        %v1524 = vadd.f32 %v1307, %v1523
        %1525 = vdwg.mxu0
        %vm1526 = vcmp.ge.f32.partialorder %v1367, 0.0
        %vm1527 = vcmp.ge.f32.partialorder %v1369, 0.0
        %vm1528 = vcmp.ge.f32.partialorder %v1372, 0.0
        %vm1529 = vcmp.ge.f32.partialorder %v1374, 0.0
        %vm1530 = vcmp.ge.f32.partialorder %v1377, 0.0
        %vm1531 = vcmp.ge.f32.partialorder %v1379, 0.0
        %vm1532 = vcmp.ge.f32.partialorder %v1382, 0.0
        %vm1533 = vcmp.ge.f32.partialorder %v1384, 0.0
        %vm1534 = vcmp.ge.f32.partialorder %v1387, 0.0
        %vm1535 = vcmp.ge.f32.partialorder %v1389, 0.0
        %vm1536 = vcmp.ge.f32.partialorder %v1392, 0.0
        %vm1537 = vcmp.ge.f32.partialorder %v1394, 0.0
        %vm1538 = vcmp.ge.f32.partialorder %v1397, 0.0
        %vm1539 = vcmp.ge.f32.partialorder %v1399, 0.0
        %vm1540 = vcmp.ge.f32.partialorder %v1402, 0.0
        %vm1541 = vcmp.ge.f32.partialorder %v1404, 0.0
        %vm1542 = vcmp.ge.f32.partialorder %v1407, 0.0
        %vm1543 = vcmp.ge.f32.partialorder %v1409, 0.0
        %vm1544 = vcmp.ge.f32.partialorder %v1412, 0.0
        %vm1545 = vcmp.ge.f32.partialorder %v1414, 0.0
        %vm1546 = vcmp.ge.f32.partialorder %v1417, 0.0
        %vm1547 = vcmp.ge.f32.partialorder %v1419, 0.0
        %vm1548 = vcmp.ge.f32.partialorder %v1422, 0.0
        %vm1549 = vcmp.ge.f32.partialorder %v1424, 0.0
        %vm1550 = vcmp.ge.f32.partialorder %v1427, 0.0
        %vm1551 = vcmp.ge.f32.partialorder %v1429, 0.0
        %vm1552 = vcmp.ge.f32.partialorder %v1432, 0.0
        %vm1553 = vcmp.ge.f32.partialorder %v1434, 0.0
        %vm1554 = vcmp.ge.f32.partialorder %v1437, 0.0
        %vm1555 = vcmp.ge.f32.partialorder %v1439, 0.0
        %vm1556 = vcmp.ge.f32.partialorder %v1442, 0.0
        %vm1557 = vcmp.ge.f32.partialorder %v1444, 0.0
        %vm1558 = vcmp.ge.f32.partialorder %v1447, 0.0
        %vm1559 = vcmp.ge.f32.partialorder %v1449, 0.0
        %vm1560 = vcmp.ge.f32.partialorder %v1452, 0.0
        %vm1561 = vcmp.ge.f32.partialorder %v1454, 0.0
        %vm1562 = vcmp.ge.f32.partialorder %v1457, 0.0
        %vm1563 = vcmp.ge.f32.partialorder %v1459, 0.0
        %vm1564 = vcmp.ge.f32.partialorder %v1462, 0.0
        %vm1565 = vcmp.ge.f32.partialorder %v1464, 0.0
        %vm1566 = vcmp.ge.f32.partialorder %v1467, 0.0
        %vm1567 = vcmp.ge.f32.partialorder %v1469, 0.0
        %vm1568 = vcmp.ge.f32.partialorder %v1472, 0.0
        %vm1569 = vcmp.ge.f32.partialorder %v1474, 0.0
        %vm1570 = vcmp.ge.f32.partialorder %v1477, 0.0
        %vm1571 = vcmp.ge.f32.partialorder %v1479, 0.0
        %vm1572 = vcmp.ge.f32.partialorder %v1482, 0.0
        %vm1573 = vcmp.ge.f32.partialorder %v1484, 0.0
        %vm1574 = vcmp.ge.f32.partialorder %v1487, 0.0
        %vm1575 = vcmp.ge.f32.partialorder %v1489, 0.0
        %vm1576 = vcmp.ge.f32.partialorder %v1492, 0.0
        %vm1577 = vcmp.ge.f32.partialorder %v1494, 0.0
        %vm1578 = vcmp.ge.f32.partialorder %v1497, 0.0
        %vm1579 = vcmp.ge.f32.partialorder %v1499, 0.0
        %vm1580 = vcmp.ge.f32.partialorder %v1502, 0.0
        %vm1581 = vcmp.ge.f32.partialorder %v1504, 0.0
        %vm1582 = vcmp.ge.f32.partialorder %v1507, 0.0
        %vm1583 = vcmp.ge.f32.partialorder %v1509, 0.0
        %vm1584 = vcmp.ge.f32.partialorder %v1512, 0.0
        %vm1585 = vcmp.ge.f32.partialorder %v1514, 0.0
        %vm1586 = vcmp.ge.f32.partialorder %v1517, 0.0
        %vm1587 = vcmp.ge.f32.partialorder %v1519, 0.0
        %vm1588 = vcmp.ge.f32.partialorder %v1522, 0.0
        %vm1589 = vcmp.ge.f32.partialorder %v1524, 0.0
        %v1590 = vmul.f32 %v1367, 0.2
        %v1591 = vmul.f32 %v1369, 0.2
        %v1592 = vmul.f32 %v1372, 0.2
        %v1593 = vmul.f32 %v1374, 0.2
        %v1594 = vmul.f32 %v1377, 0.2
        %v1595 = vmul.f32 %v1379, 0.2
        %v1596 = vmul.f32 %v1382, 0.2
        %v1597 = vmul.f32 %v1384, 0.2
        %v1598 = vmul.f32 %v1387, 0.2
        %v1599 = vmul.f32 %v1389, 0.2
        %v1600 = vmul.f32 %v1392, 0.2
        %v1601 = vmul.f32 %v1394, 0.2
        %v1602 = vmul.f32 %v1397, 0.2
        %v1603 = vmul.f32 %v1399, 0.2
        %v1604 = vmul.f32 %v1402, 0.2
        %v1605 = vmul.f32 %v1404, 0.2
        %v1606 = vmul.f32 %v1407, 0.2
        %v1607 = vmul.f32 %v1409, 0.2
        %v1608 = vmul.f32 %v1412, 0.2
        %v1609 = vmul.f32 %v1414, 0.2
        %v1610 = vmul.f32 %v1417, 0.2
        %v1611 = vmul.f32 %v1419, 0.2
        %v1612 = vmul.f32 %v1422, 0.2
        %v1613 = vmul.f32 %v1424, 0.2
        %v1614 = vmul.f32 %v1427, 0.2
        %v1615 = vmul.f32 %v1429, 0.2
        %v1616 = vmul.f32 %v1432, 0.2
        %v1617 = vmul.f32 %v1434, 0.2
        %v1618 = vmul.f32 %v1437, 0.2
        %v1619 = vmul.f32 %v1439, 0.2
        %v1620 = vmul.f32 %v1442, 0.2
        %v1621 = vmul.f32 %v1444, 0.2
        %v1622 = vmul.f32 %v1447, 0.2
        %v1623 = vmul.f32 %v1449, 0.2
        %v1624 = vmul.f32 %v1452, 0.2
        %v1625 = vmul.f32 %v1454, 0.2
        %v1626 = vmul.f32 %v1457, 0.2
        %v1627 = vmul.f32 %v1459, 0.2
        %v1628 = vmul.f32 %v1462, 0.2
        %v1629 = vmul.f32 %v1464, 0.2
        %v1630 = vmul.f32 %v1467, 0.2
        %v1631 = vmul.f32 %v1469, 0.2
        %v1632 = vmul.f32 %v1472, 0.2
        %v1633 = vmul.f32 %v1474, 0.2
        %v1634 = vmul.f32 %v1477, 0.2
        %v1635 = vmul.f32 %v1479, 0.2
        %v1636 = vmul.f32 %v1482, 0.2
        %v1637 = vmul.f32 %v1484, 0.2
        %v1638 = vmul.f32 %v1487, 0.2
        %v1639 = vmul.f32 %v1489, 0.2
        %v1640 = vmul.f32 %v1492, 0.2
        %v1641 = vmul.f32 %v1494, 0.2
        %v1642 = vmul.f32 %v1497, 0.2
        %v1643 = vmul.f32 %v1499, 0.2
        %v1644 = vmul.f32 %v1502, 0.2
        %v1645 = vmul.f32 %v1504, 0.2
        %v1646 = vmul.f32 %v1507, 0.2
        %v1647 = vmul.f32 %v1509, 0.2
        %v1648 = vmul.f32 %v1512, 0.2
        %v1649 = vmul.f32 %v1514, 0.2
        %v1650 = vmul.f32 %v1517, 0.2
        %v1651 = vmul.f32 %v1519, 0.2
        %v1652 = vmul.f32 %v1522, 0.2
        %v1653 = vmul.f32 %v1524, 0.2
        %v1654 = vsel %vm1526, %v1367, %v1590
        %v1655 = vsel %vm1527, %v1369, %v1591
        %v1656 = vsel %vm1528, %v1372, %v1592
        %v1657 = vsel %vm1529, %v1374, %v1593
        %v1658 = vsel %vm1530, %v1377, %v1594
        %v1659 = vsel %vm1531, %v1379, %v1595
        %v1660 = vsel %vm1532, %v1382, %v1596
        %v1661 = vsel %vm1533, %v1384, %v1597
        %v1662 = vsel %vm1534, %v1387, %v1598
        %v1663 = vsel %vm1535, %v1389, %v1599
        %v1664 = vsel %vm1536, %v1392, %v1600
        %v1665 = vsel %vm1537, %v1394, %v1601
        %v1666 = vsel %vm1538, %v1397, %v1602
        %v1667 = vsel %vm1539, %v1399, %v1603
        %v1668 = vsel %vm1540, %v1402, %v1604
        %v1669 = vsel %vm1541, %v1404, %v1605
        %v1670 = vsel %vm1542, %v1407, %v1606
        %v1671 = vsel %vm1543, %v1409, %v1607
        %v1672 = vsel %vm1544, %v1412, %v1608
        %v1673 = vsel %vm1545, %v1414, %v1609
        %v1674 = vsel %vm1546, %v1417, %v1610
        %v1675 = vsel %vm1547, %v1419, %v1611
        %v1676 = vsel %vm1548, %v1422, %v1612
        %v1677 = vsel %vm1549, %v1424, %v1613
        %v1678 = vsel %vm1550, %v1427, %v1614
        %v1679 = vsel %vm1551, %v1429, %v1615
        %v1680 = vsel %vm1552, %v1432, %v1616
        %v1681 = vsel %vm1553, %v1434, %v1617
        %v1682 = vsel %vm1554, %v1437, %v1618
        %v1683 = vsel %vm1555, %v1439, %v1619
        %v1684 = vsel %vm1556, %v1442, %v1620
        %v1685 = vsel %vm1557, %v1444, %v1621
        %v1686 = vsel %vm1558, %v1447, %v1622
        %v1687 = vsel %vm1559, %v1449, %v1623
        %v1688 = vsel %vm1560, %v1452, %v1624
        %v1689 = vsel %vm1561, %v1454, %v1625
        %v1690 = vsel %vm1562, %v1457, %v1626
        %v1691 = vsel %vm1563, %v1459, %v1627
        %v1692 = vsel %vm1564, %v1462, %v1628
        %v1693 = vsel %vm1565, %v1464, %v1629
        %v1694 = vsel %vm1566, %v1467, %v1630
        %v1695 = vsel %vm1567, %v1469, %v1631
        %v1696 = vsel %vm1568, %v1472, %v1632
        %v1697 = vsel %vm1569, %v1474, %v1633
        %v1698 = vsel %vm1570, %v1477, %v1634
        %v1699 = vsel %vm1571, %v1479, %v1635
        %v1700 = vsel %vm1572, %v1482, %v1636
        %v1701 = vsel %vm1573, %v1484, %v1637
        %v1702 = vsel %vm1574, %v1487, %v1638
        %v1703 = vsel %vm1575, %v1489, %v1639
        %v1704 = vsel %vm1576, %v1492, %v1640
        %v1705 = vsel %vm1577, %v1494, %v1641
        %v1706 = vsel %vm1578, %v1497, %v1642
        %v1707 = vsel %vm1579, %v1499, %v1643
        %v1708 = vsel %vm1580, %v1502, %v1644
        %v1709 = vsel %vm1581, %v1504, %v1645
        %v1710 = vsel %vm1582, %v1507, %v1646
        %v1711 = vsel %vm1583, %v1509, %v1647
        %v1712 = vsel %vm1584, %v1512, %v1648
        %v1713 = vsel %vm1585, %v1514, %v1649
        %v1714 = vsel %vm1586, %v1517, %v1650
        %v1715 = vsel %vm1587, %v1519, %v1651
        %v1716 = vsel %vm1588, %v1522, %v1652
        %v1717 = vsel %vm1589, %v1524, %v1653
        %v1718 = vpack.c.bf16 %v1655, %v1654
        %v1719 = vpack.c.bf16 %v1657, %v1656
        %v1720 = vpack.c.bf16 %v1659, %v1658
        %v1721 = vpack.c.bf16 %v1661, %v1660
        %v1722 = vpack.c.bf16 %v1663, %v1662
        %v1723 = vpack.c.bf16 %v1665, %v1664
        %v1724 = vpack.c.bf16 %v1667, %v1666
        %v1725 = vpack.c.bf16 %v1669, %v1668
        %v1726 = vpack.c.bf16 %v1671, %v1670
        %v1727 = vpack.c.bf16 %v1673, %v1672
        %v1728 = vpack.c.bf16 %v1675, %v1674
        %v1729 = vpack.c.bf16 %v1677, %v1676
        %v1730 = vpack.c.bf16 %v1679, %v1678
        %v1731 = vpack.c.bf16 %v1681, %v1680
        %v1732 = vpack.c.bf16 %v1683, %v1682
        %v1733 = vpack.c.bf16 %v1685, %v1684
        %v1734 = vpack.c.bf16 %v1687, %v1686
        %v1735 = vpack.c.bf16 %v1689, %v1688
        %v1736 = vpack.c.bf16 %v1691, %v1690
        %v1737 = vpack.c.bf16 %v1693, %v1692
        %v1738 = vpack.c.bf16 %v1695, %v1694
        %v1739 = vpack.c.bf16 %v1697, %v1696
        %v1740 = vpack.c.bf16 %v1699, %v1698
        %v1741 = vpack.c.bf16 %v1701, %v1700
        %v1742 = vpack.c.bf16 %v1703, %v1702
        %v1743 = vpack.c.bf16 %v1705, %v1704
        %v1744 = vpack.c.bf16 %v1707, %v1706
        %v1745 = vpack.c.bf16 %v1709, %v1708
        %v1746 = vpack.c.bf16 %v1711, %v1710
        %v1747 = vpack.c.bf16 %v1713, %v1712
        %v1748 = vpack.c.bf16 %v1715, %v1714
        %v1749 = vpack.c.bf16 %v1717, %v1716
        %v1750 = vld [vmem:[%s7] sm:$0xf]
        %v1751 = vld [vmem:[%s7 + $0x4] sm:$0xf]
        %v1752 = vld [vmem:[%s7 + $0x8] sm:$0xf]
        %v1753 = vld [vmem:[%s7 + $0xc] sm:$0xf]
        %v1754 = vld [vmem:[%s7 + $0x10] sm:$0xf]
        %v1755 = vld [vmem:[%s7 + $0x14] sm:$0xf]
        %v1756 = vld [vmem:[%s7 + $0x18] sm:$0xf]
        %v1757 = vld [vmem:[%s7 + $0x1c] sm:$0xf]
        %v1758 = vld [vmem:[%s7 + $0x20] sm:$0xf]
        %v1759 = vld [vmem:[%s7 + $0x24] sm:$0xf]
        %v1760 = vld [vmem:[%s7 + $0x28] sm:$0xf]
        %v1761 = vld [vmem:[%s7 + $0x2c] sm:$0xf]
        %v1762 = vld [vmem:[%s7 + $0x30] sm:$0xf]
        %v1763 = vld [vmem:[%s7 + $0x34] sm:$0xf]
        %v1764 = vld [vmem:[%s7 + $0x38] sm:$0xf]
        %v1765 = vld [vmem:[%s7 + $0x3c] sm:$0xf]
        %v1766 = vld [vmem:[%s8] sm:$0x1]
        %v1768 = vperm.slane %v1766, 0
        %v1786 = vunpack.c.l.b16 %v1750
        %v1787 = vunpack.c.l.b16 %v1751
        %v1788 = vunpack.c.l.b16 %v1752
        %v1789 = vunpack.c.l.b16 %v1753
        %v1790 = vunpack.c.l.b16 %v1754
        %v1791 = vunpack.c.l.b16 %v1755
        %v1792 = vunpack.c.l.b16 %v1756
        %v1793 = vunpack.c.l.b16 %v1757
        %v1794 = vunpack.c.l.b16 %v1758
        %v1795 = vunpack.c.l.b16 %v1759
        %v1796 = vunpack.c.l.b16 %v1760
        %v1797 = vunpack.c.l.b16 %v1761
        %v1798 = vunpack.c.l.b16 %v1762
        %v1799 = vunpack.c.l.b16 %v1763
        %v1800 = vunpack.c.l.b16 %v1764
        %v1801 = vunpack.c.l.b16 %v1765
        %v1802 = vpack.c.b16 %v1787, %v1786
        %v1803 = vpack.c.b16 %v1789, %v1788
        %v1804 = vpack.c.b16 %v1791, %v1790
        %v1805 = vpack.c.b16 %v1793, %v1792
        %v1806 = vpack.c.b16 %v1795, %v1794
        %v1807 = vpack.c.b16 %v1797, %v1796
        %v1808 = vpack.c.b16 %v1799, %v1798
        %v1809 = vpack.c.b16 %v1801, %v1800
        %1818 = vmatpush.bf16.msra.mxu0 %v1809
        %1819 = vmatpush.bf16.msra.mxu0 %v1808
        %1820 = vmatpush.bf16.msra.mxu0 %v1807
        %1821 = vmatpush.bf16.msra.mxu0 %v1806
        %1822 = vmatpush.bf16.msra.mxu0 %v1805
        %1823 = vmatpush.bf16.msra.mxu0 %v1804
        %1824 = vmatpush.bf16.msra.mxu0 %v1803
        %1825 = vmatpush.bf16.msra.mxu0 %v1802
        %1826 = vmatmul.bf16.gmra.mxu0 %v1718
        %v1827 = vpop.f32.mrf.mxu0
        %v1828 = vadd.f32 %v1768, %v1827
        %v1829 = vpop.f32.mrf.mxu0
        %v1830 = vadd.f32 %v1768, %v1829
        %1831 = vmatmul.bf16.gmra.mxu0 %v1719
        %v1832 = vpop.f32.mrf.mxu0
        %v1833 = vadd.f32 %v1768, %v1832
        %v1834 = vpop.f32.mrf.mxu0
        %v1835 = vadd.f32 %v1768, %v1834
        %1836 = vmatmul.bf16.gmra.mxu0 %v1720
        %v1837 = vpop.f32.mrf.mxu0
        %v1838 = vadd.f32 %v1768, %v1837
        %v1839 = vpop.f32.mrf.mxu0
        %v1840 = vadd.f32 %v1768, %v1839
        %1841 = vmatmul.bf16.gmra.mxu0 %v1721
        %v1842 = vpop.f32.mrf.mxu0
        %v1843 = vadd.f32 %v1768, %v1842
        %v1844 = vpop.f32.mrf.mxu0
        %v1845 = vadd.f32 %v1768, %v1844
        %1846 = vmatmul.bf16.gmra.mxu0 %v1722
        %v1847 = vpop.f32.mrf.mxu0
        %v1848 = vadd.f32 %v1768, %v1847
        %v1849 = vpop.f32.mrf.mxu0
        %v1850 = vadd.f32 %v1768, %v1849
        %1851 = vmatmul.bf16.gmra.mxu0 %v1723
        %v1852 = vpop.f32.mrf.mxu0
        %v1853 = vadd.f32 %v1768, %v1852
        %v1854 = vpop.f32.mrf.mxu0
        %v1855 = vadd.f32 %v1768, %v1854
        %1856 = vmatmul.bf16.gmra.mxu0 %v1724
        %v1857 = vpop.f32.mrf.mxu0
        %v1858 = vadd.f32 %v1768, %v1857
        %v1859 = vpop.f32.mrf.mxu0
        %v1860 = vadd.f32 %v1768, %v1859
        %1861 = vmatmul.bf16.gmra.mxu0 %v1725
        %v1862 = vpop.f32.mrf.mxu0
        %v1863 = vadd.f32 %v1768, %v1862
        %v1864 = vpop.f32.mrf.mxu0
        %v1865 = vadd.f32 %v1768, %v1864
        %1866 = vmatmul.bf16.gmra.mxu0 %v1726
        %v1867 = vpop.f32.mrf.mxu0
        %v1868 = vadd.f32 %v1768, %v1867
        %v1869 = vpop.f32.mrf.mxu0
        %v1870 = vadd.f32 %v1768, %v1869
        %1871 = vmatmul.bf16.gmra.mxu0 %v1727
        %v1872 = vpop.f32.mrf.mxu0
        %v1873 = vadd.f32 %v1768, %v1872
        %v1874 = vpop.f32.mrf.mxu0
        %v1875 = vadd.f32 %v1768, %v1874
        %1876 = vmatmul.bf16.gmra.mxu0 %v1728
        %v1877 = vpop.f32.mrf.mxu0
        %v1878 = vadd.f32 %v1768, %v1877
        %v1879 = vpop.f32.mrf.mxu0
        %v1880 = vadd.f32 %v1768, %v1879
        %1881 = vmatmul.bf16.gmra.mxu0 %v1729
        %v1882 = vpop.f32.mrf.mxu0
        %v1883 = vadd.f32 %v1768, %v1882
        %v1884 = vpop.f32.mrf.mxu0
        %v1885 = vadd.f32 %v1768, %v1884
        %1886 = vmatmul.bf16.gmra.mxu0 %v1730
        %v1887 = vpop.f32.mrf.mxu0
        %v1888 = vadd.f32 %v1768, %v1887
        %v1889 = vpop.f32.mrf.mxu0
        %v1890 = vadd.f32 %v1768, %v1889
        %1891 = vmatmul.bf16.gmra.mxu0 %v1731
        %v1892 = vpop.f32.mrf.mxu0
        %v1893 = vadd.f32 %v1768, %v1892
        %v1894 = vpop.f32.mrf.mxu0
        %v1895 = vadd.f32 %v1768, %v1894
        %1896 = vmatmul.bf16.gmra.mxu0 %v1732
        %v1897 = vpop.f32.mrf.mxu0
        %v1898 = vadd.f32 %v1768, %v1897
        %v1899 = vpop.f32.mrf.mxu0
        %v1900 = vadd.f32 %v1768, %v1899
        %1901 = vmatmul.bf16.gmra.mxu0 %v1733
        %v1902 = vpop.f32.mrf.mxu0
        %v1903 = vadd.f32 %v1768, %v1902
        %v1904 = vpop.f32.mrf.mxu0
        %v1905 = vadd.f32 %v1768, %v1904
        %1906 = vmatmul.bf16.gmra.mxu0 %v1734
        %v1907 = vpop.f32.mrf.mxu0
        %v1908 = vadd.f32 %v1768, %v1907
        %v1909 = vpop.f32.mrf.mxu0
        %v1910 = vadd.f32 %v1768, %v1909
        %1911 = vmatmul.bf16.gmra.mxu0 %v1735
        %v1912 = vpop.f32.mrf.mxu0
        %v1913 = vadd.f32 %v1768, %v1912
        %v1914 = vpop.f32.mrf.mxu0
        %v1915 = vadd.f32 %v1768, %v1914
        %1916 = vmatmul.bf16.gmra.mxu0 %v1736
        %v1917 = vpop.f32.mrf.mxu0
        %v1918 = vadd.f32 %v1768, %v1917
        %v1919 = vpop.f32.mrf.mxu0
        %v1920 = vadd.f32 %v1768, %v1919
        %1921 = vmatmul.bf16.gmra.mxu0 %v1737
        %v1922 = vpop.f32.mrf.mxu0
        %v1923 = vadd.f32 %v1768, %v1922
        %v1924 = vpop.f32.mrf.mxu0
        %v1925 = vadd.f32 %v1768, %v1924
        %1926 = vmatmul.bf16.gmra.mxu0 %v1738
        %v1927 = vpop.f32.mrf.mxu0
        %v1928 = vadd.f32 %v1768, %v1927
        %v1929 = vpop.f32.mrf.mxu0
        %v1930 = vadd.f32 %v1768, %v1929
        %1931 = vmatmul.bf16.gmra.mxu0 %v1739
        %v1932 = vpop.f32.mrf.mxu0
        %v1933 = vadd.f32 %v1768, %v1932
        %v1934 = vpop.f32.mrf.mxu0
        %v1935 = vadd.f32 %v1768, %v1934
        %1936 = vmatmul.bf16.gmra.mxu0 %v1740
        %v1937 = vpop.f32.mrf.mxu0
        %v1938 = vadd.f32 %v1768, %v1937
        %v1939 = vpop.f32.mrf.mxu0
        %v1940 = vadd.f32 %v1768, %v1939
        %1941 = vmatmul.bf16.gmra.mxu0 %v1741
        %v1942 = vpop.f32.mrf.mxu0
        %v1943 = vadd.f32 %v1768, %v1942
        %v1944 = vpop.f32.mrf.mxu0
        %v1945 = vadd.f32 %v1768, %v1944
        %1946 = vmatmul.bf16.gmra.mxu0 %v1742
        %v1947 = vpop.f32.mrf.mxu0
        %v1948 = vadd.f32 %v1768, %v1947
        %v1949 = vpop.f32.mrf.mxu0
        %v1950 = vadd.f32 %v1768, %v1949
        %1951 = vmatmul.bf16.gmra.mxu0 %v1743
        %v1952 = vpop.f32.mrf.mxu0
        %v1953 = vadd.f32 %v1768, %v1952
        %v1954 = vpop.f32.mrf.mxu0
        %v1955 = vadd.f32 %v1768, %v1954
        %1956 = vmatmul.bf16.gmra.mxu0 %v1744
        %v1957 = vpop.f32.mrf.mxu0
        %v1958 = vadd.f32 %v1768, %v1957
        %v1959 = vpop.f32.mrf.mxu0
        %v1960 = vadd.f32 %v1768, %v1959
        %1961 = vmatmul.bf16.gmra.mxu0 %v1745
        %v1962 = vpop.f32.mrf.mxu0
        %v1963 = vadd.f32 %v1768, %v1962
        %v1964 = vpop.f32.mrf.mxu0
        %v1965 = vadd.f32 %v1768, %v1964
        %1966 = vmatmul.bf16.gmra.mxu0 %v1746
        %v1967 = vpop.f32.mrf.mxu0
        %v1968 = vadd.f32 %v1768, %v1967
        %v1969 = vpop.f32.mrf.mxu0
        %v1970 = vadd.f32 %v1768, %v1969
        %1971 = vmatmul.bf16.gmra.mxu0 %v1747
        %v1972 = vpop.f32.mrf.mxu0
        %v1973 = vadd.f32 %v1768, %v1972
        %v1974 = vpop.f32.mrf.mxu0
        %v1975 = vadd.f32 %v1768, %v1974
        %1976 = vmatmul.bf16.gmra.mxu0 %v1748
        %v1977 = vpop.f32.mrf.mxu0
        %v1978 = vadd.f32 %v1768, %v1977
        %v1979 = vpop.f32.mrf.mxu0
        %v1980 = vadd.f32 %v1768, %v1979
        %1981 = vmatmul.bf16.gmra.mxu0 %v1749
        %v1982 = vpop.f32.mrf.mxu0
        %v1983 = vadd.f32 %v1768, %v1982
        %v1984 = vpop.f32.mrf.mxu0
        %v1985 = vadd.f32 %v1768, %v1984
        %1986 = vdwg.mxu0
        %v1987 = vld [vmem:[%s569] sm:$0xff]
        %v1988 = vld [vmem:[%s569 + $0x8] sm:$0xff]
        %v1989 = vld [vmem:[%s569 + $0x10] sm:$0xff]
        %v1990 = vld [vmem:[%s569 + $0x18] sm:$0xff]
        %v1991 = vld [vmem:[%s569 + $0x20] sm:$0xff]
        %v1992 = vld [vmem:[%s569 + $0x28] sm:$0xff]
        %v1993 = vld [vmem:[%s569 + $0x30] sm:$0xff]
        %v1994 = vld [vmem:[%s569 + $0x38] sm:$0xff]
        %v1995 = vld [vmem:[%s569 + $0x40] sm:$0xff]
        %v1996 = vld [vmem:[%s569 + $0x48] sm:$0xff]
        %v1997 = vld [vmem:[%s569 + $0x50] sm:$0xff]
        %v1998 = vld [vmem:[%s569 + $0x58] sm:$0xff]
        %v1999 = vld [vmem:[%s569 + $0x60] sm:$0xff]
        %v2000 = vld [vmem:[%s569 + $0x68] sm:$0xff]
        %v2001 = vld [vmem:[%s569 + $0x70] sm:$0xff]
        %v2002 = vld [vmem:[%s569 + $0x78] sm:$0xff]
        %v2003 = vld [vmem:[%s569 + $0x80] sm:$0xff]
        %v2004 = vld [vmem:[%s569 + $0x88] sm:$0xff]
        %v2005 = vld [vmem:[%s569 + $0x90] sm:$0xff]
        %v2006 = vld [vmem:[%s569 + $0x98] sm:$0xff]
        %v2007 = vld [vmem:[%s569 + $0xa0] sm:$0xff]
        %v2008 = vld [vmem:[%s569 + $0xa8] sm:$0xff]
        %v2009 = vld [vmem:[%s569 + $0xb0] sm:$0xff]
        %v2010 = vld [vmem:[%s569 + $0xb8] sm:$0xff]
        %v2011 = vld [vmem:[%s569 + $0xc0] sm:$0xff]
        %v2012 = vld [vmem:[%s569 + $0xc8] sm:$0xff]
        %v2013 = vld [vmem:[%s569 + $0xd0] sm:$0xff]
        %v2014 = vld [vmem:[%s569 + $0xd8] sm:$0xff]
        %v2015 = vld [vmem:[%s569 + $0xe0] sm:$0xff]
        %v2016 = vld [vmem:[%s569 + $0xe8] sm:$0xff]
        %v2017 = vld [vmem:[%s569 + $0xf0] sm:$0xff]
        %v2018 = vld [vmem:[%s569 + $0xf8] sm:$0xff]
        %v2019 = vld [vmem:[%s569 + $0x100] sm:$0xff]
        %v2020 = vld [vmem:[%s569 + $0x108] sm:$0xff]
        %v2021 = vld [vmem:[%s569 + $0x110] sm:$0xff]
        %v2022 = vld [vmem:[%s569 + $0x118] sm:$0xff]
        %v2023 = vld [vmem:[%s569 + $0x120] sm:$0xff]
        %v2024 = vld [vmem:[%s569 + $0x128] sm:$0xff]
        %v2025 = vld [vmem:[%s569 + $0x130] sm:$0xff]
        %v2026 = vld [vmem:[%s569 + $0x138] sm:$0xff]
        %v2027 = vld [vmem:[%s569 + $0x140] sm:$0xff]
        %v2028 = vld [vmem:[%s569 + $0x148] sm:$0xff]
        %v2029 = vld [vmem:[%s569 + $0x150] sm:$0xff]
        %v2030 = vld [vmem:[%s569 + $0x158] sm:$0xff]
        %v2031 = vld [vmem:[%s569 + $0x160] sm:$0xff]
        %v2032 = vld [vmem:[%s569 + $0x168] sm:$0xff]
        %v2033 = vld [vmem:[%s569 + $0x170] sm:$0xff]
        %v2034 = vld [vmem:[%s569 + $0x178] sm:$0xff]
        %v2035 = vld [vmem:[%s569 + $0x180] sm:$0xff]
        %v2036 = vld [vmem:[%s569 + $0x188] sm:$0xff]
        %v2037 = vld [vmem:[%s569 + $0x190] sm:$0xff]
        %v2038 = vld [vmem:[%s569 + $0x198] sm:$0xff]
        %v2039 = vld [vmem:[%s569 + $0x1a0] sm:$0xff]
        %v2040 = vld [vmem:[%s569 + $0x1a8] sm:$0xff]
        %v2041 = vld [vmem:[%s569 + $0x1b0] sm:$0xff]
        %v2042 = vld [vmem:[%s569 + $0x1b8] sm:$0xff]
        %v2043 = vld [vmem:[%s569 + $0x1c0] sm:$0xff]
        %v2044 = vld [vmem:[%s569 + $0x1c8] sm:$0xff]
        %v2045 = vld [vmem:[%s569 + $0x1d0] sm:$0xff]
        %v2046 = vld [vmem:[%s569 + $0x1d8] sm:$0xff]
        %v2047 = vld [vmem:[%s569 + $0x1e0] sm:$0xff]
        %v2048 = vld [vmem:[%s569 + $0x1e8] sm:$0xff]
        %v2049 = vld [vmem:[%s569 + $0x1f0] sm:$0xff]
        %v2050 = vld [vmem:[%s569 + $0x1f8] sm:$0xff]
        %v2051 = vld [vmem:[%s6] sm:$0xf]
        %2053 = vset.pattern.permute.xlu0 0
        %2054 = vperm.xlu0 %2053, %v1987
        %v2055 = vpop.permute.xlu0 %2054
        %2058 = vset.pattern.permute.xlu0 0
        %2059 = vperm.xlu0 %2058, %v1988
        %v2060 = vpop.permute.xlu0 %2059
        %2063 = vset.pattern.permute.xlu0 0
        %2064 = vperm.xlu0 %2063, %v1989
        %v2065 = vpop.permute.xlu0 %2064
        %2068 = vset.pattern.permute.xlu0 0
        %2069 = vperm.xlu0 %2068, %v1990
        %v2070 = vpop.permute.xlu0 %2069
        %2073 = vset.pattern.permute.xlu0 0
        %2074 = vperm.xlu0 %2073, %v1991
        %v2075 = vpop.permute.xlu0 %2074
        %2078 = vset.pattern.permute.xlu0 0
        %2079 = vperm.xlu0 %2078, %v1992
        %v2080 = vpop.permute.xlu0 %2079
        %2083 = vset.pattern.permute.xlu0 0
        %2084 = vperm.xlu0 %2083, %v1993
        %v2085 = vpop.permute.xlu0 %2084
        %2088 = vset.pattern.permute.xlu0 0
        %2089 = vperm.xlu0 %2088, %v1994
        %v2090 = vpop.permute.xlu0 %2089
        %2093 = vset.pattern.permute.xlu0 0
        %2094 = vperm.xlu0 %2093, %v1995
        %v2095 = vpop.permute.xlu0 %2094
        %2098 = vset.pattern.permute.xlu0 0
        %2099 = vperm.xlu0 %2098, %v1996
        %v2100 = vpop.permute.xlu0 %2099
        %2103 = vset.pattern.permute.xlu0 0
        %2104 = vperm.xlu0 %2103, %v1997
        %v2105 = vpop.permute.xlu0 %2104
        %2108 = vset.pattern.permute.xlu0 0
        %2109 = vperm.xlu0 %2108, %v1998
        %v2110 = vpop.permute.xlu0 %2109
        %2113 = vset.pattern.permute.xlu0 0
        %2114 = vperm.xlu0 %2113, %v1999
        %v2115 = vpop.permute.xlu0 %2114
        %2118 = vset.pattern.permute.xlu0 0
        %2119 = vperm.xlu0 %2118, %v2000
        %v2120 = vpop.permute.xlu0 %2119
        %2123 = vset.pattern.permute.xlu0 0
        %2124 = vperm.xlu0 %2123, %v2001
        %v2125 = vpop.permute.xlu0 %2124
        %2128 = vset.pattern.permute.xlu0 0
        %2129 = vperm.xlu0 %2128, %v2002
        %v2130 = vpop.permute.xlu0 %2129
        %2133 = vset.pattern.permute.xlu0 0
        %2134 = vperm.xlu0 %2133, %v2003
        %v2135 = vpop.permute.xlu0 %2134
        %2138 = vset.pattern.permute.xlu0 0
        %2139 = vperm.xlu0 %2138, %v2004
        %v2140 = vpop.permute.xlu0 %2139
        %2143 = vset.pattern.permute.xlu0 0
        %2144 = vperm.xlu0 %2143, %v2005
        %v2145 = vpop.permute.xlu0 %2144
        %2148 = vset.pattern.permute.xlu0 0
        %2149 = vperm.xlu0 %2148, %v2006
        %v2150 = vpop.permute.xlu0 %2149
        %2153 = vset.pattern.permute.xlu0 0
        %2154 = vperm.xlu0 %2153, %v2007
        %v2155 = vpop.permute.xlu0 %2154
        %2158 = vset.pattern.permute.xlu0 0
        %2159 = vperm.xlu0 %2158, %v2008
        %v2160 = vpop.permute.xlu0 %2159
        %2163 = vset.pattern.permute.xlu0 0
        %2164 = vperm.xlu0 %2163, %v2009
        %v2165 = vpop.permute.xlu0 %2164
        %2168 = vset.pattern.permute.xlu0 0
        %2169 = vperm.xlu0 %2168, %v2010
        %v2170 = vpop.permute.xlu0 %2169
        %2173 = vset.pattern.permute.xlu0 0
        %2174 = vperm.xlu0 %2173, %v2011
        %v2175 = vpop.permute.xlu0 %2174
        %2178 = vset.pattern.permute.xlu0 0
        %2179 = vperm.xlu0 %2178, %v2012
        %v2180 = vpop.permute.xlu0 %2179
        %2183 = vset.pattern.permute.xlu0 0
        %2184 = vperm.xlu0 %2183, %v2013
        %v2185 = vpop.permute.xlu0 %2184
        %2188 = vset.pattern.permute.xlu0 0
        %2189 = vperm.xlu0 %2188, %v2014
        %v2190 = vpop.permute.xlu0 %2189
        %2193 = vset.pattern.permute.xlu0 0
        %2194 = vperm.xlu0 %2193, %v2015
        %v2195 = vpop.permute.xlu0 %2194
        %2198 = vset.pattern.permute.xlu0 0
        %2199 = vperm.xlu0 %2198, %v2016
        %v2200 = vpop.permute.xlu0 %2199
        %2203 = vset.pattern.permute.xlu0 0
        %2204 = vperm.xlu0 %2203, %v2017
        %v2205 = vpop.permute.xlu0 %2204
        %2208 = vset.pattern.permute.xlu0 0
        %2209 = vperm.xlu0 %2208, %v2018
        %v2210 = vpop.permute.xlu0 %2209
        %2213 = vset.pattern.permute.xlu0 0
        %2214 = vperm.xlu0 %2213, %v2019
        %v2215 = vpop.permute.xlu0 %2214
        %2218 = vset.pattern.permute.xlu0 0
        %2219 = vperm.xlu0 %2218, %v2020
        %v2220 = vpop.permute.xlu0 %2219
        %2223 = vset.pattern.permute.xlu0 0
        %2224 = vperm.xlu0 %2223, %v2021
        %v2225 = vpop.permute.xlu0 %2224
        %2228 = vset.pattern.permute.xlu0 0
        %2229 = vperm.xlu0 %2228, %v2022
        %v2230 = vpop.permute.xlu0 %2229
        %2233 = vset.pattern.permute.xlu0 0
        %2234 = vperm.xlu0 %2233, %v2023
        %v2235 = vpop.permute.xlu0 %2234
        %2238 = vset.pattern.permute.xlu0 0
        %2239 = vperm.xlu0 %2238, %v2024
        %v2240 = vpop.permute.xlu0 %2239
        %2243 = vset.pattern.permute.xlu0 0
        %2244 = vperm.xlu0 %2243, %v2025
        %v2245 = vpop.permute.xlu0 %2244
        %2248 = vset.pattern.permute.xlu0 0
        %2249 = vperm.xlu0 %2248, %v2026
        %v2250 = vpop.permute.xlu0 %2249
        %2253 = vset.pattern.permute.xlu0 0
        %2254 = vperm.xlu0 %2253, %v2027
        %v2255 = vpop.permute.xlu0 %2254
        %2258 = vset.pattern.permute.xlu0 0
        %2259 = vperm.xlu0 %2258, %v2028
        %v2260 = vpop.permute.xlu0 %2259
        %2263 = vset.pattern.permute.xlu0 0
        %2264 = vperm.xlu0 %2263, %v2029
        %v2265 = vpop.permute.xlu0 %2264
        %2268 = vset.pattern.permute.xlu0 0
        %2269 = vperm.xlu0 %2268, %v2030
        %v2270 = vpop.permute.xlu0 %2269
        %2273 = vset.pattern.permute.xlu0 0
        %2274 = vperm.xlu0 %2273, %v2031
        %v2275 = vpop.permute.xlu0 %2274
        %2278 = vset.pattern.permute.xlu0 0
        %2279 = vperm.xlu0 %2278, %v2032
        %v2280 = vpop.permute.xlu0 %2279
        %2283 = vset.pattern.permute.xlu0 0
        %2284 = vperm.xlu0 %2283, %v2033
        %v2285 = vpop.permute.xlu0 %2284
        %2288 = vset.pattern.permute.xlu0 0
        %2289 = vperm.xlu0 %2288, %v2034
        %v2290 = vpop.permute.xlu0 %2289
        %2293 = vset.pattern.permute.xlu0 0
        %2294 = vperm.xlu0 %2293, %v2035
        %v2295 = vpop.permute.xlu0 %2294
        %2298 = vset.pattern.permute.xlu0 0
        %2299 = vperm.xlu0 %2298, %v2036
        %v2300 = vpop.permute.xlu0 %2299
        %2303 = vset.pattern.permute.xlu0 0
        %2304 = vperm.xlu0 %2303, %v2037
        %v2305 = vpop.permute.xlu0 %2304
        %2308 = vset.pattern.permute.xlu0 0
        %2309 = vperm.xlu0 %2308, %v2038
        %v2310 = vpop.permute.xlu0 %2309
        %2313 = vset.pattern.permute.xlu0 0
        %2314 = vperm.xlu0 %2313, %v2039
        %v2315 = vpop.permute.xlu0 %2314
        %2318 = vset.pattern.permute.xlu0 0
        %2319 = vperm.xlu0 %2318, %v2040
        %v2320 = vpop.permute.xlu0 %2319
        %2323 = vset.pattern.permute.xlu0 0
        %2324 = vperm.xlu0 %2323, %v2041
        %v2325 = vpop.permute.xlu0 %2324
        %2328 = vset.pattern.permute.xlu0 0
        %2329 = vperm.xlu0 %2328, %v2042
        %v2330 = vpop.permute.xlu0 %2329
        %2333 = vset.pattern.permute.xlu0 0
        %2334 = vperm.xlu0 %2333, %v2043
        %v2335 = vpop.permute.xlu0 %2334
        %2338 = vset.pattern.permute.xlu0 0
        %2339 = vperm.xlu0 %2338, %v2044
        %v2340 = vpop.permute.xlu0 %2339
        %2343 = vset.pattern.permute.xlu0 0
        %2344 = vperm.xlu0 %2343, %v2045
        %v2345 = vpop.permute.xlu0 %2344
        %2348 = vset.pattern.permute.xlu0 0
        %2349 = vperm.xlu0 %2348, %v2046
        %v2350 = vpop.permute.xlu0 %2349
        %2353 = vset.pattern.permute.xlu0 0
        %2354 = vperm.xlu0 %2353, %v2047
        %v2355 = vpop.permute.xlu0 %2354
        %2358 = vset.pattern.permute.xlu0 0
        %2359 = vperm.xlu0 %2358, %v2048
        %v2360 = vpop.permute.xlu0 %2359
        %2363 = vset.pattern.permute.xlu0 0
        %2364 = vperm.xlu0 %2363, %v2049
        %v2365 = vpop.permute.xlu0 %2364
        %2368 = vset.pattern.permute.xlu0 0
        %2369 = vperm.xlu0 %2368, %v2050
        %v2370 = vpop.permute.xlu0 %2369
        %v2372 = vperm.slane %v2051, 0
        %v2373 = vmul.f32 %v2055, %v2372
        %v2374 = vmul.f32 %v2060, %v2372
        %v2375 = vmul.f32 %v2065, %v2372
        %v2376 = vmul.f32 %v2070, %v2372
        %v2377 = vmul.f32 %v2075, %v2372
        %v2378 = vmul.f32 %v2080, %v2372
        %v2379 = vmul.f32 %v2085, %v2372
        %v2380 = vmul.f32 %v2090, %v2372
        %v2381 = vmul.f32 %v2095, %v2372
        %v2382 = vmul.f32 %v2100, %v2372
        %v2383 = vmul.f32 %v2105, %v2372
        %v2384 = vmul.f32 %v2110, %v2372
        %v2385 = vmul.f32 %v2115, %v2372
        %v2386 = vmul.f32 %v2120, %v2372
        %v2387 = vmul.f32 %v2125, %v2372
        %v2388 = vmul.f32 %v2130, %v2372
        %v2389 = vmul.f32 %v2135, %v2372
        %v2390 = vmul.f32 %v2140, %v2372
        %v2391 = vmul.f32 %v2145, %v2372
        %v2392 = vmul.f32 %v2150, %v2372
        %v2393 = vmul.f32 %v2155, %v2372
        %v2394 = vmul.f32 %v2160, %v2372
        %v2395 = vmul.f32 %v2165, %v2372
        %v2396 = vmul.f32 %v2170, %v2372
        %v2397 = vmul.f32 %v2175, %v2372
        %v2398 = vmul.f32 %v2180, %v2372
        %v2399 = vmul.f32 %v2185, %v2372
        %v2400 = vmul.f32 %v2190, %v2372
        %v2401 = vmul.f32 %v2195, %v2372
        %v2402 = vmul.f32 %v2200, %v2372
        %v2403 = vmul.f32 %v2205, %v2372
        %v2404 = vmul.f32 %v2210, %v2372
        %v2405 = vmul.f32 %v2215, %v2372
        %v2406 = vmul.f32 %v2220, %v2372
        %v2407 = vmul.f32 %v2225, %v2372
        %v2408 = vmul.f32 %v2230, %v2372
        %v2409 = vmul.f32 %v2235, %v2372
        %v2410 = vmul.f32 %v2240, %v2372
        %v2411 = vmul.f32 %v2245, %v2372
        %v2412 = vmul.f32 %v2250, %v2372
        %v2413 = vmul.f32 %v2255, %v2372
        %v2414 = vmul.f32 %v2260, %v2372
        %v2415 = vmul.f32 %v2265, %v2372
        %v2416 = vmul.f32 %v2270, %v2372
        %v2417 = vmul.f32 %v2275, %v2372
        %v2418 = vmul.f32 %v2280, %v2372
        %v2419 = vmul.f32 %v2285, %v2372
        %v2420 = vmul.f32 %v2290, %v2372
        %v2421 = vmul.f32 %v2295, %v2372
        %v2422 = vmul.f32 %v2300, %v2372
        %v2423 = vmul.f32 %v2305, %v2372
        %v2424 = vmul.f32 %v2310, %v2372
        %v2425 = vmul.f32 %v2315, %v2372
        %v2426 = vmul.f32 %v2320, %v2372
        %v2427 = vmul.f32 %v2325, %v2372
        %v2428 = vmul.f32 %v2330, %v2372
        %v2429 = vmul.f32 %v2335, %v2372
        %v2430 = vmul.f32 %v2340, %v2372
        %v2431 = vmul.f32 %v2345, %v2372
        %v2432 = vmul.f32 %v2350, %v2372
        %v2433 = vmul.f32 %v2355, %v2372
        %v2434 = vmul.f32 %v2360, %v2372
        %v2435 = vmul.f32 %v2365, %v2372
        %v2436 = vmul.f32 %v2370, %v2372
        %v2437 = vadd.f32 %v1828, %v2373
        %v2438 = vadd.f32 %v1830, %v2374
        %v2439 = vadd.f32 %v1833, %v2375
        %v2440 = vadd.f32 %v1835, %v2376
        %v2441 = vadd.f32 %v1838, %v2377
        %v2442 = vadd.f32 %v1840, %v2378
        %v2443 = vadd.f32 %v1843, %v2379
        %v2444 = vadd.f32 %v1845, %v2380
        %v2445 = vadd.f32 %v1848, %v2381
        %v2446 = vadd.f32 %v1850, %v2382
        %v2447 = vadd.f32 %v1853, %v2383
        %v2448 = vadd.f32 %v1855, %v2384
        %v2449 = vadd.f32 %v1858, %v2385
        %v2450 = vadd.f32 %v1860, %v2386
        %v2451 = vadd.f32 %v1863, %v2387
        %v2452 = vadd.f32 %v1865, %v2388
        %v2453 = vadd.f32 %v1868, %v2389
        %v2454 = vadd.f32 %v1870, %v2390
        %v2455 = vadd.f32 %v1873, %v2391
        %v2456 = vadd.f32 %v1875, %v2392
        %v2457 = vadd.f32 %v1878, %v2393
        %v2458 = vadd.f32 %v1880, %v2394
        %v2459 = vadd.f32 %v1883, %v2395
        %v2460 = vadd.f32 %v1885, %v2396
        %v2461 = vadd.f32 %v1888, %v2397
        %v2462 = vadd.f32 %v1890, %v2398
        %v2463 = vadd.f32 %v1893, %v2399
        %v2464 = vadd.f32 %v1895, %v2400
        %v2465 = vadd.f32 %v1898, %v2401
        %v2466 = vadd.f32 %v1900, %v2402
        %v2467 = vadd.f32 %v1903, %v2403
        %v2468 = vadd.f32 %v1905, %v2404
        %v2469 = vadd.f32 %v1908, %v2405
        %v2470 = vadd.f32 %v1910, %v2406
        %v2471 = vadd.f32 %v1913, %v2407
        %v2472 = vadd.f32 %v1915, %v2408
        %v2473 = vadd.f32 %v1918, %v2409
        %v2474 = vadd.f32 %v1920, %v2410
        %v2475 = vadd.f32 %v1923, %v2411
        %v2476 = vadd.f32 %v1925, %v2412
        %v2477 = vadd.f32 %v1928, %v2413
        %v2478 = vadd.f32 %v1930, %v2414
        %v2479 = vadd.f32 %v1933, %v2415
        %v2480 = vadd.f32 %v1935, %v2416
        %v2481 = vadd.f32 %v1938, %v2417
        %v2482 = vadd.f32 %v1940, %v2418
        %v2483 = vadd.f32 %v1943, %v2419
        %v2484 = vadd.f32 %v1945, %v2420
        %v2485 = vadd.f32 %v1948, %v2421
        %v2486 = vadd.f32 %v1950, %v2422
        %v2487 = vadd.f32 %v1953, %v2423
        %v2488 = vadd.f32 %v1955, %v2424
        %v2489 = vadd.f32 %v1958, %v2425
        %v2490 = vadd.f32 %v1960, %v2426
        %v2491 = vadd.f32 %v1963, %v2427
        %v2492 = vadd.f32 %v1965, %v2428
        %v2493 = vadd.f32 %v1968, %v2429
        %v2494 = vadd.f32 %v1970, %v2430
        %v2495 = vadd.f32 %v1973, %v2431
        %v2496 = vadd.f32 %v1975, %v2432
        %v2497 = vadd.f32 %v1978, %v2433
        %v2498 = vadd.f32 %v1980, %v2434
        %v2499 = vadd.f32 %v1983, %v2435
        %v2500 = vadd.f32 %v1985, %v2436
        %2501 = vset.pattern.permute.xlu0 1
        %2502 = vperm.xlu0 %2501, %v1987
        %v2503 = vpop.permute.xlu0 %2502
        %2505 = vset.pattern.permute.xlu0 1
        %2506 = vperm.xlu0 %2505, %v1988
        %v2507 = vpop.permute.xlu0 %2506
        %2509 = vset.pattern.permute.xlu0 1
        %2510 = vperm.xlu0 %2509, %v1989
        %v2511 = vpop.permute.xlu0 %2510
        %2513 = vset.pattern.permute.xlu0 1
        %2514 = vperm.xlu0 %2513, %v1990
        %v2515 = vpop.permute.xlu0 %2514
        %2517 = vset.pattern.permute.xlu0 1
        %2518 = vperm.xlu0 %2517, %v1991
        %v2519 = vpop.permute.xlu0 %2518
        %2521 = vset.pattern.permute.xlu0 1
        %2522 = vperm.xlu0 %2521, %v1992
        %v2523 = vpop.permute.xlu0 %2522
        %2525 = vset.pattern.permute.xlu0 1
        %2526 = vperm.xlu0 %2525, %v1993
        %v2527 = vpop.permute.xlu0 %2526
        %2529 = vset.pattern.permute.xlu0 1
        %2530 = vperm.xlu0 %2529, %v1994
        %v2531 = vpop.permute.xlu0 %2530
        %2533 = vset.pattern.permute.xlu0 1
        %2534 = vperm.xlu0 %2533, %v1995
        %v2535 = vpop.permute.xlu0 %2534
        %2537 = vset.pattern.permute.xlu0 1
        %2538 = vperm.xlu0 %2537, %v1996
        %v2539 = vpop.permute.xlu0 %2538
        %2541 = vset.pattern.permute.xlu0 1
        %2542 = vperm.xlu0 %2541, %v1997
        %v2543 = vpop.permute.xlu0 %2542
        %2545 = vset.pattern.permute.xlu0 1
        %2546 = vperm.xlu0 %2545, %v1998
        %v2547 = vpop.permute.xlu0 %2546
        %2549 = vset.pattern.permute.xlu0 1
        %2550 = vperm.xlu0 %2549, %v1999
        %v2551 = vpop.permute.xlu0 %2550
        %2553 = vset.pattern.permute.xlu0 1
        %2554 = vperm.xlu0 %2553, %v2000
        %v2555 = vpop.permute.xlu0 %2554
        %2557 = vset.pattern.permute.xlu0 1
        %2558 = vperm.xlu0 %2557, %v2001
        %v2559 = vpop.permute.xlu0 %2558
        %2561 = vset.pattern.permute.xlu0 1
        %2562 = vperm.xlu0 %2561, %v2002
        %v2563 = vpop.permute.xlu0 %2562
        %2565 = vset.pattern.permute.xlu0 1
        %2566 = vperm.xlu0 %2565, %v2003
        %v2567 = vpop.permute.xlu0 %2566
        %2569 = vset.pattern.permute.xlu0 1
        %2570 = vperm.xlu0 %2569, %v2004
        %v2571 = vpop.permute.xlu0 %2570
        %2573 = vset.pattern.permute.xlu0 1
        %2574 = vperm.xlu0 %2573, %v2005
        %v2575 = vpop.permute.xlu0 %2574
        %2577 = vset.pattern.permute.xlu0 1
        %2578 = vperm.xlu0 %2577, %v2006
        %v2579 = vpop.permute.xlu0 %2578
        %2581 = vset.pattern.permute.xlu0 1
        %2582 = vperm.xlu0 %2581, %v2007
        %v2583 = vpop.permute.xlu0 %2582
        %2585 = vset.pattern.permute.xlu0 1
        %2586 = vperm.xlu0 %2585, %v2008
        %v2587 = vpop.permute.xlu0 %2586
        %2589 = vset.pattern.permute.xlu0 1
        %2590 = vperm.xlu0 %2589, %v2009
        %v2591 = vpop.permute.xlu0 %2590
        %2593 = vset.pattern.permute.xlu0 1
        %2594 = vperm.xlu0 %2593, %v2010
        %v2595 = vpop.permute.xlu0 %2594
        %2597 = vset.pattern.permute.xlu0 1
        %2598 = vperm.xlu0 %2597, %v2011
        %v2599 = vpop.permute.xlu0 %2598
        %2601 = vset.pattern.permute.xlu0 1
        %2602 = vperm.xlu0 %2601, %v2012
        %v2603 = vpop.permute.xlu0 %2602
        %2605 = vset.pattern.permute.xlu0 1
        %2606 = vperm.xlu0 %2605, %v2013
        %v2607 = vpop.permute.xlu0 %2606
        %2609 = vset.pattern.permute.xlu0 1
        %2610 = vperm.xlu0 %2609, %v2014
        %v2611 = vpop.permute.xlu0 %2610
        %2613 = vset.pattern.permute.xlu0 1
        %2614 = vperm.xlu0 %2613, %v2015
        %v2615 = vpop.permute.xlu0 %2614
        %2617 = vset.pattern.permute.xlu0 1
        %2618 = vperm.xlu0 %2617, %v2016
        %v2619 = vpop.permute.xlu0 %2618
        %2621 = vset.pattern.permute.xlu0 1
        %2622 = vperm.xlu0 %2621, %v2017
        %v2623 = vpop.permute.xlu0 %2622
        %2625 = vset.pattern.permute.xlu0 1
        %2626 = vperm.xlu0 %2625, %v2018
        %v2627 = vpop.permute.xlu0 %2626
        %2629 = vset.pattern.permute.xlu0 1
        %2630 = vperm.xlu0 %2629, %v2019
        %v2631 = vpop.permute.xlu0 %2630
        %2633 = vset.pattern.permute.xlu0 1
        %2634 = vperm.xlu0 %2633, %v2020
        %v2635 = vpop.permute.xlu0 %2634
        %2637 = vset.pattern.permute.xlu0 1
        %2638 = vperm.xlu0 %2637, %v2021
        %v2639 = vpop.permute.xlu0 %2638
        %2641 = vset.pattern.permute.xlu0 1
        %2642 = vperm.xlu0 %2641, %v2022
        %v2643 = vpop.permute.xlu0 %2642
        %2645 = vset.pattern.permute.xlu0 1
        %2646 = vperm.xlu0 %2645, %v2023
        %v2647 = vpop.permute.xlu0 %2646
        %2649 = vset.pattern.permute.xlu0 1
        %2650 = vperm.xlu0 %2649, %v2024
        %v2651 = vpop.permute.xlu0 %2650
        %2653 = vset.pattern.permute.xlu0 1
        %2654 = vperm.xlu0 %2653, %v2025
        %v2655 = vpop.permute.xlu0 %2654
        %2657 = vset.pattern.permute.xlu0 1
        %2658 = vperm.xlu0 %2657, %v2026
        %v2659 = vpop.permute.xlu0 %2658
        %2661 = vset.pattern.permute.xlu0 1
        %2662 = vperm.xlu0 %2661, %v2027
        %v2663 = vpop.permute.xlu0 %2662
        %2665 = vset.pattern.permute.xlu0 1
        %2666 = vperm.xlu0 %2665, %v2028
        %v2667 = vpop.permute.xlu0 %2666
        %2669 = vset.pattern.permute.xlu0 1
        %2670 = vperm.xlu0 %2669, %v2029
        %v2671 = vpop.permute.xlu0 %2670
        %2673 = vset.pattern.permute.xlu0 1
        %2674 = vperm.xlu0 %2673, %v2030
        %v2675 = vpop.permute.xlu0 %2674
        %2677 = vset.pattern.permute.xlu0 1
        %2678 = vperm.xlu0 %2677, %v2031
        %v2679 = vpop.permute.xlu0 %2678
        %2681 = vset.pattern.permute.xlu0 1
        %2682 = vperm.xlu0 %2681, %v2032
        %v2683 = vpop.permute.xlu0 %2682
        %2685 = vset.pattern.permute.xlu0 1
        %2686 = vperm.xlu0 %2685, %v2033
        %v2687 = vpop.permute.xlu0 %2686
        %2689 = vset.pattern.permute.xlu0 1
        %2690 = vperm.xlu0 %2689, %v2034
        %v2691 = vpop.permute.xlu0 %2690
        %2693 = vset.pattern.permute.xlu0 1
        %2694 = vperm.xlu0 %2693, %v2035
        %v2695 = vpop.permute.xlu0 %2694
        %2697 = vset.pattern.permute.xlu0 1
        %2698 = vperm.xlu0 %2697, %v2036
        %v2699 = vpop.permute.xlu0 %2698
        %2701 = vset.pattern.permute.xlu0 1
        %2702 = vperm.xlu0 %2701, %v2037
        %v2703 = vpop.permute.xlu0 %2702
        %2705 = vset.pattern.permute.xlu0 1
        %2706 = vperm.xlu0 %2705, %v2038
        %v2707 = vpop.permute.xlu0 %2706
        %2709 = vset.pattern.permute.xlu0 1
        %2710 = vperm.xlu0 %2709, %v2039
        %v2711 = vpop.permute.xlu0 %2710
        %2713 = vset.pattern.permute.xlu0 1
        %2714 = vperm.xlu0 %2713, %v2040
        %v2715 = vpop.permute.xlu0 %2714
        %2717 = vset.pattern.permute.xlu0 1
        %2718 = vperm.xlu0 %2717, %v2041
        %v2719 = vpop.permute.xlu0 %2718
        %2721 = vset.pattern.permute.xlu0 1
        %2722 = vperm.xlu0 %2721, %v2042
        %v2723 = vpop.permute.xlu0 %2722
        %2725 = vset.pattern.permute.xlu0 1
        %2726 = vperm.xlu0 %2725, %v2043
        %v2727 = vpop.permute.xlu0 %2726
        %2729 = vset.pattern.permute.xlu0 1
        %2730 = vperm.xlu0 %2729, %v2044
        %v2731 = vpop.permute.xlu0 %2730
        %2733 = vset.pattern.permute.xlu0 1
        %2734 = vperm.xlu0 %2733, %v2045
        %v2735 = vpop.permute.xlu0 %2734
        %2737 = vset.pattern.permute.xlu0 1
        %2738 = vperm.xlu0 %2737, %v2046
        %v2739 = vpop.permute.xlu0 %2738
        %2741 = vset.pattern.permute.xlu0 1
        %2742 = vperm.xlu0 %2741, %v2047
        %v2743 = vpop.permute.xlu0 %2742
        %2745 = vset.pattern.permute.xlu0 1
        %2746 = vperm.xlu0 %2745, %v2048
        %v2747 = vpop.permute.xlu0 %2746
        %2749 = vset.pattern.permute.xlu0 1
        %2750 = vperm.xlu0 %2749, %v2049
        %v2751 = vpop.permute.xlu0 %2750
        %2753 = vset.pattern.permute.xlu0 1
        %2754 = vperm.xlu0 %2753, %v2050
        %v2755 = vpop.permute.xlu0 %2754
        %v2757 = vperm.slane %v2051, 1
        %v2758 = vmul.f32 %v2503, %v2757
        %v2759 = vmul.f32 %v2507, %v2757
        %v2760 = vmul.f32 %v2511, %v2757
        %v2761 = vmul.f32 %v2515, %v2757
        %v2762 = vmul.f32 %v2519, %v2757
        %v2763 = vmul.f32 %v2523, %v2757
        %v2764 = vmul.f32 %v2527, %v2757
        %v2765 = vmul.f32 %v2531, %v2757
        %v2766 = vmul.f32 %v2535, %v2757
        %v2767 = vmul.f32 %v2539, %v2757
        %v2768 = vmul.f32 %v2543, %v2757
        %v2769 = vmul.f32 %v2547, %v2757
        %v2770 = vmul.f32 %v2551, %v2757
        %v2771 = vmul.f32 %v2555, %v2757
        %v2772 = vmul.f32 %v2559, %v2757
        %v2773 = vmul.f32 %v2563, %v2757
        %v2774 = vmul.f32 %v2567, %v2757
        %v2775 = vmul.f32 %v2571, %v2757
        %v2776 = vmul.f32 %v2575, %v2757
        %v2777 = vmul.f32 %v2579, %v2757
        %v2778 = vmul.f32 %v2583, %v2757
        %v2779 = vmul.f32 %v2587, %v2757
        %v2780 = vmul.f32 %v2591, %v2757
        %v2781 = vmul.f32 %v2595, %v2757
        %v2782 = vmul.f32 %v2599, %v2757
        %v2783 = vmul.f32 %v2603, %v2757
        %v2784 = vmul.f32 %v2607, %v2757
        %v2785 = vmul.f32 %v2611, %v2757
        %v2786 = vmul.f32 %v2615, %v2757
        %v2787 = vmul.f32 %v2619, %v2757
        %v2788 = vmul.f32 %v2623, %v2757
        %v2789 = vmul.f32 %v2627, %v2757
        %v2790 = vmul.f32 %v2631, %v2757
        %v2791 = vmul.f32 %v2635, %v2757
        %v2792 = vmul.f32 %v2639, %v2757
        %v2793 = vmul.f32 %v2643, %v2757
        %v2794 = vmul.f32 %v2647, %v2757
        %v2795 = vmul.f32 %v2651, %v2757
        %v2796 = vmul.f32 %v2655, %v2757
        %v2797 = vmul.f32 %v2659, %v2757
        %v2798 = vmul.f32 %v2663, %v2757
        %v2799 = vmul.f32 %v2667, %v2757
        %v2800 = vmul.f32 %v2671, %v2757
        %v2801 = vmul.f32 %v2675, %v2757
        %v2802 = vmul.f32 %v2679, %v2757
        %v2803 = vmul.f32 %v2683, %v2757
        %v2804 = vmul.f32 %v2687, %v2757
        %v2805 = vmul.f32 %v2691, %v2757
        %v2806 = vmul.f32 %v2695, %v2757
        %v2807 = vmul.f32 %v2699, %v2757
        %v2808 = vmul.f32 %v2703, %v2757
        %v2809 = vmul.f32 %v2707, %v2757
        %v2810 = vmul.f32 %v2711, %v2757
        %v2811 = vmul.f32 %v2715, %v2757
        %v2812 = vmul.f32 %v2719, %v2757
        %v2813 = vmul.f32 %v2723, %v2757
        %v2814 = vmul.f32 %v2727, %v2757
        %v2815 = vmul.f32 %v2731, %v2757
        %v2816 = vmul.f32 %v2735, %v2757
        %v2817 = vmul.f32 %v2739, %v2757
        %v2818 = vmul.f32 %v2743, %v2757
        %v2819 = vmul.f32 %v2747, %v2757
        %v2820 = vmul.f32 %v2751, %v2757
        %v2821 = vmul.f32 %v2755, %v2757
        %v2822 = vadd.f32 %v2437, %v2758
        %v2823 = vadd.f32 %v2438, %v2759
        %v2824 = vadd.f32 %v2439, %v2760
        %v2825 = vadd.f32 %v2440, %v2761
        %v2826 = vadd.f32 %v2441, %v2762
        %v2827 = vadd.f32 %v2442, %v2763
        %v2828 = vadd.f32 %v2443, %v2764
        %v2829 = vadd.f32 %v2444, %v2765
        %v2830 = vadd.f32 %v2445, %v2766
        %v2831 = vadd.f32 %v2446, %v2767
        %v2832 = vadd.f32 %v2447, %v2768
        %v2833 = vadd.f32 %v2448, %v2769
        %v2834 = vadd.f32 %v2449, %v2770
        %v2835 = vadd.f32 %v2450, %v2771
        %v2836 = vadd.f32 %v2451, %v2772
        %v2837 = vadd.f32 %v2452, %v2773
        %v2838 = vadd.f32 %v2453, %v2774
        %v2839 = vadd.f32 %v2454, %v2775
        %v2840 = vadd.f32 %v2455, %v2776
        %v2841 = vadd.f32 %v2456, %v2777
        %v2842 = vadd.f32 %v2457, %v2778
        %v2843 = vadd.f32 %v2458, %v2779
        %v2844 = vadd.f32 %v2459, %v2780
        %v2845 = vadd.f32 %v2460, %v2781
        %v2846 = vadd.f32 %v2461, %v2782
        %v2847 = vadd.f32 %v2462, %v2783
        %v2848 = vadd.f32 %v2463, %v2784
        %v2849 = vadd.f32 %v2464, %v2785
        %v2850 = vadd.f32 %v2465, %v2786
        %v2851 = vadd.f32 %v2466, %v2787
        %v2852 = vadd.f32 %v2467, %v2788
        %v2853 = vadd.f32 %v2468, %v2789
        %v2854 = vadd.f32 %v2469, %v2790
        %v2855 = vadd.f32 %v2470, %v2791
        %v2856 = vadd.f32 %v2471, %v2792
        %v2857 = vadd.f32 %v2472, %v2793
        %v2858 = vadd.f32 %v2473, %v2794
        %v2859 = vadd.f32 %v2474, %v2795
        %v2860 = vadd.f32 %v2475, %v2796
        %v2861 = vadd.f32 %v2476, %v2797
        %v2862 = vadd.f32 %v2477, %v2798
        %v2863 = vadd.f32 %v2478, %v2799
        %v2864 = vadd.f32 %v2479, %v2800
        %v2865 = vadd.f32 %v2480, %v2801
        %v2866 = vadd.f32 %v2481, %v2802
        %v2867 = vadd.f32 %v2482, %v2803
        %v2868 = vadd.f32 %v2483, %v2804
        %v2869 = vadd.f32 %v2484, %v2805
        %v2870 = vadd.f32 %v2485, %v2806
        %v2871 = vadd.f32 %v2486, %v2807
        %v2872 = vadd.f32 %v2487, %v2808
        %v2873 = vadd.f32 %v2488, %v2809
        %v2874 = vadd.f32 %v2489, %v2810
        %v2875 = vadd.f32 %v2490, %v2811
        %v2876 = vadd.f32 %v2491, %v2812
        %v2877 = vadd.f32 %v2492, %v2813
        %v2878 = vadd.f32 %v2493, %v2814
        %v2879 = vadd.f32 %v2494, %v2815
        %v2880 = vadd.f32 %v2495, %v2816
        %v2881 = vadd.f32 %v2496, %v2817
        %v2882 = vadd.f32 %v2497, %v2818
        %v2883 = vadd.f32 %v2498, %v2819
        %v2884 = vadd.f32 %v2499, %v2820
        %v2885 = vadd.f32 %v2500, %v2821
        %2886 = vset.pattern.permute.xlu0 2
        %2887 = vperm.xlu0 %2886, %v1987
        %v2888 = vpop.permute.xlu0 %2887
        %2890 = vset.pattern.permute.xlu0 2
        %2891 = vperm.xlu0 %2890, %v1988
        %v2892 = vpop.permute.xlu0 %2891
        %2894 = vset.pattern.permute.xlu0 2
        %2895 = vperm.xlu0 %2894, %v1989
        %v2896 = vpop.permute.xlu0 %2895
        %2898 = vset.pattern.permute.xlu0 2
        %2899 = vperm.xlu0 %2898, %v1990
        %v2900 = vpop.permute.xlu0 %2899
        %2902 = vset.pattern.permute.xlu0 2
        %2903 = vperm.xlu0 %2902, %v1991
        %v2904 = vpop.permute.xlu0 %2903
        %2906 = vset.pattern.permute.xlu0 2
        %2907 = vperm.xlu0 %2906, %v1992
        %v2908 = vpop.permute.xlu0 %2907
        %2910 = vset.pattern.permute.xlu0 2
        %2911 = vperm.xlu0 %2910, %v1993
        %v2912 = vpop.permute.xlu0 %2911
        %2914 = vset.pattern.permute.xlu0 2
        %2915 = vperm.xlu0 %2914, %v1994
        %v2916 = vpop.permute.xlu0 %2915
        %2918 = vset.pattern.permute.xlu0 2
        %2919 = vperm.xlu0 %2918, %v1995
        %v2920 = vpop.permute.xlu0 %2919
        %2922 = vset.pattern.permute.xlu0 2
        %2923 = vperm.xlu0 %2922, %v1996
        %v2924 = vpop.permute.xlu0 %2923
        %2926 = vset.pattern.permute.xlu0 2
        %2927 = vperm.xlu0 %2926, %v1997
        %v2928 = vpop.permute.xlu0 %2927
        %2930 = vset.pattern.permute.xlu0 2
        %2931 = vperm.xlu0 %2930, %v1998
        %v2932 = vpop.permute.xlu0 %2931
        %2934 = vset.pattern.permute.xlu0 2
        %2935 = vperm.xlu0 %2934, %v1999
        %v2936 = vpop.permute.xlu0 %2935
        %2938 = vset.pattern.permute.xlu0 2
        %2939 = vperm.xlu0 %2938, %v2000
        %v2940 = vpop.permute.xlu0 %2939
        %2942 = vset.pattern.permute.xlu0 2
        %2943 = vperm.xlu0 %2942, %v2001
        %v2944 = vpop.permute.xlu0 %2943
        %2946 = vset.pattern.permute.xlu0 2
        %2947 = vperm.xlu0 %2946, %v2002
        %v2948 = vpop.permute.xlu0 %2947
        %2950 = vset.pattern.permute.xlu0 2
        %2951 = vperm.xlu0 %2950, %v2003
        %v2952 = vpop.permute.xlu0 %2951
        %2954 = vset.pattern.permute.xlu0 2
        %2955 = vperm.xlu0 %2954, %v2004
        %v2956 = vpop.permute.xlu0 %2955
        %2958 = vset.pattern.permute.xlu0 2
        %2959 = vperm.xlu0 %2958, %v2005
        %v2960 = vpop.permute.xlu0 %2959
        %2962 = vset.pattern.permute.xlu0 2
        %2963 = vperm.xlu0 %2962, %v2006
        %v2964 = vpop.permute.xlu0 %2963
        %2966 = vset.pattern.permute.xlu0 2
        %2967 = vperm.xlu0 %2966, %v2007
        %v2968 = vpop.permute.xlu0 %2967
        %2970 = vset.pattern.permute.xlu0 2
        %2971 = vperm.xlu0 %2970, %v2008
        %v2972 = vpop.permute.xlu0 %2971
        %2974 = vset.pattern.permute.xlu0 2
        %2975 = vperm.xlu0 %2974, %v2009
        %v2976 = vpop.permute.xlu0 %2975
        %2978 = vset.pattern.permute.xlu0 2
        %2979 = vperm.xlu0 %2978, %v2010
        %v2980 = vpop.permute.xlu0 %2979
        %2982 = vset.pattern.permute.xlu0 2
        %2983 = vperm.xlu0 %2982, %v2011
        %v2984 = vpop.permute.xlu0 %2983
        %2986 = vset.pattern.permute.xlu0 2
        %2987 = vperm.xlu0 %2986, %v2012
        %v2988 = vpop.permute.xlu0 %2987
        %2990 = vset.pattern.permute.xlu0 2
        %2991 = vperm.xlu0 %2990, %v2013
        %v2992 = vpop.permute.xlu0 %2991
        %2994 = vset.pattern.permute.xlu0 2
        %2995 = vperm.xlu0 %2994, %v2014
        %v2996 = vpop.permute.xlu0 %2995
        %2998 = vset.pattern.permute.xlu0 2
        %2999 = vperm.xlu0 %2998, %v2015
        %v3000 = vpop.permute.xlu0 %2999
        %3002 = vset.pattern.permute.xlu0 2
        %3003 = vperm.xlu0 %3002, %v2016
        %v3004 = vpop.permute.xlu0 %3003
        %3006 = vset.pattern.permute.xlu0 2
        %3007 = vperm.xlu0 %3006, %v2017
        %v3008 = vpop.permute.xlu0 %3007
        %3010 = vset.pattern.permute.xlu0 2
        %3011 = vperm.xlu0 %3010, %v2018
        %v3012 = vpop.permute.xlu0 %3011
        %3014 = vset.pattern.permute.xlu0 2
        %3015 = vperm.xlu0 %3014, %v2019
        %v3016 = vpop.permute.xlu0 %3015
        %3018 = vset.pattern.permute.xlu0 2
        %3019 = vperm.xlu0 %3018, %v2020
        %v3020 = vpop.permute.xlu0 %3019
        %3022 = vset.pattern.permute.xlu0 2
        %3023 = vperm.xlu0 %3022, %v2021
        %v3024 = vpop.permute.xlu0 %3023
        %3026 = vset.pattern.permute.xlu0 2
        %3027 = vperm.xlu0 %3026, %v2022
        %v3028 = vpop.permute.xlu0 %3027
        %3030 = vset.pattern.permute.xlu0 2
        %3031 = vperm.xlu0 %3030, %v2023
        %v3032 = vpop.permute.xlu0 %3031
        %3034 = vset.pattern.permute.xlu0 2
        %3035 = vperm.xlu0 %3034, %v2024
        %v3036 = vpop.permute.xlu0 %3035
        %3038 = vset.pattern.permute.xlu0 2
        %3039 = vperm.xlu0 %3038, %v2025
        %v3040 = vpop.permute.xlu0 %3039
        %3042 = vset.pattern.permute.xlu0 2
        %3043 = vperm.xlu0 %3042, %v2026
        %v3044 = vpop.permute.xlu0 %3043
        %3046 = vset.pattern.permute.xlu0 2
        %3047 = vperm.xlu0 %3046, %v2027
        %v3048 = vpop.permute.xlu0 %3047
        %3050 = vset.pattern.permute.xlu0 2
        %3051 = vperm.xlu0 %3050, %v2028
        %v3052 = vpop.permute.xlu0 %3051
        %3054 = vset.pattern.permute.xlu0 2
        %3055 = vperm.xlu0 %3054, %v2029
        %v3056 = vpop.permute.xlu0 %3055
        %3058 = vset.pattern.permute.xlu0 2
        %3059 = vperm.xlu0 %3058, %v2030
        %v3060 = vpop.permute.xlu0 %3059
        %3062 = vset.pattern.permute.xlu0 2
        %3063 = vperm.xlu0 %3062, %v2031
        %v3064 = vpop.permute.xlu0 %3063
        %3066 = vset.pattern.permute.xlu0 2
        %3067 = vperm.xlu0 %3066, %v2032
        %v3068 = vpop.permute.xlu0 %3067
        %3070 = vset.pattern.permute.xlu0 2
        %3071 = vperm.xlu0 %3070, %v2033
        %v3072 = vpop.permute.xlu0 %3071
        %3074 = vset.pattern.permute.xlu0 2
        %3075 = vperm.xlu0 %3074, %v2034
        %v3076 = vpop.permute.xlu0 %3075
        %3078 = vset.pattern.permute.xlu0 2
        %3079 = vperm.xlu0 %3078, %v2035
        %v3080 = vpop.permute.xlu0 %3079
        %3082 = vset.pattern.permute.xlu0 2
        %3083 = vperm.xlu0 %3082, %v2036
        %v3084 = vpop.permute.xlu0 %3083
        %3086 = vset.pattern.permute.xlu0 2
        %3087 = vperm.xlu0 %3086, %v2037
        %v3088 = vpop.permute.xlu0 %3087
        %3090 = vset.pattern.permute.xlu0 2
        %3091 = vperm.xlu0 %3090, %v2038
        %v3092 = vpop.permute.xlu0 %3091
        %3094 = vset.pattern.permute.xlu0 2
        %3095 = vperm.xlu0 %3094, %v2039
        %v3096 = vpop.permute.xlu0 %3095
        %3098 = vset.pattern.permute.xlu0 2
        %3099 = vperm.xlu0 %3098, %v2040
        %v3100 = vpop.permute.xlu0 %3099
        %3102 = vset.pattern.permute.xlu0 2
        %3103 = vperm.xlu0 %3102, %v2041
        %v3104 = vpop.permute.xlu0 %3103
        %3106 = vset.pattern.permute.xlu0 2
        %3107 = vperm.xlu0 %3106, %v2042
        %v3108 = vpop.permute.xlu0 %3107
        %3110 = vset.pattern.permute.xlu0 2
        %3111 = vperm.xlu0 %3110, %v2043
        %v3112 = vpop.permute.xlu0 %3111
        %3114 = vset.pattern.permute.xlu0 2
        %3115 = vperm.xlu0 %3114, %v2044
        %v3116 = vpop.permute.xlu0 %3115
        %3118 = vset.pattern.permute.xlu0 2
        %3119 = vperm.xlu0 %3118, %v2045
        %v3120 = vpop.permute.xlu0 %3119
        %3122 = vset.pattern.permute.xlu0 2
        %3123 = vperm.xlu0 %3122, %v2046
        %v3124 = vpop.permute.xlu0 %3123
        %3126 = vset.pattern.permute.xlu0 2
        %3127 = vperm.xlu0 %3126, %v2047
        %v3128 = vpop.permute.xlu0 %3127
        %3130 = vset.pattern.permute.xlu0 2
        %3131 = vperm.xlu0 %3130, %v2048
        %v3132 = vpop.permute.xlu0 %3131
        %3134 = vset.pattern.permute.xlu0 2
        %3135 = vperm.xlu0 %3134, %v2049
        %v3136 = vpop.permute.xlu0 %3135
        %3138 = vset.pattern.permute.xlu0 2
        %3139 = vperm.xlu0 %3138, %v2050
        %v3140 = vpop.permute.xlu0 %3139
        %v3142 = vperm.slane %v2051, 2
        %v3143 = vmul.f32 %v2888, %v3142
        %v3144 = vmul.f32 %v2892, %v3142
        %v3145 = vmul.f32 %v2896, %v3142
        %v3146 = vmul.f32 %v2900, %v3142
        %v3147 = vmul.f32 %v2904, %v3142
        %v3148 = vmul.f32 %v2908, %v3142
        %v3149 = vmul.f32 %v2912, %v3142
        %v3150 = vmul.f32 %v2916, %v3142
        %v3151 = vmul.f32 %v2920, %v3142
        %v3152 = vmul.f32 %v2924, %v3142
        %v3153 = vmul.f32 %v2928, %v3142
        %v3154 = vmul.f32 %v2932, %v3142
        %v3155 = vmul.f32 %v2936, %v3142
        %v3156 = vmul.f32 %v2940, %v3142
        %v3157 = vmul.f32 %v2944, %v3142
        %v3158 = vmul.f32 %v2948, %v3142
        %v3159 = vmul.f32 %v2952, %v3142
        %v3160 = vmul.f32 %v2956, %v3142
        %v3161 = vmul.f32 %v2960, %v3142
        %v3162 = vmul.f32 %v2964, %v3142
        %v3163 = vmul.f32 %v2968, %v3142
        %v3164 = vmul.f32 %v2972, %v3142
        %v3165 = vmul.f32 %v2976, %v3142
        %v3166 = vmul.f32 %v2980, %v3142
        %v3167 = vmul.f32 %v2984, %v3142
        %v3168 = vmul.f32 %v2988, %v3142
        %v3169 = vmul.f32 %v2992, %v3142
        %v3170 = vmul.f32 %v2996, %v3142
        %v3171 = vmul.f32 %v3000, %v3142
        %v3172 = vmul.f32 %v3004, %v3142
        %v3173 = vmul.f32 %v3008, %v3142
        %v3174 = vmul.f32 %v3012, %v3142
        %v3175 = vmul.f32 %v3016, %v3142
        %v3176 = vmul.f32 %v3020, %v3142
        %v3177 = vmul.f32 %v3024, %v3142
        %v3178 = vmul.f32 %v3028, %v3142
        %v3179 = vmul.f32 %v3032, %v3142
        %v3180 = vmul.f32 %v3036, %v3142
        %v3181 = vmul.f32 %v3040, %v3142
        %v3182 = vmul.f32 %v3044, %v3142
        %v3183 = vmul.f32 %v3048, %v3142
        %v3184 = vmul.f32 %v3052, %v3142
        %v3185 = vmul.f32 %v3056, %v3142
        %v3186 = vmul.f32 %v3060, %v3142
        %v3187 = vmul.f32 %v3064, %v3142
        %v3188 = vmul.f32 %v3068, %v3142
        %v3189 = vmul.f32 %v3072, %v3142
        %v3190 = vmul.f32 %v3076, %v3142
        %v3191 = vmul.f32 %v3080, %v3142
        %v3192 = vmul.f32 %v3084, %v3142
        %v3193 = vmul.f32 %v3088, %v3142
        %v3194 = vmul.f32 %v3092, %v3142
        %v3195 = vmul.f32 %v3096, %v3142
        %v3196 = vmul.f32 %v3100, %v3142
        %v3197 = vmul.f32 %v3104, %v3142
        %v3198 = vmul.f32 %v3108, %v3142
        %v3199 = vmul.f32 %v3112, %v3142
        %v3200 = vmul.f32 %v3116, %v3142
        %v3201 = vmul.f32 %v3120, %v3142
        %v3202 = vmul.f32 %v3124, %v3142
        %v3203 = vmul.f32 %v3128, %v3142
        %v3204 = vmul.f32 %v3132, %v3142
        %v3205 = vmul.f32 %v3136, %v3142
        %v3206 = vmul.f32 %v3140, %v3142
        %v3207 = vadd.f32 %v2822, %v3143
        %v3208 = vadd.f32 %v2823, %v3144
        %v3209 = vadd.f32 %v2824, %v3145
        %v3210 = vadd.f32 %v2825, %v3146
        %v3211 = vadd.f32 %v2826, %v3147
        %v3212 = vadd.f32 %v2827, %v3148
        %v3213 = vadd.f32 %v2828, %v3149
        %v3214 = vadd.f32 %v2829, %v3150
        %v3215 = vadd.f32 %v2830, %v3151
        %v3216 = vadd.f32 %v2831, %v3152
        %v3217 = vadd.f32 %v2832, %v3153
        %v3218 = vadd.f32 %v2833, %v3154
        %v3219 = vadd.f32 %v2834, %v3155
        %v3220 = vadd.f32 %v2835, %v3156
        %v3221 = vadd.f32 %v2836, %v3157
        %v3222 = vadd.f32 %v2837, %v3158
        %v3223 = vadd.f32 %v2838, %v3159
        %v3224 = vadd.f32 %v2839, %v3160
        %v3225 = vadd.f32 %v2840, %v3161
        %v3226 = vadd.f32 %v2841, %v3162
        %v3227 = vadd.f32 %v2842, %v3163
        %v3228 = vadd.f32 %v2843, %v3164
        %v3229 = vadd.f32 %v2844, %v3165
        %v3230 = vadd.f32 %v2845, %v3166
        %v3231 = vadd.f32 %v2846, %v3167
        %v3232 = vadd.f32 %v2847, %v3168
        %v3233 = vadd.f32 %v2848, %v3169
        %v3234 = vadd.f32 %v2849, %v3170
        %v3235 = vadd.f32 %v2850, %v3171
        %v3236 = vadd.f32 %v2851, %v3172
        %v3237 = vadd.f32 %v2852, %v3173
        %v3238 = vadd.f32 %v2853, %v3174
        %v3239 = vadd.f32 %v2854, %v3175
        %v3240 = vadd.f32 %v2855, %v3176
        %v3241 = vadd.f32 %v2856, %v3177
        %v3242 = vadd.f32 %v2857, %v3178
        %v3243 = vadd.f32 %v2858, %v3179
        %v3244 = vadd.f32 %v2859, %v3180
        %v3245 = vadd.f32 %v2860, %v3181
        %v3246 = vadd.f32 %v2861, %v3182
        %v3247 = vadd.f32 %v2862, %v3183
        %v3248 = vadd.f32 %v2863, %v3184
        %v3249 = vadd.f32 %v2864, %v3185
        %v3250 = vadd.f32 %v2865, %v3186
        %v3251 = vadd.f32 %v2866, %v3187
        %v3252 = vadd.f32 %v2867, %v3188
        %v3253 = vadd.f32 %v2868, %v3189
        %v3254 = vadd.f32 %v2869, %v3190
        %v3255 = vadd.f32 %v2870, %v3191
        %v3256 = vadd.f32 %v2871, %v3192
        %v3257 = vadd.f32 %v2872, %v3193
        %v3258 = vadd.f32 %v2873, %v3194
        %v3259 = vadd.f32 %v2874, %v3195
        %v3260 = vadd.f32 %v2875, %v3196
        %v3261 = vadd.f32 %v2876, %v3197
        %v3262 = vadd.f32 %v2877, %v3198
        %v3263 = vadd.f32 %v2878, %v3199
        %v3264 = vadd.f32 %v2879, %v3200
        %v3265 = vadd.f32 %v2880, %v3201
        %v3266 = vadd.f32 %v2881, %v3202
        %v3267 = vadd.f32 %v2882, %v3203
        %v3268 = vadd.f32 %v2883, %v3204
        %v3269 = vadd.f32 %v2884, %v3205
        %v3270 = vadd.f32 %v2885, %v3206
        %3271 = vset.pattern.permute.xlu0 3
        %3272 = vperm.xlu0 %3271, %v1987
        %v3273 = vpop.permute.xlu0 %3272
        %3275 = vset.pattern.permute.xlu0 3
        %3276 = vperm.xlu0 %3275, %v1988
        %v3277 = vpop.permute.xlu0 %3276
        %3279 = vset.pattern.permute.xlu0 3
        %3280 = vperm.xlu0 %3279, %v1989
        %v3281 = vpop.permute.xlu0 %3280
        %3283 = vset.pattern.permute.xlu0 3
        %3284 = vperm.xlu0 %3283, %v1990
        %v3285 = vpop.permute.xlu0 %3284
        %3287 = vset.pattern.permute.xlu0 3
        %3288 = vperm.xlu0 %3287, %v1991
        %v3289 = vpop.permute.xlu0 %3288
        %3291 = vset.pattern.permute.xlu0 3
        %3292 = vperm.xlu0 %3291, %v1992
        %v3293 = vpop.permute.xlu0 %3292
        %3295 = vset.pattern.permute.xlu0 3
        %3296 = vperm.xlu0 %3295, %v1993
        %v3297 = vpop.permute.xlu0 %3296
        %3299 = vset.pattern.permute.xlu0 3
        %3300 = vperm.xlu0 %3299, %v1994
        %v3301 = vpop.permute.xlu0 %3300
        %3303 = vset.pattern.permute.xlu0 3
        %3304 = vperm.xlu0 %3303, %v1995
        %v3305 = vpop.permute.xlu0 %3304
        %3307 = vset.pattern.permute.xlu0 3
        %3308 = vperm.xlu0 %3307, %v1996
        %v3309 = vpop.permute.xlu0 %3308
        %3311 = vset.pattern.permute.xlu0 3
        %3312 = vperm.xlu0 %3311, %v1997
        %v3313 = vpop.permute.xlu0 %3312
        %3315 = vset.pattern.permute.xlu0 3
        %3316 = vperm.xlu0 %3315, %v1998
        %v3317 = vpop.permute.xlu0 %3316
        %3319 = vset.pattern.permute.xlu0 3
        %3320 = vperm.xlu0 %3319, %v1999
        %v3321 = vpop.permute.xlu0 %3320
        %3323 = vset.pattern.permute.xlu0 3
        %3324 = vperm.xlu0 %3323, %v2000
        %v3325 = vpop.permute.xlu0 %3324
        %3327 = vset.pattern.permute.xlu0 3
        %3328 = vperm.xlu0 %3327, %v2001
        %v3329 = vpop.permute.xlu0 %3328
        %3331 = vset.pattern.permute.xlu0 3
        %3332 = vperm.xlu0 %3331, %v2002
        %v3333 = vpop.permute.xlu0 %3332
        %3335 = vset.pattern.permute.xlu0 3
        %3336 = vperm.xlu0 %3335, %v2003
        %v3337 = vpop.permute.xlu0 %3336
        %3339 = vset.pattern.permute.xlu0 3
        %3340 = vperm.xlu0 %3339, %v2004
        %v3341 = vpop.permute.xlu0 %3340
        %3343 = vset.pattern.permute.xlu0 3
        %3344 = vperm.xlu0 %3343, %v2005
        %v3345 = vpop.permute.xlu0 %3344
        %3347 = vset.pattern.permute.xlu0 3
        %3348 = vperm.xlu0 %3347, %v2006
        %v3349 = vpop.permute.xlu0 %3348
        %3351 = vset.pattern.permute.xlu0 3
        %3352 = vperm.xlu0 %3351, %v2007
        %v3353 = vpop.permute.xlu0 %3352
        %3355 = vset.pattern.permute.xlu0 3
        %3356 = vperm.xlu0 %3355, %v2008
        %v3357 = vpop.permute.xlu0 %3356
        %3359 = vset.pattern.permute.xlu0 3
        %3360 = vperm.xlu0 %3359, %v2009
        %v3361 = vpop.permute.xlu0 %3360
        %3363 = vset.pattern.permute.xlu0 3
        %3364 = vperm.xlu0 %3363, %v2010
        %v3365 = vpop.permute.xlu0 %3364
        %3367 = vset.pattern.permute.xlu0 3
        %3368 = vperm.xlu0 %3367, %v2011
        %v3369 = vpop.permute.xlu0 %3368
        %3371 = vset.pattern.permute.xlu0 3
        %3372 = vperm.xlu0 %3371, %v2012
        %v3373 = vpop.permute.xlu0 %3372
        %3375 = vset.pattern.permute.xlu0 3
        %3376 = vperm.xlu0 %3375, %v2013
        %v3377 = vpop.permute.xlu0 %3376
        %3379 = vset.pattern.permute.xlu0 3
        %3380 = vperm.xlu0 %3379, %v2014
        %v3381 = vpop.permute.xlu0 %3380
        %3383 = vset.pattern.permute.xlu0 3
        %3384 = vperm.xlu0 %3383, %v2015
        %v3385 = vpop.permute.xlu0 %3384
        %3387 = vset.pattern.permute.xlu0 3
        %3388 = vperm.xlu0 %3387, %v2016
        %v3389 = vpop.permute.xlu0 %3388
        %3391 = vset.pattern.permute.xlu0 3
        %3392 = vperm.xlu0 %3391, %v2017
        %v3393 = vpop.permute.xlu0 %3392
        %3395 = vset.pattern.permute.xlu0 3
        %3396 = vperm.xlu0 %3395, %v2018
        %v3397 = vpop.permute.xlu0 %3396
        %3399 = vset.pattern.permute.xlu0 3
        %3400 = vperm.xlu0 %3399, %v2019
        %v3401 = vpop.permute.xlu0 %3400
        %3403 = vset.pattern.permute.xlu0 3
        %3404 = vperm.xlu0 %3403, %v2020
        %v3405 = vpop.permute.xlu0 %3404
        %3407 = vset.pattern.permute.xlu0 3
        %3408 = vperm.xlu0 %3407, %v2021
        %v3409 = vpop.permute.xlu0 %3408
        %3411 = vset.pattern.permute.xlu0 3
        %3412 = vperm.xlu0 %3411, %v2022
        %v3413 = vpop.permute.xlu0 %3412
        %3415 = vset.pattern.permute.xlu0 3
        %3416 = vperm.xlu0 %3415, %v2023
        %v3417 = vpop.permute.xlu0 %3416
        %3419 = vset.pattern.permute.xlu0 3
        %3420 = vperm.xlu0 %3419, %v2024
        %v3421 = vpop.permute.xlu0 %3420
        %3423 = vset.pattern.permute.xlu0 3
        %3424 = vperm.xlu0 %3423, %v2025
        %v3425 = vpop.permute.xlu0 %3424
        %3427 = vset.pattern.permute.xlu0 3
        %3428 = vperm.xlu0 %3427, %v2026
        %v3429 = vpop.permute.xlu0 %3428
        %3431 = vset.pattern.permute.xlu0 3
        %3432 = vperm.xlu0 %3431, %v2027
        %v3433 = vpop.permute.xlu0 %3432
        %3435 = vset.pattern.permute.xlu0 3
        %3436 = vperm.xlu0 %3435, %v2028
        %v3437 = vpop.permute.xlu0 %3436
        %3439 = vset.pattern.permute.xlu0 3
        %3440 = vperm.xlu0 %3439, %v2029
        %v3441 = vpop.permute.xlu0 %3440
        %3443 = vset.pattern.permute.xlu0 3
        %3444 = vperm.xlu0 %3443, %v2030
        %v3445 = vpop.permute.xlu0 %3444
        %3447 = vset.pattern.permute.xlu0 3
        %3448 = vperm.xlu0 %3447, %v2031
        %v3449 = vpop.permute.xlu0 %3448
        %3451 = vset.pattern.permute.xlu0 3
        %3452 = vperm.xlu0 %3451, %v2032
        %v3453 = vpop.permute.xlu0 %3452
        %3455 = vset.pattern.permute.xlu0 3
        %3456 = vperm.xlu0 %3455, %v2033
        %v3457 = vpop.permute.xlu0 %3456
        %3459 = vset.pattern.permute.xlu0 3
        %3460 = vperm.xlu0 %3459, %v2034
        %v3461 = vpop.permute.xlu0 %3460
        %3463 = vset.pattern.permute.xlu0 3
        %3464 = vperm.xlu0 %3463, %v2035
        %v3465 = vpop.permute.xlu0 %3464
        %3467 = vset.pattern.permute.xlu0 3
        %3468 = vperm.xlu0 %3467, %v2036
        %v3469 = vpop.permute.xlu0 %3468
        %3471 = vset.pattern.permute.xlu0 3
        %3472 = vperm.xlu0 %3471, %v2037
        %v3473 = vpop.permute.xlu0 %3472
        %3475 = vset.pattern.permute.xlu0 3
        %3476 = vperm.xlu0 %3475, %v2038
        %v3477 = vpop.permute.xlu0 %3476
        %3479 = vset.pattern.permute.xlu0 3
        %3480 = vperm.xlu0 %3479, %v2039
        %v3481 = vpop.permute.xlu0 %3480
        %3483 = vset.pattern.permute.xlu0 3
        %3484 = vperm.xlu0 %3483, %v2040
        %v3485 = vpop.permute.xlu0 %3484
        %3487 = vset.pattern.permute.xlu0 3
        %3488 = vperm.xlu0 %3487, %v2041
        %v3489 = vpop.permute.xlu0 %3488
        %3491 = vset.pattern.permute.xlu0 3
        %3492 = vperm.xlu0 %3491, %v2042
        %v3493 = vpop.permute.xlu0 %3492
        %3495 = vset.pattern.permute.xlu0 3
        %3496 = vperm.xlu0 %3495, %v2043
        %v3497 = vpop.permute.xlu0 %3496
        %3499 = vset.pattern.permute.xlu0 3
        %3500 = vperm.xlu0 %3499, %v2044
        %v3501 = vpop.permute.xlu0 %3500
        %3503 = vset.pattern.permute.xlu0 3
        %3504 = vperm.xlu0 %3503, %v2045
        %v3505 = vpop.permute.xlu0 %3504
        %3507 = vset.pattern.permute.xlu0 3
        %3508 = vperm.xlu0 %3507, %v2046
        %v3509 = vpop.permute.xlu0 %3508
        %3511 = vset.pattern.permute.xlu0 3
        %3512 = vperm.xlu0 %3511, %v2047
        %v3513 = vpop.permute.xlu0 %3512
        %3515 = vset.pattern.permute.xlu0 3
        %3516 = vperm.xlu0 %3515, %v2048
        %v3517 = vpop.permute.xlu0 %3516
        %3519 = vset.pattern.permute.xlu0 3
        %3520 = vperm.xlu0 %3519, %v2049
        %v3521 = vpop.permute.xlu0 %3520
        %3523 = vset.pattern.permute.xlu0 3
        %3524 = vperm.xlu0 %3523, %v2050
        %v3525 = vpop.permute.xlu0 %3524
        %v3527 = vperm.slane %v2051, 3
        %v3528 = vmul.f32 %v3273, %v3527
        %v3529 = vmul.f32 %v3277, %v3527
        %v3530 = vmul.f32 %v3281, %v3527
        %v3531 = vmul.f32 %v3285, %v3527
        %v3532 = vmul.f32 %v3289, %v3527
        %v3533 = vmul.f32 %v3293, %v3527
        %v3534 = vmul.f32 %v3297, %v3527
        %v3535 = vmul.f32 %v3301, %v3527
        %v3536 = vmul.f32 %v3305, %v3527
        %v3537 = vmul.f32 %v3309, %v3527
        %v3538 = vmul.f32 %v3313, %v3527
        %v3539 = vmul.f32 %v3317, %v3527
        %v3540 = vmul.f32 %v3321, %v3527
        %v3541 = vmul.f32 %v3325, %v3527
        %v3542 = vmul.f32 %v3329, %v3527
        %v3543 = vmul.f32 %v3333, %v3527
        %v3544 = vmul.f32 %v3337, %v3527
        %v3545 = vmul.f32 %v3341, %v3527
        %v3546 = vmul.f32 %v3345, %v3527
        %v3547 = vmul.f32 %v3349, %v3527
        %v3548 = vmul.f32 %v3353, %v3527
        %v3549 = vmul.f32 %v3357, %v3527
        %v3550 = vmul.f32 %v3361, %v3527
        %v3551 = vmul.f32 %v3365, %v3527
        %v3552 = vmul.f32 %v3369, %v3527
        %v3553 = vmul.f32 %v3373, %v3527
        %v3554 = vmul.f32 %v3377, %v3527
        %v3555 = vmul.f32 %v3381, %v3527
        %v3556 = vmul.f32 %v3385, %v3527
        %v3557 = vmul.f32 %v3389, %v3527
        %v3558 = vmul.f32 %v3393, %v3527
        %v3559 = vmul.f32 %v3397, %v3527
        %v3560 = vmul.f32 %v3401, %v3527
        %v3561 = vmul.f32 %v3405, %v3527
        %v3562 = vmul.f32 %v3409, %v3527
        %v3563 = vmul.f32 %v3413, %v3527
        %v3564 = vmul.f32 %v3417, %v3527
        %v3565 = vmul.f32 %v3421, %v3527
        %v3566 = vmul.f32 %v3425, %v3527
        %v3567 = vmul.f32 %v3429, %v3527
        %v3568 = vmul.f32 %v3433, %v3527
        %v3569 = vmul.f32 %v3437, %v3527
        %v3570 = vmul.f32 %v3441, %v3527
        %v3571 = vmul.f32 %v3445, %v3527
        %v3572 = vmul.f32 %v3449, %v3527
        %v3573 = vmul.f32 %v3453, %v3527
        %v3574 = vmul.f32 %v3457, %v3527
        %v3575 = vmul.f32 %v3461, %v3527
        %v3576 = vmul.f32 %v3465, %v3527
        %v3577 = vmul.f32 %v3469, %v3527
        %v3578 = vmul.f32 %v3473, %v3527
        %v3579 = vmul.f32 %v3477, %v3527
        %v3580 = vmul.f32 %v3481, %v3527
        %v3581 = vmul.f32 %v3485, %v3527
        %v3582 = vmul.f32 %v3489, %v3527
        %v3583 = vmul.f32 %v3493, %v3527
        %v3584 = vmul.f32 %v3497, %v3527
        %v3585 = vmul.f32 %v3501, %v3527
        %v3586 = vmul.f32 %v3505, %v3527
        %v3587 = vmul.f32 %v3509, %v3527
        %v3588 = vmul.f32 %v3513, %v3527
        %v3589 = vmul.f32 %v3517, %v3527
        %v3590 = vmul.f32 %v3521, %v3527
        %v3591 = vmul.f32 %v3525, %v3527
        %v3592 = vadd.f32 %v3207, %v3528
        %v3593 = vadd.f32 %v3208, %v3529
        %v3594 = vadd.f32 %v3209, %v3530
        %v3595 = vadd.f32 %v3210, %v3531
        %v3596 = vadd.f32 %v3211, %v3532
        %v3597 = vadd.f32 %v3212, %v3533
        %v3598 = vadd.f32 %v3213, %v3534
        %v3599 = vadd.f32 %v3214, %v3535
        %v3600 = vadd.f32 %v3215, %v3536
        %v3601 = vadd.f32 %v3216, %v3537
        %v3602 = vadd.f32 %v3217, %v3538
        %v3603 = vadd.f32 %v3218, %v3539
        %v3604 = vadd.f32 %v3219, %v3540
        %v3605 = vadd.f32 %v3220, %v3541
        %v3606 = vadd.f32 %v3221, %v3542
        %v3607 = vadd.f32 %v3222, %v3543
        %v3608 = vadd.f32 %v3223, %v3544
        %v3609 = vadd.f32 %v3224, %v3545
        %v3610 = vadd.f32 %v3225, %v3546
        %v3611 = vadd.f32 %v3226, %v3547
        %v3612 = vadd.f32 %v3227, %v3548
        %v3613 = vadd.f32 %v3228, %v3549
        %v3614 = vadd.f32 %v3229, %v3550
        %v3615 = vadd.f32 %v3230, %v3551
        %v3616 = vadd.f32 %v3231, %v3552
        %v3617 = vadd.f32 %v3232, %v3553
        %v3618 = vadd.f32 %v3233, %v3554
        %v3619 = vadd.f32 %v3234, %v3555
        %v3620 = vadd.f32 %v3235, %v3556
        %v3621 = vadd.f32 %v3236, %v3557
        %v3622 = vadd.f32 %v3237, %v3558
        %v3623 = vadd.f32 %v3238, %v3559
        %v3624 = vadd.f32 %v3239, %v3560
        %v3625 = vadd.f32 %v3240, %v3561
        %v3626 = vadd.f32 %v3241, %v3562
        %v3627 = vadd.f32 %v3242, %v3563
        %v3628 = vadd.f32 %v3243, %v3564
        %v3629 = vadd.f32 %v3244, %v3565
        %v3630 = vadd.f32 %v3245, %v3566
        %v3631 = vadd.f32 %v3246, %v3567
        %v3632 = vadd.f32 %v3247, %v3568
        %v3633 = vadd.f32 %v3248, %v3569
        %v3634 = vadd.f32 %v3249, %v3570
        %v3635 = vadd.f32 %v3250, %v3571
        %v3636 = vadd.f32 %v3251, %v3572
        %v3637 = vadd.f32 %v3252, %v3573
        %v3638 = vadd.f32 %v3253, %v3574
        %v3639 = vadd.f32 %v3254, %v3575
        %v3640 = vadd.f32 %v3255, %v3576
        %v3641 = vadd.f32 %v3256, %v3577
        %v3642 = vadd.f32 %v3257, %v3578
        %v3643 = vadd.f32 %v3258, %v3579
        %v3644 = vadd.f32 %v3259, %v3580
        %v3645 = vadd.f32 %v3260, %v3581
        %v3646 = vadd.f32 %v3261, %v3582
        %v3647 = vadd.f32 %v3262, %v3583
        %v3648 = vadd.f32 %v3263, %v3584
        %v3649 = vadd.f32 %v3264, %v3585
        %v3650 = vadd.f32 %v3265, %v3586
        %v3651 = vadd.f32 %v3266, %v3587
        %v3652 = vadd.f32 %v3267, %v3588
        %v3653 = vadd.f32 %v3268, %v3589
        %v3654 = vadd.f32 %v3269, %v3590
        %v3655 = vadd.f32 %v3270, %v3591
        %v3656 = vand.u32 2147483647, %v3592
        %v3657 = vand.u32 2147483647, %v3593
        %v3658 = vand.u32 2147483647, %v3594
        %v3659 = vand.u32 2147483647, %v3595
        %v3660 = vand.u32 2147483647, %v3596
        %v3661 = vand.u32 2147483647, %v3597
        %v3662 = vand.u32 2147483647, %v3598
        %v3663 = vand.u32 2147483647, %v3599
        %v3664 = vand.u32 2147483647, %v3600
        %v3665 = vand.u32 2147483647, %v3601
        %v3666 = vand.u32 2147483647, %v3602
        %v3667 = vand.u32 2147483647, %v3603
        %v3668 = vand.u32 2147483647, %v3604
        %v3669 = vand.u32 2147483647, %v3605
        %v3670 = vand.u32 2147483647, %v3606
        %v3671 = vand.u32 2147483647, %v3607
        %v3672 = vand.u32 2147483647, %v3608
        %v3673 = vand.u32 2147483647, %v3609
        %v3674 = vand.u32 2147483647, %v3610
        %v3675 = vand.u32 2147483647, %v3611
        %v3676 = vand.u32 2147483647, %v3612
        %v3677 = vand.u32 2147483647, %v3613
        %v3678 = vand.u32 2147483647, %v3614
        %v3679 = vand.u32 2147483647, %v3615
        %v3680 = vand.u32 2147483647, %v3616
        %v3681 = vand.u32 2147483647, %v3617
        %v3682 = vand.u32 2147483647, %v3618
        %v3683 = vand.u32 2147483647, %v3619
        %v3684 = vand.u32 2147483647, %v3620
        %v3685 = vand.u32 2147483647, %v3621
        %v3686 = vand.u32 2147483647, %v3622
        %v3687 = vand.u32 2147483647, %v3623
        %v3688 = vand.u32 2147483647, %v3624
        %v3689 = vand.u32 2147483647, %v3625
        %v3690 = vand.u32 2147483647, %v3626
        %v3691 = vand.u32 2147483647, %v3627
        %v3692 = vand.u32 2147483647, %v3628
        %v3693 = vand.u32 2147483647, %v3629
        %v3694 = vand.u32 2147483647, %v3630
        %v3695 = vand.u32 2147483647, %v3631
        %v3696 = vand.u32 2147483647, %v3632
        %v3697 = vand.u32 2147483647, %v3633
        %v3698 = vand.u32 2147483647, %v3634
        %v3699 = vand.u32 2147483647, %v3635
        %v3700 = vand.u32 2147483647, %v3636
        %v3701 = vand.u32 2147483647, %v3637
        %v3702 = vand.u32 2147483647, %v3638
        %v3703 = vand.u32 2147483647, %v3639
        %v3704 = vand.u32 2147483647, %v3640
        %v3705 = vand.u32 2147483647, %v3641
        %v3706 = vand.u32 2147483647, %v3642
        %v3707 = vand.u32 2147483647, %v3643
        %v3708 = vand.u32 2147483647, %v3644
        %v3709 = vand.u32 2147483647, %v3645
        %v3710 = vand.u32 2147483647, %v3646
        %v3711 = vand.u32 2147483647, %v3647
        %v3712 = vand.u32 2147483647, %v3648
        %v3713 = vand.u32 2147483647, %v3649
        %v3714 = vand.u32 2147483647, %v3650
        %v3715 = vand.u32 2147483647, %v3651
        %v3716 = vand.u32 2147483647, %v3652
        %v3717 = vand.u32 2147483647, %v3653
        %v3718 = vand.u32 2147483647, %v3654
        %v3719 = vand.u32 2147483647, %v3655
        %v3720 = vsub.f32 0.0, %v3656
        %v3721 = vsub.f32 0.0, %v3657
        %v3722 = vsub.f32 0.0, %v3658
        %v3723 = vsub.f32 0.0, %v3659
        %v3724 = vsub.f32 0.0, %v3660
        %v3725 = vsub.f32 0.0, %v3661
        %v3726 = vsub.f32 0.0, %v3662
        %v3727 = vsub.f32 0.0, %v3663
        %v3728 = vsub.f32 0.0, %v3664
        %v3729 = vsub.f32 0.0, %v3665
        %v3730 = vsub.f32 0.0, %v3666
        %v3731 = vsub.f32 0.0, %v3667
        %v3732 = vsub.f32 0.0, %v3668
        %v3733 = vsub.f32 0.0, %v3669
        %v3734 = vsub.f32 0.0, %v3670
        %v3735 = vsub.f32 0.0, %v3671
        %v3736 = vsub.f32 0.0, %v3672
        %v3737 = vsub.f32 0.0, %v3673
        %v3738 = vsub.f32 0.0, %v3674
        %v3739 = vsub.f32 0.0, %v3675
        %v3740 = vsub.f32 0.0, %v3676
        %v3741 = vsub.f32 0.0, %v3677
        %v3742 = vsub.f32 0.0, %v3678
        %v3743 = vsub.f32 0.0, %v3679
        %v3744 = vsub.f32 0.0, %v3680
        %v3745 = vsub.f32 0.0, %v3681
        %v3746 = vsub.f32 0.0, %v3682
        %v3747 = vsub.f32 0.0, %v3683
        %v3748 = vsub.f32 0.0, %v3684
        %v3749 = vsub.f32 0.0, %v3685
        %v3750 = vsub.f32 0.0, %v3686
        %v3751 = vsub.f32 0.0, %v3687
        %v3752 = vsub.f32 0.0, %v3688
        %v3753 = vsub.f32 0.0, %v3689
        %v3754 = vsub.f32 0.0, %v3690
        %v3755 = vsub.f32 0.0, %v3691
        %v3756 = vsub.f32 0.0, %v3692
        %v3757 = vsub.f32 0.0, %v3693
        %v3758 = vsub.f32 0.0, %v3694
        %v3759 = vsub.f32 0.0, %v3695
        %v3760 = vsub.f32 0.0, %v3696
        %v3761 = vsub.f32 0.0, %v3697
        %v3762 = vsub.f32 0.0, %v3698
        %v3763 = vsub.f32 0.0, %v3699
        %v3764 = vsub.f32 0.0, %v3700
        %v3765 = vsub.f32 0.0, %v3701
        %v3766 = vsub.f32 0.0, %v3702
        %v3767 = vsub.f32 0.0, %v3703
        %v3768 = vsub.f32 0.0, %v3704
        %v3769 = vsub.f32 0.0, %v3705
        %v3770 = vsub.f32 0.0, %v3706
        %v3771 = vsub.f32 0.0, %v3707
        %v3772 = vsub.f32 0.0, %v3708
        %v3773 = vsub.f32 0.0, %v3709
        %v3774 = vsub.f32 0.0, %v3710
        %v3775 = vsub.f32 0.0, %v3711
        %v3776 = vsub.f32 0.0, %v3712
        %v3777 = vsub.f32 0.0, %v3713
        %v3778 = vsub.f32 0.0, %v3714
        %v3779 = vsub.f32 0.0, %v3715
        %v3780 = vsub.f32 0.0, %v3716
        %v3781 = vsub.f32 0.0, %v3717
        %v3782 = vsub.f32 0.0, %v3718
        %v3783 = vsub.f32 0.0, %v3719
        %v3784 = vmul.f32 %v3720, 1.442695
        %v3785 = vpow.pop %v3784
        %v3786 = vmul.f32 %v3721, 1.442695
        %v3787 = vpow.pop %v3786
        %v3788 = vmul.f32 %v3722, 1.442695
        %v3789 = vpow.pop %v3788
        %v3790 = vmul.f32 %v3723, 1.442695
        %v3791 = vpow.pop %v3790
        %v3792 = vmul.f32 %v3724, 1.442695
        %v3793 = vpow.pop %v3792
        %v3794 = vmul.f32 %v3725, 1.442695
        %v3795 = vpow.pop %v3794
        %v3796 = vmul.f32 %v3726, 1.442695
        %v3797 = vpow.pop %v3796
        %v3798 = vmul.f32 %v3727, 1.442695
        %v3799 = vpow.pop %v3798
        %v3800 = vmul.f32 %v3728, 1.442695
        %v3801 = vpow.pop %v3800
        %v3802 = vmul.f32 %v3729, 1.442695
        %v3803 = vpow.pop %v3802
        %v3804 = vmul.f32 %v3730, 1.442695
        %v3805 = vpow.pop %v3804
        %v3806 = vmul.f32 %v3731, 1.442695
        %v3807 = vpow.pop %v3806
        %v3808 = vmul.f32 %v3732, 1.442695
        %v3809 = vpow.pop %v3808
        %v3810 = vmul.f32 %v3733, 1.442695
        %v3811 = vpow.pop %v3810
        %v3812 = vmul.f32 %v3734, 1.442695
        %v3813 = vpow.pop %v3812
        %v3814 = vmul.f32 %v3735, 1.442695
        %v3815 = vpow.pop %v3814
        %v3816 = vmul.f32 %v3736, 1.442695
        %v3817 = vpow.pop %v3816
        %v3818 = vmul.f32 %v3737, 1.442695
        %v3819 = vpow.pop %v3818
        %v3820 = vmul.f32 %v3738, 1.442695
        %v3821 = vpow.pop %v3820
        %v3822 = vmul.f32 %v3739, 1.442695
        %v3823 = vpow.pop %v3822
        %v3824 = vmul.f32 %v3740, 1.442695
        %v3825 = vpow.pop %v3824
        %v3826 = vmul.f32 %v3741, 1.442695
        %v3827 = vpow.pop %v3826
        %v3828 = vmul.f32 %v3742, 1.442695
        %v3829 = vpow.pop %v3828
        %v3830 = vmul.f32 %v3743, 1.442695
        %v3831 = vpow.pop %v3830
        %v3832 = vmul.f32 %v3744, 1.442695
        %v3833 = vpow.pop %v3832
        %v3834 = vmul.f32 %v3745, 1.442695
        %v3835 = vpow.pop %v3834
        %v3836 = vmul.f32 %v3746, 1.442695
        %v3837 = vpow.pop %v3836
        %v3838 = vmul.f32 %v3747, 1.442695
        %v3839 = vpow.pop %v3838
        %v3840 = vmul.f32 %v3748, 1.442695
        %v3841 = vpow.pop %v3840
        %v3842 = vmul.f32 %v3749, 1.442695
        %v3843 = vpow.pop %v3842
        %v3844 = vmul.f32 %v3750, 1.442695
        %v3845 = vpow.pop %v3844
        %v3846 = vmul.f32 %v3751, 1.442695
        %v3847 = vpow.pop %v3846
        %v3848 = vmul.f32 %v3752, 1.442695
        %v3849 = vpow.pop %v3848
        %v3850 = vmul.f32 %v3753, 1.442695
        %v3851 = vpow.pop %v3850
        %v3852 = vmul.f32 %v3754, 1.442695
        %v3853 = vpow.pop %v3852
        %v3854 = vmul.f32 %v3755, 1.442695
        %v3855 = vpow.pop %v3854
        %v3856 = vmul.f32 %v3756, 1.442695
        %v3857 = vpow.pop %v3856
        %v3858 = vmul.f32 %v3757, 1.442695
        %v3859 = vpow.pop %v3858
        %v3860 = vmul.f32 %v3758, 1.442695
        %v3861 = vpow.pop %v3860
        %v3862 = vmul.f32 %v3759, 1.442695
        %v3863 = vpow.pop %v3862
        %v3864 = vmul.f32 %v3760, 1.442695
        %v3865 = vpow.pop %v3864
        %v3866 = vmul.f32 %v3761, 1.442695
        %v3867 = vpow.pop %v3866
        %v3868 = vmul.f32 %v3762, 1.442695
        %v3869 = vpow.pop %v3868
        %v3870 = vmul.f32 %v3763, 1.442695
        %v3871 = vpow.pop %v3870
        %v3872 = vmul.f32 %v3764, 1.442695
        %v3873 = vpow.pop %v3872
        %v3874 = vmul.f32 %v3765, 1.442695
        %v3875 = vpow.pop %v3874
        %v3876 = vmul.f32 %v3766, 1.442695
        %v3877 = vpow.pop %v3876
        %v3878 = vmul.f32 %v3767, 1.442695
        %v3879 = vpow.pop %v3878
        %v3880 = vmul.f32 %v3768, 1.442695
        %v3881 = vpow.pop %v3880
        %v3882 = vmul.f32 %v3769, 1.442695
        %v3883 = vpow.pop %v3882
        %v3884 = vmul.f32 %v3770, 1.442695
        %v3885 = vpow.pop %v3884
        %v3886 = vmul.f32 %v3771, 1.442695
        %v3887 = vpow.pop %v3886
        %v3888 = vmul.f32 %v3772, 1.442695
        %v3889 = vpow.pop %v3888
        %v3890 = vmul.f32 %v3773, 1.442695
        %v3891 = vpow.pop %v3890
        %v3892 = vmul.f32 %v3774, 1.442695
        %v3893 = vpow.pop %v3892
        %v3894 = vmul.f32 %v3775, 1.442695
        %v3895 = vpow.pop %v3894
        %v3896 = vmul.f32 %v3776, 1.442695
        %v3897 = vpow.pop %v3896
        %v3898 = vmul.f32 %v3777, 1.442695
        %v3899 = vpow.pop %v3898
        %v3900 = vmul.f32 %v3778, 1.442695
        %v3901 = vpow.pop %v3900
        %v3902 = vmul.f32 %v3779, 1.442695
        %v3903 = vpow.pop %v3902
        %v3904 = vmul.f32 %v3780, 1.442695
        %v3905 = vpow.pop %v3904
        %v3906 = vmul.f32 %v3781, 1.442695
        %v3907 = vpow.pop %v3906
        %v3908 = vmul.f32 %v3782, 1.442695
        %v3909 = vpow.pop %v3908
        %v3910 = vmul.f32 %v3783, 1.442695
        %v3911 = vpow.pop %v3910
        %v3912 = vadd.f32 %v3785, 1.0
        %v3913 = vadd.f32 %v3787, 1.0
        %v3914 = vadd.f32 %v3789, 1.0
        %v3915 = vadd.f32 %v3791, 1.0
        %v3916 = vadd.f32 %v3793, 1.0
        %v3917 = vadd.f32 %v3795, 1.0
        %v3918 = vadd.f32 %v3797, 1.0
        %v3919 = vadd.f32 %v3799, 1.0
        %v3920 = vadd.f32 %v3801, 1.0
        %v3921 = vadd.f32 %v3803, 1.0
        %v3922 = vadd.f32 %v3805, 1.0
        %v3923 = vadd.f32 %v3807, 1.0
        %v3924 = vadd.f32 %v3809, 1.0
        %v3925 = vadd.f32 %v3811, 1.0
        %v3926 = vadd.f32 %v3813, 1.0
        %v3927 = vadd.f32 %v3815, 1.0
        %v3928 = vadd.f32 %v3817, 1.0
        %v3929 = vadd.f32 %v3819, 1.0
        %v3930 = vadd.f32 %v3821, 1.0
        %v3931 = vadd.f32 %v3823, 1.0
        %v3932 = vadd.f32 %v3825, 1.0
        %v3933 = vadd.f32 %v3827, 1.0
        %v3934 = vadd.f32 %v3829, 1.0
        %v3935 = vadd.f32 %v3831, 1.0
        %v3936 = vadd.f32 %v3833, 1.0
        %v3937 = vadd.f32 %v3835, 1.0
        %v3938 = vadd.f32 %v3837, 1.0
        %v3939 = vadd.f32 %v3839, 1.0
        %v3940 = vadd.f32 %v3841, 1.0
        %v3941 = vadd.f32 %v3843, 1.0
        %v3942 = vadd.f32 %v3845, 1.0
        %v3943 = vadd.f32 %v3847, 1.0
        %v3944 = vadd.f32 %v3849, 1.0
        %v3945 = vadd.f32 %v3851, 1.0
        %v3946 = vadd.f32 %v3853, 1.0
        %v3947 = vadd.f32 %v3855, 1.0
        %v3948 = vadd.f32 %v3857, 1.0
        %v3949 = vadd.f32 %v3859, 1.0
        %v3950 = vadd.f32 %v3861, 1.0
        %v3951 = vadd.f32 %v3863, 1.0
        %v3952 = vadd.f32 %v3865, 1.0
        %v3953 = vadd.f32 %v3867, 1.0
        %v3954 = vadd.f32 %v3869, 1.0
        %v3955 = vadd.f32 %v3871, 1.0
        %v3956 = vadd.f32 %v3873, 1.0
        %v3957 = vadd.f32 %v3875, 1.0
        %v3958 = vadd.f32 %v3877, 1.0
        %v3959 = vadd.f32 %v3879, 1.0
        %v3960 = vadd.f32 %v3881, 1.0
        %v3961 = vadd.f32 %v3883, 1.0
        %v3962 = vadd.f32 %v3885, 1.0
        %v3963 = vadd.f32 %v3887, 1.0
        %v3964 = vadd.f32 %v3889, 1.0
        %v3965 = vadd.f32 %v3891, 1.0
        %v3966 = vadd.f32 %v3893, 1.0
        %v3967 = vadd.f32 %v3895, 1.0
        %v3968 = vadd.f32 %v3897, 1.0
        %v3969 = vadd.f32 %v3899, 1.0
        %v3970 = vadd.f32 %v3901, 1.0
        %v3971 = vadd.f32 %v3903, 1.0
        %v3972 = vadd.f32 %v3905, 1.0
        %v3973 = vadd.f32 %v3907, 1.0
        %v3974 = vadd.f32 %v3909, 1.0
        %v3975 = vadd.f32 %v3911, 1.0
        %v3976 = vrcp.pop %v3912
        %v3977 = vrcp.pop %v3913
        %v3978 = vrcp.pop %v3914
        %v3979 = vrcp.pop %v3915
        %v3980 = vrcp.pop %v3916
        %v3981 = vrcp.pop %v3917
        %v3982 = vrcp.pop %v3918
        %v3983 = vrcp.pop %v3919
        %v3984 = vrcp.pop %v3920
        %v3985 = vrcp.pop %v3921
        %v3986 = vrcp.pop %v3922
        %v3987 = vrcp.pop %v3923
        %v3988 = vrcp.pop %v3924
        %v3989 = vrcp.pop %v3925
        %v3990 = vrcp.pop %v3926
        %v3991 = vrcp.pop %v3927
        %v3992 = vrcp.pop %v3928
        %v3993 = vrcp.pop %v3929
        %v3994 = vrcp.pop %v3930
        %v3995 = vrcp.pop %v3931
        %v3996 = vrcp.pop %v3932
        %v3997 = vrcp.pop %v3933
        %v3998 = vrcp.pop %v3934
        %v3999 = vrcp.pop %v3935
        %v4000 = vrcp.pop %v3936
        %v4001 = vrcp.pop %v3937
        %v4002 = vrcp.pop %v3938
        %v4003 = vrcp.pop %v3939
        %v4004 = vrcp.pop %v3940
        %v4005 = vrcp.pop %v3941
        %v4006 = vrcp.pop %v3942
        %v4007 = vrcp.pop %v3943
        %v4008 = vrcp.pop %v3944
        %v4009 = vrcp.pop %v3945
        %v4010 = vrcp.pop %v3946
        %v4011 = vrcp.pop %v3947
        %v4012 = vrcp.pop %v3948
        %v4013 = vrcp.pop %v3949
        %v4014 = vrcp.pop %v3950
        %v4015 = vrcp.pop %v3951
        %v4016 = vrcp.pop %v3952
        %v4017 = vrcp.pop %v3953
        %v4018 = vrcp.pop %v3954
        %v4019 = vrcp.pop %v3955
        %v4020 = vrcp.pop %v3956
        %v4021 = vrcp.pop %v3957
        %v4022 = vrcp.pop %v3958
        %v4023 = vrcp.pop %v3959
        %v4024 = vrcp.pop %v3960
        %v4025 = vrcp.pop %v3961
        %v4026 = vrcp.pop %v3962
        %v4027 = vrcp.pop %v3963
        %v4028 = vrcp.pop %v3964
        %v4029 = vrcp.pop %v3965
        %v4030 = vrcp.pop %v3966
        %v4031 = vrcp.pop %v3967
        %v4032 = vrcp.pop %v3968
        %v4033 = vrcp.pop %v3969
        %v4034 = vrcp.pop %v3970
        %v4035 = vrcp.pop %v3971
        %v4036 = vrcp.pop %v3972
        %v4037 = vrcp.pop %v3973
        %v4038 = vrcp.pop %v3974
        %v4039 = vrcp.pop %v3975
        %vm4040 = vcmp.ge.f32.partialorder %v3592, 0.0
        %vm4041 = vcmp.ge.f32.partialorder %v3593, 0.0
        %vm4042 = vcmp.ge.f32.partialorder %v3594, 0.0
        %vm4043 = vcmp.ge.f32.partialorder %v3595, 0.0
        %vm4044 = vcmp.ge.f32.partialorder %v3596, 0.0
        %vm4045 = vcmp.ge.f32.partialorder %v3597, 0.0
        %vm4046 = vcmp.ge.f32.partialorder %v3598, 0.0
        %vm4047 = vcmp.ge.f32.partialorder %v3599, 0.0
        %vm4048 = vcmp.ge.f32.partialorder %v3600, 0.0
        %vm4049 = vcmp.ge.f32.partialorder %v3601, 0.0
        %vm4050 = vcmp.ge.f32.partialorder %v3602, 0.0
        %vm4051 = vcmp.ge.f32.partialorder %v3603, 0.0
        %vm4052 = vcmp.ge.f32.partialorder %v3604, 0.0
        %vm4053 = vcmp.ge.f32.partialorder %v3605, 0.0
        %vm4054 = vcmp.ge.f32.partialorder %v3606, 0.0
        %vm4055 = vcmp.ge.f32.partialorder %v3607, 0.0
        %vm4056 = vcmp.ge.f32.partialorder %v3608, 0.0
        %vm4057 = vcmp.ge.f32.partialorder %v3609, 0.0
        %vm4058 = vcmp.ge.f32.partialorder %v3610, 0.0
        %vm4059 = vcmp.ge.f32.partialorder %v3611, 0.0
        %vm4060 = vcmp.ge.f32.partialorder %v3612, 0.0
        %vm4061 = vcmp.ge.f32.partialorder %v3613, 0.0
        %vm4062 = vcmp.ge.f32.partialorder %v3614, 0.0
        %vm4063 = vcmp.ge.f32.partialorder %v3615, 0.0
        %vm4064 = vcmp.ge.f32.partialorder %v3616, 0.0
        %vm4065 = vcmp.ge.f32.partialorder %v3617, 0.0
        %vm4066 = vcmp.ge.f32.partialorder %v3618, 0.0
        %vm4067 = vcmp.ge.f32.partialorder %v3619, 0.0
        %vm4068 = vcmp.ge.f32.partialorder %v3620, 0.0
        %vm4069 = vcmp.ge.f32.partialorder %v3621, 0.0
        %vm4070 = vcmp.ge.f32.partialorder %v3622, 0.0
        %vm4071 = vcmp.ge.f32.partialorder %v3623, 0.0
        %vm4072 = vcmp.ge.f32.partialorder %v3624, 0.0
        %vm4073 = vcmp.ge.f32.partialorder %v3625, 0.0
        %vm4074 = vcmp.ge.f32.partialorder %v3626, 0.0
        %vm4075 = vcmp.ge.f32.partialorder %v3627, 0.0
        %vm4076 = vcmp.ge.f32.partialorder %v3628, 0.0
        %vm4077 = vcmp.ge.f32.partialorder %v3629, 0.0
        %vm4078 = vcmp.ge.f32.partialorder %v3630, 0.0
        %vm4079 = vcmp.ge.f32.partialorder %v3631, 0.0
        %vm4080 = vcmp.ge.f32.partialorder %v3632, 0.0
        %vm4081 = vcmp.ge.f32.partialorder %v3633, 0.0
        %vm4082 = vcmp.ge.f32.partialorder %v3634, 0.0
        %vm4083 = vcmp.ge.f32.partialorder %v3635, 0.0
        %vm4084 = vcmp.ge.f32.partialorder %v3636, 0.0
        %vm4085 = vcmp.ge.f32.partialorder %v3637, 0.0
        %vm4086 = vcmp.ge.f32.partialorder %v3638, 0.0
        %vm4087 = vcmp.ge.f32.partialorder %v3639, 0.0
        %vm4088 = vcmp.ge.f32.partialorder %v3640, 0.0
        %vm4089 = vcmp.ge.f32.partialorder %v3641, 0.0
        %vm4090 = vcmp.ge.f32.partialorder %v3642, 0.0
        %vm4091 = vcmp.ge.f32.partialorder %v3643, 0.0
        %vm4092 = vcmp.ge.f32.partialorder %v3644, 0.0
        %vm4093 = vcmp.ge.f32.partialorder %v3645, 0.0
        %vm4094 = vcmp.ge.f32.partialorder %v3646, 0.0
        %vm4095 = vcmp.ge.f32.partialorder %v3647, 0.0
        %vm4096 = vcmp.ge.f32.partialorder %v3648, 0.0
        %vm4097 = vcmp.ge.f32.partialorder %v3649, 0.0
        %vm4098 = vcmp.ge.f32.partialorder %v3650, 0.0
        %vm4099 = vcmp.ge.f32.partialorder %v3651, 0.0
        %vm4100 = vcmp.ge.f32.partialorder %v3652, 0.0
        %vm4101 = vcmp.ge.f32.partialorder %v3653, 0.0
        %vm4102 = vcmp.ge.f32.partialorder %v3654, 0.0
        %vm4103 = vcmp.ge.f32.partialorder %v3655, 0.0
        %v4104 = vmul.f32 %v3785, %v3976
        %v4105 = vmul.f32 %v3787, %v3977
        %v4106 = vmul.f32 %v3789, %v3978
        %v4107 = vmul.f32 %v3791, %v3979
        %v4108 = vmul.f32 %v3793, %v3980
        %v4109 = vmul.f32 %v3795, %v3981
        %v4110 = vmul.f32 %v3797, %v3982
        %v4111 = vmul.f32 %v3799, %v3983
        %v4112 = vmul.f32 %v3801, %v3984
        %v4113 = vmul.f32 %v3803, %v3985
        %v4114 = vmul.f32 %v3805, %v3986
        %v4115 = vmul.f32 %v3807, %v3987
        %v4116 = vmul.f32 %v3809, %v3988
        %v4117 = vmul.f32 %v3811, %v3989
        %v4118 = vmul.f32 %v3813, %v3990
        %v4119 = vmul.f32 %v3815, %v3991
        %v4120 = vmul.f32 %v3817, %v3992
        %v4121 = vmul.f32 %v3819, %v3993
        %v4122 = vmul.f32 %v3821, %v3994
        %v4123 = vmul.f32 %v3823, %v3995
        %v4124 = vmul.f32 %v3825, %v3996
        %v4125 = vmul.f32 %v3827, %v3997
        %v4126 = vmul.f32 %v3829, %v3998
        %v4127 = vmul.f32 %v3831, %v3999
        %v4128 = vmul.f32 %v3833, %v4000
        %v4129 = vmul.f32 %v3835, %v4001
        %v4130 = vmul.f32 %v3837, %v4002
        %v4131 = vmul.f32 %v3839, %v4003
        %v4132 = vmul.f32 %v3841, %v4004
        %v4133 = vmul.f32 %v3843, %v4005
        %v4134 = vmul.f32 %v3845, %v4006
        %v4135 = vmul.f32 %v3847, %v4007
        %v4136 = vmul.f32 %v3849, %v4008
        %v4137 = vmul.f32 %v3851, %v4009
        %v4138 = vmul.f32 %v3853, %v4010
        %v4139 = vmul.f32 %v3855, %v4011
        %v4140 = vmul.f32 %v3857, %v4012
        %v4141 = vmul.f32 %v3859, %v4013
        %v4142 = vmul.f32 %v3861, %v4014
        %v4143 = vmul.f32 %v3863, %v4015
        %v4144 = vmul.f32 %v3865, %v4016
        %v4145 = vmul.f32 %v3867, %v4017
        %v4146 = vmul.f32 %v3869, %v4018
        %v4147 = vmul.f32 %v3871, %v4019
        %v4148 = vmul.f32 %v3873, %v4020
        %v4149 = vmul.f32 %v3875, %v4021
        %v4150 = vmul.f32 %v3877, %v4022
        %v4151 = vmul.f32 %v3879, %v4023
        %v4152 = vmul.f32 %v3881, %v4024
        %v4153 = vmul.f32 %v3883, %v4025
        %v4154 = vmul.f32 %v3885, %v4026
        %v4155 = vmul.f32 %v3887, %v4027
        %v4156 = vmul.f32 %v3889, %v4028
        %v4157 = vmul.f32 %v3891, %v4029
        %v4158 = vmul.f32 %v3893, %v4030
        %v4159 = vmul.f32 %v3895, %v4031
        %v4160 = vmul.f32 %v3897, %v4032
        %v4161 = vmul.f32 %v3899, %v4033
        %v4162 = vmul.f32 %v3901, %v4034
        %v4163 = vmul.f32 %v3903, %v4035
        %v4164 = vmul.f32 %v3905, %v4036
        %v4165 = vmul.f32 %v3907, %v4037
        %v4166 = vmul.f32 %v3909, %v4038
        %v4167 = vmul.f32 %v3911, %v4039
        %v4168 = vsel %vm4040, %v3976, %v4104
        %v4169 = vsel %vm4041, %v3977, %v4105
        %v4170 = vsel %vm4042, %v3978, %v4106
        %v4171 = vsel %vm4043, %v3979, %v4107
        %v4172 = vsel %vm4044, %v3980, %v4108
        %v4173 = vsel %vm4045, %v3981, %v4109
        %v4174 = vsel %vm4046, %v3982, %v4110
        %v4175 = vsel %vm4047, %v3983, %v4111
        %v4176 = vsel %vm4048, %v3984, %v4112
        %v4177 = vsel %vm4049, %v3985, %v4113
        %v4178 = vsel %vm4050, %v3986, %v4114
        %v4179 = vsel %vm4051, %v3987, %v4115
        %v4180 = vsel %vm4052, %v3988, %v4116
        %v4181 = vsel %vm4053, %v3989, %v4117
        %v4182 = vsel %vm4054, %v3990, %v4118
        %v4183 = vsel %vm4055, %v3991, %v4119
        %v4184 = vsel %vm4056, %v3992, %v4120
        %v4185 = vsel %vm4057, %v3993, %v4121
        %v4186 = vsel %vm4058, %v3994, %v4122
        %v4187 = vsel %vm4059, %v3995, %v4123
        %v4188 = vsel %vm4060, %v3996, %v4124
        %v4189 = vsel %vm4061, %v3997, %v4125
        %v4190 = vsel %vm4062, %v3998, %v4126
        %v4191 = vsel %vm4063, %v3999, %v4127
        %v4192 = vsel %vm4064, %v4000, %v4128
        %v4193 = vsel %vm4065, %v4001, %v4129
        %v4194 = vsel %vm4066, %v4002, %v4130
        %v4195 = vsel %vm4067, %v4003, %v4131
        %v4196 = vsel %vm4068, %v4004, %v4132
        %v4197 = vsel %vm4069, %v4005, %v4133
        %v4198 = vsel %vm4070, %v4006, %v4134
        %v4199 = vsel %vm4071, %v4007, %v4135
        %v4200 = vsel %vm4072, %v4008, %v4136
        %v4201 = vsel %vm4073, %v4009, %v4137
        %v4202 = vsel %vm4074, %v4010, %v4138
        %v4203 = vsel %vm4075, %v4011, %v4139
        %v4204 = vsel %vm4076, %v4012, %v4140
        %v4205 = vsel %vm4077, %v4013, %v4141
        %v4206 = vsel %vm4078, %v4014, %v4142
        %v4207 = vsel %vm4079, %v4015, %v4143
        %v4208 = vsel %vm4080, %v4016, %v4144
        %v4209 = vsel %vm4081, %v4017, %v4145
        %v4210 = vsel %vm4082, %v4018, %v4146
        %v4211 = vsel %vm4083, %v4019, %v4147
        %v4212 = vsel %vm4084, %v4020, %v4148
        %v4213 = vsel %vm4085, %v4021, %v4149
        %v4214 = vsel %vm4086, %v4022, %v4150
        %v4215 = vsel %vm4087, %v4023, %v4151
        %v4216 = vsel %vm4088, %v4024, %v4152
        %v4217 = vsel %vm4089, %v4025, %v4153
        %v4218 = vsel %vm4090, %v4026, %v4154
        %v4219 = vsel %vm4091, %v4027, %v4155
        %v4220 = vsel %vm4092, %v4028, %v4156
        %v4221 = vsel %vm4093, %v4029, %v4157
        %v4222 = vsel %vm4094, %v4030, %v4158
        %v4223 = vsel %vm4095, %v4031, %v4159
        %v4224 = vsel %vm4096, %v4032, %v4160
        %v4225 = vsel %vm4097, %v4033, %v4161
        %v4226 = vsel %vm4098, %v4034, %v4162
        %v4227 = vsel %vm4099, %v4035, %v4163
        %v4228 = vsel %vm4100, %v4036, %v4164
        %v4229 = vsel %vm4101, %v4037, %v4165
        %v4230 = vsel %vm4102, %v4038, %v4166
        %v4231 = vsel %vm4103, %v4039, %v4167
        %v4232 = vmul.f32 %v3592, %v4168
        %v4233 = vmul.f32 %v3593, %v4169
        %v4234 = vmul.f32 %v3594, %v4170
        %v4235 = vmul.f32 %v3595, %v4171
        %v4236 = vmul.f32 %v3596, %v4172
        %v4237 = vmul.f32 %v3597, %v4173
        %v4238 = vmul.f32 %v3598, %v4174
        %v4239 = vmul.f32 %v3599, %v4175
        %v4240 = vmul.f32 %v3600, %v4176
        %v4241 = vmul.f32 %v3601, %v4177
        %v4242 = vmul.f32 %v3602, %v4178
        %v4243 = vmul.f32 %v3603, %v4179
        %v4244 = vmul.f32 %v3604, %v4180
        %v4245 = vmul.f32 %v3605, %v4181
        %v4246 = vmul.f32 %v3606, %v4182
        %v4247 = vmul.f32 %v3607, %v4183
        %v4248 = vmul.f32 %v3608, %v4184
        %v4249 = vmul.f32 %v3609, %v4185
        %v4250 = vmul.f32 %v3610, %v4186
        %v4251 = vmul.f32 %v3611, %v4187
        %v4252 = vmul.f32 %v3612, %v4188
        %v4253 = vmul.f32 %v3613, %v4189
        %v4254 = vmul.f32 %v3614, %v4190
        %v4255 = vmul.f32 %v3615, %v4191
        %v4256 = vmul.f32 %v3616, %v4192
        %v4257 = vmul.f32 %v3617, %v4193
        %v4258 = vmul.f32 %v3618, %v4194
        %v4259 = vmul.f32 %v3619, %v4195
        %v4260 = vmul.f32 %v3620, %v4196
        %v4261 = vmul.f32 %v3621, %v4197
        %v4262 = vmul.f32 %v3622, %v4198
        %v4263 = vmul.f32 %v3623, %v4199
        %v4264 = vmul.f32 %v3624, %v4200
        %v4265 = vmul.f32 %v3625, %v4201
        %v4266 = vmul.f32 %v3626, %v4202
        %v4267 = vmul.f32 %v3627, %v4203
        %v4268 = vmul.f32 %v3628, %v4204
        %v4269 = vmul.f32 %v3629, %v4205
        %v4270 = vmul.f32 %v3630, %v4206
        %v4271 = vmul.f32 %v3631, %v4207
        %v4272 = vmul.f32 %v3632, %v4208
        %v4273 = vmul.f32 %v3633, %v4209
        %v4274 = vmul.f32 %v3634, %v4210
        %v4275 = vmul.f32 %v3635, %v4211
        %v4276 = vmul.f32 %v3636, %v4212
        %v4277 = vmul.f32 %v3637, %v4213
        %v4278 = vmul.f32 %v3638, %v4214
        %v4279 = vmul.f32 %v3639, %v4215
        %v4280 = vmul.f32 %v3640, %v4216
        %v4281 = vmul.f32 %v3641, %v4217
        %v4282 = vmul.f32 %v3642, %v4218
        %v4283 = vmul.f32 %v3643, %v4219
        %v4284 = vmul.f32 %v3644, %v4220
        %v4285 = vmul.f32 %v3645, %v4221
        %v4286 = vmul.f32 %v3646, %v4222
        %v4287 = vmul.f32 %v3647, %v4223
        %v4288 = vmul.f32 %v3648, %v4224
        %v4289 = vmul.f32 %v3649, %v4225
        %v4290 = vmul.f32 %v3650, %v4226
        %v4291 = vmul.f32 %v3651, %v4227
        %v4292 = vmul.f32 %v3652, %v4228
        %v4293 = vmul.f32 %v3653, %v4229
        %v4294 = vmul.f32 %v3654, %v4230
        %v4295 = vmul.f32 %v3655, %v4231
        %v4296 = vpack.c.bf16 %v4233, %v4232
        %v4297 = vpack.c.bf16 %v4235, %v4234
        %v4298 = vpack.c.bf16 %v4237, %v4236
        %v4299 = vpack.c.bf16 %v4239, %v4238
        %v4300 = vpack.c.bf16 %v4241, %v4240
        %v4301 = vpack.c.bf16 %v4243, %v4242
        %v4302 = vpack.c.bf16 %v4245, %v4244
        %v4303 = vpack.c.bf16 %v4247, %v4246
        %v4304 = vpack.c.bf16 %v4249, %v4248
        %v4305 = vpack.c.bf16 %v4251, %v4250
        %v4306 = vpack.c.bf16 %v4253, %v4252
        %v4307 = vpack.c.bf16 %v4255, %v4254
        %v4308 = vpack.c.bf16 %v4257, %v4256
        %v4309 = vpack.c.bf16 %v4259, %v4258
        %v4310 = vpack.c.bf16 %v4261, %v4260
        %v4311 = vpack.c.bf16 %v4263, %v4262
        %v4312 = vpack.c.bf16 %v4265, %v4264
        %v4313 = vpack.c.bf16 %v4267, %v4266
        %v4314 = vpack.c.bf16 %v4269, %v4268
        %v4315 = vpack.c.bf16 %v4271, %v4270
        %v4316 = vpack.c.bf16 %v4273, %v4272
        %v4317 = vpack.c.bf16 %v4275, %v4274
        %v4318 = vpack.c.bf16 %v4277, %v4276
        %v4319 = vpack.c.bf16 %v4279, %v4278
        %v4320 = vpack.c.bf16 %v4281, %v4280
        %v4321 = vpack.c.bf16 %v4283, %v4282
        %v4322 = vpack.c.bf16 %v4285, %v4284
        %v4323 = vpack.c.bf16 %v4287, %v4286
        %v4324 = vpack.c.bf16 %v4289, %v4288
        %v4325 = vpack.c.bf16 %v4291, %v4290
        %v4326 = vpack.c.bf16 %v4293, %v4292
        %v4327 = vpack.c.bf16 %v4295, %v4294
        %v4328 = vld [vmem:[%s9] sm:$0xf]
        %v4329 = vld [vmem:[%s9 + $0x4] sm:$0xf]
        %v4330 = vld [vmem:[%s9 + $0x8] sm:$0xf]
        %v4331 = vld [vmem:[%s9 + $0xc] sm:$0xf]
        %v4332 = vld [vmem:[%s9 + $0x10] sm:$0xf]
        %v4333 = vld [vmem:[%s9 + $0x14] sm:$0xf]
        %v4334 = vld [vmem:[%s9 + $0x18] sm:$0xf]
        %v4335 = vld [vmem:[%s9 + $0x1c] sm:$0xf]
        %v4336 = vld [vmem:[%s9 + $0x20] sm:$0xf]
        %v4337 = vld [vmem:[%s9 + $0x24] sm:$0xf]
        %v4338 = vld [vmem:[%s9 + $0x28] sm:$0xf]
        %v4339 = vld [vmem:[%s9 + $0x2c] sm:$0xf]
        %v4340 = vld [vmem:[%s9 + $0x30] sm:$0xf]
        %v4341 = vld [vmem:[%s9 + $0x34] sm:$0xf]
        %v4342 = vld [vmem:[%s9 + $0x38] sm:$0xf]
        %v4343 = vld [vmem:[%s9 + $0x3c] sm:$0xf]
        %v4344 = vld [vmem:[%s10] sm:$0x1]
        %v4346 = vperm.slane %v4344, 0
        %v4364 = vunpack.c.l.b16 %v4328
        %v4365 = vunpack.c.l.b16 %v4329
        %v4366 = vunpack.c.l.b16 %v4330
        %v4367 = vunpack.c.l.b16 %v4331
        %v4368 = vunpack.c.l.b16 %v4332
        %v4369 = vunpack.c.l.b16 %v4333
        %v4370 = vunpack.c.l.b16 %v4334
        %v4371 = vunpack.c.l.b16 %v4335
        %v4372 = vunpack.c.l.b16 %v4336
        %v4373 = vunpack.c.l.b16 %v4337
        %v4374 = vunpack.c.l.b16 %v4338
        %v4375 = vunpack.c.l.b16 %v4339
        %v4376 = vunpack.c.l.b16 %v4340
        %v4377 = vunpack.c.l.b16 %v4341
        %v4378 = vunpack.c.l.b16 %v4342
        %v4379 = vunpack.c.l.b16 %v4343
        %v4380 = vpack.c.b16 %v4365, %v4364
        %v4381 = vpack.c.b16 %v4367, %v4366
        %v4382 = vpack.c.b16 %v4369, %v4368
        %v4383 = vpack.c.b16 %v4371, %v4370
        %v4384 = vpack.c.b16 %v4373, %v4372
        %v4385 = vpack.c.b16 %v4375, %v4374
        %v4386 = vpack.c.b16 %v4377, %v4376
        %v4387 = vpack.c.b16 %v4379, %v4378
        %4396 = vmatpush.bf16.msra.mxu0 %v4387
        %4397 = vmatpush.bf16.msra.mxu0 %v4386
        %4398 = vmatpush.bf16.msra.mxu0 %v4385
        %4399 = vmatpush.bf16.msra.mxu0 %v4384
        %4400 = vmatpush.bf16.msra.mxu0 %v4383
        %4401 = vmatpush.bf16.msra.mxu0 %v4382
        %4402 = vmatpush.bf16.msra.mxu0 %v4381
        %4403 = vmatpush.bf16.msra.mxu0 %v4380
        %4404 = vmatmul.bf16.gmra.mxu0 %v4296
        %v4405 = vpop.f32.mrf.mxu0
        %v4406 = vadd.f32 %v4346, %v4405
        %v4407 = vpop.f32.mrf.mxu0
        %v4408 = vadd.f32 %v4346, %v4407
        %4409 = vmatmul.bf16.gmra.mxu0 %v4297
        %v4410 = vpop.f32.mrf.mxu0
        %v4411 = vadd.f32 %v4346, %v4410
        %v4412 = vpop.f32.mrf.mxu0
        %v4413 = vadd.f32 %v4346, %v4412
        %4414 = vmatmul.bf16.gmra.mxu0 %v4298
        %v4415 = vpop.f32.mrf.mxu0
        %v4416 = vadd.f32 %v4346, %v4415
        %v4417 = vpop.f32.mrf.mxu0
        %v4418 = vadd.f32 %v4346, %v4417
        %4419 = vmatmul.bf16.gmra.mxu0 %v4299
        %v4420 = vpop.f32.mrf.mxu0
        %v4421 = vadd.f32 %v4346, %v4420
        %v4422 = vpop.f32.mrf.mxu0
        %v4423 = vadd.f32 %v4346, %v4422
        %4424 = vmatmul.bf16.gmra.mxu0 %v4300
        %v4425 = vpop.f32.mrf.mxu0
        %v4426 = vadd.f32 %v4346, %v4425
        %v4427 = vpop.f32.mrf.mxu0
        %v4428 = vadd.f32 %v4346, %v4427
        %4429 = vmatmul.bf16.gmra.mxu0 %v4301
        %v4430 = vpop.f32.mrf.mxu0
        %v4431 = vadd.f32 %v4346, %v4430
        %v4432 = vpop.f32.mrf.mxu0
        %v4433 = vadd.f32 %v4346, %v4432
        %4434 = vmatmul.bf16.gmra.mxu0 %v4302
        %v4435 = vpop.f32.mrf.mxu0
        %v4436 = vadd.f32 %v4346, %v4435
        %v4437 = vpop.f32.mrf.mxu0
        %v4438 = vadd.f32 %v4346, %v4437
        %4439 = vmatmul.bf16.gmra.mxu0 %v4303
        %v4440 = vpop.f32.mrf.mxu0
        %v4441 = vadd.f32 %v4346, %v4440
        %v4442 = vpop.f32.mrf.mxu0
        %v4443 = vadd.f32 %v4346, %v4442
        %4444 = vmatmul.bf16.gmra.mxu0 %v4304
        %v4445 = vpop.f32.mrf.mxu0
        %v4446 = vadd.f32 %v4346, %v4445
        %v4447 = vpop.f32.mrf.mxu0
        %v4448 = vadd.f32 %v4346, %v4447
        %4449 = vmatmul.bf16.gmra.mxu0 %v4305
        %v4450 = vpop.f32.mrf.mxu0
        %v4451 = vadd.f32 %v4346, %v4450
        %v4452 = vpop.f32.mrf.mxu0
        %v4453 = vadd.f32 %v4346, %v4452
        %4454 = vmatmul.bf16.gmra.mxu0 %v4306
        %v4455 = vpop.f32.mrf.mxu0
        %v4456 = vadd.f32 %v4346, %v4455
        %v4457 = vpop.f32.mrf.mxu0
        %v4458 = vadd.f32 %v4346, %v4457
        %4459 = vmatmul.bf16.gmra.mxu0 %v4307
        %v4460 = vpop.f32.mrf.mxu0
        %v4461 = vadd.f32 %v4346, %v4460
        %v4462 = vpop.f32.mrf.mxu0
        %v4463 = vadd.f32 %v4346, %v4462
        %4464 = vmatmul.bf16.gmra.mxu0 %v4308
        %v4465 = vpop.f32.mrf.mxu0
        %v4466 = vadd.f32 %v4346, %v4465
        %v4467 = vpop.f32.mrf.mxu0
        %v4468 = vadd.f32 %v4346, %v4467
        %4469 = vmatmul.bf16.gmra.mxu0 %v4309
        %v4470 = vpop.f32.mrf.mxu0
        %v4471 = vadd.f32 %v4346, %v4470
        %v4472 = vpop.f32.mrf.mxu0
        %v4473 = vadd.f32 %v4346, %v4472
        %4474 = vmatmul.bf16.gmra.mxu0 %v4310
        %v4475 = vpop.f32.mrf.mxu0
        %v4476 = vadd.f32 %v4346, %v4475
        %v4477 = vpop.f32.mrf.mxu0
        %v4478 = vadd.f32 %v4346, %v4477
        %4479 = vmatmul.bf16.gmra.mxu0 %v4311
        %v4480 = vpop.f32.mrf.mxu0
        %v4481 = vadd.f32 %v4346, %v4480
        %v4482 = vpop.f32.mrf.mxu0
        %v4483 = vadd.f32 %v4346, %v4482
        %4484 = vmatmul.bf16.gmra.mxu0 %v4312
        %v4485 = vpop.f32.mrf.mxu0
        %v4486 = vadd.f32 %v4346, %v4485
        %v4487 = vpop.f32.mrf.mxu0
        %v4488 = vadd.f32 %v4346, %v4487
        %4489 = vmatmul.bf16.gmra.mxu0 %v4313
        %v4490 = vpop.f32.mrf.mxu0
        %v4491 = vadd.f32 %v4346, %v4490
        %v4492 = vpop.f32.mrf.mxu0
        %v4493 = vadd.f32 %v4346, %v4492
        %4494 = vmatmul.bf16.gmra.mxu0 %v4314
        %v4495 = vpop.f32.mrf.mxu0
        %v4496 = vadd.f32 %v4346, %v4495
        %v4497 = vpop.f32.mrf.mxu0
        %v4498 = vadd.f32 %v4346, %v4497
        %4499 = vmatmul.bf16.gmra.mxu0 %v4315
        %v4500 = vpop.f32.mrf.mxu0
        %v4501 = vadd.f32 %v4346, %v4500
        %v4502 = vpop.f32.mrf.mxu0
        %v4503 = vadd.f32 %v4346, %v4502
        %4504 = vmatmul.bf16.gmra.mxu0 %v4316
        %v4505 = vpop.f32.mrf.mxu0
        %v4506 = vadd.f32 %v4346, %v4505
        %v4507 = vpop.f32.mrf.mxu0
        %v4508 = vadd.f32 %v4346, %v4507
        %4509 = vmatmul.bf16.gmra.mxu0 %v4317
        %v4510 = vpop.f32.mrf.mxu0
        %v4511 = vadd.f32 %v4346, %v4510
        %v4512 = vpop.f32.mrf.mxu0
        %v4513 = vadd.f32 %v4346, %v4512
        %4514 = vmatmul.bf16.gmra.mxu0 %v4318
        %v4515 = vpop.f32.mrf.mxu0
        %v4516 = vadd.f32 %v4346, %v4515
        %v4517 = vpop.f32.mrf.mxu0
        %v4518 = vadd.f32 %v4346, %v4517
        %4519 = vmatmul.bf16.gmra.mxu0 %v4319
        %v4520 = vpop.f32.mrf.mxu0
        %v4521 = vadd.f32 %v4346, %v4520
        %v4522 = vpop.f32.mrf.mxu0
        %v4523 = vadd.f32 %v4346, %v4522
        %4524 = vmatmul.bf16.gmra.mxu0 %v4320
        %v4525 = vpop.f32.mrf.mxu0
        %v4526 = vadd.f32 %v4346, %v4525
        %v4527 = vpop.f32.mrf.mxu0
        %v4528 = vadd.f32 %v4346, %v4527
        %4529 = vmatmul.bf16.gmra.mxu0 %v4321
        %v4530 = vpop.f32.mrf.mxu0
        %v4531 = vadd.f32 %v4346, %v4530
        %v4532 = vpop.f32.mrf.mxu0
        %v4533 = vadd.f32 %v4346, %v4532
        %4534 = vmatmul.bf16.gmra.mxu0 %v4322
        %v4535 = vpop.f32.mrf.mxu0
        %v4536 = vadd.f32 %v4346, %v4535
        %v4537 = vpop.f32.mrf.mxu0
        %v4538 = vadd.f32 %v4346, %v4537
        %4539 = vmatmul.bf16.gmra.mxu0 %v4323
        %v4540 = vpop.f32.mrf.mxu0
        %v4541 = vadd.f32 %v4346, %v4540
        %v4542 = vpop.f32.mrf.mxu0
        %v4543 = vadd.f32 %v4346, %v4542
        %4544 = vmatmul.bf16.gmra.mxu0 %v4324
        %v4545 = vpop.f32.mrf.mxu0
        %v4546 = vadd.f32 %v4346, %v4545
        %v4547 = vpop.f32.mrf.mxu0
        %v4548 = vadd.f32 %v4346, %v4547
        %4549 = vmatmul.bf16.gmra.mxu0 %v4325
        %v4550 = vpop.f32.mrf.mxu0
        %v4551 = vadd.f32 %v4346, %v4550
        %v4552 = vpop.f32.mrf.mxu0
        %v4553 = vadd.f32 %v4346, %v4552
        %4554 = vmatmul.bf16.gmra.mxu0 %v4326
        %v4555 = vpop.f32.mrf.mxu0
        %v4556 = vadd.f32 %v4346, %v4555
        %v4557 = vpop.f32.mrf.mxu0
        %v4558 = vadd.f32 %v4346, %v4557
        %4559 = vmatmul.bf16.gmra.mxu0 %v4327
        %v4560 = vpop.f32.mrf.mxu0
        %v4561 = vadd.f32 %v4346, %v4560
        %v4562 = vpop.f32.mrf.mxu0
        %v4563 = vadd.f32 %v4346, %v4562
        %4564 = vdwg.mxu0
        %v4565 = vand.u32 2147483647, %v4406
        %v4566 = vand.u32 2147483647, %v4408
        %v4567 = vand.u32 2147483647, %v4411
        %v4568 = vand.u32 2147483647, %v4413
        %v4569 = vand.u32 2147483647, %v4416
        %v4570 = vand.u32 2147483647, %v4418
        %v4571 = vand.u32 2147483647, %v4421
        %v4572 = vand.u32 2147483647, %v4423
        %v4573 = vand.u32 2147483647, %v4426
        %v4574 = vand.u32 2147483647, %v4428
        %v4575 = vand.u32 2147483647, %v4431
        %v4576 = vand.u32 2147483647, %v4433
        %v4577 = vand.u32 2147483647, %v4436
        %v4578 = vand.u32 2147483647, %v4438
        %v4579 = vand.u32 2147483647, %v4441
        %v4580 = vand.u32 2147483647, %v4443
        %v4581 = vand.u32 2147483647, %v4446
        %v4582 = vand.u32 2147483647, %v4448
        %v4583 = vand.u32 2147483647, %v4451
        %v4584 = vand.u32 2147483647, %v4453
        %v4585 = vand.u32 2147483647, %v4456
        %v4586 = vand.u32 2147483647, %v4458
        %v4587 = vand.u32 2147483647, %v4461
        %v4588 = vand.u32 2147483647, %v4463
        %v4589 = vand.u32 2147483647, %v4466
        %v4590 = vand.u32 2147483647, %v4468
        %v4591 = vand.u32 2147483647, %v4471
        %v4592 = vand.u32 2147483647, %v4473
        %v4593 = vand.u32 2147483647, %v4476
        %v4594 = vand.u32 2147483647, %v4478
        %v4595 = vand.u32 2147483647, %v4481
        %v4596 = vand.u32 2147483647, %v4483
        %v4597 = vand.u32 2147483647, %v4486
        %v4598 = vand.u32 2147483647, %v4488
        %v4599 = vand.u32 2147483647, %v4491
        %v4600 = vand.u32 2147483647, %v4493
        %v4601 = vand.u32 2147483647, %v4496
        %v4602 = vand.u32 2147483647, %v4498
        %v4603 = vand.u32 2147483647, %v4501
        %v4604 = vand.u32 2147483647, %v4503
        %v4605 = vand.u32 2147483647, %v4506
        %v4606 = vand.u32 2147483647, %v4508
        %v4607 = vand.u32 2147483647, %v4511
        %v4608 = vand.u32 2147483647, %v4513
        %v4609 = vand.u32 2147483647, %v4516
        %v4610 = vand.u32 2147483647, %v4518
        %v4611 = vand.u32 2147483647, %v4521
        %v4612 = vand.u32 2147483647, %v4523
        %v4613 = vand.u32 2147483647, %v4526
        %v4614 = vand.u32 2147483647, %v4528
        %v4615 = vand.u32 2147483647, %v4531
        %v4616 = vand.u32 2147483647, %v4533
        %v4617 = vand.u32 2147483647, %v4536
        %v4618 = vand.u32 2147483647, %v4538
        %v4619 = vand.u32 2147483647, %v4541
        %v4620 = vand.u32 2147483647, %v4543
        %v4621 = vand.u32 2147483647, %v4546
        %v4622 = vand.u32 2147483647, %v4548
        %v4623 = vand.u32 2147483647, %v4551
        %v4624 = vand.u32 2147483647, %v4553
        %v4625 = vand.u32 2147483647, %v4556
        %v4626 = vand.u32 2147483647, %v4558
        %v4627 = vand.u32 2147483647, %v4561
        %v4628 = vand.u32 2147483647, %v4563
        %v4629 = vsub.f32 0.0, %v4565
        %v4630 = vsub.f32 0.0, %v4566
        %v4631 = vsub.f32 0.0, %v4567
        %v4632 = vsub.f32 0.0, %v4568
        %v4633 = vsub.f32 0.0, %v4569
        %v4634 = vsub.f32 0.0, %v4570
        %v4635 = vsub.f32 0.0, %v4571
        %v4636 = vsub.f32 0.0, %v4572
        %v4637 = vsub.f32 0.0, %v4573
        %v4638 = vsub.f32 0.0, %v4574
        %v4639 = vsub.f32 0.0, %v4575
        %v4640 = vsub.f32 0.0, %v4576
        %v4641 = vsub.f32 0.0, %v4577
        %v4642 = vsub.f32 0.0, %v4578
        %v4643 = vsub.f32 0.0, %v4579
        %v4644 = vsub.f32 0.0, %v4580
        %v4645 = vsub.f32 0.0, %v4581
        %v4646 = vsub.f32 0.0, %v4582
        %v4647 = vsub.f32 0.0, %v4583
        %v4648 = vsub.f32 0.0, %v4584
        %v4649 = vsub.f32 0.0, %v4585
        %v4650 = vsub.f32 0.0, %v4586
        %v4651 = vsub.f32 0.0, %v4587
        %v4652 = vsub.f32 0.0, %v4588
        %v4653 = vsub.f32 0.0, %v4589
        %v4654 = vsub.f32 0.0, %v4590
        %v4655 = vsub.f32 0.0, %v4591
        %v4656 = vsub.f32 0.0, %v4592
        %v4657 = vsub.f32 0.0, %v4593
        %v4658 = vsub.f32 0.0, %v4594
        %v4659 = vsub.f32 0.0, %v4595
        %v4660 = vsub.f32 0.0, %v4596
        %v4661 = vsub.f32 0.0, %v4597
        %v4662 = vsub.f32 0.0, %v4598
        %v4663 = vsub.f32 0.0, %v4599
        %v4664 = vsub.f32 0.0, %v4600
        %v4665 = vsub.f32 0.0, %v4601
        %v4666 = vsub.f32 0.0, %v4602
        %v4667 = vsub.f32 0.0, %v4603
        %v4668 = vsub.f32 0.0, %v4604
        %v4669 = vsub.f32 0.0, %v4605
        %v4670 = vsub.f32 0.0, %v4606
        %v4671 = vsub.f32 0.0, %v4607
        %v4672 = vsub.f32 0.0, %v4608
        %v4673 = vsub.f32 0.0, %v4609
        %v4674 = vsub.f32 0.0, %v4610
        %v4675 = vsub.f32 0.0, %v4611
        %v4676 = vsub.f32 0.0, %v4612
        %v4677 = vsub.f32 0.0, %v4613
        %v4678 = vsub.f32 0.0, %v4614
        %v4679 = vsub.f32 0.0, %v4615
        %v4680 = vsub.f32 0.0, %v4616
        %v4681 = vsub.f32 0.0, %v4617
        %v4682 = vsub.f32 0.0, %v4618
        %v4683 = vsub.f32 0.0, %v4619
        %v4684 = vsub.f32 0.0, %v4620
        %v4685 = vsub.f32 0.0, %v4621
        %v4686 = vsub.f32 0.0, %v4622
        %v4687 = vsub.f32 0.0, %v4623
        %v4688 = vsub.f32 0.0, %v4624
        %v4689 = vsub.f32 0.0, %v4625
        %v4690 = vsub.f32 0.0, %v4626
        %v4691 = vsub.f32 0.0, %v4627
        %v4692 = vsub.f32 0.0, %v4628
        %v4693 = vmul.f32 %v4629, 1.442695
        %v4694 = vpow.pop %v4693
        %v4695 = vmul.f32 %v4630, 1.442695
        %v4696 = vpow.pop %v4695
        %v4697 = vmul.f32 %v4631, 1.442695
        %v4698 = vpow.pop %v4697
        %v4699 = vmul.f32 %v4632, 1.442695
        %v4700 = vpow.pop %v4699
        %v4701 = vmul.f32 %v4633, 1.442695
        %v4702 = vpow.pop %v4701
        %v4703 = vmul.f32 %v4634, 1.442695
        %v4704 = vpow.pop %v4703
        %v4705 = vmul.f32 %v4635, 1.442695
        %v4706 = vpow.pop %v4705
        %v4707 = vmul.f32 %v4636, 1.442695
        %v4708 = vpow.pop %v4707
        %v4709 = vmul.f32 %v4637, 1.442695
        %v4710 = vpow.pop %v4709
        %v4711 = vmul.f32 %v4638, 1.442695
        %v4712 = vpow.pop %v4711
        %v4713 = vmul.f32 %v4639, 1.442695
        %v4714 = vpow.pop %v4713
        %v4715 = vmul.f32 %v4640, 1.442695
        %v4716 = vpow.pop %v4715
        %v4717 = vmul.f32 %v4641, 1.442695
        %v4718 = vpow.pop %v4717
        %v4719 = vmul.f32 %v4642, 1.442695
        %v4720 = vpow.pop %v4719
        %v4721 = vmul.f32 %v4643, 1.442695
        %v4722 = vpow.pop %v4721
        %v4723 = vmul.f32 %v4644, 1.442695
        %v4724 = vpow.pop %v4723
        %v4725 = vmul.f32 %v4645, 1.442695
        %v4726 = vpow.pop %v4725
        %v4727 = vmul.f32 %v4646, 1.442695
        %v4728 = vpow.pop %v4727
        %v4729 = vmul.f32 %v4647, 1.442695
        %v4730 = vpow.pop %v4729
        %v4731 = vmul.f32 %v4648, 1.442695
        %v4732 = vpow.pop %v4731
        %v4733 = vmul.f32 %v4649, 1.442695
        %v4734 = vpow.pop %v4733
        %v4735 = vmul.f32 %v4650, 1.442695
        %v4736 = vpow.pop %v4735
        %v4737 = vmul.f32 %v4651, 1.442695
        %v4738 = vpow.pop %v4737
        %v4739 = vmul.f32 %v4652, 1.442695
        %v4740 = vpow.pop %v4739
        %v4741 = vmul.f32 %v4653, 1.442695
        %v4742 = vpow.pop %v4741
        %v4743 = vmul.f32 %v4654, 1.442695
        %v4744 = vpow.pop %v4743
        %v4745 = vmul.f32 %v4655, 1.442695
        %v4746 = vpow.pop %v4745
        %v4747 = vmul.f32 %v4656, 1.442695
        %v4748 = vpow.pop %v4747
        %v4749 = vmul.f32 %v4657, 1.442695
        %v4750 = vpow.pop %v4749
        %v4751 = vmul.f32 %v4658, 1.442695
        %v4752 = vpow.pop %v4751
        %v4753 = vmul.f32 %v4659, 1.442695
        %v4754 = vpow.pop %v4753
        %v4755 = vmul.f32 %v4660, 1.442695
        %v4756 = vpow.pop %v4755
        %v4757 = vmul.f32 %v4661, 1.442695
        %v4758 = vpow.pop %v4757
        %v4759 = vmul.f32 %v4662, 1.442695
        %v4760 = vpow.pop %v4759
        %v4761 = vmul.f32 %v4663, 1.442695
        %v4762 = vpow.pop %v4761
        %v4763 = vmul.f32 %v4664, 1.442695
        %v4764 = vpow.pop %v4763
        %v4765 = vmul.f32 %v4665, 1.442695
        %v4766 = vpow.pop %v4765
        %v4767 = vmul.f32 %v4666, 1.442695
        %v4768 = vpow.pop %v4767
        %v4769 = vmul.f32 %v4667, 1.442695
        %v4770 = vpow.pop %v4769
        %v4771 = vmul.f32 %v4668, 1.442695
        %v4772 = vpow.pop %v4771
        %v4773 = vmul.f32 %v4669, 1.442695
        %v4774 = vpow.pop %v4773
        %v4775 = vmul.f32 %v4670, 1.442695
        %v4776 = vpow.pop %v4775
        %v4777 = vmul.f32 %v4671, 1.442695
        %v4778 = vpow.pop %v4777
        %v4779 = vmul.f32 %v4672, 1.442695
        %v4780 = vpow.pop %v4779
        %v4781 = vmul.f32 %v4673, 1.442695
        %v4782 = vpow.pop %v4781
        %v4783 = vmul.f32 %v4674, 1.442695
        %v4784 = vpow.pop %v4783
        %v4785 = vmul.f32 %v4675, 1.442695
        %v4786 = vpow.pop %v4785
        %v4787 = vmul.f32 %v4676, 1.442695
        %v4788 = vpow.pop %v4787
        %v4789 = vmul.f32 %v4677, 1.442695
        %v4790 = vpow.pop %v4789
        %v4791 = vmul.f32 %v4678, 1.442695
        %v4792 = vpow.pop %v4791
        %v4793 = vmul.f32 %v4679, 1.442695
        %v4794 = vpow.pop %v4793
        %v4795 = vmul.f32 %v4680, 1.442695
        %v4796 = vpow.pop %v4795
        %v4797 = vmul.f32 %v4681, 1.442695
        %v4798 = vpow.pop %v4797
        %v4799 = vmul.f32 %v4682, 1.442695
        %v4800 = vpow.pop %v4799
        %v4801 = vmul.f32 %v4683, 1.442695
        %v4802 = vpow.pop %v4801
        %v4803 = vmul.f32 %v4684, 1.442695
        %v4804 = vpow.pop %v4803
        %v4805 = vmul.f32 %v4685, 1.442695
        %v4806 = vpow.pop %v4805
        %v4807 = vmul.f32 %v4686, 1.442695
        %v4808 = vpow.pop %v4807
        %v4809 = vmul.f32 %v4687, 1.442695
        %v4810 = vpow.pop %v4809
        %v4811 = vmul.f32 %v4688, 1.442695
        %v4812 = vpow.pop %v4811
        %v4813 = vmul.f32 %v4689, 1.442695
        %v4814 = vpow.pop %v4813
        %v4815 = vmul.f32 %v4690, 1.442695
        %v4816 = vpow.pop %v4815
        %v4817 = vmul.f32 %v4691, 1.442695
        %v4818 = vpow.pop %v4817
        %v4819 = vmul.f32 %v4692, 1.442695
        %v4820 = vpow.pop %v4819
        %v4821 = vadd.f32 %v4694, 1.0
        %v4822 = vadd.f32 %v4696, 1.0
        %v4823 = vadd.f32 %v4698, 1.0
        %v4824 = vadd.f32 %v4700, 1.0
        %v4825 = vadd.f32 %v4702, 1.0
        %v4826 = vadd.f32 %v4704, 1.0
        %v4827 = vadd.f32 %v4706, 1.0
        %v4828 = vadd.f32 %v4708, 1.0
        %v4829 = vadd.f32 %v4710, 1.0
        %v4830 = vadd.f32 %v4712, 1.0
        %v4831 = vadd.f32 %v4714, 1.0
        %v4832 = vadd.f32 %v4716, 1.0
        %v4833 = vadd.f32 %v4718, 1.0
        %v4834 = vadd.f32 %v4720, 1.0
        %v4835 = vadd.f32 %v4722, 1.0
        %v4836 = vadd.f32 %v4724, 1.0
        %v4837 = vadd.f32 %v4726, 1.0
        %v4838 = vadd.f32 %v4728, 1.0
        %v4839 = vadd.f32 %v4730, 1.0
        %v4840 = vadd.f32 %v4732, 1.0
        %v4841 = vadd.f32 %v4734, 1.0
        %v4842 = vadd.f32 %v4736, 1.0
        %v4843 = vadd.f32 %v4738, 1.0
        %v4844 = vadd.f32 %v4740, 1.0
        %v4845 = vadd.f32 %v4742, 1.0
        %v4846 = vadd.f32 %v4744, 1.0
        %v4847 = vadd.f32 %v4746, 1.0
        %v4848 = vadd.f32 %v4748, 1.0
        %v4849 = vadd.f32 %v4750, 1.0
        %v4850 = vadd.f32 %v4752, 1.0
        %v4851 = vadd.f32 %v4754, 1.0
        %v4852 = vadd.f32 %v4756, 1.0
        %v4853 = vadd.f32 %v4758, 1.0
        %v4854 = vadd.f32 %v4760, 1.0
        %v4855 = vadd.f32 %v4762, 1.0
        %v4856 = vadd.f32 %v4764, 1.0
        %v4857 = vadd.f32 %v4766, 1.0
        %v4858 = vadd.f32 %v4768, 1.0
        %v4859 = vadd.f32 %v4770, 1.0
        %v4860 = vadd.f32 %v4772, 1.0
        %v4861 = vadd.f32 %v4774, 1.0
        %v4862 = vadd.f32 %v4776, 1.0
        %v4863 = vadd.f32 %v4778, 1.0
        %v4864 = vadd.f32 %v4780, 1.0
        %v4865 = vadd.f32 %v4782, 1.0
        %v4866 = vadd.f32 %v4784, 1.0
        %v4867 = vadd.f32 %v4786, 1.0
        %v4868 = vadd.f32 %v4788, 1.0
        %v4869 = vadd.f32 %v4790, 1.0
        %v4870 = vadd.f32 %v4792, 1.0
        %v4871 = vadd.f32 %v4794, 1.0
        %v4872 = vadd.f32 %v4796, 1.0
        %v4873 = vadd.f32 %v4798, 1.0
        %v4874 = vadd.f32 %v4800, 1.0
        %v4875 = vadd.f32 %v4802, 1.0
        %v4876 = vadd.f32 %v4804, 1.0
        %v4877 = vadd.f32 %v4806, 1.0
        %v4878 = vadd.f32 %v4808, 1.0
        %v4879 = vadd.f32 %v4810, 1.0
        %v4880 = vadd.f32 %v4812, 1.0
        %v4881 = vadd.f32 %v4814, 1.0
        %v4882 = vadd.f32 %v4816, 1.0
        %v4883 = vadd.f32 %v4818, 1.0
        %v4884 = vadd.f32 %v4820, 1.0
        %v4885 = vrcp.pop %v4821
        %v4886 = vrcp.pop %v4822
        %v4887 = vrcp.pop %v4823
        %v4888 = vrcp.pop %v4824
        %v4889 = vrcp.pop %v4825
        %v4890 = vrcp.pop %v4826
        %v4891 = vrcp.pop %v4827
        %v4892 = vrcp.pop %v4828
        %v4893 = vrcp.pop %v4829
        %v4894 = vrcp.pop %v4830
        %v4895 = vrcp.pop %v4831
        %v4896 = vrcp.pop %v4832
        %v4897 = vrcp.pop %v4833
        %v4898 = vrcp.pop %v4834
        %v4899 = vrcp.pop %v4835
        %v4900 = vrcp.pop %v4836
        %v4901 = vrcp.pop %v4837
        %v4902 = vrcp.pop %v4838
        %v4903 = vrcp.pop %v4839
        %v4904 = vrcp.pop %v4840
        %v4905 = vrcp.pop %v4841
        %v4906 = vrcp.pop %v4842
        %v4907 = vrcp.pop %v4843
        %v4908 = vrcp.pop %v4844
        %v4909 = vrcp.pop %v4845
        %v4910 = vrcp.pop %v4846
        %v4911 = vrcp.pop %v4847
        %v4912 = vrcp.pop %v4848
        %v4913 = vrcp.pop %v4849
        %v4914 = vrcp.pop %v4850
        %v4915 = vrcp.pop %v4851
        %v4916 = vrcp.pop %v4852
        %v4917 = vrcp.pop %v4853
        %v4918 = vrcp.pop %v4854
        %v4919 = vrcp.pop %v4855
        %v4920 = vrcp.pop %v4856
        %v4921 = vrcp.pop %v4857
        %v4922 = vrcp.pop %v4858
        %v4923 = vrcp.pop %v4859
        %v4924 = vrcp.pop %v4860
        %v4925 = vrcp.pop %v4861
        %v4926 = vrcp.pop %v4862
        %v4927 = vrcp.pop %v4863
        %v4928 = vrcp.pop %v4864
        %v4929 = vrcp.pop %v4865
        %v4930 = vrcp.pop %v4866
        %v4931 = vrcp.pop %v4867
        %v4932 = vrcp.pop %v4868
        %v4933 = vrcp.pop %v4869
        %v4934 = vrcp.pop %v4870
        %v4935 = vrcp.pop %v4871
        %v4936 = vrcp.pop %v4872
        %v4937 = vrcp.pop %v4873
        %v4938 = vrcp.pop %v4874
        %v4939 = vrcp.pop %v4875
        %v4940 = vrcp.pop %v4876
        %v4941 = vrcp.pop %v4877
        %v4942 = vrcp.pop %v4878
        %v4943 = vrcp.pop %v4879
        %v4944 = vrcp.pop %v4880
        %v4945 = vrcp.pop %v4881
        %v4946 = vrcp.pop %v4882
        %v4947 = vrcp.pop %v4883
        %v4948 = vrcp.pop %v4884
        %vm4949 = vcmp.ge.f32.partialorder %v4406, 0.0
        %vm4950 = vcmp.ge.f32.partialorder %v4408, 0.0
        %vm4951 = vcmp.ge.f32.partialorder %v4411, 0.0
        %vm4952 = vcmp.ge.f32.partialorder %v4413, 0.0
        %vm4953 = vcmp.ge.f32.partialorder %v4416, 0.0
        %vm4954 = vcmp.ge.f32.partialorder %v4418, 0.0
        %vm4955 = vcmp.ge.f32.partialorder %v4421, 0.0
        %vm4956 = vcmp.ge.f32.partialorder %v4423, 0.0
        %vm4957 = vcmp.ge.f32.partialorder %v4426, 0.0
        %vm4958 = vcmp.ge.f32.partialorder %v4428, 0.0
        %vm4959 = vcmp.ge.f32.partialorder %v4431, 0.0
        %vm4960 = vcmp.ge.f32.partialorder %v4433, 0.0
        %vm4961 = vcmp.ge.f32.partialorder %v4436, 0.0
        %vm4962 = vcmp.ge.f32.partialorder %v4438, 0.0
        %vm4963 = vcmp.ge.f32.partialorder %v4441, 0.0
        %vm4964 = vcmp.ge.f32.partialorder %v4443, 0.0
        %vm4965 = vcmp.ge.f32.partialorder %v4446, 0.0
        %vm4966 = vcmp.ge.f32.partialorder %v4448, 0.0
        %vm4967 = vcmp.ge.f32.partialorder %v4451, 0.0
        %vm4968 = vcmp.ge.f32.partialorder %v4453, 0.0
        %vm4969 = vcmp.ge.f32.partialorder %v4456, 0.0
        %vm4970 = vcmp.ge.f32.partialorder %v4458, 0.0
        %vm4971 = vcmp.ge.f32.partialorder %v4461, 0.0
        %vm4972 = vcmp.ge.f32.partialorder %v4463, 0.0
        %vm4973 = vcmp.ge.f32.partialorder %v4466, 0.0
        %vm4974 = vcmp.ge.f32.partialorder %v4468, 0.0
        %vm4975 = vcmp.ge.f32.partialorder %v4471, 0.0
        %vm4976 = vcmp.ge.f32.partialorder %v4473, 0.0
        %vm4977 = vcmp.ge.f32.partialorder %v4476, 0.0
        %vm4978 = vcmp.ge.f32.partialorder %v4478, 0.0
        %vm4979 = vcmp.ge.f32.partialorder %v4481, 0.0
        %vm4980 = vcmp.ge.f32.partialorder %v4483, 0.0
        %vm4981 = vcmp.ge.f32.partialorder %v4486, 0.0
        %vm4982 = vcmp.ge.f32.partialorder %v4488, 0.0
        %vm4983 = vcmp.ge.f32.partialorder %v4491, 0.0
        %vm4984 = vcmp.ge.f32.partialorder %v4493, 0.0
        %vm4985 = vcmp.ge.f32.partialorder %v4496, 0.0
        %vm4986 = vcmp.ge.f32.partialorder %v4498, 0.0
        %vm4987 = vcmp.ge.f32.partialorder %v4501, 0.0
        %vm4988 = vcmp.ge.f32.partialorder %v4503, 0.0
        %vm4989 = vcmp.ge.f32.partialorder %v4506, 0.0
        %vm4990 = vcmp.ge.f32.partialorder %v4508, 0.0
        %vm4991 = vcmp.ge.f32.partialorder %v4511, 0.0
        %vm4992 = vcmp.ge.f32.partialorder %v4513, 0.0
        %vm4993 = vcmp.ge.f32.partialorder %v4516, 0.0
        %vm4994 = vcmp.ge.f32.partialorder %v4518, 0.0
        %vm4995 = vcmp.ge.f32.partialorder %v4521, 0.0
        %vm4996 = vcmp.ge.f32.partialorder %v4523, 0.0
        %vm4997 = vcmp.ge.f32.partialorder %v4526, 0.0
        %vm4998 = vcmp.ge.f32.partialorder %v4528, 0.0
        %vm4999 = vcmp.ge.f32.partialorder %v4531, 0.0
        %vm5000 = vcmp.ge.f32.partialorder %v4533, 0.0
        %vm5001 = vcmp.ge.f32.partialorder %v4536, 0.0
        %vm5002 = vcmp.ge.f32.partialorder %v4538, 0.0
        %vm5003 = vcmp.ge.f32.partialorder %v4541, 0.0
        %vm5004 = vcmp.ge.f32.partialorder %v4543, 0.0
        %vm5005 = vcmp.ge.f32.partialorder %v4546, 0.0
        %vm5006 = vcmp.ge.f32.partialorder %v4548, 0.0
        %vm5007 = vcmp.ge.f32.partialorder %v4551, 0.0
        %vm5008 = vcmp.ge.f32.partialorder %v4553, 0.0
        %vm5009 = vcmp.ge.f32.partialorder %v4556, 0.0
        %vm5010 = vcmp.ge.f32.partialorder %v4558, 0.0
        %vm5011 = vcmp.ge.f32.partialorder %v4561, 0.0
        %vm5012 = vcmp.ge.f32.partialorder %v4563, 0.0
        %v5013 = vmul.f32 %v4694, %v4885
        %v5014 = vmul.f32 %v4696, %v4886
        %v5015 = vmul.f32 %v4698, %v4887
        %v5016 = vmul.f32 %v4700, %v4888
        %v5017 = vmul.f32 %v4702, %v4889
        %v5018 = vmul.f32 %v4704, %v4890
        %v5019 = vmul.f32 %v4706, %v4891
        %v5020 = vmul.f32 %v4708, %v4892
        %v5021 = vmul.f32 %v4710, %v4893
        %v5022 = vmul.f32 %v4712, %v4894
        %v5023 = vmul.f32 %v4714, %v4895
        %v5024 = vmul.f32 %v4716, %v4896
        %v5025 = vmul.f32 %v4718, %v4897
        %v5026 = vmul.f32 %v4720, %v4898
        %v5027 = vmul.f32 %v4722, %v4899
        %v5028 = vmul.f32 %v4724, %v4900
        %v5029 = vmul.f32 %v4726, %v4901
        %v5030 = vmul.f32 %v4728, %v4902
        %v5031 = vmul.f32 %v4730, %v4903
        %v5032 = vmul.f32 %v4732, %v4904
        %v5033 = vmul.f32 %v4734, %v4905
        %v5034 = vmul.f32 %v4736, %v4906
        %v5035 = vmul.f32 %v4738, %v4907
        %v5036 = vmul.f32 %v4740, %v4908
        %v5037 = vmul.f32 %v4742, %v4909
        %v5038 = vmul.f32 %v4744, %v4910
        %v5039 = vmul.f32 %v4746, %v4911
        %v5040 = vmul.f32 %v4748, %v4912
        %v5041 = vmul.f32 %v4750, %v4913
        %v5042 = vmul.f32 %v4752, %v4914
        %v5043 = vmul.f32 %v4754, %v4915
        %v5044 = vmul.f32 %v4756, %v4916
        %v5045 = vmul.f32 %v4758, %v4917
        %v5046 = vmul.f32 %v4760, %v4918
        %v5047 = vmul.f32 %v4762, %v4919
        %v5048 = vmul.f32 %v4764, %v4920
        %v5049 = vmul.f32 %v4766, %v4921
        %v5050 = vmul.f32 %v4768, %v4922
        %v5051 = vmul.f32 %v4770, %v4923
        %v5052 = vmul.f32 %v4772, %v4924
        %v5053 = vmul.f32 %v4774, %v4925
        %v5054 = vmul.f32 %v4776, %v4926
        %v5055 = vmul.f32 %v4778, %v4927
        %v5056 = vmul.f32 %v4780, %v4928
        %v5057 = vmul.f32 %v4782, %v4929
        %v5058 = vmul.f32 %v4784, %v4930
        %v5059 = vmul.f32 %v4786, %v4931
        %v5060 = vmul.f32 %v4788, %v4932
        %v5061 = vmul.f32 %v4790, %v4933
        %v5062 = vmul.f32 %v4792, %v4934
        %v5063 = vmul.f32 %v4794, %v4935
        %v5064 = vmul.f32 %v4796, %v4936
        %v5065 = vmul.f32 %v4798, %v4937
        %v5066 = vmul.f32 %v4800, %v4938
        %v5067 = vmul.f32 %v4802, %v4939
        %v5068 = vmul.f32 %v4804, %v4940
        %v5069 = vmul.f32 %v4806, %v4941
        %v5070 = vmul.f32 %v4808, %v4942
        %v5071 = vmul.f32 %v4810, %v4943
        %v5072 = vmul.f32 %v4812, %v4944
        %v5073 = vmul.f32 %v4814, %v4945
        %v5074 = vmul.f32 %v4816, %v4946
        %v5075 = vmul.f32 %v4818, %v4947
        %v5076 = vmul.f32 %v4820, %v4948
        %v5077 = vsel %vm4949, %v4885, %v5013
        %v5078 = vsel %vm4950, %v4886, %v5014
        %v5079 = vsel %vm4951, %v4887, %v5015
        %v5080 = vsel %vm4952, %v4888, %v5016
        %v5081 = vsel %vm4953, %v4889, %v5017
        %v5082 = vsel %vm4954, %v4890, %v5018
        %v5083 = vsel %vm4955, %v4891, %v5019
        %v5084 = vsel %vm4956, %v4892, %v5020
        %v5085 = vsel %vm4957, %v4893, %v5021
        %v5086 = vsel %vm4958, %v4894, %v5022
        %v5087 = vsel %vm4959, %v4895, %v5023
        %v5088 = vsel %vm4960, %v4896, %v5024
        %v5089 = vsel %vm4961, %v4897, %v5025
        %v5090 = vsel %vm4962, %v4898, %v5026
        %v5091 = vsel %vm4963, %v4899, %v5027
        %v5092 = vsel %vm4964, %v4900, %v5028
        %v5093 = vsel %vm4965, %v4901, %v5029
        %v5094 = vsel %vm4966, %v4902, %v5030
        %v5095 = vsel %vm4967, %v4903, %v5031
        %v5096 = vsel %vm4968, %v4904, %v5032
        %v5097 = vsel %vm4969, %v4905, %v5033
        %v5098 = vsel %vm4970, %v4906, %v5034
        %v5099 = vsel %vm4971, %v4907, %v5035
        %v5100 = vsel %vm4972, %v4908, %v5036
        %v5101 = vsel %vm4973, %v4909, %v5037
        %v5102 = vsel %vm4974, %v4910, %v5038
        %v5103 = vsel %vm4975, %v4911, %v5039
        %v5104 = vsel %vm4976, %v4912, %v5040
        %v5105 = vsel %vm4977, %v4913, %v5041
        %v5106 = vsel %vm4978, %v4914, %v5042
        %v5107 = vsel %vm4979, %v4915, %v5043
        %v5108 = vsel %vm4980, %v4916, %v5044
        %v5109 = vsel %vm4981, %v4917, %v5045
        %v5110 = vsel %vm4982, %v4918, %v5046
        %v5111 = vsel %vm4983, %v4919, %v5047
        %v5112 = vsel %vm4984, %v4920, %v5048
        %v5113 = vsel %vm4985, %v4921, %v5049
        %v5114 = vsel %vm4986, %v4922, %v5050
        %v5115 = vsel %vm4987, %v4923, %v5051
        %v5116 = vsel %vm4988, %v4924, %v5052
        %v5117 = vsel %vm4989, %v4925, %v5053
        %v5118 = vsel %vm4990, %v4926, %v5054
        %v5119 = vsel %vm4991, %v4927, %v5055
        %v5120 = vsel %vm4992, %v4928, %v5056
        %v5121 = vsel %vm4993, %v4929, %v5057
        %v5122 = vsel %vm4994, %v4930, %v5058
        %v5123 = vsel %vm4995, %v4931, %v5059
        %v5124 = vsel %vm4996, %v4932, %v5060
        %v5125 = vsel %vm4997, %v4933, %v5061
        %v5126 = vsel %vm4998, %v4934, %v5062
        %v5127 = vsel %vm4999, %v4935, %v5063
        %v5128 = vsel %vm5000, %v4936, %v5064
        %v5129 = vsel %vm5001, %v4937, %v5065
        %v5130 = vsel %vm5002, %v4938, %v5066
        %v5131 = vsel %vm5003, %v4939, %v5067
        %v5132 = vsel %vm5004, %v4940, %v5068
        %v5133 = vsel %vm5005, %v4941, %v5069
        %v5134 = vsel %vm5006, %v4942, %v5070
        %v5135 = vsel %vm5007, %v4943, %v5071
        %v5136 = vsel %vm5008, %v4944, %v5072
        %v5137 = vsel %vm5009, %v4945, %v5073
        %v5138 = vsel %vm5010, %v4946, %v5074
        %v5139 = vsel %vm5011, %v4947, %v5075
        %v5140 = vsel %vm5012, %v4948, %v5076
        %v5141 = vmul.f32 %v4406, %v5077
        %v5142 = vmul.f32 %v4408, %v5078
        %v5143 = vmul.f32 %v4411, %v5079
        %v5144 = vmul.f32 %v4413, %v5080
        %v5145 = vmul.f32 %v4416, %v5081
        %v5146 = vmul.f32 %v4418, %v5082
        %v5147 = vmul.f32 %v4421, %v5083
        %v5148 = vmul.f32 %v4423, %v5084
        %v5149 = vmul.f32 %v4426, %v5085
        %v5150 = vmul.f32 %v4428, %v5086
        %v5151 = vmul.f32 %v4431, %v5087
        %v5152 = vmul.f32 %v4433, %v5088
        %v5153 = vmul.f32 %v4436, %v5089
        %v5154 = vmul.f32 %v4438, %v5090
        %v5155 = vmul.f32 %v4441, %v5091
        %v5156 = vmul.f32 %v4443, %v5092
        %v5157 = vmul.f32 %v4446, %v5093
        %v5158 = vmul.f32 %v4448, %v5094
        %v5159 = vmul.f32 %v4451, %v5095
        %v5160 = vmul.f32 %v4453, %v5096
        %v5161 = vmul.f32 %v4456, %v5097
        %v5162 = vmul.f32 %v4458, %v5098
        %v5163 = vmul.f32 %v4461, %v5099
        %v5164 = vmul.f32 %v4463, %v5100
        %v5165 = vmul.f32 %v4466, %v5101
        %v5166 = vmul.f32 %v4468, %v5102
        %v5167 = vmul.f32 %v4471, %v5103
        %v5168 = vmul.f32 %v4473, %v5104
        %v5169 = vmul.f32 %v4476, %v5105
        %v5170 = vmul.f32 %v4478, %v5106
        %v5171 = vmul.f32 %v4481, %v5107
        %v5172 = vmul.f32 %v4483, %v5108
        %v5173 = vmul.f32 %v4486, %v5109
        %v5174 = vmul.f32 %v4488, %v5110
        %v5175 = vmul.f32 %v4491, %v5111
        %v5176 = vmul.f32 %v4493, %v5112
        %v5177 = vmul.f32 %v4496, %v5113
        %v5178 = vmul.f32 %v4498, %v5114
        %v5179 = vmul.f32 %v4501, %v5115
        %v5180 = vmul.f32 %v4503, %v5116
        %v5181 = vmul.f32 %v4506, %v5117
        %v5182 = vmul.f32 %v4508, %v5118
        %v5183 = vmul.f32 %v4511, %v5119
        %v5184 = vmul.f32 %v4513, %v5120
        %v5185 = vmul.f32 %v4516, %v5121
        %v5186 = vmul.f32 %v4518, %v5122
        %v5187 = vmul.f32 %v4521, %v5123
        %v5188 = vmul.f32 %v4523, %v5124
        %v5189 = vmul.f32 %v4526, %v5125
        %v5190 = vmul.f32 %v4528, %v5126
        %v5191 = vmul.f32 %v4531, %v5127
        %v5192 = vmul.f32 %v4533, %v5128
        %v5193 = vmul.f32 %v4536, %v5129
        %v5194 = vmul.f32 %v4538, %v5130
        %v5195 = vmul.f32 %v4541, %v5131
        %v5196 = vmul.f32 %v4543, %v5132
        %v5197 = vmul.f32 %v4546, %v5133
        %v5198 = vmul.f32 %v4548, %v5134
        %v5199 = vmul.f32 %v4551, %v5135
        %v5200 = vmul.f32 %v4553, %v5136
        %v5201 = vmul.f32 %v4556, %v5137
        %v5202 = vmul.f32 %v4558, %v5138
        %v5203 = vmul.f32 %v4561, %v5139
        %v5204 = vmul.f32 %v4563, %v5140
        %v5205 = vpack.c.bf16 %v5142, %v5141
        %v5206 = vpack.c.bf16 %v5144, %v5143
        %v5207 = vpack.c.bf16 %v5146, %v5145
        %v5208 = vpack.c.bf16 %v5148, %v5147
        %v5209 = vpack.c.bf16 %v5150, %v5149
        %v5210 = vpack.c.bf16 %v5152, %v5151
        %v5211 = vpack.c.bf16 %v5154, %v5153
        %v5212 = vpack.c.bf16 %v5156, %v5155
        %v5213 = vpack.c.bf16 %v5158, %v5157
        %v5214 = vpack.c.bf16 %v5160, %v5159
        %v5215 = vpack.c.bf16 %v5162, %v5161
        %v5216 = vpack.c.bf16 %v5164, %v5163
        %v5217 = vpack.c.bf16 %v5166, %v5165
        %v5218 = vpack.c.bf16 %v5168, %v5167
        %v5219 = vpack.c.bf16 %v5170, %v5169
        %v5220 = vpack.c.bf16 %v5172, %v5171
        %v5221 = vpack.c.bf16 %v5174, %v5173
        %v5222 = vpack.c.bf16 %v5176, %v5175
        %v5223 = vpack.c.bf16 %v5178, %v5177
        %v5224 = vpack.c.bf16 %v5180, %v5179
        %v5225 = vpack.c.bf16 %v5182, %v5181
        %v5226 = vpack.c.bf16 %v5184, %v5183
        %v5227 = vpack.c.bf16 %v5186, %v5185
        %v5228 = vpack.c.bf16 %v5188, %v5187
        %v5229 = vpack.c.bf16 %v5190, %v5189
        %v5230 = vpack.c.bf16 %v5192, %v5191
        %v5231 = vpack.c.bf16 %v5194, %v5193
        %v5232 = vpack.c.bf16 %v5196, %v5195
        %v5233 = vpack.c.bf16 %v5198, %v5197
        %v5234 = vpack.c.bf16 %v5200, %v5199
        %v5235 = vpack.c.bf16 %v5202, %v5201
        %v5236 = vpack.c.bf16 %v5204, %v5203
        %v5237 = vld [vmem:[%s11] sm:$0xf]
        %v5238 = vld [vmem:[%s11 + $0x4] sm:$0xf]
        %v5239 = vld [vmem:[%s11 + $0x8] sm:$0xf]
        %v5240 = vld [vmem:[%s11 + $0xc] sm:$0xf]
        %v5241 = vld [vmem:[%s11 + $0x10] sm:$0xf]
        %v5242 = vld [vmem:[%s11 + $0x14] sm:$0xf]
        %v5243 = vld [vmem:[%s11 + $0x18] sm:$0xf]
        %v5244 = vld [vmem:[%s11 + $0x1c] sm:$0xf]
        %v5245 = vld [vmem:[%s11 + $0x20] sm:$0xf]
        %v5246 = vld [vmem:[%s11 + $0x24] sm:$0xf]
        %v5247 = vld [vmem:[%s11 + $0x28] sm:$0xf]
        %v5248 = vld [vmem:[%s11 + $0x2c] sm:$0xf]
        %v5249 = vld [vmem:[%s11 + $0x30] sm:$0xf]
        %v5250 = vld [vmem:[%s11 + $0x34] sm:$0xf]
        %v5251 = vld [vmem:[%s11 + $0x38] sm:$0xf]
        %v5252 = vld [vmem:[%s11 + $0x3c] sm:$0xf]
        %v5253 = vld [vmem:[%s12] sm:$0x1]
        %v5255 = vperm.slane %v5253, 0
        %v5273 = vunpack.c.l.b16 %v5237
        %v5274 = vunpack.c.l.b16 %v5238
        %v5275 = vunpack.c.l.b16 %v5239
        %v5276 = vunpack.c.l.b16 %v5240
        %v5277 = vunpack.c.l.b16 %v5241
        %v5278 = vunpack.c.l.b16 %v5242
        %v5279 = vunpack.c.l.b16 %v5243
        %v5280 = vunpack.c.l.b16 %v5244
        %v5281 = vunpack.c.l.b16 %v5245
        %v5282 = vunpack.c.l.b16 %v5246
        %v5283 = vunpack.c.l.b16 %v5247
        %v5284 = vunpack.c.l.b16 %v5248
        %v5285 = vunpack.c.l.b16 %v5249
        %v5286 = vunpack.c.l.b16 %v5250
        %v5287 = vunpack.c.l.b16 %v5251
        %v5288 = vunpack.c.l.b16 %v5252
        %v5289 = vpack.c.b16 %v5274, %v5273
        %v5290 = vpack.c.b16 %v5276, %v5275
        %v5291 = vpack.c.b16 %v5278, %v5277
        %v5292 = vpack.c.b16 %v5280, %v5279
        %v5293 = vpack.c.b16 %v5282, %v5281
        %v5294 = vpack.c.b16 %v5284, %v5283
        %v5295 = vpack.c.b16 %v5286, %v5285
        %v5296 = vpack.c.b16 %v5288, %v5287
        %5305 = vmatpush.bf16.msra.mxu0 %v5296
        %5306 = vmatpush.bf16.msra.mxu0 %v5295
        %5307 = vmatpush.bf16.msra.mxu0 %v5294
        %5308 = vmatpush.bf16.msra.mxu0 %v5293
        %5309 = vmatpush.bf16.msra.mxu0 %v5292
        %5310 = vmatpush.bf16.msra.mxu0 %v5291
        %5311 = vmatpush.bf16.msra.mxu0 %v5290
        %5312 = vmatpush.bf16.msra.mxu0 %v5289
        %5313 = vmatmul.bf16.gmra.mxu0 %v5205
        %v5314 = vpop.f32.mrf.mxu0
        %v5315 = vadd.f32 %v5255, %v5314
        %v5316 = vpop.f32.mrf.mxu0
        %v5317 = vadd.f32 %v5255, %v5316
        %5318 = vmatmul.bf16.gmra.mxu0 %v5206
        %v5319 = vpop.f32.mrf.mxu0
        %v5320 = vadd.f32 %v5255, %v5319
        %v5321 = vpop.f32.mrf.mxu0
        %v5322 = vadd.f32 %v5255, %v5321
        %5323 = vmatmul.bf16.gmra.mxu0 %v5207
        %v5324 = vpop.f32.mrf.mxu0
        %v5325 = vadd.f32 %v5255, %v5324
        %v5326 = vpop.f32.mrf.mxu0
        %v5327 = vadd.f32 %v5255, %v5326
        %5328 = vmatmul.bf16.gmra.mxu0 %v5208
        %v5329 = vpop.f32.mrf.mxu0
        %v5330 = vadd.f32 %v5255, %v5329
        %v5331 = vpop.f32.mrf.mxu0
        %v5332 = vadd.f32 %v5255, %v5331
        %5333 = vmatmul.bf16.gmra.mxu0 %v5209
        %v5334 = vpop.f32.mrf.mxu0
        %v5335 = vadd.f32 %v5255, %v5334
        %v5336 = vpop.f32.mrf.mxu0
        %v5337 = vadd.f32 %v5255, %v5336
        %5338 = vmatmul.bf16.gmra.mxu0 %v5210
        %v5339 = vpop.f32.mrf.mxu0
        %v5340 = vadd.f32 %v5255, %v5339
        %v5341 = vpop.f32.mrf.mxu0
        %v5342 = vadd.f32 %v5255, %v5341
        %5343 = vmatmul.bf16.gmra.mxu0 %v5211
        %v5344 = vpop.f32.mrf.mxu0
        %v5345 = vadd.f32 %v5255, %v5344
        %v5346 = vpop.f32.mrf.mxu0
        %v5347 = vadd.f32 %v5255, %v5346
        %5348 = vmatmul.bf16.gmra.mxu0 %v5212
        %v5349 = vpop.f32.mrf.mxu0
        %v5350 = vadd.f32 %v5255, %v5349
        %v5351 = vpop.f32.mrf.mxu0
        %v5352 = vadd.f32 %v5255, %v5351
        %5353 = vmatmul.bf16.gmra.mxu0 %v5213
        %v5354 = vpop.f32.mrf.mxu0
        %v5355 = vadd.f32 %v5255, %v5354
        %v5356 = vpop.f32.mrf.mxu0
        %v5357 = vadd.f32 %v5255, %v5356
        %5358 = vmatmul.bf16.gmra.mxu0 %v5214
        %v5359 = vpop.f32.mrf.mxu0
        %v5360 = vadd.f32 %v5255, %v5359
        %v5361 = vpop.f32.mrf.mxu0
        %v5362 = vadd.f32 %v5255, %v5361
        %5363 = vmatmul.bf16.gmra.mxu0 %v5215
        %v5364 = vpop.f32.mrf.mxu0
        %v5365 = vadd.f32 %v5255, %v5364
        %v5366 = vpop.f32.mrf.mxu0
        %v5367 = vadd.f32 %v5255, %v5366
        %5368 = vmatmul.bf16.gmra.mxu0 %v5216
        %v5369 = vpop.f32.mrf.mxu0
        %v5370 = vadd.f32 %v5255, %v5369
        %v5371 = vpop.f32.mrf.mxu0
        %v5372 = vadd.f32 %v5255, %v5371
        %5373 = vmatmul.bf16.gmra.mxu0 %v5217
        %v5374 = vpop.f32.mrf.mxu0
        %v5375 = vadd.f32 %v5255, %v5374
        %v5376 = vpop.f32.mrf.mxu0
        %v5377 = vadd.f32 %v5255, %v5376
        %5378 = vmatmul.bf16.gmra.mxu0 %v5218
        %v5379 = vpop.f32.mrf.mxu0
        %v5380 = vadd.f32 %v5255, %v5379
        %v5381 = vpop.f32.mrf.mxu0
        %v5382 = vadd.f32 %v5255, %v5381
        %5383 = vmatmul.bf16.gmra.mxu0 %v5219
        %v5384 = vpop.f32.mrf.mxu0
        %v5385 = vadd.f32 %v5255, %v5384
        %v5386 = vpop.f32.mrf.mxu0
        %v5387 = vadd.f32 %v5255, %v5386
        %5388 = vmatmul.bf16.gmra.mxu0 %v5220
        %v5389 = vpop.f32.mrf.mxu0
        %v5390 = vadd.f32 %v5255, %v5389
        %v5391 = vpop.f32.mrf.mxu0
        %v5392 = vadd.f32 %v5255, %v5391
        %5393 = vmatmul.bf16.gmra.mxu0 %v5221
        %v5394 = vpop.f32.mrf.mxu0
        %v5395 = vadd.f32 %v5255, %v5394
        %v5396 = vpop.f32.mrf.mxu0
        %v5397 = vadd.f32 %v5255, %v5396
        %5398 = vmatmul.bf16.gmra.mxu0 %v5222
        %v5399 = vpop.f32.mrf.mxu0
        %v5400 = vadd.f32 %v5255, %v5399
        %v5401 = vpop.f32.mrf.mxu0
        %v5402 = vadd.f32 %v5255, %v5401
        %5403 = vmatmul.bf16.gmra.mxu0 %v5223
        %v5404 = vpop.f32.mrf.mxu0
        %v5405 = vadd.f32 %v5255, %v5404
        %v5406 = vpop.f32.mrf.mxu0
        %v5407 = vadd.f32 %v5255, %v5406
        %5408 = vmatmul.bf16.gmra.mxu0 %v5224
        %v5409 = vpop.f32.mrf.mxu0
        %v5410 = vadd.f32 %v5255, %v5409
        %v5411 = vpop.f32.mrf.mxu0
        %v5412 = vadd.f32 %v5255, %v5411
        %5413 = vmatmul.bf16.gmra.mxu0 %v5225
        %v5414 = vpop.f32.mrf.mxu0
        %v5415 = vadd.f32 %v5255, %v5414
        %v5416 = vpop.f32.mrf.mxu0
        %v5417 = vadd.f32 %v5255, %v5416
        %5418 = vmatmul.bf16.gmra.mxu0 %v5226
        %v5419 = vpop.f32.mrf.mxu0
        %v5420 = vadd.f32 %v5255, %v5419
        %v5421 = vpop.f32.mrf.mxu0
        %v5422 = vadd.f32 %v5255, %v5421
        %5423 = vmatmul.bf16.gmra.mxu0 %v5227
        %v5424 = vpop.f32.mrf.mxu0
        %v5425 = vadd.f32 %v5255, %v5424
        %v5426 = vpop.f32.mrf.mxu0
        %v5427 = vadd.f32 %v5255, %v5426
        %5428 = vmatmul.bf16.gmra.mxu0 %v5228
        %v5429 = vpop.f32.mrf.mxu0
        %v5430 = vadd.f32 %v5255, %v5429
        %v5431 = vpop.f32.mrf.mxu0
        %v5432 = vadd.f32 %v5255, %v5431
        %5433 = vmatmul.bf16.gmra.mxu0 %v5229
        %v5434 = vpop.f32.mrf.mxu0
        %v5435 = vadd.f32 %v5255, %v5434
        %v5436 = vpop.f32.mrf.mxu0
        %v5437 = vadd.f32 %v5255, %v5436
        %5438 = vmatmul.bf16.gmra.mxu0 %v5230
        %v5439 = vpop.f32.mrf.mxu0
        %v5440 = vadd.f32 %v5255, %v5439
        %v5441 = vpop.f32.mrf.mxu0
        %v5442 = vadd.f32 %v5255, %v5441
        %5443 = vmatmul.bf16.gmra.mxu0 %v5231
        %v5444 = vpop.f32.mrf.mxu0
        %v5445 = vadd.f32 %v5255, %v5444
        %v5446 = vpop.f32.mrf.mxu0
        %v5447 = vadd.f32 %v5255, %v5446
        %5448 = vmatmul.bf16.gmra.mxu0 %v5232
        %v5449 = vpop.f32.mrf.mxu0
        %v5450 = vadd.f32 %v5255, %v5449
        %v5451 = vpop.f32.mrf.mxu0
        %v5452 = vadd.f32 %v5255, %v5451
        %5453 = vmatmul.bf16.gmra.mxu0 %v5233
        %v5454 = vpop.f32.mrf.mxu0
        %v5455 = vadd.f32 %v5255, %v5454
        %v5456 = vpop.f32.mrf.mxu0
        %v5457 = vadd.f32 %v5255, %v5456
        %5458 = vmatmul.bf16.gmra.mxu0 %v5234
        %v5459 = vpop.f32.mrf.mxu0
        %v5460 = vadd.f32 %v5255, %v5459
        %v5461 = vpop.f32.mrf.mxu0
        %v5462 = vadd.f32 %v5255, %v5461
        %5463 = vmatmul.bf16.gmra.mxu0 %v5235
        %v5464 = vpop.f32.mrf.mxu0
        %v5465 = vadd.f32 %v5255, %v5464
        %v5466 = vpop.f32.mrf.mxu0
        %v5467 = vadd.f32 %v5255, %v5466
        %5468 = vmatmul.bf16.gmra.mxu0 %v5236
        %v5469 = vpop.f32.mrf.mxu0
        %v5470 = vadd.f32 %v5255, %v5469
        %v5471 = vpop.f32.mrf.mxu0
        %v5472 = vadd.f32 %v5255, %v5471
        %5473 = vdwg.mxu0
        %v5474 = vand.u32 2147483647, %v5315
        %v5475 = vand.u32 2147483647, %v5317
        %v5476 = vand.u32 2147483647, %v5320
        %v5477 = vand.u32 2147483647, %v5322
        %v5478 = vand.u32 2147483647, %v5325
        %v5479 = vand.u32 2147483647, %v5327
        %v5480 = vand.u32 2147483647, %v5330
        %v5481 = vand.u32 2147483647, %v5332
        %v5482 = vand.u32 2147483647, %v5335
        %v5483 = vand.u32 2147483647, %v5337
        %v5484 = vand.u32 2147483647, %v5340
        %v5485 = vand.u32 2147483647, %v5342
        %v5486 = vand.u32 2147483647, %v5345
        %v5487 = vand.u32 2147483647, %v5347
        %v5488 = vand.u32 2147483647, %v5350
        %v5489 = vand.u32 2147483647, %v5352
        %v5490 = vand.u32 2147483647, %v5355
        %v5491 = vand.u32 2147483647, %v5357
        %v5492 = vand.u32 2147483647, %v5360
        %v5493 = vand.u32 2147483647, %v5362
        %v5494 = vand.u32 2147483647, %v5365
        %v5495 = vand.u32 2147483647, %v5367
        %v5496 = vand.u32 2147483647, %v5370
        %v5497 = vand.u32 2147483647, %v5372
        %v5498 = vand.u32 2147483647, %v5375
        %v5499 = vand.u32 2147483647, %v5377
        %v5500 = vand.u32 2147483647, %v5380
        %v5501 = vand.u32 2147483647, %v5382
        %v5502 = vand.u32 2147483647, %v5385
        %v5503 = vand.u32 2147483647, %v5387
        %v5504 = vand.u32 2147483647, %v5390
        %v5505 = vand.u32 2147483647, %v5392
        %v5506 = vand.u32 2147483647, %v5395
        %v5507 = vand.u32 2147483647, %v5397
        %v5508 = vand.u32 2147483647, %v5400
        %v5509 = vand.u32 2147483647, %v5402
        %v5510 = vand.u32 2147483647, %v5405
        %v5511 = vand.u32 2147483647, %v5407
        %v5512 = vand.u32 2147483647, %v5410
        %v5513 = vand.u32 2147483647, %v5412
        %v5514 = vand.u32 2147483647, %v5415
        %v5515 = vand.u32 2147483647, %v5417
        %v5516 = vand.u32 2147483647, %v5420
        %v5517 = vand.u32 2147483647, %v5422
        %v5518 = vand.u32 2147483647, %v5425
        %v5519 = vand.u32 2147483647, %v5427
        %v5520 = vand.u32 2147483647, %v5430
        %v5521 = vand.u32 2147483647, %v5432
        %v5522 = vand.u32 2147483647, %v5435
        %v5523 = vand.u32 2147483647, %v5437
        %v5524 = vand.u32 2147483647, %v5440
        %v5525 = vand.u32 2147483647, %v5442
        %v5526 = vand.u32 2147483647, %v5445
        %v5527 = vand.u32 2147483647, %v5447
        %v5528 = vand.u32 2147483647, %v5450
        %v5529 = vand.u32 2147483647, %v5452
        %v5530 = vand.u32 2147483647, %v5455
        %v5531 = vand.u32 2147483647, %v5457
        %v5532 = vand.u32 2147483647, %v5460
        %v5533 = vand.u32 2147483647, %v5462
        %v5534 = vand.u32 2147483647, %v5465
        %v5535 = vand.u32 2147483647, %v5467
        %v5536 = vand.u32 2147483647, %v5470
        %v5537 = vand.u32 2147483647, %v5472
        %v5538 = vsub.f32 0.0, %v5474
        %v5539 = vsub.f32 0.0, %v5475
        %v5540 = vsub.f32 0.0, %v5476
        %v5541 = vsub.f32 0.0, %v5477
        %v5542 = vsub.f32 0.0, %v5478
        %v5543 = vsub.f32 0.0, %v5479
        %v5544 = vsub.f32 0.0, %v5480
        %v5545 = vsub.f32 0.0, %v5481
        %v5546 = vsub.f32 0.0, %v5482
        %v5547 = vsub.f32 0.0, %v5483
        %v5548 = vsub.f32 0.0, %v5484
        %v5549 = vsub.f32 0.0, %v5485
        %v5550 = vsub.f32 0.0, %v5486
        %v5551 = vsub.f32 0.0, %v5487
        %v5552 = vsub.f32 0.0, %v5488
        %v5553 = vsub.f32 0.0, %v5489
        %v5554 = vsub.f32 0.0, %v5490
        %v5555 = vsub.f32 0.0, %v5491
        %v5556 = vsub.f32 0.0, %v5492
        %v5557 = vsub.f32 0.0, %v5493
        %v5558 = vsub.f32 0.0, %v5494
        %v5559 = vsub.f32 0.0, %v5495
        %v5560 = vsub.f32 0.0, %v5496
        %v5561 = vsub.f32 0.0, %v5497
        %v5562 = vsub.f32 0.0, %v5498
        %v5563 = vsub.f32 0.0, %v5499
        %v5564 = vsub.f32 0.0, %v5500
        %v5565 = vsub.f32 0.0, %v5501
        %v5566 = vsub.f32 0.0, %v5502
        %v5567 = vsub.f32 0.0, %v5503
        %v5568 = vsub.f32 0.0, %v5504
        %v5569 = vsub.f32 0.0, %v5505
        %v5570 = vsub.f32 0.0, %v5506
        %v5571 = vsub.f32 0.0, %v5507
        %v5572 = vsub.f32 0.0, %v5508
        %v5573 = vsub.f32 0.0, %v5509
        %v5574 = vsub.f32 0.0, %v5510
        %v5575 = vsub.f32 0.0, %v5511
        %v5576 = vsub.f32 0.0, %v5512
        %v5577 = vsub.f32 0.0, %v5513
        %v5578 = vsub.f32 0.0, %v5514
        %v5579 = vsub.f32 0.0, %v5515
        %v5580 = vsub.f32 0.0, %v5516
        %v5581 = vsub.f32 0.0, %v5517
        %v5582 = vsub.f32 0.0, %v5518
        %v5583 = vsub.f32 0.0, %v5519
        %v5584 = vsub.f32 0.0, %v5520
        %v5585 = vsub.f32 0.0, %v5521
        %v5586 = vsub.f32 0.0, %v5522
        %v5587 = vsub.f32 0.0, %v5523
        %v5588 = vsub.f32 0.0, %v5524
        %v5589 = vsub.f32 0.0, %v5525
        %v5590 = vsub.f32 0.0, %v5526
        %v5591 = vsub.f32 0.0, %v5527
        %v5592 = vsub.f32 0.0, %v5528
        %v5593 = vsub.f32 0.0, %v5529
        %v5594 = vsub.f32 0.0, %v5530
        %v5595 = vsub.f32 0.0, %v5531
        %v5596 = vsub.f32 0.0, %v5532
        %v5597 = vsub.f32 0.0, %v5533
        %v5598 = vsub.f32 0.0, %v5534
        %v5599 = vsub.f32 0.0, %v5535
        %v5600 = vsub.f32 0.0, %v5536
        %v5601 = vsub.f32 0.0, %v5537
        %v5602 = vmul.f32 %v5538, 1.442695
        %v5603 = vpow.pop %v5602
        %v5604 = vmul.f32 %v5539, 1.442695
        %v5605 = vpow.pop %v5604
        %v5606 = vmul.f32 %v5540, 1.442695
        %v5607 = vpow.pop %v5606
        %v5608 = vmul.f32 %v5541, 1.442695
        %v5609 = vpow.pop %v5608
        %v5610 = vmul.f32 %v5542, 1.442695
        %v5611 = vpow.pop %v5610
        %v5612 = vmul.f32 %v5543, 1.442695
        %v5613 = vpow.pop %v5612
        %v5614 = vmul.f32 %v5544, 1.442695
        %v5615 = vpow.pop %v5614
        %v5616 = vmul.f32 %v5545, 1.442695
        %v5617 = vpow.pop %v5616
        %v5618 = vmul.f32 %v5546, 1.442695
        %v5619 = vpow.pop %v5618
        %v5620 = vmul.f32 %v5547, 1.442695
        %v5621 = vpow.pop %v5620
        %v5622 = vmul.f32 %v5548, 1.442695
        %v5623 = vpow.pop %v5622
        %v5624 = vmul.f32 %v5549, 1.442695
        %v5625 = vpow.pop %v5624
        %v5626 = vmul.f32 %v5550, 1.442695
        %v5627 = vpow.pop %v5626
        %v5628 = vmul.f32 %v5551, 1.442695
        %v5629 = vpow.pop %v5628
        %v5630 = vmul.f32 %v5552, 1.442695
        %v5631 = vpow.pop %v5630
        %v5632 = vmul.f32 %v5553, 1.442695
        %v5633 = vpow.pop %v5632
        %v5634 = vmul.f32 %v5554, 1.442695
        %v5635 = vpow.pop %v5634
        %v5636 = vmul.f32 %v5555, 1.442695
        %v5637 = vpow.pop %v5636
        %v5638 = vmul.f32 %v5556, 1.442695
        %v5639 = vpow.pop %v5638
        %v5640 = vmul.f32 %v5557, 1.442695
        %v5641 = vpow.pop %v5640
        %v5642 = vmul.f32 %v5558, 1.442695
        %v5643 = vpow.pop %v5642
        %v5644 = vmul.f32 %v5559, 1.442695
        %v5645 = vpow.pop %v5644
        %v5646 = vmul.f32 %v5560, 1.442695
        %v5647 = vpow.pop %v5646
        %v5648 = vmul.f32 %v5561, 1.442695
        %v5649 = vpow.pop %v5648
        %v5650 = vmul.f32 %v5562, 1.442695
        %v5651 = vpow.pop %v5650
        %v5652 = vmul.f32 %v5563, 1.442695
        %v5653 = vpow.pop %v5652
        %v5654 = vmul.f32 %v5564, 1.442695
        %v5655 = vpow.pop %v5654
        %v5656 = vmul.f32 %v5565, 1.442695
        %v5657 = vpow.pop %v5656
        %v5658 = vmul.f32 %v5566, 1.442695
        %v5659 = vpow.pop %v5658
        %v5660 = vmul.f32 %v5567, 1.442695
        %v5661 = vpow.pop %v5660
        %v5662 = vmul.f32 %v5568, 1.442695
        %v5663 = vpow.pop %v5662
        %v5664 = vmul.f32 %v5569, 1.442695
        %v5665 = vpow.pop %v5664
        %v5666 = vmul.f32 %v5570, 1.442695
        %v5667 = vpow.pop %v5666
        %v5668 = vmul.f32 %v5571, 1.442695
        %v5669 = vpow.pop %v5668
        %v5670 = vmul.f32 %v5572, 1.442695
        %v5671 = vpow.pop %v5670
        %v5672 = vmul.f32 %v5573, 1.442695
        %v5673 = vpow.pop %v5672
        %v5674 = vmul.f32 %v5574, 1.442695
        %v5675 = vpow.pop %v5674
        %v5676 = vmul.f32 %v5575, 1.442695
        %v5677 = vpow.pop %v5676
        %v5678 = vmul.f32 %v5576, 1.442695
        %v5679 = vpow.pop %v5678
        %v5680 = vmul.f32 %v5577, 1.442695
        %v5681 = vpow.pop %v5680
        %v5682 = vmul.f32 %v5578, 1.442695
        %v5683 = vpow.pop %v5682
        %v5684 = vmul.f32 %v5579, 1.442695
        %v5685 = vpow.pop %v5684
        %v5686 = vmul.f32 %v5580, 1.442695
        %v5687 = vpow.pop %v5686
        %v5688 = vmul.f32 %v5581, 1.442695
        %v5689 = vpow.pop %v5688
        %v5690 = vmul.f32 %v5582, 1.442695
        %v5691 = vpow.pop %v5690
        %v5692 = vmul.f32 %v5583, 1.442695
        %v5693 = vpow.pop %v5692
        %v5694 = vmul.f32 %v5584, 1.442695
        %v5695 = vpow.pop %v5694
        %v5696 = vmul.f32 %v5585, 1.442695
        %v5697 = vpow.pop %v5696
        %v5698 = vmul.f32 %v5586, 1.442695
        %v5699 = vpow.pop %v5698
        %v5700 = vmul.f32 %v5587, 1.442695
        %v5701 = vpow.pop %v5700
        %v5702 = vmul.f32 %v5588, 1.442695
        %v5703 = vpow.pop %v5702
        %v5704 = vmul.f32 %v5589, 1.442695
        %v5705 = vpow.pop %v5704
        %v5706 = vmul.f32 %v5590, 1.442695
        %v5707 = vpow.pop %v5706
        %v5708 = vmul.f32 %v5591, 1.442695
        %v5709 = vpow.pop %v5708
        %v5710 = vmul.f32 %v5592, 1.442695
        %v5711 = vpow.pop %v5710
        %v5712 = vmul.f32 %v5593, 1.442695
        %v5713 = vpow.pop %v5712
        %v5714 = vmul.f32 %v5594, 1.442695
        %v5715 = vpow.pop %v5714
        %v5716 = vmul.f32 %v5595, 1.442695
        %v5717 = vpow.pop %v5716
        %v5718 = vmul.f32 %v5596, 1.442695
        %v5719 = vpow.pop %v5718
        %v5720 = vmul.f32 %v5597, 1.442695
        %v5721 = vpow.pop %v5720
        %v5722 = vmul.f32 %v5598, 1.442695
        %v5723 = vpow.pop %v5722
        %v5724 = vmul.f32 %v5599, 1.442695
        %v5725 = vpow.pop %v5724
        %v5726 = vmul.f32 %v5600, 1.442695
        %v5727 = vpow.pop %v5726
        %v5728 = vmul.f32 %v5601, 1.442695
        %v5729 = vpow.pop %v5728
        %v5730 = vadd.f32 %v5603, 1.0
        %v5731 = vadd.f32 %v5605, 1.0
        %v5732 = vadd.f32 %v5607, 1.0
        %v5733 = vadd.f32 %v5609, 1.0
        %v5734 = vadd.f32 %v5611, 1.0
        %v5735 = vadd.f32 %v5613, 1.0
        %v5736 = vadd.f32 %v5615, 1.0
        %v5737 = vadd.f32 %v5617, 1.0
        %v5738 = vadd.f32 %v5619, 1.0
        %v5739 = vadd.f32 %v5621, 1.0
        %v5740 = vadd.f32 %v5623, 1.0
        %v5741 = vadd.f32 %v5625, 1.0
        %v5742 = vadd.f32 %v5627, 1.0
        %v5743 = vadd.f32 %v5629, 1.0
        %v5744 = vadd.f32 %v5631, 1.0
        %v5745 = vadd.f32 %v5633, 1.0
        %v5746 = vadd.f32 %v5635, 1.0
        %v5747 = vadd.f32 %v5637, 1.0
        %v5748 = vadd.f32 %v5639, 1.0
        %v5749 = vadd.f32 %v5641, 1.0
        %v5750 = vadd.f32 %v5643, 1.0
        %v5751 = vadd.f32 %v5645, 1.0
        %v5752 = vadd.f32 %v5647, 1.0
        %v5753 = vadd.f32 %v5649, 1.0
        %v5754 = vadd.f32 %v5651, 1.0
        %v5755 = vadd.f32 %v5653, 1.0
        %v5756 = vadd.f32 %v5655, 1.0
        %v5757 = vadd.f32 %v5657, 1.0
        %v5758 = vadd.f32 %v5659, 1.0
        %v5759 = vadd.f32 %v5661, 1.0
        %v5760 = vadd.f32 %v5663, 1.0
        %v5761 = vadd.f32 %v5665, 1.0
        %v5762 = vadd.f32 %v5667, 1.0
        %v5763 = vadd.f32 %v5669, 1.0
        %v5764 = vadd.f32 %v5671, 1.0
        %v5765 = vadd.f32 %v5673, 1.0
        %v5766 = vadd.f32 %v5675, 1.0
        %v5767 = vadd.f32 %v5677, 1.0
        %v5768 = vadd.f32 %v5679, 1.0
        %v5769 = vadd.f32 %v5681, 1.0
        %v5770 = vadd.f32 %v5683, 1.0
        %v5771 = vadd.f32 %v5685, 1.0
        %v5772 = vadd.f32 %v5687, 1.0
        %v5773 = vadd.f32 %v5689, 1.0
        %v5774 = vadd.f32 %v5691, 1.0
        %v5775 = vadd.f32 %v5693, 1.0
        %v5776 = vadd.f32 %v5695, 1.0
        %v5777 = vadd.f32 %v5697, 1.0
        %v5778 = vadd.f32 %v5699, 1.0
        %v5779 = vadd.f32 %v5701, 1.0
        %v5780 = vadd.f32 %v5703, 1.0
        %v5781 = vadd.f32 %v5705, 1.0
        %v5782 = vadd.f32 %v5707, 1.0
        %v5783 = vadd.f32 %v5709, 1.0
        %v5784 = vadd.f32 %v5711, 1.0
        %v5785 = vadd.f32 %v5713, 1.0
        %v5786 = vadd.f32 %v5715, 1.0
        %v5787 = vadd.f32 %v5717, 1.0
        %v5788 = vadd.f32 %v5719, 1.0
        %v5789 = vadd.f32 %v5721, 1.0
        %v5790 = vadd.f32 %v5723, 1.0
        %v5791 = vadd.f32 %v5725, 1.0
        %v5792 = vadd.f32 %v5727, 1.0
        %v5793 = vadd.f32 %v5729, 1.0
        %v5794 = vrcp.pop %v5730
        %v5795 = vrcp.pop %v5731
        %v5796 = vrcp.pop %v5732
        %v5797 = vrcp.pop %v5733
        %v5798 = vrcp.pop %v5734
        %v5799 = vrcp.pop %v5735
        %v5800 = vrcp.pop %v5736
        %v5801 = vrcp.pop %v5737
        %v5802 = vrcp.pop %v5738
        %v5803 = vrcp.pop %v5739
        %v5804 = vrcp.pop %v5740
        %v5805 = vrcp.pop %v5741
        %v5806 = vrcp.pop %v5742
        %v5807 = vrcp.pop %v5743
        %v5808 = vrcp.pop %v5744
        %v5809 = vrcp.pop %v5745
        %v5810 = vrcp.pop %v5746
        %v5811 = vrcp.pop %v5747
        %v5812 = vrcp.pop %v5748
        %v5813 = vrcp.pop %v5749
        %v5814 = vrcp.pop %v5750
        %v5815 = vrcp.pop %v5751
        %v5816 = vrcp.pop %v5752
        %v5817 = vrcp.pop %v5753
        %v5818 = vrcp.pop %v5754
        %v5819 = vrcp.pop %v5755
        %v5820 = vrcp.pop %v5756
        %v5821 = vrcp.pop %v5757
        %v5822 = vrcp.pop %v5758
        %v5823 = vrcp.pop %v5759
        %v5824 = vrcp.pop %v5760
        %v5825 = vrcp.pop %v5761
        %v5826 = vrcp.pop %v5762
        %v5827 = vrcp.pop %v5763
        %v5828 = vrcp.pop %v5764
        %v5829 = vrcp.pop %v5765
        %v5830 = vrcp.pop %v5766
        %v5831 = vrcp.pop %v5767
        %v5832 = vrcp.pop %v5768
        %v5833 = vrcp.pop %v5769
        %v5834 = vrcp.pop %v5770
        %v5835 = vrcp.pop %v5771
        %v5836 = vrcp.pop %v5772
        %v5837 = vrcp.pop %v5773
        %v5838 = vrcp.pop %v5774
        %v5839 = vrcp.pop %v5775
        %v5840 = vrcp.pop %v5776
        %v5841 = vrcp.pop %v5777
        %v5842 = vrcp.pop %v5778
        %v5843 = vrcp.pop %v5779
        %v5844 = vrcp.pop %v5780
        %v5845 = vrcp.pop %v5781
        %v5846 = vrcp.pop %v5782
        %v5847 = vrcp.pop %v5783
        %v5848 = vrcp.pop %v5784
        %v5849 = vrcp.pop %v5785
        %v5850 = vrcp.pop %v5786
        %v5851 = vrcp.pop %v5787
        %v5852 = vrcp.pop %v5788
        %v5853 = vrcp.pop %v5789
        %v5854 = vrcp.pop %v5790
        %v5855 = vrcp.pop %v5791
        %v5856 = vrcp.pop %v5792
        %v5857 = vrcp.pop %v5793
        %vm5858 = vcmp.ge.f32.partialorder %v5315, 0.0
        %vm5859 = vcmp.ge.f32.partialorder %v5317, 0.0
        %vm5860 = vcmp.ge.f32.partialorder %v5320, 0.0
        %vm5861 = vcmp.ge.f32.partialorder %v5322, 0.0
        %vm5862 = vcmp.ge.f32.partialorder %v5325, 0.0
        %vm5863 = vcmp.ge.f32.partialorder %v5327, 0.0
        %vm5864 = vcmp.ge.f32.partialorder %v5330, 0.0
        %vm5865 = vcmp.ge.f32.partialorder %v5332, 0.0
        %vm5866 = vcmp.ge.f32.partialorder %v5335, 0.0
        %vm5867 = vcmp.ge.f32.partialorder %v5337, 0.0
        %vm5868 = vcmp.ge.f32.partialorder %v5340, 0.0
        %vm5869 = vcmp.ge.f32.partialorder %v5342, 0.0
        %vm5870 = vcmp.ge.f32.partialorder %v5345, 0.0
        %vm5871 = vcmp.ge.f32.partialorder %v5347, 0.0
        %vm5872 = vcmp.ge.f32.partialorder %v5350, 0.0
        %vm5873 = vcmp.ge.f32.partialorder %v5352, 0.0
        %vm5874 = vcmp.ge.f32.partialorder %v5355, 0.0
        %vm5875 = vcmp.ge.f32.partialorder %v5357, 0.0
        %vm5876 = vcmp.ge.f32.partialorder %v5360, 0.0
        %vm5877 = vcmp.ge.f32.partialorder %v5362, 0.0
        %vm5878 = vcmp.ge.f32.partialorder %v5365, 0.0
        %vm5879 = vcmp.ge.f32.partialorder %v5367, 0.0
        %vm5880 = vcmp.ge.f32.partialorder %v5370, 0.0
        %vm5881 = vcmp.ge.f32.partialorder %v5372, 0.0
        %vm5882 = vcmp.ge.f32.partialorder %v5375, 0.0
        %vm5883 = vcmp.ge.f32.partialorder %v5377, 0.0
        %vm5884 = vcmp.ge.f32.partialorder %v5380, 0.0
        %vm5885 = vcmp.ge.f32.partialorder %v5382, 0.0
        %vm5886 = vcmp.ge.f32.partialorder %v5385, 0.0
        %vm5887 = vcmp.ge.f32.partialorder %v5387, 0.0
        %vm5888 = vcmp.ge.f32.partialorder %v5390, 0.0
        %vm5889 = vcmp.ge.f32.partialorder %v5392, 0.0
        %vm5890 = vcmp.ge.f32.partialorder %v5395, 0.0
        %vm5891 = vcmp.ge.f32.partialorder %v5397, 0.0
        %vm5892 = vcmp.ge.f32.partialorder %v5400, 0.0
        %vm5893 = vcmp.ge.f32.partialorder %v5402, 0.0
        %vm5894 = vcmp.ge.f32.partialorder %v5405, 0.0
        %vm5895 = vcmp.ge.f32.partialorder %v5407, 0.0
        %vm5896 = vcmp.ge.f32.partialorder %v5410, 0.0
        %vm5897 = vcmp.ge.f32.partialorder %v5412, 0.0
        %vm5898 = vcmp.ge.f32.partialorder %v5415, 0.0
        %vm5899 = vcmp.ge.f32.partialorder %v5417, 0.0
        %vm5900 = vcmp.ge.f32.partialorder %v5420, 0.0
        %vm5901 = vcmp.ge.f32.partialorder %v5422, 0.0
        %vm5902 = vcmp.ge.f32.partialorder %v5425, 0.0
        %vm5903 = vcmp.ge.f32.partialorder %v5427, 0.0
        %vm5904 = vcmp.ge.f32.partialorder %v5430, 0.0
        %vm5905 = vcmp.ge.f32.partialorder %v5432, 0.0
        %vm5906 = vcmp.ge.f32.partialorder %v5435, 0.0
        %vm5907 = vcmp.ge.f32.partialorder %v5437, 0.0
        %vm5908 = vcmp.ge.f32.partialorder %v5440, 0.0
        %vm5909 = vcmp.ge.f32.partialorder %v5442, 0.0
        %vm5910 = vcmp.ge.f32.partialorder %v5445, 0.0
        %vm5911 = vcmp.ge.f32.partialorder %v5447, 0.0
        %vm5912 = vcmp.ge.f32.partialorder %v5450, 0.0
        %vm5913 = vcmp.ge.f32.partialorder %v5452, 0.0
        %vm5914 = vcmp.ge.f32.partialorder %v5455, 0.0
        %vm5915 = vcmp.ge.f32.partialorder %v5457, 0.0
        %vm5916 = vcmp.ge.f32.partialorder %v5460, 0.0
        %vm5917 = vcmp.ge.f32.partialorder %v5462, 0.0
        %vm5918 = vcmp.ge.f32.partialorder %v5465, 0.0
        %vm5919 = vcmp.ge.f32.partialorder %v5467, 0.0
        %vm5920 = vcmp.ge.f32.partialorder %v5470, 0.0
        %vm5921 = vcmp.ge.f32.partialorder %v5472, 0.0
        %v5922 = vmul.f32 %v5603, %v5794
        %v5923 = vmul.f32 %v5605, %v5795
        %v5924 = vmul.f32 %v5607, %v5796
        %v5925 = vmul.f32 %v5609, %v5797
        %v5926 = vmul.f32 %v5611, %v5798
        %v5927 = vmul.f32 %v5613, %v5799
        %v5928 = vmul.f32 %v5615, %v5800
        %v5929 = vmul.f32 %v5617, %v5801
        %v5930 = vmul.f32 %v5619, %v5802
        %v5931 = vmul.f32 %v5621, %v5803
        %v5932 = vmul.f32 %v5623, %v5804
        %v5933 = vmul.f32 %v5625, %v5805
        %v5934 = vmul.f32 %v5627, %v5806
        %v5935 = vmul.f32 %v5629, %v5807
        %v5936 = vmul.f32 %v5631, %v5808
        %v5937 = vmul.f32 %v5633, %v5809
        %v5938 = vmul.f32 %v5635, %v5810
        %v5939 = vmul.f32 %v5637, %v5811
        %v5940 = vmul.f32 %v5639, %v5812
        %v5941 = vmul.f32 %v5641, %v5813
        %v5942 = vmul.f32 %v5643, %v5814
        %v5943 = vmul.f32 %v5645, %v5815
        %v5944 = vmul.f32 %v5647, %v5816
        %v5945 = vmul.f32 %v5649, %v5817
        %v5946 = vmul.f32 %v5651, %v5818
        %v5947 = vmul.f32 %v5653, %v5819
        %v5948 = vmul.f32 %v5655, %v5820
        %v5949 = vmul.f32 %v5657, %v5821
        %v5950 = vmul.f32 %v5659, %v5822
        %v5951 = vmul.f32 %v5661, %v5823
        %v5952 = vmul.f32 %v5663, %v5824
        %v5953 = vmul.f32 %v5665, %v5825
        %v5954 = vmul.f32 %v5667, %v5826
        %v5955 = vmul.f32 %v5669, %v5827
        %v5956 = vmul.f32 %v5671, %v5828
        %v5957 = vmul.f32 %v5673, %v5829
        %v5958 = vmul.f32 %v5675, %v5830
        %v5959 = vmul.f32 %v5677, %v5831
        %v5960 = vmul.f32 %v5679, %v5832
        %v5961 = vmul.f32 %v5681, %v5833
        %v5962 = vmul.f32 %v5683, %v5834
        %v5963 = vmul.f32 %v5685, %v5835
        %v5964 = vmul.f32 %v5687, %v5836
        %v5965 = vmul.f32 %v5689, %v5837
        %v5966 = vmul.f32 %v5691, %v5838
        %v5967 = vmul.f32 %v5693, %v5839
        %v5968 = vmul.f32 %v5695, %v5840
        %v5969 = vmul.f32 %v5697, %v5841
        %v5970 = vmul.f32 %v5699, %v5842
        %v5971 = vmul.f32 %v5701, %v5843
        %v5972 = vmul.f32 %v5703, %v5844
        %v5973 = vmul.f32 %v5705, %v5845
        %v5974 = vmul.f32 %v5707, %v5846
        %v5975 = vmul.f32 %v5709, %v5847
        %v5976 = vmul.f32 %v5711, %v5848
        %v5977 = vmul.f32 %v5713, %v5849
        %v5978 = vmul.f32 %v5715, %v5850
        %v5979 = vmul.f32 %v5717, %v5851
        %v5980 = vmul.f32 %v5719, %v5852
        %v5981 = vmul.f32 %v5721, %v5853
        %v5982 = vmul.f32 %v5723, %v5854
        %v5983 = vmul.f32 %v5725, %v5855
        %v5984 = vmul.f32 %v5727, %v5856
        %v5985 = vmul.f32 %v5729, %v5857
        %v5986 = vsel %vm5858, %v5794, %v5922
        %v5987 = vsel %vm5859, %v5795, %v5923
        %v5988 = vsel %vm5860, %v5796, %v5924
        %v5989 = vsel %vm5861, %v5797, %v5925
        %v5990 = vsel %vm5862, %v5798, %v5926
        %v5991 = vsel %vm5863, %v5799, %v5927
        %v5992 = vsel %vm5864, %v5800, %v5928
        %v5993 = vsel %vm5865, %v5801, %v5929
        %v5994 = vsel %vm5866, %v5802, %v5930
        %v5995 = vsel %vm5867, %v5803, %v5931
        %v5996 = vsel %vm5868, %v5804, %v5932
        %v5997 = vsel %vm5869, %v5805, %v5933
        %v5998 = vsel %vm5870, %v5806, %v5934
        %v5999 = vsel %vm5871, %v5807, %v5935
        %v6000 = vsel %vm5872, %v5808, %v5936
        %v6001 = vsel %vm5873, %v5809, %v5937
        %v6002 = vsel %vm5874, %v5810, %v5938
        %v6003 = vsel %vm5875, %v5811, %v5939
        %v6004 = vsel %vm5876, %v5812, %v5940
        %v6005 = vsel %vm5877, %v5813, %v5941
        %v6006 = vsel %vm5878, %v5814, %v5942
        %v6007 = vsel %vm5879, %v5815, %v5943
        %v6008 = vsel %vm5880, %v5816, %v5944
        %v6009 = vsel %vm5881, %v5817, %v5945
        %v6010 = vsel %vm5882, %v5818, %v5946
        %v6011 = vsel %vm5883, %v5819, %v5947
        %v6012 = vsel %vm5884, %v5820, %v5948
        %v6013 = vsel %vm5885, %v5821, %v5949
        %v6014 = vsel %vm5886, %v5822, %v5950
        %v6015 = vsel %vm5887, %v5823, %v5951
        %v6016 = vsel %vm5888, %v5824, %v5952
        %v6017 = vsel %vm5889, %v5825, %v5953
        %v6018 = vsel %vm5890, %v5826, %v5954
        %v6019 = vsel %vm5891, %v5827, %v5955
        %v6020 = vsel %vm5892, %v5828, %v5956
        %v6021 = vsel %vm5893, %v5829, %v5957
        %v6022 = vsel %vm5894, %v5830, %v5958
        %v6023 = vsel %vm5895, %v5831, %v5959
        %v6024 = vsel %vm5896, %v5832, %v5960
        %v6025 = vsel %vm5897, %v5833, %v5961
        %v6026 = vsel %vm5898, %v5834, %v5962
        %v6027 = vsel %vm5899, %v5835, %v5963
        %v6028 = vsel %vm5900, %v5836, %v5964
        %v6029 = vsel %vm5901, %v5837, %v5965
        %v6030 = vsel %vm5902, %v5838, %v5966
        %v6031 = vsel %vm5903, %v5839, %v5967
        %v6032 = vsel %vm5904, %v5840, %v5968
        %v6033 = vsel %vm5905, %v5841, %v5969
        %v6034 = vsel %vm5906, %v5842, %v5970
        %v6035 = vsel %vm5907, %v5843, %v5971
        %v6036 = vsel %vm5908, %v5844, %v5972
        %v6037 = vsel %vm5909, %v5845, %v5973
        %v6038 = vsel %vm5910, %v5846, %v5974
        %v6039 = vsel %vm5911, %v5847, %v5975
        %v6040 = vsel %vm5912, %v5848, %v5976
        %v6041 = vsel %vm5913, %v5849, %v5977
        %v6042 = vsel %vm5914, %v5850, %v5978
        %v6043 = vsel %vm5915, %v5851, %v5979
        %v6044 = vsel %vm5916, %v5852, %v5980
        %v6045 = vsel %vm5917, %v5853, %v5981
        %v6046 = vsel %vm5918, %v5854, %v5982
        %v6047 = vsel %vm5919, %v5855, %v5983
        %v6048 = vsel %vm5920, %v5856, %v5984
        %v6049 = vsel %vm5921, %v5857, %v5985
        %v6050 = vmul.f32 %v5315, %v5986
        %v6051 = vmul.f32 %v5317, %v5987
        %v6052 = vmul.f32 %v5320, %v5988
        %v6053 = vmul.f32 %v5322, %v5989
        %v6054 = vmul.f32 %v5325, %v5990
        %v6055 = vmul.f32 %v5327, %v5991
        %v6056 = vmul.f32 %v5330, %v5992
        %v6057 = vmul.f32 %v5332, %v5993
        %v6058 = vmul.f32 %v5335, %v5994
        %v6059 = vmul.f32 %v5337, %v5995
        %v6060 = vmul.f32 %v5340, %v5996
        %v6061 = vmul.f32 %v5342, %v5997
        %v6062 = vmul.f32 %v5345, %v5998
        %v6063 = vmul.f32 %v5347, %v5999
        %v6064 = vmul.f32 %v5350, %v6000
        %v6065 = vmul.f32 %v5352, %v6001
        %v6066 = vmul.f32 %v5355, %v6002
        %v6067 = vmul.f32 %v5357, %v6003
        %v6068 = vmul.f32 %v5360, %v6004
        %v6069 = vmul.f32 %v5362, %v6005
        %v6070 = vmul.f32 %v5365, %v6006
        %v6071 = vmul.f32 %v5367, %v6007
        %v6072 = vmul.f32 %v5370, %v6008
        %v6073 = vmul.f32 %v5372, %v6009
        %v6074 = vmul.f32 %v5375, %v6010
        %v6075 = vmul.f32 %v5377, %v6011
        %v6076 = vmul.f32 %v5380, %v6012
        %v6077 = vmul.f32 %v5382, %v6013
        %v6078 = vmul.f32 %v5385, %v6014
        %v6079 = vmul.f32 %v5387, %v6015
        %v6080 = vmul.f32 %v5390, %v6016
        %v6081 = vmul.f32 %v5392, %v6017
        %v6082 = vmul.f32 %v5395, %v6018
        %v6083 = vmul.f32 %v5397, %v6019
        %v6084 = vmul.f32 %v5400, %v6020
        %v6085 = vmul.f32 %v5402, %v6021
        %v6086 = vmul.f32 %v5405, %v6022
        %v6087 = vmul.f32 %v5407, %v6023
        %v6088 = vmul.f32 %v5410, %v6024
        %v6089 = vmul.f32 %v5412, %v6025
        %v6090 = vmul.f32 %v5415, %v6026
        %v6091 = vmul.f32 %v5417, %v6027
        %v6092 = vmul.f32 %v5420, %v6028
        %v6093 = vmul.f32 %v5422, %v6029
        %v6094 = vmul.f32 %v5425, %v6030
        %v6095 = vmul.f32 %v5427, %v6031
        %v6096 = vmul.f32 %v5430, %v6032
        %v6097 = vmul.f32 %v5432, %v6033
        %v6098 = vmul.f32 %v5435, %v6034
        %v6099 = vmul.f32 %v5437, %v6035
        %v6100 = vmul.f32 %v5440, %v6036
        %v6101 = vmul.f32 %v5442, %v6037
        %v6102 = vmul.f32 %v5445, %v6038
        %v6103 = vmul.f32 %v5447, %v6039
        %v6104 = vmul.f32 %v5450, %v6040
        %v6105 = vmul.f32 %v5452, %v6041
        %v6106 = vmul.f32 %v5455, %v6042
        %v6107 = vmul.f32 %v5457, %v6043
        %v6108 = vmul.f32 %v5460, %v6044
        %v6109 = vmul.f32 %v5462, %v6045
        %v6110 = vmul.f32 %v5465, %v6046
        %v6111 = vmul.f32 %v5467, %v6047
        %v6112 = vmul.f32 %v5470, %v6048
        %v6113 = vmul.f32 %v5472, %v6049
        %v6114 = vpack.c.bf16 %v6051, %v6050
        %v6115 = vpack.c.bf16 %v6053, %v6052
        %v6116 = vpack.c.bf16 %v6055, %v6054
        %v6117 = vpack.c.bf16 %v6057, %v6056
        %v6118 = vpack.c.bf16 %v6059, %v6058
        %v6119 = vpack.c.bf16 %v6061, %v6060
        %v6120 = vpack.c.bf16 %v6063, %v6062
        %v6121 = vpack.c.bf16 %v6065, %v6064
        %v6122 = vpack.c.bf16 %v6067, %v6066
        %v6123 = vpack.c.bf16 %v6069, %v6068
        %v6124 = vpack.c.bf16 %v6071, %v6070
        %v6125 = vpack.c.bf16 %v6073, %v6072
        %v6126 = vpack.c.bf16 %v6075, %v6074
        %v6127 = vpack.c.bf16 %v6077, %v6076
        %v6128 = vpack.c.bf16 %v6079, %v6078
        %v6129 = vpack.c.bf16 %v6081, %v6080
        %v6130 = vpack.c.bf16 %v6083, %v6082
        %v6131 = vpack.c.bf16 %v6085, %v6084
        %v6132 = vpack.c.bf16 %v6087, %v6086
        %v6133 = vpack.c.bf16 %v6089, %v6088
        %v6134 = vpack.c.bf16 %v6091, %v6090
        %v6135 = vpack.c.bf16 %v6093, %v6092
        %v6136 = vpack.c.bf16 %v6095, %v6094
        %v6137 = vpack.c.bf16 %v6097, %v6096
        %v6138 = vpack.c.bf16 %v6099, %v6098
        %v6139 = vpack.c.bf16 %v6101, %v6100
        %v6140 = vpack.c.bf16 %v6103, %v6102
        %v6141 = vpack.c.bf16 %v6105, %v6104
        %v6142 = vpack.c.bf16 %v6107, %v6106
        %v6143 = vpack.c.bf16 %v6109, %v6108
        %v6144 = vpack.c.bf16 %v6111, %v6110
        %v6145 = vpack.c.bf16 %v6113, %v6112
        %v6146 = vld [vmem:[%s13] sm:$0xf]
        %v6147 = vld [vmem:[%s13 + $0x4] sm:$0xf]
        %v6148 = vld [vmem:[%s13 + $0x8] sm:$0xf]
        %v6149 = vld [vmem:[%s13 + $0xc] sm:$0xf]
        %v6150 = vld [vmem:[%s13 + $0x10] sm:$0xf]
        %v6151 = vld [vmem:[%s13 + $0x14] sm:$0xf]
        %v6152 = vld [vmem:[%s13 + $0x18] sm:$0xf]
        %v6153 = vld [vmem:[%s13 + $0x1c] sm:$0xf]
        %v6154 = vld [vmem:[%s13 + $0x20] sm:$0xf]
        %v6155 = vld [vmem:[%s13 + $0x24] sm:$0xf]
        %v6156 = vld [vmem:[%s13 + $0x28] sm:$0xf]
        %v6157 = vld [vmem:[%s13 + $0x2c] sm:$0xf]
        %v6158 = vld [vmem:[%s13 + $0x30] sm:$0xf]
        %v6159 = vld [vmem:[%s13 + $0x34] sm:$0xf]
        %v6160 = vld [vmem:[%s13 + $0x38] sm:$0xf]
        %v6161 = vld [vmem:[%s13 + $0x3c] sm:$0xf]
        %v6162 = vld [vmem:[%s14] sm:$0x1]
        %v6164 = vperm.slane %v6162, 0
        %v6182 = vunpack.c.l.b16 %v6146
        %v6183 = vunpack.c.l.b16 %v6147
        %v6184 = vunpack.c.l.b16 %v6148
        %v6185 = vunpack.c.l.b16 %v6149
        %v6186 = vunpack.c.l.b16 %v6150
        %v6187 = vunpack.c.l.b16 %v6151
        %v6188 = vunpack.c.l.b16 %v6152
        %v6189 = vunpack.c.l.b16 %v6153
        %v6190 = vunpack.c.l.b16 %v6154
        %v6191 = vunpack.c.l.b16 %v6155
        %v6192 = vunpack.c.l.b16 %v6156
        %v6193 = vunpack.c.l.b16 %v6157
        %v6194 = vunpack.c.l.b16 %v6158
        %v6195 = vunpack.c.l.b16 %v6159
        %v6196 = vunpack.c.l.b16 %v6160
        %v6197 = vunpack.c.l.b16 %v6161
        %v6198 = vpack.c.b16 %v6183, %v6182
        %v6199 = vpack.c.b16 %v6185, %v6184
        %v6200 = vpack.c.b16 %v6187, %v6186
        %v6201 = vpack.c.b16 %v6189, %v6188
        %v6202 = vpack.c.b16 %v6191, %v6190
        %v6203 = vpack.c.b16 %v6193, %v6192
        %v6204 = vpack.c.b16 %v6195, %v6194
        %v6205 = vpack.c.b16 %v6197, %v6196
        %6214 = vmatpush.bf16.msra.mxu0 %v6205
        %6215 = vmatpush.bf16.msra.mxu0 %v6204
        %6216 = vmatpush.bf16.msra.mxu0 %v6203
        %6217 = vmatpush.bf16.msra.mxu0 %v6202
        %6218 = vmatpush.bf16.msra.mxu0 %v6201
        %6219 = vmatpush.bf16.msra.mxu0 %v6200
        %6220 = vmatpush.bf16.msra.mxu0 %v6199
        %6221 = vmatpush.bf16.msra.mxu0 %v6198
        %6222 = vmatmul.bf16.gmra.mxu0 %v6114
        %v6223 = vpop.f32.mrf.mxu0
        %v6224 = vadd.f32 %v6164, %v6223
        %v6225 = vpop.f32.mrf.mxu0
        %v6226 = vadd.f32 %v6164, %v6225
        %6227 = vmatmul.bf16.gmra.mxu0 %v6115
        %v6228 = vpop.f32.mrf.mxu0
        %v6229 = vadd.f32 %v6164, %v6228
        %v6230 = vpop.f32.mrf.mxu0
        %v6231 = vadd.f32 %v6164, %v6230
        %6232 = vmatmul.bf16.gmra.mxu0 %v6116
        %v6233 = vpop.f32.mrf.mxu0
        %v6234 = vadd.f32 %v6164, %v6233
        %v6235 = vpop.f32.mrf.mxu0
        %v6236 = vadd.f32 %v6164, %v6235
        %6237 = vmatmul.bf16.gmra.mxu0 %v6117
        %v6238 = vpop.f32.mrf.mxu0
        %v6239 = vadd.f32 %v6164, %v6238
        %v6240 = vpop.f32.mrf.mxu0
        %v6241 = vadd.f32 %v6164, %v6240
        %6242 = vmatmul.bf16.gmra.mxu0 %v6118
        %v6243 = vpop.f32.mrf.mxu0
        %v6244 = vadd.f32 %v6164, %v6243
        %v6245 = vpop.f32.mrf.mxu0
        %v6246 = vadd.f32 %v6164, %v6245
        %6247 = vmatmul.bf16.gmra.mxu0 %v6119
        %v6248 = vpop.f32.mrf.mxu0
        %v6249 = vadd.f32 %v6164, %v6248
        %v6250 = vpop.f32.mrf.mxu0
        %v6251 = vadd.f32 %v6164, %v6250
        %6252 = vmatmul.bf16.gmra.mxu0 %v6120
        %v6253 = vpop.f32.mrf.mxu0
        %v6254 = vadd.f32 %v6164, %v6253
        %v6255 = vpop.f32.mrf.mxu0
        %v6256 = vadd.f32 %v6164, %v6255
        %6257 = vmatmul.bf16.gmra.mxu0 %v6121
        %v6258 = vpop.f32.mrf.mxu0
        %v6259 = vadd.f32 %v6164, %v6258
        %v6260 = vpop.f32.mrf.mxu0
        %v6261 = vadd.f32 %v6164, %v6260
        %6262 = vmatmul.bf16.gmra.mxu0 %v6122
        %v6263 = vpop.f32.mrf.mxu0
        %v6264 = vadd.f32 %v6164, %v6263
        %v6265 = vpop.f32.mrf.mxu0
        %v6266 = vadd.f32 %v6164, %v6265
        %6267 = vmatmul.bf16.gmra.mxu0 %v6123
        %v6268 = vpop.f32.mrf.mxu0
        %v6269 = vadd.f32 %v6164, %v6268
        %v6270 = vpop.f32.mrf.mxu0
        %v6271 = vadd.f32 %v6164, %v6270
        %6272 = vmatmul.bf16.gmra.mxu0 %v6124
        %v6273 = vpop.f32.mrf.mxu0
        %v6274 = vadd.f32 %v6164, %v6273
        %v6275 = vpop.f32.mrf.mxu0
        %v6276 = vadd.f32 %v6164, %v6275
        %6277 = vmatmul.bf16.gmra.mxu0 %v6125
        %v6278 = vpop.f32.mrf.mxu0
        %v6279 = vadd.f32 %v6164, %v6278
        %v6280 = vpop.f32.mrf.mxu0
        %v6281 = vadd.f32 %v6164, %v6280
        %6282 = vmatmul.bf16.gmra.mxu0 %v6126
        %v6283 = vpop.f32.mrf.mxu0
        %v6284 = vadd.f32 %v6164, %v6283
        %v6285 = vpop.f32.mrf.mxu0
        %v6286 = vadd.f32 %v6164, %v6285
        %6287 = vmatmul.bf16.gmra.mxu0 %v6127
        %v6288 = vpop.f32.mrf.mxu0
        %v6289 = vadd.f32 %v6164, %v6288
        %v6290 = vpop.f32.mrf.mxu0
        %v6291 = vadd.f32 %v6164, %v6290
        %6292 = vmatmul.bf16.gmra.mxu0 %v6128
        %v6293 = vpop.f32.mrf.mxu0
        %v6294 = vadd.f32 %v6164, %v6293
        %v6295 = vpop.f32.mrf.mxu0
        %v6296 = vadd.f32 %v6164, %v6295
        %6297 = vmatmul.bf16.gmra.mxu0 %v6129
        %v6298 = vpop.f32.mrf.mxu0
        %v6299 = vadd.f32 %v6164, %v6298
        %v6300 = vpop.f32.mrf.mxu0
        %v6301 = vadd.f32 %v6164, %v6300
        %6302 = vmatmul.bf16.gmra.mxu0 %v6130
        %v6303 = vpop.f32.mrf.mxu0
        %v6304 = vadd.f32 %v6164, %v6303
        %v6305 = vpop.f32.mrf.mxu0
        %v6306 = vadd.f32 %v6164, %v6305
        %6307 = vmatmul.bf16.gmra.mxu0 %v6131
        %v6308 = vpop.f32.mrf.mxu0
        %v6309 = vadd.f32 %v6164, %v6308
        %v6310 = vpop.f32.mrf.mxu0
        %v6311 = vadd.f32 %v6164, %v6310
        %6312 = vmatmul.bf16.gmra.mxu0 %v6132
        %v6313 = vpop.f32.mrf.mxu0
        %v6314 = vadd.f32 %v6164, %v6313
        %v6315 = vpop.f32.mrf.mxu0
        %v6316 = vadd.f32 %v6164, %v6315
        %6317 = vmatmul.bf16.gmra.mxu0 %v6133
        %v6318 = vpop.f32.mrf.mxu0
        %v6319 = vadd.f32 %v6164, %v6318
        %v6320 = vpop.f32.mrf.mxu0
        %v6321 = vadd.f32 %v6164, %v6320
        %6322 = vmatmul.bf16.gmra.mxu0 %v6134
        %v6323 = vpop.f32.mrf.mxu0
        %v6324 = vadd.f32 %v6164, %v6323
        %v6325 = vpop.f32.mrf.mxu0
        %v6326 = vadd.f32 %v6164, %v6325
        %6327 = vmatmul.bf16.gmra.mxu0 %v6135
        %v6328 = vpop.f32.mrf.mxu0
        %v6329 = vadd.f32 %v6164, %v6328
        %v6330 = vpop.f32.mrf.mxu0
        %v6331 = vadd.f32 %v6164, %v6330
        %6332 = vmatmul.bf16.gmra.mxu0 %v6136
        %v6333 = vpop.f32.mrf.mxu0
        %v6334 = vadd.f32 %v6164, %v6333
        %v6335 = vpop.f32.mrf.mxu0
        %v6336 = vadd.f32 %v6164, %v6335
        %6337 = vmatmul.bf16.gmra.mxu0 %v6137
        %v6338 = vpop.f32.mrf.mxu0
        %v6339 = vadd.f32 %v6164, %v6338
        %v6340 = vpop.f32.mrf.mxu0
        %v6341 = vadd.f32 %v6164, %v6340
        %6342 = vmatmul.bf16.gmra.mxu0 %v6138
        %v6343 = vpop.f32.mrf.mxu0
        %v6344 = vadd.f32 %v6164, %v6343
        %v6345 = vpop.f32.mrf.mxu0
        %v6346 = vadd.f32 %v6164, %v6345
        %6347 = vmatmul.bf16.gmra.mxu0 %v6139
        %v6348 = vpop.f32.mrf.mxu0
        %v6349 = vadd.f32 %v6164, %v6348
        %v6350 = vpop.f32.mrf.mxu0
        %v6351 = vadd.f32 %v6164, %v6350
        %6352 = vmatmul.bf16.gmra.mxu0 %v6140
        %v6353 = vpop.f32.mrf.mxu0
        %v6354 = vadd.f32 %v6164, %v6353
        %v6355 = vpop.f32.mrf.mxu0
        %v6356 = vadd.f32 %v6164, %v6355
        %6357 = vmatmul.bf16.gmra.mxu0 %v6141
        %v6358 = vpop.f32.mrf.mxu0
        %v6359 = vadd.f32 %v6164, %v6358
        %v6360 = vpop.f32.mrf.mxu0
        %v6361 = vadd.f32 %v6164, %v6360
        %6362 = vmatmul.bf16.gmra.mxu0 %v6142
        %v6363 = vpop.f32.mrf.mxu0
        %v6364 = vadd.f32 %v6164, %v6363
        %v6365 = vpop.f32.mrf.mxu0
        %v6366 = vadd.f32 %v6164, %v6365
        %6367 = vmatmul.bf16.gmra.mxu0 %v6143
        %v6368 = vpop.f32.mrf.mxu0
        %v6369 = vadd.f32 %v6164, %v6368
        %v6370 = vpop.f32.mrf.mxu0
        %v6371 = vadd.f32 %v6164, %v6370
        %6372 = vmatmul.bf16.gmra.mxu0 %v6144
        %v6373 = vpop.f32.mrf.mxu0
        %v6374 = vadd.f32 %v6164, %v6373
        %v6375 = vpop.f32.mrf.mxu0
        %v6376 = vadd.f32 %v6164, %v6375
        %6377 = vmatmul.bf16.gmra.mxu0 %v6145
        %v6378 = vpop.f32.mrf.mxu0
        %v6379 = vadd.f32 %v6164, %v6378
        %v6380 = vpop.f32.mrf.mxu0
        %v6381 = vadd.f32 %v6164, %v6380
        %6382 = vdwg.mxu0
        %v6383 = vand.u32 2147483647, %v6224
        %v6384 = vand.u32 2147483647, %v6226
        %v6385 = vand.u32 2147483647, %v6229
        %v6386 = vand.u32 2147483647, %v6231
        %v6387 = vand.u32 2147483647, %v6234
        %v6388 = vand.u32 2147483647, %v6236
        %v6389 = vand.u32 2147483647, %v6239
        %v6390 = vand.u32 2147483647, %v6241
        %v6391 = vand.u32 2147483647, %v6244
        %v6392 = vand.u32 2147483647, %v6246
        %v6393 = vand.u32 2147483647, %v6249
        %v6394 = vand.u32 2147483647, %v6251
        %v6395 = vand.u32 2147483647, %v6254
        %v6396 = vand.u32 2147483647, %v6256
        %v6397 = vand.u32 2147483647, %v6259
        %v6398 = vand.u32 2147483647, %v6261
        %v6399 = vand.u32 2147483647, %v6264
        %v6400 = vand.u32 2147483647, %v6266
        %v6401 = vand.u32 2147483647, %v6269
        %v6402 = vand.u32 2147483647, %v6271
        %v6403 = vand.u32 2147483647, %v6274
        %v6404 = vand.u32 2147483647, %v6276
        %v6405 = vand.u32 2147483647, %v6279
        %v6406 = vand.u32 2147483647, %v6281
        %v6407 = vand.u32 2147483647, %v6284
        %v6408 = vand.u32 2147483647, %v6286
        %v6409 = vand.u32 2147483647, %v6289
        %v6410 = vand.u32 2147483647, %v6291
        %v6411 = vand.u32 2147483647, %v6294
        %v6412 = vand.u32 2147483647, %v6296
        %v6413 = vand.u32 2147483647, %v6299
        %v6414 = vand.u32 2147483647, %v6301
        %v6415 = vand.u32 2147483647, %v6304
        %v6416 = vand.u32 2147483647, %v6306
        %v6417 = vand.u32 2147483647, %v6309
        %v6418 = vand.u32 2147483647, %v6311
        %v6419 = vand.u32 2147483647, %v6314
        %v6420 = vand.u32 2147483647, %v6316
        %v6421 = vand.u32 2147483647, %v6319
        %v6422 = vand.u32 2147483647, %v6321
        %v6423 = vand.u32 2147483647, %v6324
        %v6424 = vand.u32 2147483647, %v6326
        %v6425 = vand.u32 2147483647, %v6329
        %v6426 = vand.u32 2147483647, %v6331
        %v6427 = vand.u32 2147483647, %v6334
        %v6428 = vand.u32 2147483647, %v6336
        %v6429 = vand.u32 2147483647, %v6339
        %v6430 = vand.u32 2147483647, %v6341
        %v6431 = vand.u32 2147483647, %v6344
        %v6432 = vand.u32 2147483647, %v6346
        %v6433 = vand.u32 2147483647, %v6349
        %v6434 = vand.u32 2147483647, %v6351
        %v6435 = vand.u32 2147483647, %v6354
        %v6436 = vand.u32 2147483647, %v6356
        %v6437 = vand.u32 2147483647, %v6359
        %v6438 = vand.u32 2147483647, %v6361
        %v6439 = vand.u32 2147483647, %v6364
        %v6440 = vand.u32 2147483647, %v6366
        %v6441 = vand.u32 2147483647, %v6369
        %v6442 = vand.u32 2147483647, %v6371
        %v6443 = vand.u32 2147483647, %v6374
        %v6444 = vand.u32 2147483647, %v6376
        %v6445 = vand.u32 2147483647, %v6379
        %v6446 = vand.u32 2147483647, %v6381
        %v6447 = vsub.f32 0.0, %v6383
        %v6448 = vsub.f32 0.0, %v6384
        %v6449 = vsub.f32 0.0, %v6385
        %v6450 = vsub.f32 0.0, %v6386
        %v6451 = vsub.f32 0.0, %v6387
        %v6452 = vsub.f32 0.0, %v6388
        %v6453 = vsub.f32 0.0, %v6389
        %v6454 = vsub.f32 0.0, %v6390
        %v6455 = vsub.f32 0.0, %v6391
        %v6456 = vsub.f32 0.0, %v6392
        %v6457 = vsub.f32 0.0, %v6393
        %v6458 = vsub.f32 0.0, %v6394
        %v6459 = vsub.f32 0.0, %v6395
        %v6460 = vsub.f32 0.0, %v6396
        %v6461 = vsub.f32 0.0, %v6397
        %v6462 = vsub.f32 0.0, %v6398
        %v6463 = vsub.f32 0.0, %v6399
        %v6464 = vsub.f32 0.0, %v6400
        %v6465 = vsub.f32 0.0, %v6401
        %v6466 = vsub.f32 0.0, %v6402
        %v6467 = vsub.f32 0.0, %v6403
        %v6468 = vsub.f32 0.0, %v6404
        %v6469 = vsub.f32 0.0, %v6405
        %v6470 = vsub.f32 0.0, %v6406
        %v6471 = vsub.f32 0.0, %v6407
        %v6472 = vsub.f32 0.0, %v6408
        %v6473 = vsub.f32 0.0, %v6409
        %v6474 = vsub.f32 0.0, %v6410
        %v6475 = vsub.f32 0.0, %v6411
        %v6476 = vsub.f32 0.0, %v6412
        %v6477 = vsub.f32 0.0, %v6413
        %v6478 = vsub.f32 0.0, %v6414
        %v6479 = vsub.f32 0.0, %v6415
        %v6480 = vsub.f32 0.0, %v6416
        %v6481 = vsub.f32 0.0, %v6417
        %v6482 = vsub.f32 0.0, %v6418
        %v6483 = vsub.f32 0.0, %v6419
        %v6484 = vsub.f32 0.0, %v6420
        %v6485 = vsub.f32 0.0, %v6421
        %v6486 = vsub.f32 0.0, %v6422
        %v6487 = vsub.f32 0.0, %v6423
        %v6488 = vsub.f32 0.0, %v6424
        %v6489 = vsub.f32 0.0, %v6425
        %v6490 = vsub.f32 0.0, %v6426
        %v6491 = vsub.f32 0.0, %v6427
        %v6492 = vsub.f32 0.0, %v6428
        %v6493 = vsub.f32 0.0, %v6429
        %v6494 = vsub.f32 0.0, %v6430
        %v6495 = vsub.f32 0.0, %v6431
        %v6496 = vsub.f32 0.0, %v6432
        %v6497 = vsub.f32 0.0, %v6433
        %v6498 = vsub.f32 0.0, %v6434
        %v6499 = vsub.f32 0.0, %v6435
        %v6500 = vsub.f32 0.0, %v6436
        %v6501 = vsub.f32 0.0, %v6437
        %v6502 = vsub.f32 0.0, %v6438
        %v6503 = vsub.f32 0.0, %v6439
        %v6504 = vsub.f32 0.0, %v6440
        %v6505 = vsub.f32 0.0, %v6441
        %v6506 = vsub.f32 0.0, %v6442
        %v6507 = vsub.f32 0.0, %v6443
        %v6508 = vsub.f32 0.0, %v6444
        %v6509 = vsub.f32 0.0, %v6445
        %v6510 = vsub.f32 0.0, %v6446
        %v6511 = vmul.f32 %v6447, 1.442695
        %v6512 = vpow.pop %v6511
        %v6513 = vmul.f32 %v6448, 1.442695
        %v6514 = vpow.pop %v6513
        %v6515 = vmul.f32 %v6449, 1.442695
        %v6516 = vpow.pop %v6515
        %v6517 = vmul.f32 %v6450, 1.442695
        %v6518 = vpow.pop %v6517
        %v6519 = vmul.f32 %v6451, 1.442695
        %v6520 = vpow.pop %v6519
        %v6521 = vmul.f32 %v6452, 1.442695
        %v6522 = vpow.pop %v6521
        %v6523 = vmul.f32 %v6453, 1.442695
        %v6524 = vpow.pop %v6523
        %v6525 = vmul.f32 %v6454, 1.442695
        %v6526 = vpow.pop %v6525
        %v6527 = vmul.f32 %v6455, 1.442695
        %v6528 = vpow.pop %v6527
        %v6529 = vmul.f32 %v6456, 1.442695
        %v6530 = vpow.pop %v6529
        %v6531 = vmul.f32 %v6457, 1.442695
        %v6532 = vpow.pop %v6531
        %v6533 = vmul.f32 %v6458, 1.442695
        %v6534 = vpow.pop %v6533
        %v6535 = vmul.f32 %v6459, 1.442695
        %v6536 = vpow.pop %v6535
        %v6537 = vmul.f32 %v6460, 1.442695
        %v6538 = vpow.pop %v6537
        %v6539 = vmul.f32 %v6461, 1.442695
        %v6540 = vpow.pop %v6539
        %v6541 = vmul.f32 %v6462, 1.442695
        %v6542 = vpow.pop %v6541
        %v6543 = vmul.f32 %v6463, 1.442695
        %v6544 = vpow.pop %v6543
        %v6545 = vmul.f32 %v6464, 1.442695
        %v6546 = vpow.pop %v6545
        %v6547 = vmul.f32 %v6465, 1.442695
        %v6548 = vpow.pop %v6547
        %v6549 = vmul.f32 %v6466, 1.442695
        %v6550 = vpow.pop %v6549
        %v6551 = vmul.f32 %v6467, 1.442695
        %v6552 = vpow.pop %v6551
        %v6553 = vmul.f32 %v6468, 1.442695
        %v6554 = vpow.pop %v6553
        %v6555 = vmul.f32 %v6469, 1.442695
        %v6556 = vpow.pop %v6555
        %v6557 = vmul.f32 %v6470, 1.442695
        %v6558 = vpow.pop %v6557
        %v6559 = vmul.f32 %v6471, 1.442695
        %v6560 = vpow.pop %v6559
        %v6561 = vmul.f32 %v6472, 1.442695
        %v6562 = vpow.pop %v6561
        %v6563 = vmul.f32 %v6473, 1.442695
        %v6564 = vpow.pop %v6563
        %v6565 = vmul.f32 %v6474, 1.442695
        %v6566 = vpow.pop %v6565
        %v6567 = vmul.f32 %v6475, 1.442695
        %v6568 = vpow.pop %v6567
        %v6569 = vmul.f32 %v6476, 1.442695
        %v6570 = vpow.pop %v6569
        %v6571 = vmul.f32 %v6477, 1.442695
        %v6572 = vpow.pop %v6571
        %v6573 = vmul.f32 %v6478, 1.442695
        %v6574 = vpow.pop %v6573
        %v6575 = vmul.f32 %v6479, 1.442695
        %v6576 = vpow.pop %v6575
        %v6577 = vmul.f32 %v6480, 1.442695
        %v6578 = vpow.pop %v6577
        %v6579 = vmul.f32 %v6481, 1.442695
        %v6580 = vpow.pop %v6579
        %v6581 = vmul.f32 %v6482, 1.442695
        %v6582 = vpow.pop %v6581
        %v6583 = vmul.f32 %v6483, 1.442695
        %v6584 = vpow.pop %v6583
        %v6585 = vmul.f32 %v6484, 1.442695
        %v6586 = vpow.pop %v6585
        %v6587 = vmul.f32 %v6485, 1.442695
        %v6588 = vpow.pop %v6587
        %v6589 = vmul.f32 %v6486, 1.442695
        %v6590 = vpow.pop %v6589
        %v6591 = vmul.f32 %v6487, 1.442695
        %v6592 = vpow.pop %v6591
        %v6593 = vmul.f32 %v6488, 1.442695
        %v6594 = vpow.pop %v6593
        %v6595 = vmul.f32 %v6489, 1.442695
        %v6596 = vpow.pop %v6595
        %v6597 = vmul.f32 %v6490, 1.442695
        %v6598 = vpow.pop %v6597
        %v6599 = vmul.f32 %v6491, 1.442695
        %v6600 = vpow.pop %v6599
        %v6601 = vmul.f32 %v6492, 1.442695
        %v6602 = vpow.pop %v6601
        %v6603 = vmul.f32 %v6493, 1.442695
        %v6604 = vpow.pop %v6603
        %v6605 = vmul.f32 %v6494, 1.442695
        %v6606 = vpow.pop %v6605
        %v6607 = vmul.f32 %v6495, 1.442695
        %v6608 = vpow.pop %v6607
        %v6609 = vmul.f32 %v6496, 1.442695
        %v6610 = vpow.pop %v6609
        %v6611 = vmul.f32 %v6497, 1.442695
        %v6612 = vpow.pop %v6611
        %v6613 = vmul.f32 %v6498, 1.442695
        %v6614 = vpow.pop %v6613
        %v6615 = vmul.f32 %v6499, 1.442695
        %v6616 = vpow.pop %v6615
        %v6617 = vmul.f32 %v6500, 1.442695
        %v6618 = vpow.pop %v6617
        %v6619 = vmul.f32 %v6501, 1.442695
        %v6620 = vpow.pop %v6619
        %v6621 = vmul.f32 %v6502, 1.442695
        %v6622 = vpow.pop %v6621
        %v6623 = vmul.f32 %v6503, 1.442695
        %v6624 = vpow.pop %v6623
        %v6625 = vmul.f32 %v6504, 1.442695
        %v6626 = vpow.pop %v6625
        %v6627 = vmul.f32 %v6505, 1.442695
        %v6628 = vpow.pop %v6627
        %v6629 = vmul.f32 %v6506, 1.442695
        %v6630 = vpow.pop %v6629
        %v6631 = vmul.f32 %v6507, 1.442695
        %v6632 = vpow.pop %v6631
        %v6633 = vmul.f32 %v6508, 1.442695
        %v6634 = vpow.pop %v6633
        %v6635 = vmul.f32 %v6509, 1.442695
        %v6636 = vpow.pop %v6635
        %v6637 = vmul.f32 %v6510, 1.442695
        %v6638 = vpow.pop %v6637
        %v6639 = vadd.f32 %v6512, 1.0
        %v6640 = vadd.f32 %v6514, 1.0
        %v6641 = vadd.f32 %v6516, 1.0
        %v6642 = vadd.f32 %v6518, 1.0
        %v6643 = vadd.f32 %v6520, 1.0
        %v6644 = vadd.f32 %v6522, 1.0
        %v6645 = vadd.f32 %v6524, 1.0
        %v6646 = vadd.f32 %v6526, 1.0
        %v6647 = vadd.f32 %v6528, 1.0
        %v6648 = vadd.f32 %v6530, 1.0
        %v6649 = vadd.f32 %v6532, 1.0
        %v6650 = vadd.f32 %v6534, 1.0
        %v6651 = vadd.f32 %v6536, 1.0
        %v6652 = vadd.f32 %v6538, 1.0
        %v6653 = vadd.f32 %v6540, 1.0
        %v6654 = vadd.f32 %v6542, 1.0
        %v6655 = vadd.f32 %v6544, 1.0
        %v6656 = vadd.f32 %v6546, 1.0
        %v6657 = vadd.f32 %v6548, 1.0
        %v6658 = vadd.f32 %v6550, 1.0
        %v6659 = vadd.f32 %v6552, 1.0
        %v6660 = vadd.f32 %v6554, 1.0
        %v6661 = vadd.f32 %v6556, 1.0
        %v6662 = vadd.f32 %v6558, 1.0
        %v6663 = vadd.f32 %v6560, 1.0
        %v6664 = vadd.f32 %v6562, 1.0
        %v6665 = vadd.f32 %v6564, 1.0
        %v6666 = vadd.f32 %v6566, 1.0
        %v6667 = vadd.f32 %v6568, 1.0
        %v6668 = vadd.f32 %v6570, 1.0
        %v6669 = vadd.f32 %v6572, 1.0
        %v6670 = vadd.f32 %v6574, 1.0
        %v6671 = vadd.f32 %v6576, 1.0
        %v6672 = vadd.f32 %v6578, 1.0
        %v6673 = vadd.f32 %v6580, 1.0
        %v6674 = vadd.f32 %v6582, 1.0
        %v6675 = vadd.f32 %v6584, 1.0
        %v6676 = vadd.f32 %v6586, 1.0
        %v6677 = vadd.f32 %v6588, 1.0
        %v6678 = vadd.f32 %v6590, 1.0
        %v6679 = vadd.f32 %v6592, 1.0
        %v6680 = vadd.f32 %v6594, 1.0
        %v6681 = vadd.f32 %v6596, 1.0
        %v6682 = vadd.f32 %v6598, 1.0
        %v6683 = vadd.f32 %v6600, 1.0
        %v6684 = vadd.f32 %v6602, 1.0
        %v6685 = vadd.f32 %v6604, 1.0
        %v6686 = vadd.f32 %v6606, 1.0
        %v6687 = vadd.f32 %v6608, 1.0
        %v6688 = vadd.f32 %v6610, 1.0
        %v6689 = vadd.f32 %v6612, 1.0
        %v6690 = vadd.f32 %v6614, 1.0
        %v6691 = vadd.f32 %v6616, 1.0
        %v6692 = vadd.f32 %v6618, 1.0
        %v6693 = vadd.f32 %v6620, 1.0
        %v6694 = vadd.f32 %v6622, 1.0
        %v6695 = vadd.f32 %v6624, 1.0
        %v6696 = vadd.f32 %v6626, 1.0
        %v6697 = vadd.f32 %v6628, 1.0
        %v6698 = vadd.f32 %v6630, 1.0
        %v6699 = vadd.f32 %v6632, 1.0
        %v6700 = vadd.f32 %v6634, 1.0
        %v6701 = vadd.f32 %v6636, 1.0
        %v6702 = vadd.f32 %v6638, 1.0
        %v6703 = vrcp.pop %v6639
        %v6704 = vrcp.pop %v6640
        %v6705 = vrcp.pop %v6641
        %v6706 = vrcp.pop %v6642
        %v6707 = vrcp.pop %v6643
        %v6708 = vrcp.pop %v6644
        %v6709 = vrcp.pop %v6645
        %v6710 = vrcp.pop %v6646
        %v6711 = vrcp.pop %v6647
        %v6712 = vrcp.pop %v6648
        %v6713 = vrcp.pop %v6649
        %v6714 = vrcp.pop %v6650
        %v6715 = vrcp.pop %v6651
        %v6716 = vrcp.pop %v6652
        %v6717 = vrcp.pop %v6653
        %v6718 = vrcp.pop %v6654
        %v6719 = vrcp.pop %v6655
        %v6720 = vrcp.pop %v6656
        %v6721 = vrcp.pop %v6657
        %v6722 = vrcp.pop %v6658
        %v6723 = vrcp.pop %v6659
        %v6724 = vrcp.pop %v6660
        %v6725 = vrcp.pop %v6661
        %v6726 = vrcp.pop %v6662
        %v6727 = vrcp.pop %v6663
        %v6728 = vrcp.pop %v6664
        %v6729 = vrcp.pop %v6665
        %v6730 = vrcp.pop %v6666
        %v6731 = vrcp.pop %v6667
        %v6732 = vrcp.pop %v6668
        %v6733 = vrcp.pop %v6669
        %v6734 = vrcp.pop %v6670
        %v6735 = vrcp.pop %v6671
        %v6736 = vrcp.pop %v6672
        %v6737 = vrcp.pop %v6673
        %v6738 = vrcp.pop %v6674
        %v6739 = vrcp.pop %v6675
        %v6740 = vrcp.pop %v6676
        %v6741 = vrcp.pop %v6677
        %v6742 = vrcp.pop %v6678
        %v6743 = vrcp.pop %v6679
        %v6744 = vrcp.pop %v6680
        %v6745 = vrcp.pop %v6681
        %v6746 = vrcp.pop %v6682
        %v6747 = vrcp.pop %v6683
        %v6748 = vrcp.pop %v6684
        %v6749 = vrcp.pop %v6685
        %v6750 = vrcp.pop %v6686
        %v6751 = vrcp.pop %v6687
        %v6752 = vrcp.pop %v6688
        %v6753 = vrcp.pop %v6689
        %v6754 = vrcp.pop %v6690
        %v6755 = vrcp.pop %v6691
        %v6756 = vrcp.pop %v6692
        %v6757 = vrcp.pop %v6693
        %v6758 = vrcp.pop %v6694
        %v6759 = vrcp.pop %v6695
        %v6760 = vrcp.pop %v6696
        %v6761 = vrcp.pop %v6697
        %v6762 = vrcp.pop %v6698
        %v6763 = vrcp.pop %v6699
        %v6764 = vrcp.pop %v6700
        %v6765 = vrcp.pop %v6701
        %v6766 = vrcp.pop %v6702
        %vm6767 = vcmp.ge.f32.partialorder %v6224, 0.0
        %vm6768 = vcmp.ge.f32.partialorder %v6226, 0.0
        %vm6769 = vcmp.ge.f32.partialorder %v6229, 0.0
        %vm6770 = vcmp.ge.f32.partialorder %v6231, 0.0
        %vm6771 = vcmp.ge.f32.partialorder %v6234, 0.0
        %vm6772 = vcmp.ge.f32.partialorder %v6236, 0.0
        %vm6773 = vcmp.ge.f32.partialorder %v6239, 0.0
        %vm6774 = vcmp.ge.f32.partialorder %v6241, 0.0
        %vm6775 = vcmp.ge.f32.partialorder %v6244, 0.0
        %vm6776 = vcmp.ge.f32.partialorder %v6246, 0.0
        %vm6777 = vcmp.ge.f32.partialorder %v6249, 0.0
        %vm6778 = vcmp.ge.f32.partialorder %v6251, 0.0
        %vm6779 = vcmp.ge.f32.partialorder %v6254, 0.0
        %vm6780 = vcmp.ge.f32.partialorder %v6256, 0.0
        %vm6781 = vcmp.ge.f32.partialorder %v6259, 0.0
        %vm6782 = vcmp.ge.f32.partialorder %v6261, 0.0
        %vm6783 = vcmp.ge.f32.partialorder %v6264, 0.0
        %vm6784 = vcmp.ge.f32.partialorder %v6266, 0.0
        %vm6785 = vcmp.ge.f32.partialorder %v6269, 0.0
        %vm6786 = vcmp.ge.f32.partialorder %v6271, 0.0
        %vm6787 = vcmp.ge.f32.partialorder %v6274, 0.0
        %vm6788 = vcmp.ge.f32.partialorder %v6276, 0.0
        %vm6789 = vcmp.ge.f32.partialorder %v6279, 0.0
        %vm6790 = vcmp.ge.f32.partialorder %v6281, 0.0
        %vm6791 = vcmp.ge.f32.partialorder %v6284, 0.0
        %vm6792 = vcmp.ge.f32.partialorder %v6286, 0.0
        %vm6793 = vcmp.ge.f32.partialorder %v6289, 0.0
        %vm6794 = vcmp.ge.f32.partialorder %v6291, 0.0
        %vm6795 = vcmp.ge.f32.partialorder %v6294, 0.0
        %vm6796 = vcmp.ge.f32.partialorder %v6296, 0.0
        %vm6797 = vcmp.ge.f32.partialorder %v6299, 0.0
        %vm6798 = vcmp.ge.f32.partialorder %v6301, 0.0
        %vm6799 = vcmp.ge.f32.partialorder %v6304, 0.0
        %vm6800 = vcmp.ge.f32.partialorder %v6306, 0.0
        %vm6801 = vcmp.ge.f32.partialorder %v6309, 0.0
        %vm6802 = vcmp.ge.f32.partialorder %v6311, 0.0
        %vm6803 = vcmp.ge.f32.partialorder %v6314, 0.0
        %vm6804 = vcmp.ge.f32.partialorder %v6316, 0.0
        %vm6805 = vcmp.ge.f32.partialorder %v6319, 0.0
        %vm6806 = vcmp.ge.f32.partialorder %v6321, 0.0
        %vm6807 = vcmp.ge.f32.partialorder %v6324, 0.0
        %vm6808 = vcmp.ge.f32.partialorder %v6326, 0.0
        %vm6809 = vcmp.ge.f32.partialorder %v6329, 0.0
        %vm6810 = vcmp.ge.f32.partialorder %v6331, 0.0
        %vm6811 = vcmp.ge.f32.partialorder %v6334, 0.0
        %vm6812 = vcmp.ge.f32.partialorder %v6336, 0.0
        %vm6813 = vcmp.ge.f32.partialorder %v6339, 0.0
        %vm6814 = vcmp.ge.f32.partialorder %v6341, 0.0
        %vm6815 = vcmp.ge.f32.partialorder %v6344, 0.0
        %vm6816 = vcmp.ge.f32.partialorder %v6346, 0.0
        %vm6817 = vcmp.ge.f32.partialorder %v6349, 0.0
        %vm6818 = vcmp.ge.f32.partialorder %v6351, 0.0
        %vm6819 = vcmp.ge.f32.partialorder %v6354, 0.0
        %vm6820 = vcmp.ge.f32.partialorder %v6356, 0.0
        %vm6821 = vcmp.ge.f32.partialorder %v6359, 0.0
        %vm6822 = vcmp.ge.f32.partialorder %v6361, 0.0
        %vm6823 = vcmp.ge.f32.partialorder %v6364, 0.0
        %vm6824 = vcmp.ge.f32.partialorder %v6366, 0.0
        %vm6825 = vcmp.ge.f32.partialorder %v6369, 0.0
        %vm6826 = vcmp.ge.f32.partialorder %v6371, 0.0
        %vm6827 = vcmp.ge.f32.partialorder %v6374, 0.0
        %vm6828 = vcmp.ge.f32.partialorder %v6376, 0.0
        %vm6829 = vcmp.ge.f32.partialorder %v6379, 0.0
        %vm6830 = vcmp.ge.f32.partialorder %v6381, 0.0
        %v6831 = vmul.f32 %v6512, %v6703
        %v6832 = vmul.f32 %v6514, %v6704
        %v6833 = vmul.f32 %v6516, %v6705
        %v6834 = vmul.f32 %v6518, %v6706
        %v6835 = vmul.f32 %v6520, %v6707
        %v6836 = vmul.f32 %v6522, %v6708
        %v6837 = vmul.f32 %v6524, %v6709
        %v6838 = vmul.f32 %v6526, %v6710
        %v6839 = vmul.f32 %v6528, %v6711
        %v6840 = vmul.f32 %v6530, %v6712
        %v6841 = vmul.f32 %v6532, %v6713
        %v6842 = vmul.f32 %v6534, %v6714
        %v6843 = vmul.f32 %v6536, %v6715
        %v6844 = vmul.f32 %v6538, %v6716
        %v6845 = vmul.f32 %v6540, %v6717
        %v6846 = vmul.f32 %v6542, %v6718
        %v6847 = vmul.f32 %v6544, %v6719
        %v6848 = vmul.f32 %v6546, %v6720
        %v6849 = vmul.f32 %v6548, %v6721
        %v6850 = vmul.f32 %v6550, %v6722
        %v6851 = vmul.f32 %v6552, %v6723
        %v6852 = vmul.f32 %v6554, %v6724
        %v6853 = vmul.f32 %v6556, %v6725
        %v6854 = vmul.f32 %v6558, %v6726
        %v6855 = vmul.f32 %v6560, %v6727
        %v6856 = vmul.f32 %v6562, %v6728
        %v6857 = vmul.f32 %v6564, %v6729
        %v6858 = vmul.f32 %v6566, %v6730
        %v6859 = vmul.f32 %v6568, %v6731
        %v6860 = vmul.f32 %v6570, %v6732
        %v6861 = vmul.f32 %v6572, %v6733
        %v6862 = vmul.f32 %v6574, %v6734
        %v6863 = vmul.f32 %v6576, %v6735
        %v6864 = vmul.f32 %v6578, %v6736
        %v6865 = vmul.f32 %v6580, %v6737
        %v6866 = vmul.f32 %v6582, %v6738
        %v6867 = vmul.f32 %v6584, %v6739
        %v6868 = vmul.f32 %v6586, %v6740
        %v6869 = vmul.f32 %v6588, %v6741
        %v6870 = vmul.f32 %v6590, %v6742
        %v6871 = vmul.f32 %v6592, %v6743
        %v6872 = vmul.f32 %v6594, %v6744
        %v6873 = vmul.f32 %v6596, %v6745
        %v6874 = vmul.f32 %v6598, %v6746
        %v6875 = vmul.f32 %v6600, %v6747
        %v6876 = vmul.f32 %v6602, %v6748
        %v6877 = vmul.f32 %v6604, %v6749
        %v6878 = vmul.f32 %v6606, %v6750
        %v6879 = vmul.f32 %v6608, %v6751
        %v6880 = vmul.f32 %v6610, %v6752
        %v6881 = vmul.f32 %v6612, %v6753
        %v6882 = vmul.f32 %v6614, %v6754
        %v6883 = vmul.f32 %v6616, %v6755
        %v6884 = vmul.f32 %v6618, %v6756
        %v6885 = vmul.f32 %v6620, %v6757
        %v6886 = vmul.f32 %v6622, %v6758
        %v6887 = vmul.f32 %v6624, %v6759
        %v6888 = vmul.f32 %v6626, %v6760
        %v6889 = vmul.f32 %v6628, %v6761
        %v6890 = vmul.f32 %v6630, %v6762
        %v6891 = vmul.f32 %v6632, %v6763
        %v6892 = vmul.f32 %v6634, %v6764
        %v6893 = vmul.f32 %v6636, %v6765
        %v6894 = vmul.f32 %v6638, %v6766
        %v6895 = vsel %vm6767, %v6703, %v6831
        %v6896 = vsel %vm6768, %v6704, %v6832
        %v6897 = vsel %vm6769, %v6705, %v6833
        %v6898 = vsel %vm6770, %v6706, %v6834
        %v6899 = vsel %vm6771, %v6707, %v6835
        %v6900 = vsel %vm6772, %v6708, %v6836
        %v6901 = vsel %vm6773, %v6709, %v6837
        %v6902 = vsel %vm6774, %v6710, %v6838
        %v6903 = vsel %vm6775, %v6711, %v6839
        %v6904 = vsel %vm6776, %v6712, %v6840
        %v6905 = vsel %vm6777, %v6713, %v6841
        %v6906 = vsel %vm6778, %v6714, %v6842
        %v6907 = vsel %vm6779, %v6715, %v6843
        %v6908 = vsel %vm6780, %v6716, %v6844
        %v6909 = vsel %vm6781, %v6717, %v6845
        %v6910 = vsel %vm6782, %v6718, %v6846
        %v6911 = vsel %vm6783, %v6719, %v6847
        %v6912 = vsel %vm6784, %v6720, %v6848
        %v6913 = vsel %vm6785, %v6721, %v6849
        %v6914 = vsel %vm6786, %v6722, %v6850
        %v6915 = vsel %vm6787, %v6723, %v6851
        %v6916 = vsel %vm6788, %v6724, %v6852
        %v6917 = vsel %vm6789, %v6725, %v6853
        %v6918 = vsel %vm6790, %v6726, %v6854
        %v6919 = vsel %vm6791, %v6727, %v6855
        %v6920 = vsel %vm6792, %v6728, %v6856
        %v6921 = vsel %vm6793, %v6729, %v6857
        %v6922 = vsel %vm6794, %v6730, %v6858
        %v6923 = vsel %vm6795, %v6731, %v6859
        %v6924 = vsel %vm6796, %v6732, %v6860
        %v6925 = vsel %vm6797, %v6733, %v6861
        %v6926 = vsel %vm6798, %v6734, %v6862
        %v6927 = vsel %vm6799, %v6735, %v6863
        %v6928 = vsel %vm6800, %v6736, %v6864
        %v6929 = vsel %vm6801, %v6737, %v6865
        %v6930 = vsel %vm6802, %v6738, %v6866
        %v6931 = vsel %vm6803, %v6739, %v6867
        %v6932 = vsel %vm6804, %v6740, %v6868
        %v6933 = vsel %vm6805, %v6741, %v6869
        %v6934 = vsel %vm6806, %v6742, %v6870
        %v6935 = vsel %vm6807, %v6743, %v6871
        %v6936 = vsel %vm6808, %v6744, %v6872
        %v6937 = vsel %vm6809, %v6745, %v6873
        %v6938 = vsel %vm6810, %v6746, %v6874
        %v6939 = vsel %vm6811, %v6747, %v6875
        %v6940 = vsel %vm6812, %v6748, %v6876
        %v6941 = vsel %vm6813, %v6749, %v6877
        %v6942 = vsel %vm6814, %v6750, %v6878
        %v6943 = vsel %vm6815, %v6751, %v6879
        %v6944 = vsel %vm6816, %v6752, %v6880
        %v6945 = vsel %vm6817, %v6753, %v6881
        %v6946 = vsel %vm6818, %v6754, %v6882
        %v6947 = vsel %vm6819, %v6755, %v6883
        %v6948 = vsel %vm6820, %v6756, %v6884
        %v6949 = vsel %vm6821, %v6757, %v6885
        %v6950 = vsel %vm6822, %v6758, %v6886
        %v6951 = vsel %vm6823, %v6759, %v6887
        %v6952 = vsel %vm6824, %v6760, %v6888
        %v6953 = vsel %vm6825, %v6761, %v6889
        %v6954 = vsel %vm6826, %v6762, %v6890
        %v6955 = vsel %vm6827, %v6763, %v6891
        %v6956 = vsel %vm6828, %v6764, %v6892
        %v6957 = vsel %vm6829, %v6765, %v6893
        %v6958 = vsel %vm6830, %v6766, %v6894
        %v6959 = vmul.f32 %v6224, %v6895
        %v6960 = vmul.f32 %v6226, %v6896
        %v6961 = vmul.f32 %v6229, %v6897
        %v6962 = vmul.f32 %v6231, %v6898
        %v6963 = vmul.f32 %v6234, %v6899
        %v6964 = vmul.f32 %v6236, %v6900
        %v6965 = vmul.f32 %v6239, %v6901
        %v6966 = vmul.f32 %v6241, %v6902
        %v6967 = vmul.f32 %v6244, %v6903
        %v6968 = vmul.f32 %v6246, %v6904
        %v6969 = vmul.f32 %v6249, %v6905
        %v6970 = vmul.f32 %v6251, %v6906
        %v6971 = vmul.f32 %v6254, %v6907
        %v6972 = vmul.f32 %v6256, %v6908
        %v6973 = vmul.f32 %v6259, %v6909
        %v6974 = vmul.f32 %v6261, %v6910
        %v6975 = vmul.f32 %v6264, %v6911
        %v6976 = vmul.f32 %v6266, %v6912
        %v6977 = vmul.f32 %v6269, %v6913
        %v6978 = vmul.f32 %v6271, %v6914
        %v6979 = vmul.f32 %v6274, %v6915
        %v6980 = vmul.f32 %v6276, %v6916
        %v6981 = vmul.f32 %v6279, %v6917
        %v6982 = vmul.f32 %v6281, %v6918
        %v6983 = vmul.f32 %v6284, %v6919
        %v6984 = vmul.f32 %v6286, %v6920
        %v6985 = vmul.f32 %v6289, %v6921
        %v6986 = vmul.f32 %v6291, %v6922
        %v6987 = vmul.f32 %v6294, %v6923
        %v6988 = vmul.f32 %v6296, %v6924
        %v6989 = vmul.f32 %v6299, %v6925
        %v6990 = vmul.f32 %v6301, %v6926
        %v6991 = vmul.f32 %v6304, %v6927
        %v6992 = vmul.f32 %v6306, %v6928
        %v6993 = vmul.f32 %v6309, %v6929
        %v6994 = vmul.f32 %v6311, %v6930
        %v6995 = vmul.f32 %v6314, %v6931
        %v6996 = vmul.f32 %v6316, %v6932
        %v6997 = vmul.f32 %v6319, %v6933
        %v6998 = vmul.f32 %v6321, %v6934
        %v6999 = vmul.f32 %v6324, %v6935
        %v7000 = vmul.f32 %v6326, %v6936
        %v7001 = vmul.f32 %v6329, %v6937
        %v7002 = vmul.f32 %v6331, %v6938
        %v7003 = vmul.f32 %v6334, %v6939
        %v7004 = vmul.f32 %v6336, %v6940
        %v7005 = vmul.f32 %v6339, %v6941
        %v7006 = vmul.f32 %v6341, %v6942
        %v7007 = vmul.f32 %v6344, %v6943
        %v7008 = vmul.f32 %v6346, %v6944
        %v7009 = vmul.f32 %v6349, %v6945
        %v7010 = vmul.f32 %v6351, %v6946
        %v7011 = vmul.f32 %v6354, %v6947
        %v7012 = vmul.f32 %v6356, %v6948
        %v7013 = vmul.f32 %v6359, %v6949
        %v7014 = vmul.f32 %v6361, %v6950
        %v7015 = vmul.f32 %v6364, %v6951
        %v7016 = vmul.f32 %v6366, %v6952
        %v7017 = vmul.f32 %v6369, %v6953
        %v7018 = vmul.f32 %v6371, %v6954
        %v7019 = vmul.f32 %v6374, %v6955
        %v7020 = vmul.f32 %v6376, %v6956
        %v7021 = vmul.f32 %v6379, %v6957
        %v7022 = vmul.f32 %v6381, %v6958
        %v7023 = vpack.c.bf16 %v6960, %v6959
        %v7024 = vpack.c.bf16 %v6962, %v6961
        %v7025 = vpack.c.bf16 %v6964, %v6963
        %v7026 = vpack.c.bf16 %v6966, %v6965
        %v7027 = vpack.c.bf16 %v6968, %v6967
        %v7028 = vpack.c.bf16 %v6970, %v6969
        %v7029 = vpack.c.bf16 %v6972, %v6971
        %v7030 = vpack.c.bf16 %v6974, %v6973
        %v7031 = vpack.c.bf16 %v6976, %v6975
        %v7032 = vpack.c.bf16 %v6978, %v6977
        %v7033 = vpack.c.bf16 %v6980, %v6979
        %v7034 = vpack.c.bf16 %v6982, %v6981
        %v7035 = vpack.c.bf16 %v6984, %v6983
        %v7036 = vpack.c.bf16 %v6986, %v6985
        %v7037 = vpack.c.bf16 %v6988, %v6987
        %v7038 = vpack.c.bf16 %v6990, %v6989
        %v7039 = vpack.c.bf16 %v6992, %v6991
        %v7040 = vpack.c.bf16 %v6994, %v6993
        %v7041 = vpack.c.bf16 %v6996, %v6995
        %v7042 = vpack.c.bf16 %v6998, %v6997
        %v7043 = vpack.c.bf16 %v7000, %v6999
        %v7044 = vpack.c.bf16 %v7002, %v7001
        %v7045 = vpack.c.bf16 %v7004, %v7003
        %v7046 = vpack.c.bf16 %v7006, %v7005
        %v7047 = vpack.c.bf16 %v7008, %v7007
        %v7048 = vpack.c.bf16 %v7010, %v7009
        %v7049 = vpack.c.bf16 %v7012, %v7011
        %v7050 = vpack.c.bf16 %v7014, %v7013
        %v7051 = vpack.c.bf16 %v7016, %v7015
        %v7052 = vpack.c.bf16 %v7018, %v7017
        %v7053 = vpack.c.bf16 %v7020, %v7019
        %v7054 = vpack.c.bf16 %v7022, %v7021
        %v7055 = vld [vmem:[%s15] sm:$0xf]
        %v7056 = vld [vmem:[%s15 + $0x4] sm:$0xf]
        %v7057 = vld [vmem:[%s15 + $0x8] sm:$0xf]
        %v7058 = vld [vmem:[%s15 + $0xc] sm:$0xf]
        %v7059 = vld [vmem:[%s15 + $0x10] sm:$0xf]
        %v7060 = vld [vmem:[%s15 + $0x14] sm:$0xf]
        %v7061 = vld [vmem:[%s15 + $0x18] sm:$0xf]
        %v7062 = vld [vmem:[%s15 + $0x1c] sm:$0xf]
        %v7063 = vld [vmem:[%s15 + $0x20] sm:$0xf]
        %v7064 = vld [vmem:[%s15 + $0x24] sm:$0xf]
        %v7065 = vld [vmem:[%s15 + $0x28] sm:$0xf]
        %v7066 = vld [vmem:[%s15 + $0x2c] sm:$0xf]
        %v7067 = vld [vmem:[%s15 + $0x30] sm:$0xf]
        %v7068 = vld [vmem:[%s15 + $0x34] sm:$0xf]
        %v7069 = vld [vmem:[%s15 + $0x38] sm:$0xf]
        %v7070 = vld [vmem:[%s15 + $0x3c] sm:$0xf]
        %v7071 = vld [vmem:[%s16] sm:$0x1]
        %v7073 = vperm.slane %v7071, 0
        %v7091 = vunpack.c.l.b16 %v7055
        %v7092 = vunpack.c.l.b16 %v7056
        %v7093 = vunpack.c.l.b16 %v7057
        %v7094 = vunpack.c.l.b16 %v7058
        %v7095 = vunpack.c.l.b16 %v7059
        %v7096 = vunpack.c.l.b16 %v7060
        %v7097 = vunpack.c.l.b16 %v7061
        %v7098 = vunpack.c.l.b16 %v7062
        %v7099 = vunpack.c.l.b16 %v7063
        %v7100 = vunpack.c.l.b16 %v7064
        %v7101 = vunpack.c.l.b16 %v7065
        %v7102 = vunpack.c.l.b16 %v7066
        %v7103 = vunpack.c.l.b16 %v7067
        %v7104 = vunpack.c.l.b16 %v7068
        %v7105 = vunpack.c.l.b16 %v7069
        %v7106 = vunpack.c.l.b16 %v7070
        %v7107 = vpack.c.b16 %v7092, %v7091
        %v7108 = vpack.c.b16 %v7094, %v7093
        %v7109 = vpack.c.b16 %v7096, %v7095
        %v7110 = vpack.c.b16 %v7098, %v7097
        %v7111 = vpack.c.b16 %v7100, %v7099
        %v7112 = vpack.c.b16 %v7102, %v7101
        %v7113 = vpack.c.b16 %v7104, %v7103
        %v7114 = vpack.c.b16 %v7106, %v7105
        %7123 = vmatpush.bf16.msra.mxu0 %v7114
        %7124 = vmatpush.bf16.msra.mxu0 %v7113
        %7125 = vmatpush.bf16.msra.mxu0 %v7112
        %7126 = vmatpush.bf16.msra.mxu0 %v7111
        %7127 = vmatpush.bf16.msra.mxu0 %v7110
        %7128 = vmatpush.bf16.msra.mxu0 %v7109
        %7129 = vmatpush.bf16.msra.mxu0 %v7108
        %7130 = vmatpush.bf16.msra.mxu0 %v7107
        %7131 = vmatmul.bf16.gmra.mxu0 %v7023
        %v7132 = vpop.f32.mrf.mxu0
        %v7133 = vadd.f32 %v7073, %v7132
        %v7134 = vpop.f32.mrf.mxu0
        %v7135 = vadd.f32 %v7073, %v7134
        %7136 = vmatmul.bf16.gmra.mxu0 %v7024
        %v7137 = vpop.f32.mrf.mxu0
        %v7138 = vadd.f32 %v7073, %v7137
        %v7139 = vpop.f32.mrf.mxu0
        %v7140 = vadd.f32 %v7073, %v7139
        %7141 = vmatmul.bf16.gmra.mxu0 %v7025
        %v7142 = vpop.f32.mrf.mxu0
        %v7143 = vadd.f32 %v7073, %v7142
        %v7144 = vpop.f32.mrf.mxu0
        %v7145 = vadd.f32 %v7073, %v7144
        %7146 = vmatmul.bf16.gmra.mxu0 %v7026
        %v7147 = vpop.f32.mrf.mxu0
        %v7148 = vadd.f32 %v7073, %v7147
        %v7149 = vpop.f32.mrf.mxu0
        %v7150 = vadd.f32 %v7073, %v7149
        %7151 = vmatmul.bf16.gmra.mxu0 %v7027
        %v7152 = vpop.f32.mrf.mxu0
        %v7153 = vadd.f32 %v7073, %v7152
        %v7154 = vpop.f32.mrf.mxu0
        %v7155 = vadd.f32 %v7073, %v7154
        %7156 = vmatmul.bf16.gmra.mxu0 %v7028
        %v7157 = vpop.f32.mrf.mxu0
        %v7158 = vadd.f32 %v7073, %v7157
        %v7159 = vpop.f32.mrf.mxu0
        %v7160 = vadd.f32 %v7073, %v7159
        %7161 = vmatmul.bf16.gmra.mxu0 %v7029
        %v7162 = vpop.f32.mrf.mxu0
        %v7163 = vadd.f32 %v7073, %v7162
        %v7164 = vpop.f32.mrf.mxu0
        %v7165 = vadd.f32 %v7073, %v7164
        %7166 = vmatmul.bf16.gmra.mxu0 %v7030
        %v7167 = vpop.f32.mrf.mxu0
        %v7168 = vadd.f32 %v7073, %v7167
        %v7169 = vpop.f32.mrf.mxu0
        %v7170 = vadd.f32 %v7073, %v7169
        %7171 = vmatmul.bf16.gmra.mxu0 %v7031
        %v7172 = vpop.f32.mrf.mxu0
        %v7173 = vadd.f32 %v7073, %v7172
        %v7174 = vpop.f32.mrf.mxu0
        %v7175 = vadd.f32 %v7073, %v7174
        %7176 = vmatmul.bf16.gmra.mxu0 %v7032
        %v7177 = vpop.f32.mrf.mxu0
        %v7178 = vadd.f32 %v7073, %v7177
        %v7179 = vpop.f32.mrf.mxu0
        %v7180 = vadd.f32 %v7073, %v7179
        %7181 = vmatmul.bf16.gmra.mxu0 %v7033
        %v7182 = vpop.f32.mrf.mxu0
        %v7183 = vadd.f32 %v7073, %v7182
        %v7184 = vpop.f32.mrf.mxu0
        %v7185 = vadd.f32 %v7073, %v7184
        %7186 = vmatmul.bf16.gmra.mxu0 %v7034
        %v7187 = vpop.f32.mrf.mxu0
        %v7188 = vadd.f32 %v7073, %v7187
        %v7189 = vpop.f32.mrf.mxu0
        %v7190 = vadd.f32 %v7073, %v7189
        %7191 = vmatmul.bf16.gmra.mxu0 %v7035
        %v7192 = vpop.f32.mrf.mxu0
        %v7193 = vadd.f32 %v7073, %v7192
        %v7194 = vpop.f32.mrf.mxu0
        %v7195 = vadd.f32 %v7073, %v7194
        %7196 = vmatmul.bf16.gmra.mxu0 %v7036
        %v7197 = vpop.f32.mrf.mxu0
        %v7198 = vadd.f32 %v7073, %v7197
        %v7199 = vpop.f32.mrf.mxu0
        %v7200 = vadd.f32 %v7073, %v7199
        %7201 = vmatmul.bf16.gmra.mxu0 %v7037
        %v7202 = vpop.f32.mrf.mxu0
        %v7203 = vadd.f32 %v7073, %v7202
        %v7204 = vpop.f32.mrf.mxu0
        %v7205 = vadd.f32 %v7073, %v7204
        %7206 = vmatmul.bf16.gmra.mxu0 %v7038
        %v7207 = vpop.f32.mrf.mxu0
        %v7208 = vadd.f32 %v7073, %v7207
        %v7209 = vpop.f32.mrf.mxu0
        %v7210 = vadd.f32 %v7073, %v7209
        %7211 = vmatmul.bf16.gmra.mxu0 %v7039
        %v7212 = vpop.f32.mrf.mxu0
        %v7213 = vadd.f32 %v7073, %v7212
        %v7214 = vpop.f32.mrf.mxu0
        %v7215 = vadd.f32 %v7073, %v7214
        %7216 = vmatmul.bf16.gmra.mxu0 %v7040
        %v7217 = vpop.f32.mrf.mxu0
        %v7218 = vadd.f32 %v7073, %v7217
        %v7219 = vpop.f32.mrf.mxu0
        %v7220 = vadd.f32 %v7073, %v7219
        %7221 = vmatmul.bf16.gmra.mxu0 %v7041
        %v7222 = vpop.f32.mrf.mxu0
        %v7223 = vadd.f32 %v7073, %v7222
        %v7224 = vpop.f32.mrf.mxu0
        %v7225 = vadd.f32 %v7073, %v7224
        %7226 = vmatmul.bf16.gmra.mxu0 %v7042
        %v7227 = vpop.f32.mrf.mxu0
        %v7228 = vadd.f32 %v7073, %v7227
        %v7229 = vpop.f32.mrf.mxu0
        %v7230 = vadd.f32 %v7073, %v7229
        %7231 = vmatmul.bf16.gmra.mxu0 %v7043
        %v7232 = vpop.f32.mrf.mxu0
        %v7233 = vadd.f32 %v7073, %v7232
        %v7234 = vpop.f32.mrf.mxu0
        %v7235 = vadd.f32 %v7073, %v7234
        %7236 = vmatmul.bf16.gmra.mxu0 %v7044
        %v7237 = vpop.f32.mrf.mxu0
        %v7238 = vadd.f32 %v7073, %v7237
        %v7239 = vpop.f32.mrf.mxu0
        %v7240 = vadd.f32 %v7073, %v7239
        %7241 = vmatmul.bf16.gmra.mxu0 %v7045
        %v7242 = vpop.f32.mrf.mxu0
        %v7243 = vadd.f32 %v7073, %v7242
        %v7244 = vpop.f32.mrf.mxu0
        %v7245 = vadd.f32 %v7073, %v7244
        %7246 = vmatmul.bf16.gmra.mxu0 %v7046
        %v7247 = vpop.f32.mrf.mxu0
        %v7248 = vadd.f32 %v7073, %v7247
        %v7249 = vpop.f32.mrf.mxu0
        %v7250 = vadd.f32 %v7073, %v7249
        %7251 = vmatmul.bf16.gmra.mxu0 %v7047
        %v7252 = vpop.f32.mrf.mxu0
        %v7253 = vadd.f32 %v7073, %v7252
        %v7254 = vpop.f32.mrf.mxu0
        %v7255 = vadd.f32 %v7073, %v7254
        %7256 = vmatmul.bf16.gmra.mxu0 %v7048
        %v7257 = vpop.f32.mrf.mxu0
        %v7258 = vadd.f32 %v7073, %v7257
        %v7259 = vpop.f32.mrf.mxu0
        %v7260 = vadd.f32 %v7073, %v7259
        %7261 = vmatmul.bf16.gmra.mxu0 %v7049
        %v7262 = vpop.f32.mrf.mxu0
        %v7263 = vadd.f32 %v7073, %v7262
        %v7264 = vpop.f32.mrf.mxu0
        %v7265 = vadd.f32 %v7073, %v7264
        %7266 = vmatmul.bf16.gmra.mxu0 %v7050
        %v7267 = vpop.f32.mrf.mxu0
        %v7268 = vadd.f32 %v7073, %v7267
        %v7269 = vpop.f32.mrf.mxu0
        %v7270 = vadd.f32 %v7073, %v7269
        %7271 = vmatmul.bf16.gmra.mxu0 %v7051
        %v7272 = vpop.f32.mrf.mxu0
        %v7273 = vadd.f32 %v7073, %v7272
        %v7274 = vpop.f32.mrf.mxu0
        %v7275 = vadd.f32 %v7073, %v7274
        %7276 = vmatmul.bf16.gmra.mxu0 %v7052
        %v7277 = vpop.f32.mrf.mxu0
        %v7278 = vadd.f32 %v7073, %v7277
        %v7279 = vpop.f32.mrf.mxu0
        %v7280 = vadd.f32 %v7073, %v7279
        %7281 = vmatmul.bf16.gmra.mxu0 %v7053
        %v7282 = vpop.f32.mrf.mxu0
        %v7283 = vadd.f32 %v7073, %v7282
        %v7284 = vpop.f32.mrf.mxu0
        %v7285 = vadd.f32 %v7073, %v7284
        %7286 = vmatmul.bf16.gmra.mxu0 %v7054
        %v7287 = vpop.f32.mrf.mxu0
        %v7288 = vadd.f32 %v7073, %v7287
        %v7289 = vpop.f32.mrf.mxu0
        %v7290 = vadd.f32 %v7073, %v7289
        %7291 = vdwg.mxu0
        %v7292 = vand.u32 2147483647, %v7133
        %v7293 = vand.u32 2147483647, %v7135
        %v7294 = vand.u32 2147483647, %v7138
        %v7295 = vand.u32 2147483647, %v7140
        %v7296 = vand.u32 2147483647, %v7143
        %v7297 = vand.u32 2147483647, %v7145
        %v7298 = vand.u32 2147483647, %v7148
        %v7299 = vand.u32 2147483647, %v7150
        %v7300 = vand.u32 2147483647, %v7153
        %v7301 = vand.u32 2147483647, %v7155
        %v7302 = vand.u32 2147483647, %v7158
        %v7303 = vand.u32 2147483647, %v7160
        %v7304 = vand.u32 2147483647, %v7163
        %v7305 = vand.u32 2147483647, %v7165
        %v7306 = vand.u32 2147483647, %v7168
        %v7307 = vand.u32 2147483647, %v7170
        %v7308 = vand.u32 2147483647, %v7173
        %v7309 = vand.u32 2147483647, %v7175
        %v7310 = vand.u32 2147483647, %v7178
        %v7311 = vand.u32 2147483647, %v7180
        %v7312 = vand.u32 2147483647, %v7183
        %v7313 = vand.u32 2147483647, %v7185
        %v7314 = vand.u32 2147483647, %v7188
        %v7315 = vand.u32 2147483647, %v7190
        %v7316 = vand.u32 2147483647, %v7193
        %v7317 = vand.u32 2147483647, %v7195
        %v7318 = vand.u32 2147483647, %v7198
        %v7319 = vand.u32 2147483647, %v7200
        %v7320 = vand.u32 2147483647, %v7203
        %v7321 = vand.u32 2147483647, %v7205
        %v7322 = vand.u32 2147483647, %v7208
        %v7323 = vand.u32 2147483647, %v7210
        %v7324 = vand.u32 2147483647, %v7213
        %v7325 = vand.u32 2147483647, %v7215
        %v7326 = vand.u32 2147483647, %v7218
        %v7327 = vand.u32 2147483647, %v7220
        %v7328 = vand.u32 2147483647, %v7223
        %v7329 = vand.u32 2147483647, %v7225
        %v7330 = vand.u32 2147483647, %v7228
        %v7331 = vand.u32 2147483647, %v7230
        %v7332 = vand.u32 2147483647, %v7233
        %v7333 = vand.u32 2147483647, %v7235
        %v7334 = vand.u32 2147483647, %v7238
        %v7335 = vand.u32 2147483647, %v7240
        %v7336 = vand.u32 2147483647, %v7243
        %v7337 = vand.u32 2147483647, %v7245
        %v7338 = vand.u32 2147483647, %v7248
        %v7339 = vand.u32 2147483647, %v7250
        %v7340 = vand.u32 2147483647, %v7253
        %v7341 = vand.u32 2147483647, %v7255
        %v7342 = vand.u32 2147483647, %v7258
        %v7343 = vand.u32 2147483647, %v7260
        %v7344 = vand.u32 2147483647, %v7263
        %v7345 = vand.u32 2147483647, %v7265
        %v7346 = vand.u32 2147483647, %v7268
        %v7347 = vand.u32 2147483647, %v7270
        %v7348 = vand.u32 2147483647, %v7273
        %v7349 = vand.u32 2147483647, %v7275
        %v7350 = vand.u32 2147483647, %v7278
        %v7351 = vand.u32 2147483647, %v7280
        %v7352 = vand.u32 2147483647, %v7283
        %v7353 = vand.u32 2147483647, %v7285
        %v7354 = vand.u32 2147483647, %v7288
        %v7355 = vand.u32 2147483647, %v7290
        %v7356 = vsub.f32 0.0, %v7292
        %v7357 = vsub.f32 0.0, %v7293
        %v7358 = vsub.f32 0.0, %v7294
        %v7359 = vsub.f32 0.0, %v7295
        %v7360 = vsub.f32 0.0, %v7296
        %v7361 = vsub.f32 0.0, %v7297
        %v7362 = vsub.f32 0.0, %v7298
        %v7363 = vsub.f32 0.0, %v7299
        %v7364 = vsub.f32 0.0, %v7300
        %v7365 = vsub.f32 0.0, %v7301
        %v7366 = vsub.f32 0.0, %v7302
        %v7367 = vsub.f32 0.0, %v7303
        %v7368 = vsub.f32 0.0, %v7304
        %v7369 = vsub.f32 0.0, %v7305
        %v7370 = vsub.f32 0.0, %v7306
        %v7371 = vsub.f32 0.0, %v7307
        %v7372 = vsub.f32 0.0, %v7308
        %v7373 = vsub.f32 0.0, %v7309
        %v7374 = vsub.f32 0.0, %v7310
        %v7375 = vsub.f32 0.0, %v7311
        %v7376 = vsub.f32 0.0, %v7312
        %v7377 = vsub.f32 0.0, %v7313
        %v7378 = vsub.f32 0.0, %v7314
        %v7379 = vsub.f32 0.0, %v7315
        %v7380 = vsub.f32 0.0, %v7316
        %v7381 = vsub.f32 0.0, %v7317
        %v7382 = vsub.f32 0.0, %v7318
        %v7383 = vsub.f32 0.0, %v7319
        %v7384 = vsub.f32 0.0, %v7320
        %v7385 = vsub.f32 0.0, %v7321
        %v7386 = vsub.f32 0.0, %v7322
        %v7387 = vsub.f32 0.0, %v7323
        %v7388 = vsub.f32 0.0, %v7324
        %v7389 = vsub.f32 0.0, %v7325
        %v7390 = vsub.f32 0.0, %v7326
        %v7391 = vsub.f32 0.0, %v7327
        %v7392 = vsub.f32 0.0, %v7328
        %v7393 = vsub.f32 0.0, %v7329
        %v7394 = vsub.f32 0.0, %v7330
        %v7395 = vsub.f32 0.0, %v7331
        %v7396 = vsub.f32 0.0, %v7332
        %v7397 = vsub.f32 0.0, %v7333
        %v7398 = vsub.f32 0.0, %v7334
        %v7399 = vsub.f32 0.0, %v7335
        %v7400 = vsub.f32 0.0, %v7336
        %v7401 = vsub.f32 0.0, %v7337
        %v7402 = vsub.f32 0.0, %v7338
        %v7403 = vsub.f32 0.0, %v7339
        %v7404 = vsub.f32 0.0, %v7340
        %v7405 = vsub.f32 0.0, %v7341
        %v7406 = vsub.f32 0.0, %v7342
        %v7407 = vsub.f32 0.0, %v7343
        %v7408 = vsub.f32 0.0, %v7344
        %v7409 = vsub.f32 0.0, %v7345
        %v7410 = vsub.f32 0.0, %v7346
        %v7411 = vsub.f32 0.0, %v7347
        %v7412 = vsub.f32 0.0, %v7348
        %v7413 = vsub.f32 0.0, %v7349
        %v7414 = vsub.f32 0.0, %v7350
        %v7415 = vsub.f32 0.0, %v7351
        %v7416 = vsub.f32 0.0, %v7352
        %v7417 = vsub.f32 0.0, %v7353
        %v7418 = vsub.f32 0.0, %v7354
        %v7419 = vsub.f32 0.0, %v7355
        %v7420 = vmul.f32 %v7356, 1.442695
        %v7421 = vpow.pop %v7420
        %v7422 = vmul.f32 %v7357, 1.442695
        %v7423 = vpow.pop %v7422
        %v7424 = vmul.f32 %v7358, 1.442695
        %v7425 = vpow.pop %v7424
        %v7426 = vmul.f32 %v7359, 1.442695
        %v7427 = vpow.pop %v7426
        %v7428 = vmul.f32 %v7360, 1.442695
        %v7429 = vpow.pop %v7428
        %v7430 = vmul.f32 %v7361, 1.442695
        %v7431 = vpow.pop %v7430
        %v7432 = vmul.f32 %v7362, 1.442695
        %v7433 = vpow.pop %v7432
        %v7434 = vmul.f32 %v7363, 1.442695
        %v7435 = vpow.pop %v7434
        %v7436 = vmul.f32 %v7364, 1.442695
        %v7437 = vpow.pop %v7436
        %v7438 = vmul.f32 %v7365, 1.442695
        %v7439 = vpow.pop %v7438
        %v7440 = vmul.f32 %v7366, 1.442695
        %v7441 = vpow.pop %v7440
        %v7442 = vmul.f32 %v7367, 1.442695
        %v7443 = vpow.pop %v7442
        %v7444 = vmul.f32 %v7368, 1.442695
        %v7445 = vpow.pop %v7444
        %v7446 = vmul.f32 %v7369, 1.442695
        %v7447 = vpow.pop %v7446
        %v7448 = vmul.f32 %v7370, 1.442695
        %v7449 = vpow.pop %v7448
        %v7450 = vmul.f32 %v7371, 1.442695
        %v7451 = vpow.pop %v7450
        %v7452 = vmul.f32 %v7372, 1.442695
        %v7453 = vpow.pop %v7452
        %v7454 = vmul.f32 %v7373, 1.442695
        %v7455 = vpow.pop %v7454
        %v7456 = vmul.f32 %v7374, 1.442695
        %v7457 = vpow.pop %v7456
        %v7458 = vmul.f32 %v7375, 1.442695
        %v7459 = vpow.pop %v7458
        %v7460 = vmul.f32 %v7376, 1.442695
        %v7461 = vpow.pop %v7460
        %v7462 = vmul.f32 %v7377, 1.442695
        %v7463 = vpow.pop %v7462
        %v7464 = vmul.f32 %v7378, 1.442695
        %v7465 = vpow.pop %v7464
        %v7466 = vmul.f32 %v7379, 1.442695
        %v7467 = vpow.pop %v7466
        %v7468 = vmul.f32 %v7380, 1.442695
        %v7469 = vpow.pop %v7468
        %v7470 = vmul.f32 %v7381, 1.442695
        %v7471 = vpow.pop %v7470
        %v7472 = vmul.f32 %v7382, 1.442695
        %v7473 = vpow.pop %v7472
        %v7474 = vmul.f32 %v7383, 1.442695
        %v7475 = vpow.pop %v7474
        %v7476 = vmul.f32 %v7384, 1.442695
        %v7477 = vpow.pop %v7476
        %v7478 = vmul.f32 %v7385, 1.442695
        %v7479 = vpow.pop %v7478
        %v7480 = vmul.f32 %v7386, 1.442695
        %v7481 = vpow.pop %v7480
        %v7482 = vmul.f32 %v7387, 1.442695
        %v7483 = vpow.pop %v7482
        %v7484 = vmul.f32 %v7388, 1.442695
        %v7485 = vpow.pop %v7484
        %v7486 = vmul.f32 %v7389, 1.442695
        %v7487 = vpow.pop %v7486
        %v7488 = vmul.f32 %v7390, 1.442695
        %v7489 = vpow.pop %v7488
        %v7490 = vmul.f32 %v7391, 1.442695
        %v7491 = vpow.pop %v7490
        %v7492 = vmul.f32 %v7392, 1.442695
        %v7493 = vpow.pop %v7492
        %v7494 = vmul.f32 %v7393, 1.442695
        %v7495 = vpow.pop %v7494
        %v7496 = vmul.f32 %v7394, 1.442695
        %v7497 = vpow.pop %v7496
        %v7498 = vmul.f32 %v7395, 1.442695
        %v7499 = vpow.pop %v7498
        %v7500 = vmul.f32 %v7396, 1.442695
        %v7501 = vpow.pop %v7500
        %v7502 = vmul.f32 %v7397, 1.442695
        %v7503 = vpow.pop %v7502
        %v7504 = vmul.f32 %v7398, 1.442695
        %v7505 = vpow.pop %v7504
        %v7506 = vmul.f32 %v7399, 1.442695
        %v7507 = vpow.pop %v7506
        %v7508 = vmul.f32 %v7400, 1.442695
        %v7509 = vpow.pop %v7508
        %v7510 = vmul.f32 %v7401, 1.442695
        %v7511 = vpow.pop %v7510
        %v7512 = vmul.f32 %v7402, 1.442695
        %v7513 = vpow.pop %v7512
        %v7514 = vmul.f32 %v7403, 1.442695
        %v7515 = vpow.pop %v7514
        %v7516 = vmul.f32 %v7404, 1.442695
        %v7517 = vpow.pop %v7516
        %v7518 = vmul.f32 %v7405, 1.442695
        %v7519 = vpow.pop %v7518
        %v7520 = vmul.f32 %v7406, 1.442695
        %v7521 = vpow.pop %v7520
        %v7522 = vmul.f32 %v7407, 1.442695
        %v7523 = vpow.pop %v7522
        %v7524 = vmul.f32 %v7408, 1.442695
        %v7525 = vpow.pop %v7524
        %v7526 = vmul.f32 %v7409, 1.442695
        %v7527 = vpow.pop %v7526
        %v7528 = vmul.f32 %v7410, 1.442695
        %v7529 = vpow.pop %v7528
        %v7530 = vmul.f32 %v7411, 1.442695
        %v7531 = vpow.pop %v7530
        %v7532 = vmul.f32 %v7412, 1.442695
        %v7533 = vpow.pop %v7532
        %v7534 = vmul.f32 %v7413, 1.442695
        %v7535 = vpow.pop %v7534
        %v7536 = vmul.f32 %v7414, 1.442695
        %v7537 = vpow.pop %v7536
        %v7538 = vmul.f32 %v7415, 1.442695
        %v7539 = vpow.pop %v7538
        %v7540 = vmul.f32 %v7416, 1.442695
        %v7541 = vpow.pop %v7540
        %v7542 = vmul.f32 %v7417, 1.442695
        %v7543 = vpow.pop %v7542
        %v7544 = vmul.f32 %v7418, 1.442695
        %v7545 = vpow.pop %v7544
        %v7546 = vmul.f32 %v7419, 1.442695
        %v7547 = vpow.pop %v7546
        %v7548 = vadd.f32 %v7421, 1.0
        %v7549 = vadd.f32 %v7423, 1.0
        %v7550 = vadd.f32 %v7425, 1.0
        %v7551 = vadd.f32 %v7427, 1.0
        %v7552 = vadd.f32 %v7429, 1.0
        %v7553 = vadd.f32 %v7431, 1.0
        %v7554 = vadd.f32 %v7433, 1.0
        %v7555 = vadd.f32 %v7435, 1.0
        %v7556 = vadd.f32 %v7437, 1.0
        %v7557 = vadd.f32 %v7439, 1.0
        %v7558 = vadd.f32 %v7441, 1.0
        %v7559 = vadd.f32 %v7443, 1.0
        %v7560 = vadd.f32 %v7445, 1.0
        %v7561 = vadd.f32 %v7447, 1.0
        %v7562 = vadd.f32 %v7449, 1.0
        %v7563 = vadd.f32 %v7451, 1.0
        %v7564 = vadd.f32 %v7453, 1.0
        %v7565 = vadd.f32 %v7455, 1.0
        %v7566 = vadd.f32 %v7457, 1.0
        %v7567 = vadd.f32 %v7459, 1.0
        %v7568 = vadd.f32 %v7461, 1.0
        %v7569 = vadd.f32 %v7463, 1.0
        %v7570 = vadd.f32 %v7465, 1.0
        %v7571 = vadd.f32 %v7467, 1.0
        %v7572 = vadd.f32 %v7469, 1.0
        %v7573 = vadd.f32 %v7471, 1.0
        %v7574 = vadd.f32 %v7473, 1.0
        %v7575 = vadd.f32 %v7475, 1.0
        %v7576 = vadd.f32 %v7477, 1.0
        %v7577 = vadd.f32 %v7479, 1.0
        %v7578 = vadd.f32 %v7481, 1.0
        %v7579 = vadd.f32 %v7483, 1.0
        %v7580 = vadd.f32 %v7485, 1.0
        %v7581 = vadd.f32 %v7487, 1.0
        %v7582 = vadd.f32 %v7489, 1.0
        %v7583 = vadd.f32 %v7491, 1.0
        %v7584 = vadd.f32 %v7493, 1.0
        %v7585 = vadd.f32 %v7495, 1.0
        %v7586 = vadd.f32 %v7497, 1.0
        %v7587 = vadd.f32 %v7499, 1.0
        %v7588 = vadd.f32 %v7501, 1.0
        %v7589 = vadd.f32 %v7503, 1.0
        %v7590 = vadd.f32 %v7505, 1.0
        %v7591 = vadd.f32 %v7507, 1.0
        %v7592 = vadd.f32 %v7509, 1.0
        %v7593 = vadd.f32 %v7511, 1.0
        %v7594 = vadd.f32 %v7513, 1.0
        %v7595 = vadd.f32 %v7515, 1.0
        %v7596 = vadd.f32 %v7517, 1.0
        %v7597 = vadd.f32 %v7519, 1.0
        %v7598 = vadd.f32 %v7521, 1.0
        %v7599 = vadd.f32 %v7523, 1.0
        %v7600 = vadd.f32 %v7525, 1.0
        %v7601 = vadd.f32 %v7527, 1.0
        %v7602 = vadd.f32 %v7529, 1.0
        %v7603 = vadd.f32 %v7531, 1.0
        %v7604 = vadd.f32 %v7533, 1.0
        %v7605 = vadd.f32 %v7535, 1.0
        %v7606 = vadd.f32 %v7537, 1.0
        %v7607 = vadd.f32 %v7539, 1.0
        %v7608 = vadd.f32 %v7541, 1.0
        %v7609 = vadd.f32 %v7543, 1.0
        %v7610 = vadd.f32 %v7545, 1.0
        %v7611 = vadd.f32 %v7547, 1.0
        %v7612 = vrcp.pop %v7548
        %v7613 = vrcp.pop %v7549
        %v7614 = vrcp.pop %v7550
        %v7615 = vrcp.pop %v7551
        %v7616 = vrcp.pop %v7552
        %v7617 = vrcp.pop %v7553
        %v7618 = vrcp.pop %v7554
        %v7619 = vrcp.pop %v7555
        %v7620 = vrcp.pop %v7556
        %v7621 = vrcp.pop %v7557
        %v7622 = vrcp.pop %v7558
        %v7623 = vrcp.pop %v7559
        %v7624 = vrcp.pop %v7560
        %v7625 = vrcp.pop %v7561
        %v7626 = vrcp.pop %v7562
        %v7627 = vrcp.pop %v7563
        %v7628 = vrcp.pop %v7564
        %v7629 = vrcp.pop %v7565
        %v7630 = vrcp.pop %v7566
        %v7631 = vrcp.pop %v7567
        %v7632 = vrcp.pop %v7568
        %v7633 = vrcp.pop %v7569
        %v7634 = vrcp.pop %v7570
        %v7635 = vrcp.pop %v7571
        %v7636 = vrcp.pop %v7572
        %v7637 = vrcp.pop %v7573
        %v7638 = vrcp.pop %v7574
        %v7639 = vrcp.pop %v7575
        %v7640 = vrcp.pop %v7576
        %v7641 = vrcp.pop %v7577
        %v7642 = vrcp.pop %v7578
        %v7643 = vrcp.pop %v7579
        %v7644 = vrcp.pop %v7580
        %v7645 = vrcp.pop %v7581
        %v7646 = vrcp.pop %v7582
        %v7647 = vrcp.pop %v7583
        %v7648 = vrcp.pop %v7584
        %v7649 = vrcp.pop %v7585
        %v7650 = vrcp.pop %v7586
        %v7651 = vrcp.pop %v7587
        %v7652 = vrcp.pop %v7588
        %v7653 = vrcp.pop %v7589
        %v7654 = vrcp.pop %v7590
        %v7655 = vrcp.pop %v7591
        %v7656 = vrcp.pop %v7592
        %v7657 = vrcp.pop %v7593
        %v7658 = vrcp.pop %v7594
        %v7659 = vrcp.pop %v7595
        %v7660 = vrcp.pop %v7596
        %v7661 = vrcp.pop %v7597
        %v7662 = vrcp.pop %v7598
        %v7663 = vrcp.pop %v7599
        %v7664 = vrcp.pop %v7600
        %v7665 = vrcp.pop %v7601
        %v7666 = vrcp.pop %v7602
        %v7667 = vrcp.pop %v7603
        %v7668 = vrcp.pop %v7604
        %v7669 = vrcp.pop %v7605
        %v7670 = vrcp.pop %v7606
        %v7671 = vrcp.pop %v7607
        %v7672 = vrcp.pop %v7608
        %v7673 = vrcp.pop %v7609
        %v7674 = vrcp.pop %v7610
        %v7675 = vrcp.pop %v7611
        %vm7676 = vcmp.ge.f32.partialorder %v7133, 0.0
        %vm7677 = vcmp.ge.f32.partialorder %v7135, 0.0
        %vm7678 = vcmp.ge.f32.partialorder %v7138, 0.0
        %vm7679 = vcmp.ge.f32.partialorder %v7140, 0.0
        %vm7680 = vcmp.ge.f32.partialorder %v7143, 0.0
        %vm7681 = vcmp.ge.f32.partialorder %v7145, 0.0
        %vm7682 = vcmp.ge.f32.partialorder %v7148, 0.0
        %vm7683 = vcmp.ge.f32.partialorder %v7150, 0.0
        %vm7684 = vcmp.ge.f32.partialorder %v7153, 0.0
        %vm7685 = vcmp.ge.f32.partialorder %v7155, 0.0
        %vm7686 = vcmp.ge.f32.partialorder %v7158, 0.0
        %vm7687 = vcmp.ge.f32.partialorder %v7160, 0.0
        %vm7688 = vcmp.ge.f32.partialorder %v7163, 0.0
        %vm7689 = vcmp.ge.f32.partialorder %v7165, 0.0
        %vm7690 = vcmp.ge.f32.partialorder %v7168, 0.0
        %vm7691 = vcmp.ge.f32.partialorder %v7170, 0.0
        %vm7692 = vcmp.ge.f32.partialorder %v7173, 0.0
        %vm7693 = vcmp.ge.f32.partialorder %v7175, 0.0
        %vm7694 = vcmp.ge.f32.partialorder %v7178, 0.0
        %vm7695 = vcmp.ge.f32.partialorder %v7180, 0.0
        %vm7696 = vcmp.ge.f32.partialorder %v7183, 0.0
        %vm7697 = vcmp.ge.f32.partialorder %v7185, 0.0
        %vm7698 = vcmp.ge.f32.partialorder %v7188, 0.0
        %vm7699 = vcmp.ge.f32.partialorder %v7190, 0.0
        %vm7700 = vcmp.ge.f32.partialorder %v7193, 0.0
        %vm7701 = vcmp.ge.f32.partialorder %v7195, 0.0
        %vm7702 = vcmp.ge.f32.partialorder %v7198, 0.0
        %vm7703 = vcmp.ge.f32.partialorder %v7200, 0.0
        %vm7704 = vcmp.ge.f32.partialorder %v7203, 0.0
        %vm7705 = vcmp.ge.f32.partialorder %v7205, 0.0
        %vm7706 = vcmp.ge.f32.partialorder %v7208, 0.0
        %vm7707 = vcmp.ge.f32.partialorder %v7210, 0.0
        %vm7708 = vcmp.ge.f32.partialorder %v7213, 0.0
        %vm7709 = vcmp.ge.f32.partialorder %v7215, 0.0
        %vm7710 = vcmp.ge.f32.partialorder %v7218, 0.0
        %vm7711 = vcmp.ge.f32.partialorder %v7220, 0.0
        %vm7712 = vcmp.ge.f32.partialorder %v7223, 0.0
        %vm7713 = vcmp.ge.f32.partialorder %v7225, 0.0
        %vm7714 = vcmp.ge.f32.partialorder %v7228, 0.0
        %vm7715 = vcmp.ge.f32.partialorder %v7230, 0.0
        %vm7716 = vcmp.ge.f32.partialorder %v7233, 0.0
        %vm7717 = vcmp.ge.f32.partialorder %v7235, 0.0
        %vm7718 = vcmp.ge.f32.partialorder %v7238, 0.0
        %vm7719 = vcmp.ge.f32.partialorder %v7240, 0.0
        %vm7720 = vcmp.ge.f32.partialorder %v7243, 0.0
        %vm7721 = vcmp.ge.f32.partialorder %v7245, 0.0
        %vm7722 = vcmp.ge.f32.partialorder %v7248, 0.0
        %vm7723 = vcmp.ge.f32.partialorder %v7250, 0.0
        %vm7724 = vcmp.ge.f32.partialorder %v7253, 0.0
        %vm7725 = vcmp.ge.f32.partialorder %v7255, 0.0
        %vm7726 = vcmp.ge.f32.partialorder %v7258, 0.0
        %vm7727 = vcmp.ge.f32.partialorder %v7260, 0.0
        %vm7728 = vcmp.ge.f32.partialorder %v7263, 0.0
        %vm7729 = vcmp.ge.f32.partialorder %v7265, 0.0
        %vm7730 = vcmp.ge.f32.partialorder %v7268, 0.0
        %vm7731 = vcmp.ge.f32.partialorder %v7270, 0.0
        %vm7732 = vcmp.ge.f32.partialorder %v7273, 0.0
        %vm7733 = vcmp.ge.f32.partialorder %v7275, 0.0
        %vm7734 = vcmp.ge.f32.partialorder %v7278, 0.0
        %vm7735 = vcmp.ge.f32.partialorder %v7280, 0.0
        %vm7736 = vcmp.ge.f32.partialorder %v7283, 0.0
        %vm7737 = vcmp.ge.f32.partialorder %v7285, 0.0
        %vm7738 = vcmp.ge.f32.partialorder %v7288, 0.0
        %vm7739 = vcmp.ge.f32.partialorder %v7290, 0.0
        %v7740 = vmul.f32 %v7421, %v7612
        %v7741 = vmul.f32 %v7423, %v7613
        %v7742 = vmul.f32 %v7425, %v7614
        %v7743 = vmul.f32 %v7427, %v7615
        %v7744 = vmul.f32 %v7429, %v7616
        %v7745 = vmul.f32 %v7431, %v7617
        %v7746 = vmul.f32 %v7433, %v7618
        %v7747 = vmul.f32 %v7435, %v7619
        %v7748 = vmul.f32 %v7437, %v7620
        %v7749 = vmul.f32 %v7439, %v7621
        %v7750 = vmul.f32 %v7441, %v7622
        %v7751 = vmul.f32 %v7443, %v7623
        %v7752 = vmul.f32 %v7445, %v7624
        %v7753 = vmul.f32 %v7447, %v7625
        %v7754 = vmul.f32 %v7449, %v7626
        %v7755 = vmul.f32 %v7451, %v7627
        %v7756 = vmul.f32 %v7453, %v7628
        %v7757 = vmul.f32 %v7455, %v7629
        %v7758 = vmul.f32 %v7457, %v7630
        %v7759 = vmul.f32 %v7459, %v7631
        %v7760 = vmul.f32 %v7461, %v7632
        %v7761 = vmul.f32 %v7463, %v7633
        %v7762 = vmul.f32 %v7465, %v7634
        %v7763 = vmul.f32 %v7467, %v7635
        %v7764 = vmul.f32 %v7469, %v7636
        %v7765 = vmul.f32 %v7471, %v7637
        %v7766 = vmul.f32 %v7473, %v7638
        %v7767 = vmul.f32 %v7475, %v7639
        %v7768 = vmul.f32 %v7477, %v7640
        %v7769 = vmul.f32 %v7479, %v7641
        %v7770 = vmul.f32 %v7481, %v7642
        %v7771 = vmul.f32 %v7483, %v7643
        %v7772 = vmul.f32 %v7485, %v7644
        %v7773 = vmul.f32 %v7487, %v7645
        %v7774 = vmul.f32 %v7489, %v7646
        %v7775 = vmul.f32 %v7491, %v7647
        %v7776 = vmul.f32 %v7493, %v7648
        %v7777 = vmul.f32 %v7495, %v7649
        %v7778 = vmul.f32 %v7497, %v7650
        %v7779 = vmul.f32 %v7499, %v7651
        %v7780 = vmul.f32 %v7501, %v7652
        %v7781 = vmul.f32 %v7503, %v7653
        %v7782 = vmul.f32 %v7505, %v7654
        %v7783 = vmul.f32 %v7507, %v7655
        %v7784 = vmul.f32 %v7509, %v7656
        %v7785 = vmul.f32 %v7511, %v7657
        %v7786 = vmul.f32 %v7513, %v7658
        %v7787 = vmul.f32 %v7515, %v7659
        %v7788 = vmul.f32 %v7517, %v7660
        %v7789 = vmul.f32 %v7519, %v7661
        %v7790 = vmul.f32 %v7521, %v7662
        %v7791 = vmul.f32 %v7523, %v7663
        %v7792 = vmul.f32 %v7525, %v7664
        %v7793 = vmul.f32 %v7527, %v7665
        %v7794 = vmul.f32 %v7529, %v7666
        %v7795 = vmul.f32 %v7531, %v7667
        %v7796 = vmul.f32 %v7533, %v7668
        %v7797 = vmul.f32 %v7535, %v7669
        %v7798 = vmul.f32 %v7537, %v7670
        %v7799 = vmul.f32 %v7539, %v7671
        %v7800 = vmul.f32 %v7541, %v7672
        %v7801 = vmul.f32 %v7543, %v7673
        %v7802 = vmul.f32 %v7545, %v7674
        %v7803 = vmul.f32 %v7547, %v7675
        %v7804 = vsel %vm7676, %v7612, %v7740
        %v7805 = vsel %vm7677, %v7613, %v7741
        %v7806 = vsel %vm7678, %v7614, %v7742
        %v7807 = vsel %vm7679, %v7615, %v7743
        %v7808 = vsel %vm7680, %v7616, %v7744
        %v7809 = vsel %vm7681, %v7617, %v7745
        %v7810 = vsel %vm7682, %v7618, %v7746
        %v7811 = vsel %vm7683, %v7619, %v7747
        %v7812 = vsel %vm7684, %v7620, %v7748
        %v7813 = vsel %vm7685, %v7621, %v7749
        %v7814 = vsel %vm7686, %v7622, %v7750
        %v7815 = vsel %vm7687, %v7623, %v7751
        %v7816 = vsel %vm7688, %v7624, %v7752
        %v7817 = vsel %vm7689, %v7625, %v7753
        %v7818 = vsel %vm7690, %v7626, %v7754
        %v7819 = vsel %vm7691, %v7627, %v7755
        %v7820 = vsel %vm7692, %v7628, %v7756
        %v7821 = vsel %vm7693, %v7629, %v7757
        %v7822 = vsel %vm7694, %v7630, %v7758
        %v7823 = vsel %vm7695, %v7631, %v7759
        %v7824 = vsel %vm7696, %v7632, %v7760
        %v7825 = vsel %vm7697, %v7633, %v7761
        %v7826 = vsel %vm7698, %v7634, %v7762
        %v7827 = vsel %vm7699, %v7635, %v7763
        %v7828 = vsel %vm7700, %v7636, %v7764
        %v7829 = vsel %vm7701, %v7637, %v7765
        %v7830 = vsel %vm7702, %v7638, %v7766
        %v7831 = vsel %vm7703, %v7639, %v7767
        %v7832 = vsel %vm7704, %v7640, %v7768
        %v7833 = vsel %vm7705, %v7641, %v7769
        %v7834 = vsel %vm7706, %v7642, %v7770
        %v7835 = vsel %vm7707, %v7643, %v7771
        %v7836 = vsel %vm7708, %v7644, %v7772
        %v7837 = vsel %vm7709, %v7645, %v7773
        %v7838 = vsel %vm7710, %v7646, %v7774
        %v7839 = vsel %vm7711, %v7647, %v7775
        %v7840 = vsel %vm7712, %v7648, %v7776
        %v7841 = vsel %vm7713, %v7649, %v7777
        %v7842 = vsel %vm7714, %v7650, %v7778
        %v7843 = vsel %vm7715, %v7651, %v7779
        %v7844 = vsel %vm7716, %v7652, %v7780
        %v7845 = vsel %vm7717, %v7653, %v7781
        %v7846 = vsel %vm7718, %v7654, %v7782
        %v7847 = vsel %vm7719, %v7655, %v7783
        %v7848 = vsel %vm7720, %v7656, %v7784
        %v7849 = vsel %vm7721, %v7657, %v7785
        %v7850 = vsel %vm7722, %v7658, %v7786
        %v7851 = vsel %vm7723, %v7659, %v7787
        %v7852 = vsel %vm7724, %v7660, %v7788
        %v7853 = vsel %vm7725, %v7661, %v7789
        %v7854 = vsel %vm7726, %v7662, %v7790
        %v7855 = vsel %vm7727, %v7663, %v7791
        %v7856 = vsel %vm7728, %v7664, %v7792
        %v7857 = vsel %vm7729, %v7665, %v7793
        %v7858 = vsel %vm7730, %v7666, %v7794
        %v7859 = vsel %vm7731, %v7667, %v7795
        %v7860 = vsel %vm7732, %v7668, %v7796
        %v7861 = vsel %vm7733, %v7669, %v7797
        %v7862 = vsel %vm7734, %v7670, %v7798
        %v7863 = vsel %vm7735, %v7671, %v7799
        %v7864 = vsel %vm7736, %v7672, %v7800
        %v7865 = vsel %vm7737, %v7673, %v7801
        %v7866 = vsel %vm7738, %v7674, %v7802
        %v7867 = vsel %vm7739, %v7675, %v7803
        %7868 = vst [vmem:[%s558] sm:$0xff] %v7804
        %7869 = vst [vmem:[%s558 + $0x8] sm:$0xff] %v7805
        %7870 = vst [vmem:[%s558 + $0x10] sm:$0xff] %v7806
        %7871 = vst [vmem:[%s558 + $0x18] sm:$0xff] %v7807
        %7872 = vst [vmem:[%s558 + $0x20] sm:$0xff] %v7808
        %7873 = vst [vmem:[%s558 + $0x28] sm:$0xff] %v7809
        %7874 = vst [vmem:[%s558 + $0x30] sm:$0xff] %v7810
        %7875 = vst [vmem:[%s558 + $0x38] sm:$0xff] %v7811
        %7876 = vst [vmem:[%s558 + $0x40] sm:$0xff] %v7812
        %7877 = vst [vmem:[%s558 + $0x48] sm:$0xff] %v7813
        %7878 = vst [vmem:[%s558 + $0x50] sm:$0xff] %v7814
        %7879 = vst [vmem:[%s558 + $0x58] sm:$0xff] %v7815
        %7880 = vst [vmem:[%s558 + $0x60] sm:$0xff] %v7816
        %7881 = vst [vmem:[%s558 + $0x68] sm:$0xff] %v7817
        %7882 = vst [vmem:[%s558 + $0x70] sm:$0xff] %v7818
        %7883 = vst [vmem:[%s558 + $0x78] sm:$0xff] %v7819
        %7884 = vst [vmem:[%s558 + $0x80] sm:$0xff] %v7820
        %7885 = vst [vmem:[%s558 + $0x88] sm:$0xff] %v7821
        %7886 = vst [vmem:[%s558 + $0x90] sm:$0xff] %v7822
        %7887 = vst [vmem:[%s558 + $0x98] sm:$0xff] %v7823
        %7888 = vst [vmem:[%s558 + $0xa0] sm:$0xff] %v7824
        %7889 = vst [vmem:[%s558 + $0xa8] sm:$0xff] %v7825
        %7890 = vst [vmem:[%s558 + $0xb0] sm:$0xff] %v7826
        %7891 = vst [vmem:[%s558 + $0xb8] sm:$0xff] %v7827
        %7892 = vst [vmem:[%s558 + $0xc0] sm:$0xff] %v7828
        %7893 = vst [vmem:[%s558 + $0xc8] sm:$0xff] %v7829
        %7894 = vst [vmem:[%s558 + $0xd0] sm:$0xff] %v7830
        %7895 = vst [vmem:[%s558 + $0xd8] sm:$0xff] %v7831
        %7896 = vst [vmem:[%s558 + $0xe0] sm:$0xff] %v7832
        %7897 = vst [vmem:[%s558 + $0xe8] sm:$0xff] %v7833
        %7898 = vst [vmem:[%s558 + $0xf0] sm:$0xff] %v7834
        %7899 = vst [vmem:[%s558 + $0xf8] sm:$0xff] %v7835
        %7900 = vst [vmem:[%s558 + $0x100] sm:$0xff] %v7836
        %7901 = vst [vmem:[%s558 + $0x108] sm:$0xff] %v7837
        %7902 = vst [vmem:[%s558 + $0x110] sm:$0xff] %v7838
        %7903 = vst [vmem:[%s558 + $0x118] sm:$0xff] %v7839
        %7904 = vst [vmem:[%s558 + $0x120] sm:$0xff] %v7840
        %7905 = vst [vmem:[%s558 + $0x128] sm:$0xff] %v7841
        %7906 = vst [vmem:[%s558 + $0x130] sm:$0xff] %v7842
        %7907 = vst [vmem:[%s558 + $0x138] sm:$0xff] %v7843
        %7908 = vst [vmem:[%s558 + $0x140] sm:$0xff] %v7844
        %7909 = vst [vmem:[%s558 + $0x148] sm:$0xff] %v7845
        %7910 = vst [vmem:[%s558 + $0x150] sm:$0xff] %v7846
        %7911 = vst [vmem:[%s558 + $0x158] sm:$0xff] %v7847
        %7912 = vst [vmem:[%s558 + $0x160] sm:$0xff] %v7848
        %7913 = vst [vmem:[%s558 + $0x168] sm:$0xff] %v7849
        %7914 = vst [vmem:[%s558 + $0x170] sm:$0xff] %v7850
        %7915 = vst [vmem:[%s558 + $0x178] sm:$0xff] %v7851
        %7916 = vst [vmem:[%s558 + $0x180] sm:$0xff] %v7852
        %7917 = vst [vmem:[%s558 + $0x188] sm:$0xff] %v7853
        %7918 = vst [vmem:[%s558 + $0x190] sm:$0xff] %v7854
        %7919 = vst [vmem:[%s558 + $0x198] sm:$0xff] %v7855
        %7920 = vst [vmem:[%s558 + $0x1a0] sm:$0xff] %v7856
        %7921 = vst [vmem:[%s558 + $0x1a8] sm:$0xff] %v7857
        %7922 = vst [vmem:[%s558 + $0x1b0] sm:$0xff] %v7858
        %7923 = vst [vmem:[%s558 + $0x1b8] sm:$0xff] %v7859
        %7924 = vst [vmem:[%s558 + $0x1c0] sm:$0xff] %v7860
        %7925 = vst [vmem:[%s558 + $0x1c8] sm:$0xff] %v7861
        %7926 = vst [vmem:[%s558 + $0x1d0] sm:$0xff] %v7862
        %7927 = vst [vmem:[%s558 + $0x1d8] sm:$0xff] %v7863
        %7928 = vst [vmem:[%s558 + $0x1e0] sm:$0xff] %v7864
        %7929 = vst [vmem:[%s558 + $0x1e8] sm:$0xff] %v7865
        %7930 = vst [vmem:[%s558 + $0x1f0] sm:$0xff] %v7866
        %7931 = vst [vmem:[%s558 + $0x1f8] sm:$0xff] %v7867
        %s7932 = sand.u32 %s406, 1
        %s7933 = scalar_lea.sflag [#allocation3], %s7932
        %s7934 = sand.u32 %s406, 1
        %s7935 = smul.addr %s7934, 512
        %s7936 = scalar_lea.vmem [#allocation2], %s7935
        // Predicated region
        $region89: #{tpu_custom_call.1} parent=87 // pred_check
          %p7937 = pneg %p416
        $region90: #{tpu_custom_call.1} parent=87 // pred_check_branch
          %7939 = sbr.rel (%p7937) target = $region92
        $region91: #{tpu_custom_call.1} parent=87 // pred_region
          %s7940 = smul.u32 64, %s31
          %7942 = vsyncadd %s7933, 0
          %s7943 = smul.addr %s7940, 8
          %s7944 = scalar_lea.hbm %s17, %s7943
          %s7945 = sshll.u32 %s7936, 4
          %s7946 = int_to_ptr.vmem [resolvable:$true] %s7945
          %s7947 = sshll.u32 %s7944, 4
          %s7948 = int_to_ptr.hbm [resolvable:$true] %s7947
          %7953 = dma.vmem_to_hbm [thread:$0]  %s7946, 8192, %s7948, %s7933, 128, 128, 8
        $region92: #{tpu_custom_call.1} parent=87 // pred_fallthru
          _
      $region88: #{tpu_custom_call.1} parent=5 // pred_fallthru
        _
      %p7954 = scmp.le.s32.totalorder 2, %s26
      // Predicated region
      $region93: #{tpu_custom_call.1} parent=5 // pred_check
        %p7955 = pneg %p7954
      $region94: #{tpu_custom_call.1} parent=5 // pred_check_branch
        %7957 = sbr.rel (%p7955) target = $region96
      $region95: #{tpu_custom_call.1} parent=5 // pred_region
        %s7958 = ssub.s32 %s26, 2
        // Predicated region
        $region97: #{tpu_custom_call.1} parent=95 // pred_check
          %p7959 = pneg %p422
        $region98: #{tpu_custom_call.1} parent=95 // pred_check_branch
          %7961 = sbr.rel (%p7959) target = $region100
        $region99: #{tpu_custom_call.1} parent=95 // pred_region
          %s7962 = sand.u32 %s407, 1
          %s7963 = scalar_lea.sflag [#allocation3], %s7962
          %s7964 = sand.u32 %s407, 1
          %s7965 = smul.addr %s7964, 512
          %s7966 = scalar_lea.vmem [#allocation2], %s7965
          %7968 = dma.done %s7963, 8192
        $region100: #{tpu_custom_call.1} parent=95 // pred_fallthru
          _
      $region96: #{tpu_custom_call.1} parent=5 // pred_fallthru
        _
    $region6: #{tpu_custom_call.1} parent=1 // loop_footer
      %s30 = sadd.s32 1, %s26
    $region7: #{tpu_custom_call.1} parent=1 // loop_footer_branch
      %25 = sbr.rel target = $region3
    $region8: #{tpu_custom_call.1} parent=1 // loop_exit
      _
    %7969 = vsyncpa [#allocation3], 1
    %s7970 = scalar_lea.sflag [#allocation3], 1
    %7971 = vsyncpa %s7970, 1

</llo_original>
